<compile_context>
chip_gen: v6e
topology: v6e:2x2x1
jax: 0.10.0
libtpu: 0.0.40
codegen_flags: <defaults>
</compile_context>

<pallas_src>
import jax
import jax.numpy as jnp
from jax import lax
from jax.experimental import pallas as pl
from jax.experimental.pallas import tpu as pltpu


# ----------------------------------------------------------------------------
# Fused Pallas kernel: the whole FlowRefNet forward for one image.
# ----------------------------------------------------------------------------
def _flow_ref_net_kernel(x_ref, w_ref, b_ref, o_ref, buf_a, buf_b):
    """x_ref : (1, H, W, nf)         bf16  input (channels pre-padded to nf)
       w_ref : (L, 9*nf, nf)         bf16  im2col-flattened weights (L = 10)
       b_ref : (L, 1, nf)            f32   biases
       o_ref : (1, H, W, nf)         f32   output block
       buf_a : (H+2, W+2, nf)        bf16  ping (input / ReLU hidden)
       buf_b : (H+2, W+2, nf)        f32   pong (residual carrier)
    """
    _, H, W, nf = x_ref.shape
    hw = H * W
    n_layers = w_ref.shape[0]
    n_res = (n_layers - 2) // 2

    # --- Zero only the 1-pixel halo rings (SAME-conv padding).  Interiors are
    #     always fully overwritten.  Per-iteration so megacore splitting and
    #     uninitialized scratch on either core are both safe.
    def zero_halo(buf, dt):
        z_row = jnp.zeros((1, W + 2, nf), dt)
        z_col = jnp.zeros((H, 1, nf), dt)
        buf[0:1, :, :] = z_row
        buf[H + 1:H + 2, :, :] = z_row
        buf[1:H + 1, 0:1, :] = z_col
        buf[1:H + 1, W + 1:W + 2, :] = z_col

    zero_halo(buf_a, jnp.bfloat16)
    zero_halo(buf_b, jnp.float32)

    # Input image -> interior of buffer A (already bf16, already nf channels).
    buf_a[1:H + 1, 1:W + 1, :] = x_ref[0]

    def conv3x3(src_bf16, layer, relu, res_ref=None):
        """3x3 SAME conv of a padded bf16 activation, dy-decomposed into 3
        MXU matmuls of K = 3*nf.  Returns (H*W, nf) f32."""
        # Hoist the dx (lane) shifts: one concat -> (H+2, W, 3*nf) bf16.
        x3 = jnp.concatenate(
            [src_bf16[:, 0:W, :], src_bf16[:, 1:W + 1, :],
             src_bf16[:, 2:W + 2, :]], axis=-1)
        # Single reshape; dy taps become contiguous, sublane-aligned row
        # ranges of this slab (offsets 0, W, 2W).
        x3f = x3.reshape((H + 2) * W, 3 * nf)
        w = w_ref[layer]                        # (9*nf, nf) bf16, dy-major rows
        acc = None
        for dy in range(3):                     # 3 MXU passes, K = 3*nf
            part = jnp.dot(x3f[dy * W:dy * W + hw],
                           w[dy * 3 * nf:(dy + 1) * 3 * nf],
                           preferred_element_type=jnp.float32)
            acc = part if acc is None else acc + part
        acc = acc + b_ref[layer]                # (1, nf) f32 broadcast
        if relu:
            acc = jnp.maximum(acc, 0.0)
        if res_ref is not None:                 # fused residual add (f32)
            acc = acc + res_ref[1:H + 1, 1:W + 1, :].reshape(hw, nf)
        return acc

    # fea_conv0: relu(conv(x))  ->  "out" lives in buffer B (f32).
    buf_b[1:H + 1, 1:W + 1, :] = conv3x3(
        buf_a[...], 0, relu=True).reshape(H, W, nf)

    # Residual blocks: h = relu(conv1(out)) in A (bf16); out += conv2(h) in B.
    def block(blk, carry):
        l1 = 1 + 2 * blk
        l2 = 2 + 2 * blk
        h = conv3x3(buf_b[...].astype(jnp.bfloat16), l1, relu=True)
        buf_a[1:H + 1, 1:W + 1, :] = h.reshape(H, W, nf).astype(jnp.bfloat16)
        out = conv3x3(buf_a[...], l2, relu=False, res_ref=buf_b)
        buf_b[1:H + 1, 1:W + 1, :] = out.reshape(H, W, nf)
        return carry

    lax.fori_loop(0, n_res, block, None)

    # fea_conv_last: the only HBM store of the whole network.
    out = conv3x3(buf_b[...].astype(jnp.bfloat16), n_layers - 1, relu=False)
    o_ref[0] = out.reshape(H, W, nf).astype(o_ref.dtype)


# ----------------------------------------------------------------------------
# Parameter handling.
# ----------------------------------------------------------------------------
def init_params(key, cin, nf=64, n_res_layers=4):
    """Deterministic init; weights in HWIO (3, 3, Cin, Cout), PyTorch-style
    uniform(+-1/sqrt(fan_in))."""
    def conv_init(k, ci, co):
        kw, kb = jax.random.split(k)
        scale = 1.0 / jnp.sqrt(ci * 9.0)
        w = jax.random.uniform(kw, (3, 3, ci, co), jnp.float32, -scale, scale)
        b = jax.random.uniform(kb, (co,), jnp.float32, -scale, scale)
        return w, b

    keys = jax.random.split(key, 2 + 2 * n_res_layers)
    params = {"fea_conv0": conv_init(keys[0], cin, nf), "res": []}
    for l in range(n_res_layers):
        c1 = conv_init(keys[1 + 2 * l], nf, nf)
        c2 = conv_init(keys[2 + 2 * l], nf, nf)
        params["res"].append((c1, c2))
    params["fea_conv_last"] = conv_init(keys[-1], nf, nf)
    return params


def pack_params(params, nf=64):
    """Stack the 10 convs for the fused kernel.

    Weights -> (L, 9*nf, nf) bf16 in im2col order (HWIO flattened row-major,
    i.e. dy-major, then dx, then ci; fea_conv0 zero-padded from Cin to nf
    input channels).  Biases -> (L, 1, nf) f32.
    """
    w0, b0 = params["fea_conv0"]
    cin = w0.shape[2]
    w0p = jnp.pad(w0, ((0, 0), (0, 0), (0, nf - cin), (0, 0)))
    ws, bs = [w0p], [b0]
    for (w1, b1), (w2, b2) in params["res"]:
        ws += [w1, w2]
        bs += [b1, b2]
    wl, bl = params["fea_conv_last"]
    ws.append(wl)
    bs.append(bl)
    wstack = jnp.stack([w.reshape(9 * nf, nf) for w in ws]).astype(jnp.bfloat16)
    bstack = jnp.stack(bs).astype(jnp.float32).reshape(len(bs), 1, nf)
    return wstack, bstack


# ----------------------------------------------------------------------------
# Wrapper: one pallas_call for the whole network (NCHW in, NCHW out).
# ----------------------------------------------------------------------------
@jax.jit
def flow_ref_net_forward(wstack, bstack, x_nchw):
    """Fused Pallas FlowRefNet forward.  Input/output in PyTorch NCHW."""
    B, cin, H, W = x_nchw.shape
    n_layers, _, nf = wstack.shape

    # NCHW -> NHWC, zero-pad channels to nf (matches the zero-padded layer-0
    # weight) and pre-cast to bf16 (the MXU operand dtype) on the host side.
    x = jnp.transpose(x_nchw, (0, 2, 3, 1))
    x = jnp.pad(x, ((0, 0), (0, 0), (0, 0), (0, nf - cin))).astype(jnp.bfloat16)

    out_nhwc = pl.pallas_call(
        _flow_ref_net_kernel,
        out_shape=jax.ShapeDtypeStruct((B, H, W, nf), jnp.float32),
        grid=(B,),
        in_specs=[
            pl.BlockSpec((1, H, W, nf), lambda i: (i, 0, 0, 0)),
            pl.BlockSpec((n_layers, 9 * nf, nf), lambda i: (0, 0, 0)),
            pl.BlockSpec((n_layers, 1, nf), lambda i: (0, 0, 0)),
        ],
        out_specs=pl.BlockSpec((1, H, W, nf), lambda i: (i, 0, 0, 0)),
        scratch_shapes=[
            pltpu.VMEM((H + 2, W + 2, nf), jnp.bfloat16),   # ping: hidden
            pltpu.VMEM((H + 2, W + 2, nf), jnp.float32),    # pong: residual
        ],
        compiler_params=pltpu.CompilerParams(
            dimension_semantics=("parallel",),
            vmem_limit_bytes=32 * 1024 * 1024),
    )(x, wstack, bstack)

    return jnp.transpose(out_nhwc, (0, 3, 1, 2))


# ----------------------------------------------------------------------------
# Pure-JAX f32 reference (correctness check only).
# ----------------------------------------------------------------------------
def _conv_ref(x, w, b):
    y = lax.conv_general_dilated(
        x, w, window_strides=(1, 1), padding="SAME",
        dimension_numbers=("NCHW", "HWIO", "NCHW"))
    return y + b.reshape(1, -1, 1, 1)


def flow_ref_net_reference(params, x_nchw):
    w0, b0 = params["fea_conv0"]
    out = jax.nn.relu(_conv_ref(x_nchw, w0, b0))
    for (w1, b1), (w2, b2) in params["res"]:
        h = jax.nn.relu(_conv_ref(out, w1, b1))
        out = out + _conv_ref(h, w2, b2)
    wl, bl = params["fea_conv_last"]
    return _conv_ref(out, wl, bl)


# ----------------------------------------------------------------------------
if __name__ == "__main__":
    # opt.num_source = 2  =>  cin = (2-1)*2 + 3 + (2-1)*3 = 8
    num_source = 2
    cin = (num_source - 1) * 2 + 3 + (num_source - 1) * 3
    B, H, W, nf = 2, 16, 16, 64   # B=2 keeps both v7x TensorCores busy

    key = jax.random.PRNGKey(0)
    k_x, k_p = jax.random.split(key)

    x_nchw = jax.random.normal(k_x, (B, cin, H, W), dtype=jnp.float32)

    params = init_params(k_p, cin, nf=nf, n_res_layers=4)
    wstack, bstack = pack_params(params, nf=nf)

    out = flow_ref_net_forward(wstack, bstack, x_nchw)
    out = jax.block_until_ready(out)
    assert out.shape == (B, nf, H, W), out.shape

    # f32 reference.  Tolerance loosened to cover bf16 MXU operands / bf16
    # hidden buffer; accumulation, bias and the residual carrier remain f32.
    ref = jax.block_until_ready(flow_ref_net_reference(params, x_nchw))
    max_err = float(jnp.max(jnp.abs(out - ref)))
    assert jnp.allclose(out, ref, rtol=2e-2, atol=2e-2), max_err

    print("KERNEL_OK")
</pallas_src>

<mosaic_0001>
module attributes {stable_mosaic.version = 11 : i64} {
  func.func @_flow_ref_net_kernel(%arg0: i32, %arg1: memref<1x16x16x64xbf16, #tpu.memory_space<vmem>>, %arg2: memref<10x576x64xbf16, #tpu.memory_space<vmem>>, %arg3: memref<10x1x64xf32, #tpu.memory_space<vmem>>, %arg4: memref<1x16x16x64xf32, #tpu.memory_space<vmem>>, %arg5: memref<18x18x64xbf16, #tpu.memory_space<vmem>>, %arg6: memref<18x18x64xf32, #tpu.memory_space<vmem>>) attributes {dimension_semantics = [#tpu.dimension_semantics<parallel>], iteration_bounds = array<i64: 2>, scalar_prefetch = 0 : i64, scratch_operands = 2 : i64, tpu.core_type = #tpu.core_type<tc>, window_params = [{transform_indices = @transform_0, window_bounds = array<i64: 1, 16, 16, 64>}, {pipeline_mode = #tpu.pipeline_mode<synchronous>, transform_indices = @transform_1, window_bounds = array<i64: 10, 576, 64>}, {pipeline_mode = #tpu.pipeline_mode<synchronous>, transform_indices = @transform_2, window_bounds = array<i64: 10, 1, 64>}, {transform_indices = @transform_3, window_bounds = array<i64: 1, 16, 16, 64>}]} {
    %cst = arith.constant 0.000000e+00 : bf16
    %0 = vector.broadcast %cst : bf16 to vector<1x18x64xbf16>
    %cst_0 = arith.constant 0.000000e+00 : bf16
    %1 = vector.broadcast %cst_0 : bf16 to vector<16x1x64xbf16>
    %c0 = arith.constant 0 : index
    %c0_1 = arith.constant 0 : index
    %c0_2 = arith.constant 0 : index
    %2 = vector.load %arg5[%c0, %c0_1, %c0_2] : memref<18x18x64xbf16, #tpu.memory_space<vmem>>, vector<1x18x64xbf16>
    tpu.vector_store %arg5[%c0, %c0_1, %c0_2], %0 {strides = array<i32>} : memref<18x18x64xbf16, #tpu.memory_space<vmem>>, vector<1x18x64xbf16>,
    %c17 = arith.constant 17 : index
    %c0_3 = arith.constant 0 : index
    %c0_4 = arith.constant 0 : index
    %3 = vector.load %arg5[%c17, %c0_3, %c0_4] : memref<18x18x64xbf16, #tpu.memory_space<vmem>>, vector<1x18x64xbf16>
    tpu.vector_store %arg5[%c17, %c0_3, %c0_4], %0 {strides = array<i32>} : memref<18x18x64xbf16, #tpu.memory_space<vmem>>, vector<1x18x64xbf16>,
    %c1 = arith.constant 1 : index
    %c0_5 = arith.constant 0 : index
    %c0_6 = arith.constant 0 : index
    %4 = vector.load %arg5[%c1, %c0_5, %c0_6] : memref<18x18x64xbf16, #tpu.memory_space<vmem>>, vector<16x1x64xbf16>
    tpu.vector_store %arg5[%c1, %c0_5, %c0_6], %1 {strides = array<i32>} : memref<18x18x64xbf16, #tpu.memory_space<vmem>>, vector<16x1x64xbf16>,
    %c1_7 = arith.constant 1 : index
    %c17_8 = arith.constant 17 : index
    %c0_9 = arith.constant 0 : index
    %5 = vector.load %arg5[%c1_7, %c17_8, %c0_9] : memref<18x18x64xbf16, #tpu.memory_space<vmem>>, vector<16x1x64xbf16>
    tpu.vector_store %arg5[%c1_7, %c17_8, %c0_9], %1 {strides = array<i32>} : memref<18x18x64xbf16, #tpu.memory_space<vmem>>, vector<16x1x64xbf16>,
    %cst_10 = arith.constant 0.000000e+00 : f32
    %6 = vector.broadcast %cst_10 : f32 to vector<1x18x64xf32>
    %cst_11 = arith.constant 0.000000e+00 : f32
    %7 = vector.broadcast %cst_11 : f32 to vector<16x1x64xf32>
    %c0_12 = arith.constant 0 : index
    %c0_13 = arith.constant 0 : index
    %c0_14 = arith.constant 0 : index
    %8 = vector.load %arg6[%c0_12, %c0_13, %c0_14] : memref<18x18x64xf32, #tpu.memory_space<vmem>>, vector<1x18x64xf32>
    tpu.vector_store %arg6[%c0_12, %c0_13, %c0_14], %6 {strides = array<i32>} : memref<18x18x64xf32, #tpu.memory_space<vmem>>, vector<1x18x64xf32>,
    %c17_15 = arith.constant 17 : index
    %c0_16 = arith.constant 0 : index
    %c0_17 = arith.constant 0 : index
    %9 = vector.load %arg6[%c17_15, %c0_16, %c0_17] : memref<18x18x64xf32, #tpu.memory_space<vmem>>, vector<1x18x64xf32>
    tpu.vector_store %arg6[%c17_15, %c0_16, %c0_17], %6 {strides = array<i32>} : memref<18x18x64xf32, #tpu.memory_space<vmem>>, vector<1x18x64xf32>,
    %c1_18 = arith.constant 1 : index
    %c0_19 = arith.constant 0 : index
    %c0_20 = arith.constant 0 : index
    %10 = vector.load %arg6[%c1_18, %c0_19, %c0_20] : memref<18x18x64xf32, #tpu.memory_space<vmem>>, vector<16x1x64xf32>
    tpu.vector_store %arg6[%c1_18, %c0_19, %c0_20], %7 {strides = array<i32>} : memref<18x18x64xf32, #tpu.memory_space<vmem>>, vector<16x1x64xf32>,
    %c1_21 = arith.constant 1 : index
    %c17_22 = arith.constant 17 : index
    %c0_23 = arith.constant 0 : index
    %11 = vector.load %arg6[%c1_21, %c17_22, %c0_23] : memref<18x18x64xf32, #tpu.memory_space<vmem>>, vector<16x1x64xf32>
    tpu.vector_store %arg6[%c1_21, %c17_22, %c0_23], %7 {strides = array<i32>} : memref<18x18x64xf32, #tpu.memory_space<vmem>>, vector<16x1x64xf32>,
    %c0_24 = arith.constant 0 : index
    %c0_25 = arith.constant 0 : index
    %c0_26 = arith.constant 0 : index
    %c0_27 = arith.constant 0 : index
    %12 = vector.load %arg1[%c0_24, %c0_25, %c0_26, %c0_27] : memref<1x16x16x64xbf16, #tpu.memory_space<vmem>>, vector<1x16x16x64xbf16>
    %13 = vector.shape_cast %12 : vector<1x16x16x64xbf16> to vector<16x16x64xbf16>
    %c1_28 = arith.constant 1 : index
    %c1_29 = arith.constant 1 : index
    %c0_30 = arith.constant 0 : index
    %14 = vector.load %arg5[%c1_28, %c1_29, %c0_30] : memref<18x18x64xbf16, #tpu.memory_space<vmem>>, vector<16x16x64xbf16>
    tpu.vector_store %arg5[%c1_28, %c1_29, %c0_30], %13 {strides = array<i32>} : memref<18x18x64xbf16, #tpu.memory_space<vmem>>, vector<16x16x64xbf16>,
    %c0_31 = arith.constant 0 : index
    %c0_32 = arith.constant 0 : index
    %c0_33 = arith.constant 0 : index
    %15 = vector.load %arg5[%c0_31, %c0_32, %c0_33] : memref<18x18x64xbf16, #tpu.memory_space<vmem>>, vector<18x18x64xbf16>
    %16 = vector.extract_strided_slice %15 {offsets = [0, 0, 0], sizes = [18, 16, 64], strides = [1, 1, 1]} : vector<18x18x64xbf16> to vector<18x16x64xbf16>
    %17 = vector.extract_strided_slice %15 {offsets = [0, 1, 0], sizes = [18, 16, 64], strides = [1, 1, 1]} : vector<18x18x64xbf16> to vector<18x16x64xbf16>
    %18 = vector.extract_strided_slice %15 {offsets = [0, 2, 0], sizes = [18, 16, 64], strides = [1, 1, 1]} : vector<18x18x64xbf16> to vector<18x16x64xbf16>
    %19 = tpu.concatenate %16, %17, %18 in 2 : vector<18x16x64xbf16>, vector<18x16x64xbf16>, vector<18x16x64xbf16> -> vector<18x16x192xbf16>
    %20 = vector.shape_cast %19 : vector<18x16x192xbf16> to vector<288x192xbf16>
    %c0_34 = arith.constant 0 : index
    %c0_35 = arith.constant 0 : index
    %c0_36 = arith.constant 0 : index
    %21 = vector.load %arg2[%c0_34, %c0_35, %c0_36] : memref<10x576x64xbf16, #tpu.memory_space<vmem>>, vector<1x576x64xbf16>
    %22 = vector.shape_cast %21 : vector<1x576x64xbf16> to vector<576x64xbf16>
    %23 = vector.extract_strided_slice %20 {offsets = [0, 0], sizes = [256, 192], strides = [1, 1]} : vector<288x192xbf16> to vector<256x192xbf16>
    %24 = vector.extract_strided_slice %22 {offsets = [0, 0], sizes = [192, 64], strides = [1, 1]} : vector<576x64xbf16> to vector<192x64xbf16>
    %cst_37 = arith.constant dense<0.000000e+00> : vector<256x64xf32>
    %25 = tpu.matmul %23, %24, %cst_37 {dimension_numbers = #tpu.dot_dimension_numbers<[1], [0], [0], [1], [0, 0, 1, 1], [], []>} : vector<256x192xbf16>, vector<192x64xbf16>, vector<256x64xf32> -> vector<256x64xf32>
    %26 = vector.extract_strided_slice %20 {offsets = [16, 0], sizes = [256, 192], strides = [1, 1]} : vector<288x192xbf16> to vector<256x192xbf16>
    %27 = vector.extract_strided_slice %22 {offsets = [192, 0], sizes = [192, 64], strides = [1, 1]} : vector<576x64xbf16> to vector<192x64xbf16>
    %cst_38 = arith.constant dense<0.000000e+00> : vector<256x64xf32>
    %28 = tpu.matmul %26, %27, %cst_38 {dimension_numbers = #tpu.dot_dimension_numbers<[1], [0], [0], [1], [0, 0, 1, 1], [], []>} : vector<256x192xbf16>, vector<192x64xbf16>, vector<256x64xf32> -> vector<256x64xf32>
    %29 = arith.addf %25, %28 : vector<256x64xf32>
    %30 = vector.extract_strided_slice %20 {offsets = [32, 0], sizes = [256, 192], strides = [1, 1]} : vector<288x192xbf16> to vector<256x192xbf16>
    %31 = vector.extract_strided_slice %22 {offsets = [384, 0], sizes = [192, 64], strides = [1, 1]} : vector<576x64xbf16> to vector<192x64xbf16>
    %cst_39 = arith.constant dense<0.000000e+00> : vector<256x64xf32>
    %32 = tpu.matmul %30, %31, %cst_39 {dimension_numbers = #tpu.dot_dimension_numbers<[1], [0], [0], [1], [0, 0, 1, 1], [], []>} : vector<256x192xbf16>, vector<192x64xbf16>, vector<256x64xf32> -> vector<256x64xf32>
    %33 = arith.addf %29, %32 : vector<256x64xf32>
    %c0_40 = arith.constant 0 : index
    %c0_41 = arith.constant 0 : index
    %c0_42 = arith.constant 0 : index
    %34 = vector.load %arg3[%c0_40, %c0_41, %c0_42] : memref<10x1x64xf32, #tpu.memory_space<vmem>>, vector<1x1x64xf32>
    %35 = vector.shape_cast %34 : vector<1x1x64xf32> to vector<1x64xf32>
    %36 = vector.broadcast %35 : vector<1x64xf32> to vector<256x64xf32>
    %37 = arith.addf %33, %36 : vector<256x64xf32>
    %cst_43 = arith.constant 0.000000e+00 : f32
    %38 = vector.broadcast %cst_43 : f32 to vector<256x64xf32>
    %39 = arith.maximumf %37, %38 : vector<256x64xf32>
    %40 = vector.shape_cast %39 : vector<256x64xf32> to vector<16x16x64xf32>
    %c1_44 = arith.constant 1 : index
    %c1_45 = arith.constant 1 : index
    %c0_46 = arith.constant 0 : index
    %41 = vector.load %arg6[%c1_44, %c1_45, %c0_46] : memref<18x18x64xf32, #tpu.memory_space<vmem>>, vector<16x16x64xf32>
    tpu.vector_store %arg6[%c1_44, %c1_45, %c0_46], %40 {strides = array<i32>} : memref<18x18x64xf32, #tpu.memory_space<vmem>>, vector<16x16x64xf32>,
    %c0_i32 = arith.constant 0 : i32
    %c4_i32 = arith.constant 4 : i32
    %42 = arith.addi %c0_i32, %c4_i32 : i32
    %c1_i32 = arith.constant 1 : i32
    scf.for %arg7 = %c0_i32 to %42 step %c1_i32  : i32 {
      %c2_i32 = arith.constant 2 : i32
      %71 = arith.muli %c2_i32, %arg7 : i32
      %c1_i32_63 = arith.constant 1 : i32
      %72 = arith.addi %c1_i32_63, %71 : i32
      %c2_i32_64 = arith.constant 2 : i32
      %73 = arith.muli %c2_i32_64, %arg7 : i32
      %c2_i32_65 = arith.constant 2 : i32
      %74 = arith.addi %c2_i32_65, %73 : i32
      %c0_66 = arith.constant 0 : index
      %c0_67 = arith.constant 0 : index
      %c0_68 = arith.constant 0 : index
      %75 = vector.load %arg6[%c0_66, %c0_67, %c0_68] : memref<18x18x64xf32, #tpu.memory_space<vmem>>, vector<18x18x64xf32>
      %76 = arith.truncf %75 : vector<18x18x64xf32> to vector<18x18x64xbf16>
      %77 = vector.extract_strided_slice %76 {offsets = [0, 0, 0], sizes = [18, 16, 64], strides = [1, 1, 1]} : vector<18x18x64xbf16> to vector<18x16x64xbf16>
      %78 = vector.extract_strided_slice %76 {offsets = [0, 1, 0], sizes = [18, 16, 64], strides = [1, 1, 1]} : vector<18x18x64xbf16> to vector<18x16x64xbf16>
      %79 = vector.extract_strided_slice %76 {offsets = [0, 2, 0], sizes = [18, 16, 64], strides = [1, 1, 1]} : vector<18x18x64xbf16> to vector<18x16x64xbf16>
      %80 = tpu.concatenate %77, %78, %79 in 2 : vector<18x16x64xbf16>, vector<18x16x64xbf16>, vector<18x16x64xbf16> -> vector<18x16x192xbf16>
      %81 = vector.shape_cast %80 : vector<18x16x192xbf16> to vector<288x192xbf16>
      %82 = arith.index_cast %72 : i32 to index
      %c0_69 = arith.constant 0 : index
      %c0_70 = arith.constant 0 : index
      %83 = vector.load %arg2[%82, %c0_69, %c0_70] : memref<10x576x64xbf16, #tpu.memory_space<vmem>>, vector<1x576x64xbf16>
      %84 = vector.shape_cast %83 : vector<1x576x64xbf16> to vector<576x64xbf16>
      %85 = vector.extract_strided_slice %81 {offsets = [0, 0], sizes = [256, 192], strides = [1, 1]} : vector<288x192xbf16> to vector<256x192xbf16>
      %86 = vector.extract_strided_slice %84 {offsets = [0, 0], sizes = [192, 64], strides = [1, 1]} : vector<576x64xbf16> to vector<192x64xbf16>
      %cst_71 = arith.constant dense<0.000000e+00> : vector<256x64xf32>
      %87 = tpu.matmul %85, %86, %cst_71 {dimension_numbers = #tpu.dot_dimension_numbers<[1], [0], [0], [1], [0, 0, 1, 1], [], []>} : vector<256x192xbf16>, vector<192x64xbf16>, vector<256x64xf32> -> vector<256x64xf32>
      %88 = vector.extract_strided_slice %81 {offsets = [16, 0], sizes = [256, 192], strides = [1, 1]} : vector<288x192xbf16> to vector<256x192xbf16>
      %89 = vector.extract_strided_slice %84 {offsets = [192, 0], sizes = [192, 64], strides = [1, 1]} : vector<576x64xbf16> to vector<192x64xbf16>
      %cst_72 = arith.constant dense<0.000000e+00> : vector<256x64xf32>
      %90 = tpu.matmul %88, %89, %cst_72 {dimension_numbers = #tpu.dot_dimension_numbers<[1], [0], [0], [1], [0, 0, 1, 1], [], []>} : vector<256x192xbf16>, vector<192x64xbf16>, vector<256x64xf32> -> vector<256x64xf32>
      %91 = arith.addf %87, %90 : vector<256x64xf32>
      %92 = vector.extract_strided_slice %81 {offsets = [32, 0], sizes = [256, 192], strides = [1, 1]} : vector<288x192xbf16> to vector<256x192xbf16>
      %93 = vector.extract_strided_slice %84 {offsets = [384, 0], sizes = [192, 64], strides = [1, 1]} : vector<576x64xbf16> to vector<192x64xbf16>
      %cst_73 = arith.constant dense<0.000000e+00> : vector<256x64xf32>
      %94 = tpu.matmul %92, %93, %cst_73 {dimension_numbers = #tpu.dot_dimension_numbers<[1], [0], [0], [1], [0, 0, 1, 1], [], []>} : vector<256x192xbf16>, vector<192x64xbf16>, vector<256x64xf32> -> vector<256x64xf32>
      %95 = arith.addf %91, %94 : vector<256x64xf32>
      %96 = arith.index_cast %72 : i32 to index
      %c0_74 = arith.constant 0 : index
      %c0_75 = arith.constant 0 : index
      %97 = vector.load %arg3[%96, %c0_74, %c0_75] : memref<10x1x64xf32, #tpu.memory_space<vmem>>, vector<1x1x64xf32>
      %98 = vector.shape_cast %97 : vector<1x1x64xf32> to vector<1x64xf32>
      %99 = vector.broadcast %98 : vector<1x64xf32> to vector<256x64xf32>
      %100 = arith.addf %95, %99 : vector<256x64xf32>
      %cst_76 = arith.constant 0.000000e+00 : f32
      %101 = vector.broadcast %cst_76 : f32 to vector<256x64xf32>
      %102 = arith.maximumf %100, %101 : vector<256x64xf32>
      %103 = vector.shape_cast %102 : vector<256x64xf32> to vector<16x16x64xf32>
      %104 = arith.truncf %103 : vector<16x16x64xf32> to vector<16x16x64xbf16>
      %c1_77 = arith.constant 1 : index
      %c1_78 = arith.constant 1 : index
      %c0_79 = arith.constant 0 : index
      %105 = vector.load %arg5[%c1_77, %c1_78, %c0_79] : memref<18x18x64xbf16, #tpu.memory_space<vmem>>, vector<16x16x64xbf16>
      tpu.vector_store %arg5[%c1_77, %c1_78, %c0_79], %104 {strides = array<i32>} : memref<18x18x64xbf16, #tpu.memory_space<vmem>>, vector<16x16x64xbf16>,
      %c0_80 = arith.constant 0 : index
      %c0_81 = arith.constant 0 : index
      %c0_82 = arith.constant 0 : index
      %106 = vector.load %arg5[%c0_80, %c0_81, %c0_82] : memref<18x18x64xbf16, #tpu.memory_space<vmem>>, vector<18x18x64xbf16>
      %107 = vector.extract_strided_slice %106 {offsets = [0, 0, 0], sizes = [18, 16, 64], strides = [1, 1, 1]} : vector<18x18x64xbf16> to vector<18x16x64xbf16>
      %108 = vector.extract_strided_slice %106 {offsets = [0, 1, 0], sizes = [18, 16, 64], strides = [1, 1, 1]} : vector<18x18x64xbf16> to vector<18x16x64xbf16>
      %109 = vector.extract_strided_slice %106 {offsets = [0, 2, 0], sizes = [18, 16, 64], strides = [1, 1, 1]} : vector<18x18x64xbf16> to vector<18x16x64xbf16>
      %110 = tpu.concatenate %107, %108, %109 in 2 : vector<18x16x64xbf16>, vector<18x16x64xbf16>, vector<18x16x64xbf16> -> vector<18x16x192xbf16>
      %111 = vector.shape_cast %110 : vector<18x16x192xbf16> to vector<288x192xbf16>
      %112 = arith.index_cast %74 : i32 to index
      %c0_83 = arith.constant 0 : index
      %c0_84 = arith.constant 0 : index
      %113 = vector.load %arg2[%112, %c0_83, %c0_84] : memref<10x576x64xbf16, #tpu.memory_space<vmem>>, vector<1x576x64xbf16>
      %114 = vector.shape_cast %113 : vector<1x576x64xbf16> to vector<576x64xbf16>
      %115 = vector.extract_strided_slice %111 {offsets = [0, 0], sizes = [256, 192], strides = [1, 1]} : vector<288x192xbf16> to vector<256x192xbf16>
      %116 = vector.extract_strided_slice %114 {offsets = [0, 0], sizes = [192, 64], strides = [1, 1]} : vector<576x64xbf16> to vector<192x64xbf16>
      %cst_85 = arith.constant dense<0.000000e+00> : vector<256x64xf32>
      %117 = tpu.matmul %115, %116, %cst_85 {dimension_numbers = #tpu.dot_dimension_numbers<[1], [0], [0], [1], [0, 0, 1, 1], [], []>} : vector<256x192xbf16>, vector<192x64xbf16>, vector<256x64xf32> -> vector<256x64xf32>
      %118 = vector.extract_strided_slice %111 {offsets = [16, 0], sizes = [256, 192], strides = [1, 1]} : vector<288x192xbf16> to vector<256x192xbf16>
      %119 = vector.extract_strided_slice %114 {offsets = [192, 0], sizes = [192, 64], strides = [1, 1]} : vector<576x64xbf16> to vector<192x64xbf16>
      %cst_86 = arith.constant dense<0.000000e+00> : vector<256x64xf32>
      %120 = tpu.matmul %118, %119, %cst_86 {dimension_numbers = #tpu.dot_dimension_numbers<[1], [0], [0], [1], [0, 0, 1, 1], [], []>} : vector<256x192xbf16>, vector<192x64xbf16>, vector<256x64xf32> -> vector<256x64xf32>
      %121 = arith.addf %117, %120 : vector<256x64xf32>
      %122 = vector.extract_strided_slice %111 {offsets = [32, 0], sizes = [256, 192], strides = [1, 1]} : vector<288x192xbf16> to vector<256x192xbf16>
      %123 = vector.extract_strided_slice %114 {offsets = [384, 0], sizes = [192, 64], strides = [1, 1]} : vector<576x64xbf16> to vector<192x64xbf16>
      %cst_87 = arith.constant dense<0.000000e+00> : vector<256x64xf32>
      %124 = tpu.matmul %122, %123, %cst_87 {dimension_numbers = #tpu.dot_dimension_numbers<[1], [0], [0], [1], [0, 0, 1, 1], [], []>} : vector<256x192xbf16>, vector<192x64xbf16>, vector<256x64xf32> -> vector<256x64xf32>
      %125 = arith.addf %121, %124 : vector<256x64xf32>
      %126 = arith.index_cast %74 : i32 to index
      %c0_88 = arith.constant 0 : index
      %c0_89 = arith.constant 0 : index
      %127 = vector.load %arg3[%126, %c0_88, %c0_89] : memref<10x1x64xf32, #tpu.memory_space<vmem>>, vector<1x1x64xf32>
      %128 = vector.shape_cast %127 : vector<1x1x64xf32> to vector<1x64xf32>
      %129 = vector.broadcast %128 : vector<1x64xf32> to vector<256x64xf32>
      %130 = arith.addf %125, %129 : vector<256x64xf32>
      %c1_90 = arith.constant 1 : index
      %c1_91 = arith.constant 1 : index
      %c0_92 = arith.constant 0 : index
      %131 = vector.load %arg6[%c1_90, %c1_91, %c0_92] : memref<18x18x64xf32, #tpu.memory_space<vmem>>, vector<16x16x64xf32>
      %132 = vector.shape_cast %131 : vector<16x16x64xf32> to vector<256x64xf32>
      %133 = arith.addf %130, %132 : vector<256x64xf32>
      %134 = vector.shape_cast %133 : vector<256x64xf32> to vector<16x16x64xf32>
      %c1_93 = arith.constant 1 : index
      %c1_94 = arith.constant 1 : index
      %c0_95 = arith.constant 0 : index
      %135 = vector.load %arg6[%c1_93, %c1_94, %c0_95] : memref<18x18x64xf32, #tpu.memory_space<vmem>>, vector<16x16x64xf32>
      tpu.vector_store %arg6[%c1_93, %c1_94, %c0_95], %134 {strides = array<i32>} : memref<18x18x64xf32, #tpu.memory_space<vmem>>, vector<16x16x64xf32>,
    }
    %c4_i32_47 = arith.constant 4 : i32
    %c0_48 = arith.constant 0 : index
    %c0_49 = arith.constant 0 : index
    %c0_50 = arith.constant 0 : index
    %43 = vector.load %arg6[%c0_48, %c0_49, %c0_50] : memref<18x18x64xf32, #tpu.memory_space<vmem>>, vector<18x18x64xf32>
    %44 = arith.truncf %43 : vector<18x18x64xf32> to vector<18x18x64xbf16>
    %45 = vector.extract_strided_slice %44 {offsets = [0, 0, 0], sizes = [18, 16, 64], strides = [1, 1, 1]} : vector<18x18x64xbf16> to vector<18x16x64xbf16>
    %46 = vector.extract_strided_slice %44 {offsets = [0, 1, 0], sizes = [18, 16, 64], strides = [1, 1, 1]} : vector<18x18x64xbf16> to vector<18x16x64xbf16>
    %47 = vector.extract_strided_slice %44 {offsets = [0, 2, 0], sizes = [18, 16, 64], strides = [1, 1, 1]} : vector<18x18x64xbf16> to vector<18x16x64xbf16>
    %48 = tpu.concatenate %45, %46, %47 in 2 : vector<18x16x64xbf16>, vector<18x16x64xbf16>, vector<18x16x64xbf16> -> vector<18x16x192xbf16>
    %49 = vector.shape_cast %48 : vector<18x16x192xbf16> to vector<288x192xbf16>
    %c9 = arith.constant 9 : index
    %c0_51 = arith.constant 0 : index
    %c0_52 = arith.constant 0 : index
    %50 = vector.load %arg2[%c9, %c0_51, %c0_52] : memref<10x576x64xbf16, #tpu.memory_space<vmem>>, vector<1x576x64xbf16>
    %51 = vector.shape_cast %50 : vector<1x576x64xbf16> to vector<576x64xbf16>
    %52 = vector.extract_strided_slice %49 {offsets = [0, 0], sizes = [256, 192], strides = [1, 1]} : vector<288x192xbf16> to vector<256x192xbf16>
    %53 = vector.extract_strided_slice %51 {offsets = [0, 0], sizes = [192, 64], strides = [1, 1]} : vector<576x64xbf16> to vector<192x64xbf16>
    %cst_53 = arith.constant dense<0.000000e+00> : vector<256x64xf32>
    %54 = tpu.matmul %52, %53, %cst_53 {dimension_numbers = #tpu.dot_dimension_numbers<[1], [0], [0], [1], [0, 0, 1, 1], [], []>} : vector<256x192xbf16>, vector<192x64xbf16>, vector<256x64xf32> -> vector<256x64xf32>
    %55 = vector.extract_strided_slice %49 {offsets = [16, 0], sizes = [256, 192], strides = [1, 1]} : vector<288x192xbf16> to vector<256x192xbf16>
    %56 = vector.extract_strided_slice %51 {offsets = [192, 0], sizes = [192, 64], strides = [1, 1]} : vector<576x64xbf16> to vector<192x64xbf16>
    %cst_54 = arith.constant dense<0.000000e+00> : vector<256x64xf32>
    %57 = tpu.matmul %55, %56, %cst_54 {dimension_numbers = #tpu.dot_dimension_numbers<[1], [0], [0], [1], [0, 0, 1, 1], [], []>} : vector<256x192xbf16>, vector<192x64xbf16>, vector<256x64xf32> -> vector<256x64xf32>
    %58 = arith.addf %54, %57 : vector<256x64xf32>
    %59 = vector.extract_strided_slice %49 {offsets = [32, 0], sizes = [256, 192], strides = [1, 1]} : vector<288x192xbf16> to vector<256x192xbf16>
    %60 = vector.extract_strided_slice %51 {offsets = [384, 0], sizes = [192, 64], strides = [1, 1]} : vector<576x64xbf16> to vector<192x64xbf16>
    %cst_55 = arith.constant dense<0.000000e+00> : vector<256x64xf32>
    %61 = tpu.matmul %59, %60, %cst_55 {dimension_numbers = #tpu.dot_dimension_numbers<[1], [0], [0], [1], [0, 0, 1, 1], [], []>} : vector<256x192xbf16>, vector<192x64xbf16>, vector<256x64xf32> -> vector<256x64xf32>
    %62 = arith.addf %58, %61 : vector<256x64xf32>
    %c9_56 = arith.constant 9 : index
    %c0_57 = arith.constant 0 : index
    %c0_58 = arith.constant 0 : index
    %63 = vector.load %arg3[%c9_56, %c0_57, %c0_58] : memref<10x1x64xf32, #tpu.memory_space<vmem>>, vector<1x1x64xf32>
    %64 = vector.shape_cast %63 : vector<1x1x64xf32> to vector<1x64xf32>
    %65 = vector.broadcast %64 : vector<1x64xf32> to vector<256x64xf32>
    %66 = arith.addf %62, %65 : vector<256x64xf32>
    %67 = vector.shape_cast %66 : vector<256x64xf32> to vector<16x16x64xf32>
    %c0_59 = arith.constant 0 : index
    %c0_60 = arith.constant 0 : index
    %c0_61 = arith.constant 0 : index
    %c0_62 = arith.constant 0 : index
    %68 = vector.load %arg4[%c0_59, %c0_60, %c0_61, %c0_62] : memref<1x16x16x64xf32, #tpu.memory_space<vmem>>, vector<1x16x16x64xf32>
    %69 = vector.shape_cast %68 : vector<1x16x16x64xf32> to vector<16x16x64xf32>
    %70 = vector.shape_cast %67 : vector<16x16x64xf32> to vector<1x16x16x64xf32>
    tpu.vector_store %arg4[%c0_59, %c0_60, %c0_61, %c0_62], %70 {strides = array<i32>} : memref<1x16x16x64xf32, #tpu.memory_space<vmem>>, vector<1x16x16x64xf32>,
    return
  }
  func.func @transform_0(%arg0: i32) -> (i32, i32, i32, i32) {
    %c0_i32 = arith.constant 0 : i32
    %c0_i32_0 = arith.constant 0 : i32
    %c0_i32_1 = arith.constant 0 : i32
    %c0_i32_2 = arith.constant 0 : i32
    return %arg0, %c0_i32, %c0_i32_0, %c0_i32_1 : i32, i32, i32, i32
  }
  func.func @transform_1(%arg0: i32) -> (i32, i32, i32) {
    %c0_i32 = arith.constant 0 : i32
    %c0_i32_0 = arith.constant 0 : i32
    %c0_i32_1 = arith.constant 0 : i32
    %c0_i32_2 = arith.constant 0 : i32
    return %c0_i32, %c0_i32_0, %c0_i32_1 : i32, i32, i32
  }
  func.func @transform_2(%arg0: i32) -> (i32, i32, i32) {
    %c0_i32 = arith.constant 0 : i32
    %c0_i32_0 = arith.constant 0 : i32
    %c0_i32_1 = arith.constant 0 : i32
    %c0_i32_2 = arith.constant 0 : i32
    return %c0_i32, %c0_i32_0, %c0_i32_1 : i32, i32, i32
  }
  func.func @transform_3(%arg0: i32) -> (i32, i32, i32, i32) {
    %c0_i32 = arith.constant 0 : i32
    %c0_i32_0 = arith.constant 0 : i32
    %c0_i32_1 = arith.constant 0 : i32
    %c0_i32_2 = arith.constant 0 : i32
    return %arg0, %c0_i32, %c0_i32_0, %c0_i32_1 : i32, i32, i32, i32
  }
}

</mosaic_0001>

<llo_original>
// kernel: flow_ref_net_forward.1
$region0: #{flow_ref_net_forward.1}
  #allocation0 [shape = 'u32[]', space=smem, size = 0x4, offset = 0x4, fixed_abs, tag = 'smem constant byte address 0x4 - core index']
  #allocation1 [shape = 'u32[144,128]{1,0:T(1,128)}', space=vmem, size = 0x12000, scoped, tag = 'internal scratch']
  #allocation2 [shape = 'bf16[18,18,64]{2,1,0:T(8,128)(2,1)}', space=vmem, size = 0x1b000, scoped, tag = 'scratch operand']
  #allocation3 [shape = 'f32[18,18,64]{2,1,0:T(8,128)}', space=vmem, size = 0x36000, scoped, tag = 'scratch operand']
  %s0 = inlined_call_operand.vmem [shape: bf16[2,16,16,64], index: 0, kind: input, shape index: {}]
  %s1 = inlined_call_operand.vmem [shape: bf16[10,576,64], index: 1, kind: input, shape index: {}]
  %s2 = inlined_call_operand.vmem [shape: f32[10,1,64], index: 2, kind: input, shape index: {}]
  %s3 = inlined_call_operand.hbm [shape: f32[2,16,16,64], index: 3, kind: output, shape index: {}]
  %s4 = sld [smem:[#allocation0]]
  $region52: #{flow_ref_net_forward.1} parent=0
    _
  %s6 = ssub.s32 1, %s4
  %s7 = scalar_select 0, %s6, %s4
  $region1: #{flow_ref_net_forward.1} parent=0
    #allocation4 [shape = 'u8[262144]{0}', space=vmem, size = 0x40000, scoped, tag = 'output window, operand 0']
    #allocation5 [shape = 's32[2]{0}', space=sflag, size = 0x8, scoped, tag = 'scoped memory for flow_ref_net_forward.1']
    %8 = vsyncpa [#allocation5], 0
    %s9 = scalar_lea.sflag [#allocation5], 1
    %10 = vsyncpa %s9, 0
    loop: start=0, step=1, limit=4
    $region2: #{flow_ref_net_forward.1} parent=1 // loop_pre_header
      _
    $region3: #{flow_ref_net_forward.1} parent=1 // loop_header
      %s12 = sphi 0, %s16
      %p13 = scmp.ge.s32.totalorder %s12, 4
      %s22 = sphi 0, %s24
      %s25 = sphi 0, %s22
      %s26 = sphi 0, %s25
      %s42 = sphi 0, %s26
      %s46 = sphi 0, %s46
      %s48 = sphi 0, %s46
      %s49 = sphi 0, %s48
      %s63 = sphi 0, %s49
      %s67 = sphi 0, %s67
      %s69 = sphi 0, %s67
      %s70 = sphi 0, %s69
      %s84 = sphi 0, %s70
      %s90 = sphi 0, %s92
      %s93 = sphi 0, %s90
      %s94 = sphi 0, %s93
      %s110 = sphi 0, %s94
    $region4: #{flow_ref_net_forward.1} parent=1 // loop_header_branch
      %15 = sbr.rel (%p13) target = $region8
    $region5: #{flow_ref_net_forward.1} parent=1 // loop_body
      %s17 = ssub.s32 %s12, 1
      %s18 = ssub.s32 %s12, 2
      %s19 = sadd.s32 %s12, 1
      %s20 = ssub.s32 %s12, %s19
      %p21 = scmp.eq.s32.totalorder %s20, 0
      %s23 = sadd.s32 %s22, 1
      %s24 = scalar_select %p21, %s22, %s23
      %p27 = pneg %p21
      %p28 = scmp.eq.s32.totalorder %s12, 1
      %p29 = por %p27, %p28
      %p30 = scmp.ne.s32.totalorder %s22, %s25
      %p31 = scmp.eq.s32.totalorder %s12, 0
      %p32 = por %p30, %p31
      %p33 = scmp.ne.s32.totalorder %s22, %s25
      %p34 = scmp.eq.s32.totalorder %s17, 1
      %p35 = por %p33, %p34
      %p36 = scmp.ne.s32.totalorder %s25, %s26
      %p37 = scmp.eq.s32.totalorder %s17, 0
      %p38 = por %p36, %p37
      %p39 = scmp.ne.s32.totalorder %s25, %s26
      %p40 = scmp.eq.s32.totalorder %s18, 1
      %p41 = por %p39, %p40
      %p43 = scmp.ne.s32.totalorder %s26, %s42
      %p44 = scmp.eq.s32.totalorder %s18, 0
      %p45 = por %p43, %p44
      %s47 = sadd.s32 %s46, 1
      %p50 = scmp.eq.s32.totalorder %s12, 1
      %p51 = scmp.ne.s32.totalorder %s46, %s48
      %p52 = scmp.eq.s32.totalorder %s12, 0
      %p53 = por %p51, %p52
      %p54 = scmp.ne.s32.totalorder %s46, %s48
      %p55 = scmp.eq.s32.totalorder %s17, 1
      %p56 = por %p54, %p55
      %p57 = scmp.ne.s32.totalorder %s48, %s49
      %p58 = scmp.eq.s32.totalorder %s17, 0
      %p59 = por %p57, %p58
      %p60 = scmp.ne.s32.totalorder %s48, %s49
      %p61 = scmp.eq.s32.totalorder %s18, 1
      %p62 = por %p60, %p61
      %p64 = scmp.ne.s32.totalorder %s49, %s63
      %p65 = scmp.eq.s32.totalorder %s18, 0
      %p66 = por %p64, %p65
      %s68 = sadd.s32 %s67, 1
      %p71 = scmp.eq.s32.totalorder %s12, 1
      %p72 = scmp.ne.s32.totalorder %s67, %s69
      %p73 = scmp.eq.s32.totalorder %s12, 0
      %p74 = por %p72, %p73
      %p75 = scmp.ne.s32.totalorder %s67, %s69
      %p76 = scmp.eq.s32.totalorder %s17, 1
      %p77 = por %p75, %p76
      %p78 = scmp.ne.s32.totalorder %s69, %s70
      %p79 = scmp.eq.s32.totalorder %s17, 0
      %p80 = por %p78, %p79
      %p81 = scmp.ne.s32.totalorder %s69, %s70
      %p82 = scmp.eq.s32.totalorder %s18, 1
      %p83 = por %p81, %p82
      %p85 = scmp.ne.s32.totalorder %s70, %s84
      %p86 = scmp.eq.s32.totalorder %s18, 0
      %p87 = por %p85, %p86
      %s88 = ssub.s32 %s12, %s19
      %p89 = scmp.eq.s32.totalorder %s88, 0
      %s91 = sadd.s32 %s90, 1
      %s92 = scalar_select %p89, %s90, %s91
      %p95 = pneg %p89
      %p96 = scmp.eq.s32.totalorder %s12, 1
      %p97 = por %p95, %p96
      %p98 = scmp.ne.s32.totalorder %s90, %s93
      %p99 = scmp.eq.s32.totalorder %s12, 0
      %p100 = por %p98, %p99
      %p101 = scmp.ne.s32.totalorder %s90, %s93
      %p102 = scmp.eq.s32.totalorder %s17, 1
      %p103 = por %p101, %p102
      %p104 = scmp.ne.s32.totalorder %s93, %s94
      %p105 = scmp.eq.s32.totalorder %s17, 0
      %p106 = por %p104, %p105
      %p107 = scmp.ne.s32.totalorder %s93, %s94
      %p108 = scmp.eq.s32.totalorder %s18, 1
      %p109 = por %p107, %p108
      %p111 = scmp.ne.s32.totalorder %s94, %s110
      %p112 = scmp.eq.s32.totalorder %s18, 0
      %p113 = por %p111, %p112
      %p114 = scmp.le.s32.totalorder 1, %s12
      %p115 = scmp.lt.s32.totalorder %s12, 3
      %p116 = pnand %p114, %p115
      %p117 = pneg %p116
      // Predicated region
      $region9: #{flow_ref_net_forward.1} parent=5 // pred_check
        _
      $region10: #{flow_ref_net_forward.1} parent=5 // pred_check_branch
        %119 = sbr.rel (%p116) target = $region12
      $region11: #{flow_ref_net_forward.1} parent=5 // pred_region
        %s120 = ssub.s32 %s12, 1
        // Predicated region
        $region13: #{flow_ref_net_forward.1} parent=11 // pred_check
          %p121 = pneg %p59
        $region14: #{flow_ref_net_forward.1} parent=11 // pred_check_branch
          %123 = sbr.rel (%p121) target = $region16
        $region15: #{flow_ref_net_forward.1} parent=11 // pred_region
          _
        $region16: #{flow_ref_net_forward.1} parent=11 // pred_fallthru
          _
        // Predicated region
        $region17: #{flow_ref_net_forward.1} parent=11 // pred_check
          %p124 = pneg %p80
        $region18: #{flow_ref_net_forward.1} parent=11 // pred_check_branch
          %126 = sbr.rel (%p124) target = $region20
        $region19: #{flow_ref_net_forward.1} parent=11 // pred_region
          _
        $region20: #{flow_ref_net_forward.1} parent=11 // pred_fallthru
          _
      $region12: #{flow_ref_net_forward.1} parent=5 // pred_fallthru
        _
      %p127 = scmp.lt.s32.totalorder %s12, 2
      // Predicated region
      $region21: #{flow_ref_net_forward.1} parent=5 // pred_check
        %p128 = pneg %p127
      $region22: #{flow_ref_net_forward.1} parent=5 // pred_check_branch
        %130 = sbr.rel (%p128) target = $region24
      $region23: #{flow_ref_net_forward.1} parent=5 // pred_region
        // Predicated region
        $region25: #{flow_ref_net_forward.1} parent=23 // pred_check
          %p131 = pneg %p32
        $region26: #{flow_ref_net_forward.1} parent=23 // pred_check_branch
          %133 = sbr.rel (%p131) target = $region28
        $region27: #{flow_ref_net_forward.1} parent=23 // pred_region
          %p134 = scmp.lt.s32.totalorder %s12, 1
          %s135 = scalar_select %p134, %s12, 1
          %s136 = smul.addr %s135, 32
          %s137 = smul.addr %s136, 4
          %s138 = scalar_lea.vmem %s0, %s137
        $region28: #{flow_ref_net_forward.1} parent=23 // pred_fallthru
          _
      $region24: #{flow_ref_net_forward.1} parent=5 // pred_fallthru
        _
      %p139 = scmp.le.s32.totalorder 1, %s12
      %p140 = scmp.lt.s32.totalorder %s12, 3
      %p141 = pnand %p139, %p140
      %p142 = pneg %p141
      // Predicated region
      $region29: #{flow_ref_net_forward.1} parent=5 // pred_check
        _
      $region30: #{flow_ref_net_forward.1} parent=5 // pred_check_branch
        %144 = sbr.rel (%p141) target = $region32
      $region31: #{flow_ref_net_forward.1} parent=5 // pred_region
        %s145 = ssub.s32 %s12, 1
        %p146 = scmp.lt.s32.totalorder %s17, 1
        %s147 = scalar_select %p146, %s17, 1
        %s148 = smul.addr %s147, 32
        %s149 = smul.addr %s148, 4
        %s150 = scalar_lea.vmem %s0, %s149
        %p151 = pneg %p38
        %p152 = pneg %p35
        %p153 = pneg %p59
        %p154 = pneg %p56
        %p155 = pneg %p80
        %p156 = pneg %p77
        %p157 = pneg %p106
        %p158 = pneg %p103
        %s159 = sand.u32 %s93, 1
        %s160 = scalar_lea.sflag [#allocation5], %s159
        %s161 = sand.u32 %s93, 1
        %s162 = smul.addr %s161, 256
        %s163 = scalar_lea.vmem [#allocation4], %s162
        %p164 = scmp.lt.s32.totalorder %s17, 1
        %s165 = scalar_select %p164, %s17, 1
        %s166 = smul.addr %s165, 32
        %s167 = smul.addr %s166, 4
        %s168 = scalar_lea.vmem %s0, %s167
        %vm170 = vcmask 519168
        %171 = vst.msk [vmem:[#allocation2] sm:$0xf] %vm170, 0
        %172 = vst.msk [vmem:[#allocation2 + $0x4] sm:$0xf] %vm170, 0
        %vm173 = vcmask 516096
        %174 = vst.msk [vmem:[#allocation2 + $0x8] sm:$0x1] %vm173, 0
        %s175 = scalar_lea.vmem [#allocation2], 204
        %176 = vst.msk [vmem:[%s175] sm:$0xf] %vm170, 0
        %177 = vst.msk [vmem:[%s175 + $0x4] sm:$0xf] %vm170, 0
        %178 = vst.msk [vmem:[%s175 + $0x8] sm:$0x1] %vm173, 0
        %s179 = scalar_lea.vmem [#allocation2], 12
        %vm180 = vcmask 516096
        %vm181 = vsmask.f32 256
        %vm182 = vmand %vm180, %vm181
        %v183 = vld [vmem:[%s179] sm:$0x1]
        %v184 = vsel %vm182, 0, %v183
        %185 = vst [vmem:[%s179] sm:$0x1] %v184
        %v186 = vld [vmem:[%s179 + $0xc] sm:$0x1]
        %v187 = vsel %vm182, 0, %v186
        %188 = vst [vmem:[%s179 + $0xc] sm:$0x1] %v187
        %v189 = vld [vmem:[%s179 + $0x18] sm:$0x1]
        %v190 = vsel %vm182, 0, %v189
        %191 = vst [vmem:[%s179 + $0x18] sm:$0x1] %v190
        %v192 = vld [vmem:[%s179 + $0x24] sm:$0x1]
        %v193 = vsel %vm182, 0, %v192
        %194 = vst [vmem:[%s179 + $0x24] sm:$0x1] %v193
        %v195 = vld [vmem:[%s179 + $0x30] sm:$0x1]
        %v196 = vsel %vm182, 0, %v195
        %197 = vst [vmem:[%s179 + $0x30] sm:$0x1] %v196
        %v198 = vld [vmem:[%s179 + $0x3c] sm:$0x1]
        %v199 = vsel %vm182, 0, %v198
        %200 = vst [vmem:[%s179 + $0x3c] sm:$0x1] %v199
        %v201 = vld [vmem:[%s179 + $0x48] sm:$0x1]
        %v202 = vsel %vm182, 0, %v201
        %203 = vst [vmem:[%s179 + $0x48] sm:$0x1] %v202
        %v204 = vld [vmem:[%s179 + $0x54] sm:$0x1]
        %v205 = vsel %vm182, 0, %v204
        %206 = vst [vmem:[%s179 + $0x54] sm:$0x1] %v205
        %v207 = vld [vmem:[%s179 + $0x60] sm:$0x1]
        %v208 = vsel %vm182, 0, %v207
        %209 = vst [vmem:[%s179 + $0x60] sm:$0x1] %v208
        %v210 = vld [vmem:[%s179 + $0x6c] sm:$0x1]
        %v211 = vsel %vm182, 0, %v210
        %212 = vst [vmem:[%s179 + $0x6c] sm:$0x1] %v211
        %v213 = vld [vmem:[%s179 + $0x78] sm:$0x1]
        %v214 = vsel %vm182, 0, %v213
        %215 = vst [vmem:[%s179 + $0x78] sm:$0x1] %v214
        %v216 = vld [vmem:[%s179 + $0x84] sm:$0x1]
        %v217 = vsel %vm182, 0, %v216
        %218 = vst [vmem:[%s179 + $0x84] sm:$0x1] %v217
        %v219 = vld [vmem:[%s179 + $0x90] sm:$0x1]
        %v220 = vsel %vm182, 0, %v219
        %221 = vst [vmem:[%s179 + $0x90] sm:$0x1] %v220
        %v222 = vld [vmem:[%s179 + $0x9c] sm:$0x1]
        %v223 = vsel %vm182, 0, %v222
        %224 = vst [vmem:[%s179 + $0x9c] sm:$0x1] %v223
        %v225 = vld [vmem:[%s179 + $0xa8] sm:$0x1]
        %v226 = vsel %vm182, 0, %v225
        %227 = vst [vmem:[%s179 + $0xa8] sm:$0x1] %v226
        %v228 = vld [vmem:[%s179 + $0xb4] sm:$0x1]
        %v229 = vsel %vm182, 0, %v228
        %230 = vst [vmem:[%s179 + $0xb4] sm:$0x1] %v229
        %vm231 = vsmask.f32 7938
        %vm232 = vmand %vm180, %vm231
        %v233 = vld [vmem:[%s179 + $0x8] sm:$0x1]
        %v234 = vsel %vm232, 0, %v233
        %235 = vst [vmem:[%s179 + $0x8] sm:$0x1] %v234
        %v236 = vld [vmem:[%s179 + $0x14] sm:$0x1]
        %v237 = vsel %vm232, 0, %v236
        %238 = vst [vmem:[%s179 + $0x14] sm:$0x1] %v237
        %v239 = vld [vmem:[%s179 + $0x20] sm:$0x1]
        %v240 = vsel %vm232, 0, %v239
        %241 = vst [vmem:[%s179 + $0x20] sm:$0x1] %v240
        %v242 = vld [vmem:[%s179 + $0x2c] sm:$0x1]
        %v243 = vsel %vm232, 0, %v242
        %244 = vst [vmem:[%s179 + $0x2c] sm:$0x1] %v243
        %v245 = vld [vmem:[%s179 + $0x38] sm:$0x1]
        %v246 = vsel %vm232, 0, %v245
        %247 = vst [vmem:[%s179 + $0x38] sm:$0x1] %v246
        %v248 = vld [vmem:[%s179 + $0x44] sm:$0x1]
        %v249 = vsel %vm232, 0, %v248
        %250 = vst [vmem:[%s179 + $0x44] sm:$0x1] %v249
        %v251 = vld [vmem:[%s179 + $0x50] sm:$0x1]
        %v252 = vsel %vm232, 0, %v251
        %253 = vst [vmem:[%s179 + $0x50] sm:$0x1] %v252
        %v254 = vld [vmem:[%s179 + $0x5c] sm:$0x1]
        %v255 = vsel %vm232, 0, %v254
        %256 = vst [vmem:[%s179 + $0x5c] sm:$0x1] %v255
        %v257 = vld [vmem:[%s179 + $0x68] sm:$0x1]
        %v258 = vsel %vm232, 0, %v257
        %259 = vst [vmem:[%s179 + $0x68] sm:$0x1] %v258
        %v260 = vld [vmem:[%s179 + $0x74] sm:$0x1]
        %v261 = vsel %vm232, 0, %v260
        %262 = vst [vmem:[%s179 + $0x74] sm:$0x1] %v261
        %v263 = vld [vmem:[%s179 + $0x80] sm:$0x1]
        %v264 = vsel %vm232, 0, %v263
        %265 = vst [vmem:[%s179 + $0x80] sm:$0x1] %v264
        %v266 = vld [vmem:[%s179 + $0x8c] sm:$0x1]
        %v267 = vsel %vm232, 0, %v266
        %268 = vst [vmem:[%s179 + $0x8c] sm:$0x1] %v267
        %v269 = vld [vmem:[%s179 + $0x98] sm:$0x1]
        %v270 = vsel %vm232, 0, %v269
        %271 = vst [vmem:[%s179 + $0x98] sm:$0x1] %v270
        %v272 = vld [vmem:[%s179 + $0xa4] sm:$0x1]
        %v273 = vsel %vm232, 0, %v272
        %274 = vst [vmem:[%s179 + $0xa4] sm:$0x1] %v273
        %v275 = vld [vmem:[%s179 + $0xb0] sm:$0x1]
        %v276 = vsel %vm232, 0, %v275
        %277 = vst [vmem:[%s179 + $0xb0] sm:$0x1] %v276
        %v278 = vld [vmem:[%s179 + $0xbc] sm:$0x1]
        %v279 = vsel %vm232, 0, %v278
        %280 = vst [vmem:[%s179 + $0xbc] sm:$0x1] %v279
        %vm281 = vcmask 523264
        %282 = vst.msk [vmem:[#allocation3] sm:$0xff] %vm281, 0.0
        %283 = vst.msk [vmem:[#allocation3 + $0x8] sm:$0xff] %vm281, 0.0
        %vm284 = vcmask 517120
        %285 = vst.msk [vmem:[#allocation3 + $0x10] sm:$0x3] %vm284, 0.0
        %s286 = scalar_lea.vmem [#allocation3], 408
        %287 = vst.msk [vmem:[%s286] sm:$0xff] %vm281, 0.0
        %288 = vst.msk [vmem:[%s286 + $0x8] sm:$0xff] %vm281, 0.0
        %289 = vst.msk [vmem:[%s286 + $0x10] sm:$0x3] %vm284, 0.0
        %s290 = scalar_lea.vmem [#allocation3], 24
        %291 = vst.msk [vmem:[%s290] sm:$0x1] %vm173, 0.0
        %292 = vst.msk [vmem:[%s290 + $0x18] sm:$0x1] %vm173, 0.0
        %293 = vst.msk [vmem:[%s290 + $0x30] sm:$0x1] %vm173, 0.0
        %294 = vst.msk [vmem:[%s290 + $0x48] sm:$0x1] %vm173, 0.0
        %295 = vst.msk [vmem:[%s290 + $0x60] sm:$0x1] %vm173, 0.0
        %296 = vst.msk [vmem:[%s290 + $0x78] sm:$0x1] %vm173, 0.0
        %297 = vst.msk [vmem:[%s290 + $0x90] sm:$0x1] %vm173, 0.0
        %298 = vst.msk [vmem:[%s290 + $0xa8] sm:$0x1] %vm173, 0.0
        %299 = vst.msk [vmem:[%s290 + $0xc0] sm:$0x1] %vm173, 0.0
        %300 = vst.msk [vmem:[%s290 + $0xd8] sm:$0x1] %vm173, 0.0
        %301 = vst.msk [vmem:[%s290 + $0xf0] sm:$0x1] %vm173, 0.0
        %302 = vst.msk [vmem:[%s290 + $0x108] sm:$0x1] %vm173, 0.0
        %303 = vst.msk [vmem:[%s290 + $0x120] sm:$0x1] %vm173, 0.0
        %304 = vst.msk [vmem:[%s290 + $0x138] sm:$0x1] %vm173, 0.0
        %305 = vst.msk [vmem:[%s290 + $0x150] sm:$0x1] %vm173, 0.0
        %306 = vst.msk [vmem:[%s290 + $0x168] sm:$0x1] %vm173, 0.0
        %307 = vst.msk [vmem:[%s290 + $0x11] sm:$0x1] %vm173, 0.0
        %308 = vst.msk [vmem:[%s290 + $0x29] sm:$0x1] %vm173, 0.0
        %309 = vst.msk [vmem:[%s290 + $0x41] sm:$0x1] %vm173, 0.0
        %310 = vst.msk [vmem:[%s290 + $0x59] sm:$0x1] %vm173, 0.0
        %311 = vst.msk [vmem:[%s290 + $0x71] sm:$0x1] %vm173, 0.0
        %312 = vst.msk [vmem:[%s290 + $0x89] sm:$0x1] %vm173, 0.0
        %313 = vst.msk [vmem:[%s290 + $0xa1] sm:$0x1] %vm173, 0.0
        %314 = vst.msk [vmem:[%s290 + $0xb9] sm:$0x1] %vm173, 0.0
        %315 = vst.msk [vmem:[%s290 + $0xd1] sm:$0x1] %vm173, 0.0
        %316 = vst.msk [vmem:[%s290 + $0xe9] sm:$0x1] %vm173, 0.0
        %317 = vst.msk [vmem:[%s290 + $0x101] sm:$0x1] %vm173, 0.0
        %318 = vst.msk [vmem:[%s290 + $0x119] sm:$0x1] %vm173, 0.0
        %319 = vst.msk [vmem:[%s290 + $0x131] sm:$0x1] %vm173, 0.0
        %320 = vst.msk [vmem:[%s290 + $0x149] sm:$0x1] %vm173, 0.0
        %321 = vst.msk [vmem:[%s290 + $0x161] sm:$0x1] %vm173, 0.0
        %322 = vst.msk [vmem:[%s290 + $0x179] sm:$0x1] %vm173, 0.0
        %v323 = vld [vmem:[%s168] sm:$0xf]
        %v324 = vld [vmem:[%s168 + $0x4] sm:$0xf]
        %v325 = vld [vmem:[%s168 + $0x8] sm:$0xf]
        %v326 = vld [vmem:[%s168 + $0xc] sm:$0xf]
        %v327 = vld [vmem:[%s168 + $0x10] sm:$0xf]
        %v328 = vld [vmem:[%s168 + $0x14] sm:$0xf]
        %v329 = vld [vmem:[%s168 + $0x18] sm:$0xf]
        %v330 = vld [vmem:[%s168 + $0x1c] sm:$0xf]
        %v331 = vld [vmem:[%s168 + $0x20] sm:$0xf]
        %v332 = vld [vmem:[%s168 + $0x24] sm:$0xf]
        %v333 = vld [vmem:[%s168 + $0x28] sm:$0xf]
        %v334 = vld [vmem:[%s168 + $0x2c] sm:$0xf]
        %v335 = vld [vmem:[%s168 + $0x30] sm:$0xf]
        %v336 = vld [vmem:[%s168 + $0x34] sm:$0xf]
        %v337 = vld [vmem:[%s168 + $0x38] sm:$0xf]
        %v338 = vld [vmem:[%s168 + $0x3c] sm:$0xf]
        %v339 = vld [vmem:[%s168 + $0x40] sm:$0xf]
        %v340 = vld [vmem:[%s168 + $0x44] sm:$0xf]
        %v341 = vld [vmem:[%s168 + $0x48] sm:$0xf]
        %v342 = vld [vmem:[%s168 + $0x4c] sm:$0xf]
        %v343 = vld [vmem:[%s168 + $0x50] sm:$0xf]
        %v344 = vld [vmem:[%s168 + $0x54] sm:$0xf]
        %v345 = vld [vmem:[%s168 + $0x58] sm:$0xf]
        %v346 = vld [vmem:[%s168 + $0x5c] sm:$0xf]
        %v347 = vld [vmem:[%s168 + $0x60] sm:$0xf]
        %v348 = vld [vmem:[%s168 + $0x64] sm:$0xf]
        %v349 = vld [vmem:[%s168 + $0x68] sm:$0xf]
        %v350 = vld [vmem:[%s168 + $0x6c] sm:$0xf]
        %v351 = vld [vmem:[%s168 + $0x70] sm:$0xf]
        %v352 = vld [vmem:[%s168 + $0x74] sm:$0xf]
        %v353 = vld [vmem:[%s168 + $0x78] sm:$0xf]
        %v354 = vld [vmem:[%s168 + $0x7c] sm:$0xf]
        %vm355 = vsmask.f32 4368
        %vm356 = vmor %vm181, %vm355
        %v358 = vshrl.u32 %v323, 16
        %v360 = vrot.slane %v358, 7
        %v361 = vshll.u32 %v323, 16
        %v363 = vor.u32 %v360, %v361
        %v364 = vrot.slane %v360, 4
        %v366 = vshrl.u32 %v324, 16
        %v368 = vrot.slane %v366, 7
        %v369 = vshll.u32 %v324, 16
        %v371 = vor.u32 %v368, %v369
        %v372 = vsel %vm356, %v364, %v371
        %v373 = vrot.slane %v368, 4
        %v375 = vshrl.u32 %v325, 16
        %v377 = vrot.slane %v375, 7
        %v378 = vshll.u32 %v325, 16
        %v380 = vor.u32 %v377, %v378
        %v381 = vrot.slane %v377, 4
        %v383 = vshrl.u32 %v326, 16
        %v385 = vrot.slane %v383, 7
        %v386 = vshll.u32 %v326, 16
        %v388 = vor.u32 %v385, %v386
        %v389 = vsel %vm356, %v381, %v388
        %v390 = vrot.slane %v385, 4
        %v392 = vshrl.u32 %v327, 16
        %v394 = vrot.slane %v392, 7
        %v395 = vshll.u32 %v327, 16
        %v397 = vor.u32 %v394, %v395
        %v398 = vrot.slane %v394, 4
        %v400 = vshrl.u32 %v328, 16
        %v402 = vrot.slane %v400, 7
        %v403 = vshll.u32 %v328, 16
        %v405 = vor.u32 %v402, %v403
        %v406 = vsel %vm356, %v398, %v405
        %v407 = vrot.slane %v402, 4
        %v409 = vshrl.u32 %v329, 16
        %v411 = vrot.slane %v409, 7
        %v412 = vshll.u32 %v329, 16
        %v414 = vor.u32 %v411, %v412
        %v415 = vrot.slane %v411, 4
        %v417 = vshrl.u32 %v330, 16
        %v419 = vrot.slane %v417, 7
        %v420 = vshll.u32 %v330, 16
        %v422 = vor.u32 %v419, %v420
        %v423 = vsel %vm356, %v415, %v422
        %v424 = vrot.slane %v419, 4
        %v426 = vshrl.u32 %v331, 16
        %v428 = vrot.slane %v426, 7
        %v429 = vshll.u32 %v331, 16
        %v431 = vor.u32 %v428, %v429
        %v432 = vrot.slane %v428, 4
        %v434 = vshrl.u32 %v332, 16
        %v436 = vrot.slane %v434, 7
        %v437 = vshll.u32 %v332, 16
        %v439 = vor.u32 %v436, %v437
        %v440 = vsel %vm356, %v432, %v439
        %v441 = vrot.slane %v436, 4
        %v443 = vshrl.u32 %v333, 16
        %v445 = vrot.slane %v443, 7
        %v446 = vshll.u32 %v333, 16
        %v448 = vor.u32 %v445, %v446
        %v449 = vrot.slane %v445, 4
        %v451 = vshrl.u32 %v334, 16
        %v453 = vrot.slane %v451, 7
        %v454 = vshll.u32 %v334, 16
        %v456 = vor.u32 %v453, %v454
        %v457 = vsel %vm356, %v449, %v456
        %v458 = vrot.slane %v453, 4
        %v460 = vshrl.u32 %v335, 16
        %v462 = vrot.slane %v460, 7
        %v463 = vshll.u32 %v335, 16
        %v465 = vor.u32 %v462, %v463
        %v466 = vrot.slane %v462, 4
        %v468 = vshrl.u32 %v336, 16
        %v470 = vrot.slane %v468, 7
        %v471 = vshll.u32 %v336, 16
        %v473 = vor.u32 %v470, %v471
        %v474 = vsel %vm356, %v466, %v473
        %v475 = vrot.slane %v470, 4
        %v477 = vshrl.u32 %v337, 16
        %v479 = vrot.slane %v477, 7
        %v480 = vshll.u32 %v337, 16
        %v482 = vor.u32 %v479, %v480
        %v483 = vrot.slane %v479, 4
        %v485 = vshrl.u32 %v338, 16
        %v487 = vrot.slane %v485, 7
        %v488 = vshll.u32 %v338, 16
        %v490 = vor.u32 %v487, %v488
        %v491 = vsel %vm356, %v483, %v490
        %v492 = vrot.slane %v487, 4
        %v494 = vshrl.u32 %v339, 16
        %v496 = vrot.slane %v494, 7
        %v497 = vshll.u32 %v339, 16
        %v499 = vor.u32 %v496, %v497
        %v500 = vrot.slane %v496, 4
        %v502 = vshrl.u32 %v340, 16
        %v504 = vrot.slane %v502, 7
        %v505 = vshll.u32 %v340, 16
        %v507 = vor.u32 %v504, %v505
        %v508 = vsel %vm356, %v500, %v507
        %v509 = vrot.slane %v504, 4
        %v511 = vshrl.u32 %v341, 16
        %v513 = vrot.slane %v511, 7
        %v514 = vshll.u32 %v341, 16
        %v516 = vor.u32 %v513, %v514
        %v517 = vrot.slane %v513, 4
        %v519 = vshrl.u32 %v342, 16
        %v521 = vrot.slane %v519, 7
        %v522 = vshll.u32 %v342, 16
        %v524 = vor.u32 %v521, %v522
        %v525 = vsel %vm356, %v517, %v524
        %v526 = vrot.slane %v521, 4
        %v528 = vshrl.u32 %v343, 16
        %v530 = vrot.slane %v528, 7
        %v531 = vshll.u32 %v343, 16
        %v533 = vor.u32 %v530, %v531
        %v534 = vrot.slane %v530, 4
        %v536 = vshrl.u32 %v344, 16
        %v538 = vrot.slane %v536, 7
        %v539 = vshll.u32 %v344, 16
        %v541 = vor.u32 %v538, %v539
        %v542 = vsel %vm356, %v534, %v541
        %v543 = vrot.slane %v538, 4
        %v545 = vshrl.u32 %v345, 16
        %v547 = vrot.slane %v545, 7
        %v548 = vshll.u32 %v345, 16
        %v550 = vor.u32 %v547, %v548
        %v551 = vrot.slane %v547, 4
        %v553 = vshrl.u32 %v346, 16
        %v555 = vrot.slane %v553, 7
        %v556 = vshll.u32 %v346, 16
        %v558 = vor.u32 %v555, %v556
        %v559 = vsel %vm356, %v551, %v558
        %v560 = vrot.slane %v555, 4
        %v562 = vshrl.u32 %v347, 16
        %v564 = vrot.slane %v562, 7
        %v565 = vshll.u32 %v347, 16
        %v567 = vor.u32 %v564, %v565
        %v568 = vrot.slane %v564, 4
        %v570 = vshrl.u32 %v348, 16
        %v572 = vrot.slane %v570, 7
        %v573 = vshll.u32 %v348, 16
        %v575 = vor.u32 %v572, %v573
        %v576 = vsel %vm356, %v568, %v575
        %v577 = vrot.slane %v572, 4
        %v579 = vshrl.u32 %v349, 16
        %v581 = vrot.slane %v579, 7
        %v582 = vshll.u32 %v349, 16
        %v584 = vor.u32 %v581, %v582
        %v585 = vrot.slane %v581, 4
        %v587 = vshrl.u32 %v350, 16
        %v589 = vrot.slane %v587, 7
        %v590 = vshll.u32 %v350, 16
        %v592 = vor.u32 %v589, %v590
        %v593 = vsel %vm356, %v585, %v592
        %v594 = vrot.slane %v589, 4
        %v596 = vshrl.u32 %v351, 16
        %v598 = vrot.slane %v596, 7
        %v599 = vshll.u32 %v351, 16
        %v601 = vor.u32 %v598, %v599
        %v602 = vrot.slane %v598, 4
        %v604 = vshrl.u32 %v352, 16
        %v606 = vrot.slane %v604, 7
        %v607 = vshll.u32 %v352, 16
        %v609 = vor.u32 %v606, %v607
        %v610 = vsel %vm356, %v602, %v609
        %v611 = vrot.slane %v606, 4
        %v613 = vshrl.u32 %v353, 16
        %v615 = vrot.slane %v613, 7
        %v616 = vshll.u32 %v353, 16
        %v618 = vor.u32 %v615, %v616
        %v619 = vrot.slane %v615, 4
        %v621 = vshrl.u32 %v354, 16
        %v623 = vrot.slane %v621, 7
        %v624 = vshll.u32 %v354, 16
        %v626 = vor.u32 %v623, %v624
        %v627 = vsel %vm356, %v619, %v626
        %v628 = vrot.slane %v623, 4
        %vm677 = vcmask 519168
        %vm678 = vmand %vm677, %vm231
        %v679 = vld [vmem:[%s179] sm:$0xf]
        %v680 = vsel %vm678, %v363, %v679
        %681 = vst [vmem:[%s179] sm:$0xf] %v680
        %682 = vst.msk [vmem:[%s179 + $0x4] sm:$0xf] %vm170, %v372
        %v683 = vld [vmem:[%s179 + $0x8] sm:$0x1]
        %v684 = vsel %vm182, %v373, %v683
        %685 = vst [vmem:[%s179 + $0x8] sm:$0x1] %v684
        %v686 = vld [vmem:[%s179 + $0xc] sm:$0xf]
        %v687 = vsel %vm678, %v380, %v686
        %688 = vst [vmem:[%s179 + $0xc] sm:$0xf] %v687
        %689 = vst.msk [vmem:[%s179 + $0x10] sm:$0xf] %vm170, %v389
        %v690 = vld [vmem:[%s179 + $0x14] sm:$0x1]
        %v691 = vsel %vm182, %v390, %v690
        %692 = vst [vmem:[%s179 + $0x14] sm:$0x1] %v691
        %v693 = vld [vmem:[%s179 + $0x18] sm:$0xf]
        %v694 = vsel %vm678, %v397, %v693
        %695 = vst [vmem:[%s179 + $0x18] sm:$0xf] %v694
        %696 = vst.msk [vmem:[%s179 + $0x1c] sm:$0xf] %vm170, %v406
        %v697 = vld [vmem:[%s179 + $0x20] sm:$0x1]
        %v698 = vsel %vm182, %v407, %v697
        %699 = vst [vmem:[%s179 + $0x20] sm:$0x1] %v698
        %v700 = vld [vmem:[%s179 + $0x24] sm:$0xf]
        %v701 = vsel %vm678, %v414, %v700
        %702 = vst [vmem:[%s179 + $0x24] sm:$0xf] %v701
        %703 = vst.msk [vmem:[%s179 + $0x28] sm:$0xf] %vm170, %v423
        %v704 = vld [vmem:[%s179 + $0x2c] sm:$0x1]
        %v705 = vsel %vm182, %v424, %v704
        %706 = vst [vmem:[%s179 + $0x2c] sm:$0x1] %v705
        %v707 = vld [vmem:[%s179 + $0x30] sm:$0xf]
        %v708 = vsel %vm678, %v431, %v707
        %709 = vst [vmem:[%s179 + $0x30] sm:$0xf] %v708
        %710 = vst.msk [vmem:[%s179 + $0x34] sm:$0xf] %vm170, %v440
        %v711 = vld [vmem:[%s179 + $0x38] sm:$0x1]
        %v712 = vsel %vm182, %v441, %v711
        %713 = vst [vmem:[%s179 + $0x38] sm:$0x1] %v712
        %v714 = vld [vmem:[%s179 + $0x3c] sm:$0xf]
        %v715 = vsel %vm678, %v448, %v714
        %716 = vst [vmem:[%s179 + $0x3c] sm:$0xf] %v715
        %717 = vst.msk [vmem:[%s179 + $0x40] sm:$0xf] %vm170, %v457
        %v718 = vld [vmem:[%s179 + $0x44] sm:$0x1]
        %v719 = vsel %vm182, %v458, %v718
        %720 = vst [vmem:[%s179 + $0x44] sm:$0x1] %v719
        %v721 = vld [vmem:[%s179 + $0x48] sm:$0xf]
        %v722 = vsel %vm678, %v465, %v721
        %723 = vst [vmem:[%s179 + $0x48] sm:$0xf] %v722
        %724 = vst.msk [vmem:[%s179 + $0x4c] sm:$0xf] %vm170, %v474
        %v725 = vld [vmem:[%s179 + $0x50] sm:$0x1]
        %v726 = vsel %vm182, %v475, %v725
        %727 = vst [vmem:[%s179 + $0x50] sm:$0x1] %v726
        %v728 = vld [vmem:[%s179 + $0x54] sm:$0xf]
        %v729 = vsel %vm678, %v482, %v728
        %730 = vst [vmem:[%s179 + $0x54] sm:$0xf] %v729
        %731 = vst.msk [vmem:[%s179 + $0x58] sm:$0xf] %vm170, %v491
        %v732 = vld [vmem:[%s179 + $0x5c] sm:$0x1]
        %v733 = vsel %vm182, %v492, %v732
        %734 = vst [vmem:[%s179 + $0x5c] sm:$0x1] %v733
        %v735 = vld [vmem:[%s179 + $0x60] sm:$0xf]
        %v736 = vsel %vm678, %v499, %v735
        %737 = vst [vmem:[%s179 + $0x60] sm:$0xf] %v736
        %738 = vst.msk [vmem:[%s179 + $0x64] sm:$0xf] %vm170, %v508
        %v739 = vld [vmem:[%s179 + $0x68] sm:$0x1]
        %v740 = vsel %vm182, %v509, %v739
        %741 = vst [vmem:[%s179 + $0x68] sm:$0x1] %v740
        %v742 = vld [vmem:[%s179 + $0x6c] sm:$0xf]
        %v743 = vsel %vm678, %v516, %v742
        %744 = vst [vmem:[%s179 + $0x6c] sm:$0xf] %v743
        %745 = vst.msk [vmem:[%s179 + $0x70] sm:$0xf] %vm170, %v525
        %v746 = vld [vmem:[%s179 + $0x74] sm:$0x1]
        %v747 = vsel %vm182, %v526, %v746
        %748 = vst [vmem:[%s179 + $0x74] sm:$0x1] %v747
        %v749 = vld [vmem:[%s179 + $0x78] sm:$0xf]
        %v750 = vsel %vm678, %v533, %v749
        %751 = vst [vmem:[%s179 + $0x78] sm:$0xf] %v750
        %752 = vst.msk [vmem:[%s179 + $0x7c] sm:$0xf] %vm170, %v542
        %v753 = vld [vmem:[%s179 + $0x80] sm:$0x1]
        %v754 = vsel %vm182, %v543, %v753
        %755 = vst [vmem:[%s179 + $0x80] sm:$0x1] %v754
        %v756 = vld [vmem:[%s179 + $0x84] sm:$0xf]
        %v757 = vsel %vm678, %v550, %v756
        %758 = vst [vmem:[%s179 + $0x84] sm:$0xf] %v757
        %759 = vst.msk [vmem:[%s179 + $0x88] sm:$0xf] %vm170, %v559
        %v760 = vld [vmem:[%s179 + $0x8c] sm:$0x1]
        %v761 = vsel %vm182, %v560, %v760
        %762 = vst [vmem:[%s179 + $0x8c] sm:$0x1] %v761
        %v763 = vld [vmem:[%s179 + $0x90] sm:$0xf]
        %v764 = vsel %vm678, %v567, %v763
        %765 = vst [vmem:[%s179 + $0x90] sm:$0xf] %v764
        %766 = vst.msk [vmem:[%s179 + $0x94] sm:$0xf] %vm170, %v576
        %v767 = vld [vmem:[%s179 + $0x98] sm:$0x1]
        %v768 = vsel %vm182, %v577, %v767
        %769 = vst [vmem:[%s179 + $0x98] sm:$0x1] %v768
        %v770 = vld [vmem:[%s179 + $0x9c] sm:$0xf]
        %v771 = vsel %vm678, %v584, %v770
        %772 = vst [vmem:[%s179 + $0x9c] sm:$0xf] %v771
        %773 = vst.msk [vmem:[%s179 + $0xa0] sm:$0xf] %vm170, %v593
        %v774 = vld [vmem:[%s179 + $0xa4] sm:$0x1]
        %v775 = vsel %vm182, %v594, %v774
        %776 = vst [vmem:[%s179 + $0xa4] sm:$0x1] %v775
        %v777 = vld [vmem:[%s179 + $0xa8] sm:$0xf]
        %v778 = vsel %vm678, %v601, %v777
        %779 = vst [vmem:[%s179 + $0xa8] sm:$0xf] %v778
        %780 = vst.msk [vmem:[%s179 + $0xac] sm:$0xf] %vm170, %v610
        %v781 = vld [vmem:[%s179 + $0xb0] sm:$0x1]
        %v782 = vsel %vm182, %v611, %v781
        %783 = vst [vmem:[%s179 + $0xb0] sm:$0x1] %v782
        %v784 = vld [vmem:[%s179 + $0xb4] sm:$0xf]
        %v785 = vsel %vm678, %v618, %v784
        %786 = vst [vmem:[%s179 + $0xb4] sm:$0xf] %v785
        %787 = vst.msk [vmem:[%s179 + $0xb8] sm:$0xf] %vm170, %v627
        %v788 = vld [vmem:[%s179 + $0xbc] sm:$0x1]
        %v789 = vsel %vm182, %v628, %v788
        %790 = vst [vmem:[%s179 + $0xbc] sm:$0x1] %v789
        %v791 = vld [vmem:[#allocation2] sm:$0xf]
        %v792 = vld [vmem:[#allocation2 + $0x4] sm:$0xf]
        %v793 = vld [vmem:[#allocation2 + $0x8] sm:$0x1]
        %v794 = vld [vmem:[#allocation2 + $0xc] sm:$0xf]
        %v795 = vld [vmem:[#allocation2 + $0x10] sm:$0xf]
        %v796 = vld [vmem:[#allocation2 + $0x14] sm:$0x1]
        %v797 = vld [vmem:[#allocation2 + $0x18] sm:$0xf]
        %v798 = vld [vmem:[#allocation2 + $0x1c] sm:$0xf]
        %v799 = vld [vmem:[#allocation2 + $0x20] sm:$0x1]
        %v800 = vld [vmem:[#allocation2 + $0x24] sm:$0xf]
        %v801 = vld [vmem:[#allocation2 + $0x28] sm:$0xf]
        %v802 = vld [vmem:[#allocation2 + $0x2c] sm:$0x1]
        %v803 = vld [vmem:[#allocation2 + $0x30] sm:$0xf]
        %v804 = vld [vmem:[#allocation2 + $0x34] sm:$0xf]
        %v805 = vld [vmem:[#allocation2 + $0x38] sm:$0x1]
        %v806 = vld [vmem:[#allocation2 + $0x3c] sm:$0xf]
        %v807 = vld [vmem:[#allocation2 + $0x40] sm:$0xf]
        %v808 = vld [vmem:[#allocation2 + $0x44] sm:$0x1]
        %v809 = vld [vmem:[#allocation2 + $0x48] sm:$0xf]
        %v810 = vld [vmem:[#allocation2 + $0x4c] sm:$0xf]
        %v811 = vld [vmem:[#allocation2 + $0x50] sm:$0x1]
        %v812 = vld [vmem:[#allocation2 + $0x54] sm:$0xf]
        %v813 = vld [vmem:[#allocation2 + $0x58] sm:$0xf]
        %v814 = vld [vmem:[#allocation2 + $0x5c] sm:$0x1]
        %v815 = vld [vmem:[#allocation2 + $0x60] sm:$0xf]
        %v816 = vld [vmem:[#allocation2 + $0x64] sm:$0xf]
        %v817 = vld [vmem:[#allocation2 + $0x68] sm:$0x1]
        %v818 = vld [vmem:[#allocation2 + $0x6c] sm:$0xf]
        %v819 = vld [vmem:[#allocation2 + $0x70] sm:$0xf]
        %v820 = vld [vmem:[#allocation2 + $0x74] sm:$0x1]
        %v821 = vld [vmem:[#allocation2 + $0x78] sm:$0xf]
        %v822 = vld [vmem:[#allocation2 + $0x7c] sm:$0xf]
        %v823 = vld [vmem:[#allocation2 + $0x80] sm:$0x1]
        %v824 = vld [vmem:[#allocation2 + $0x84] sm:$0xf]
        %v825 = vld [vmem:[#allocation2 + $0x88] sm:$0xf]
        %v826 = vld [vmem:[#allocation2 + $0x8c] sm:$0x1]
        %v827 = vld [vmem:[#allocation2 + $0x90] sm:$0xf]
        %v828 = vld [vmem:[#allocation2 + $0x94] sm:$0xf]
        %v829 = vld [vmem:[#allocation2 + $0x98] sm:$0x1]
        %v830 = vld [vmem:[#allocation2 + $0x9c] sm:$0xf]
        %v831 = vld [vmem:[#allocation2 + $0xa0] sm:$0xf]
        %v832 = vld [vmem:[#allocation2 + $0xa4] sm:$0x1]
        %v833 = vld [vmem:[#allocation2 + $0xa8] sm:$0xf]
        %v834 = vld [vmem:[#allocation2 + $0xac] sm:$0xf]
        %v835 = vld [vmem:[#allocation2 + $0xb0] sm:$0x1]
        %v836 = vld [vmem:[#allocation2 + $0xb4] sm:$0xf]
        %v837 = vld [vmem:[#allocation2 + $0xb8] sm:$0xf]
        %v838 = vld [vmem:[#allocation2 + $0xbc] sm:$0x1]
        %v839 = vld [vmem:[#allocation2 + $0xc0] sm:$0xf]
        %v840 = vld [vmem:[#allocation2 + $0xc4] sm:$0xf]
        %v841 = vld [vmem:[#allocation2 + $0xc8] sm:$0x1]
        %v842 = vld [vmem:[#allocation2 + $0xcc] sm:$0xf]
        %v843 = vld [vmem:[#allocation2 + $0xd0] sm:$0xf]
        %v844 = vld [vmem:[#allocation2 + $0xd4] sm:$0x1]
        %v881 = vunpack.c.l.b16 %v791
        %v882 = vunpack.c.l.b16 %v792
        %v883 = vunpack.c.l.b16 %v794
        %v884 = vunpack.c.l.b16 %v795
        %v885 = vunpack.c.l.b16 %v797
        %v886 = vunpack.c.l.b16 %v798
        %v887 = vunpack.c.l.b16 %v800
        %v888 = vunpack.c.l.b16 %v801
        %v889 = vunpack.c.l.b16 %v803
        %v890 = vunpack.c.l.b16 %v804
        %v891 = vunpack.c.l.b16 %v806
        %v892 = vunpack.c.l.b16 %v807
        %v893 = vunpack.c.l.b16 %v809
        %v894 = vunpack.c.l.b16 %v810
        %v895 = vunpack.c.l.b16 %v812
        %v896 = vunpack.c.l.b16 %v813
        %v897 = vunpack.c.l.b16 %v815
        %v898 = vunpack.c.l.b16 %v816
        %v899 = vunpack.c.l.b16 %v818
        %v900 = vunpack.c.l.b16 %v819
        %v901 = vunpack.c.l.b16 %v821
        %v902 = vunpack.c.l.b16 %v822
        %v903 = vunpack.c.l.b16 %v824
        %v904 = vunpack.c.l.b16 %v825
        %v905 = vunpack.c.l.b16 %v827
        %v906 = vunpack.c.l.b16 %v828
        %v907 = vunpack.c.l.b16 %v830
        %v908 = vunpack.c.l.b16 %v831
        %v909 = vunpack.c.l.b16 %v833
        %v910 = vunpack.c.l.b16 %v834
        %v911 = vunpack.c.l.b16 %v836
        %v912 = vunpack.c.l.b16 %v837
        %v913 = vunpack.c.l.b16 %v839
        %v914 = vunpack.c.l.b16 %v840
        %v915 = vunpack.c.l.b16 %v842
        %v916 = vunpack.c.l.b16 %v843
        %v917 = vpack.c.b16 %v882, %v881
        %v918 = vpack.c.b16 %v884, %v883
        %v919 = vpack.c.b16 %v886, %v885
        %v920 = vpack.c.b16 %v888, %v887
        %v921 = vpack.c.b16 %v890, %v889
        %v922 = vpack.c.b16 %v892, %v891
        %v923 = vpack.c.b16 %v894, %v893
        %v924 = vpack.c.b16 %v896, %v895
        %v925 = vpack.c.b16 %v898, %v897
        %v926 = vpack.c.b16 %v900, %v899
        %v927 = vpack.c.b16 %v902, %v901
        %v928 = vpack.c.b16 %v904, %v903
        %v929 = vpack.c.b16 %v906, %v905
        %v930 = vpack.c.b16 %v908, %v907
        %v931 = vpack.c.b16 %v910, %v909
        %v932 = vpack.c.b16 %v912, %v911
        %v933 = vpack.c.b16 %v914, %v913
        %v934 = vpack.c.b16 %v916, %v915
        %v953 = vunpack.c.l.b16 %v793
        %v954 = vunpack.c.l.b16 %v796
        %v955 = vunpack.c.l.b16 %v799
        %v956 = vunpack.c.l.b16 %v802
        %v957 = vunpack.c.l.b16 %v805
        %v958 = vunpack.c.l.b16 %v808
        %v959 = vunpack.c.l.b16 %v811
        %v960 = vunpack.c.l.b16 %v814
        %v961 = vunpack.c.l.b16 %v817
        %v962 = vunpack.c.l.b16 %v820
        %v963 = vunpack.c.l.b16 %v823
        %v964 = vunpack.c.l.b16 %v826
        %v965 = vunpack.c.l.b16 %v829
        %v966 = vunpack.c.l.b16 %v832
        %v967 = vunpack.c.l.b16 %v835
        %v968 = vunpack.c.l.b16 %v838
        %v969 = vunpack.c.l.b16 %v841
        %v970 = vunpack.c.l.b16 %v844
        %v971 = vpack.c.b16 %v953, %v953
        %v972 = vpack.c.b16 %v954, %v954
        %v973 = vpack.c.b16 %v955, %v955
        %v974 = vpack.c.b16 %v956, %v956
        %v975 = vpack.c.b16 %v957, %v957
        %v976 = vpack.c.b16 %v958, %v958
        %v977 = vpack.c.b16 %v959, %v959
        %v978 = vpack.c.b16 %v960, %v960
        %v979 = vpack.c.b16 %v961, %v961
        %v980 = vpack.c.b16 %v962, %v962
        %v981 = vpack.c.b16 %v963, %v963
        %v982 = vpack.c.b16 %v964, %v964
        %v983 = vpack.c.b16 %v965, %v965
        %v984 = vpack.c.b16 %v966, %v966
        %v985 = vpack.c.b16 %v967, %v967
        %v986 = vpack.c.b16 %v968, %v968
        %v987 = vpack.c.b16 %v969, %v969
        %v988 = vpack.c.b16 %v970, %v970
        %vm989 = vsmask.f32 7424
        %v991 = vshrl.u32 %v917, 16
        %v993 = vshll.u32 %v917, 16
        %v995 = vrot.slane %v993, 1
        %v996 = vor.u32 %v991, %v995
        %v998 = vshll.u32 %v971, 16
        %v1000 = vrot.slane %v998, 1
        %v1001 = vsel %vm989, %v996, %v1000
        %v1003 = vshrl.u32 %v918, 16
        %v1005 = vshll.u32 %v918, 16
        %v1007 = vrot.slane %v1005, 1
        %v1008 = vor.u32 %v1003, %v1007
        %v1010 = vshll.u32 %v972, 16
        %v1012 = vrot.slane %v1010, 1
        %v1013 = vsel %vm989, %v1008, %v1012
        %v1015 = vshrl.u32 %v919, 16
        %v1017 = vshll.u32 %v919, 16
        %v1019 = vrot.slane %v1017, 1
        %v1020 = vor.u32 %v1015, %v1019
        %v1022 = vshll.u32 %v973, 16
        %v1024 = vrot.slane %v1022, 1
        %v1025 = vsel %vm989, %v1020, %v1024
        %v1027 = vshrl.u32 %v920, 16
        %v1029 = vshll.u32 %v920, 16
        %v1031 = vrot.slane %v1029, 1
        %v1032 = vor.u32 %v1027, %v1031
        %v1034 = vshll.u32 %v974, 16
        %v1036 = vrot.slane %v1034, 1
        %v1037 = vsel %vm989, %v1032, %v1036
        %v1039 = vshrl.u32 %v921, 16
        %v1041 = vshll.u32 %v921, 16
        %v1043 = vrot.slane %v1041, 1
        %v1044 = vor.u32 %v1039, %v1043
        %v1046 = vshll.u32 %v975, 16
        %v1048 = vrot.slane %v1046, 1
        %v1049 = vsel %vm989, %v1044, %v1048
        %v1051 = vshrl.u32 %v922, 16
        %v1053 = vshll.u32 %v922, 16
        %v1055 = vrot.slane %v1053, 1
        %v1056 = vor.u32 %v1051, %v1055
        %v1058 = vshll.u32 %v976, 16
        %v1060 = vrot.slane %v1058, 1
        %v1061 = vsel %vm989, %v1056, %v1060
        %v1063 = vshrl.u32 %v923, 16
        %v1065 = vshll.u32 %v923, 16
        %v1067 = vrot.slane %v1065, 1
        %v1068 = vor.u32 %v1063, %v1067
        %v1070 = vshll.u32 %v977, 16
        %v1072 = vrot.slane %v1070, 1
        %v1073 = vsel %vm989, %v1068, %v1072
        %v1075 = vshrl.u32 %v924, 16
        %v1077 = vshll.u32 %v924, 16
        %v1079 = vrot.slane %v1077, 1
        %v1080 = vor.u32 %v1075, %v1079
        %v1082 = vshll.u32 %v978, 16
        %v1084 = vrot.slane %v1082, 1
        %v1085 = vsel %vm989, %v1080, %v1084
        %v1087 = vshrl.u32 %v925, 16
        %v1089 = vshll.u32 %v925, 16
        %v1091 = vrot.slane %v1089, 1
        %v1092 = vor.u32 %v1087, %v1091
        %v1094 = vshll.u32 %v979, 16
        %v1096 = vrot.slane %v1094, 1
        %v1097 = vsel %vm989, %v1092, %v1096
        %v1099 = vshrl.u32 %v926, 16
        %v1101 = vshll.u32 %v926, 16
        %v1103 = vrot.slane %v1101, 1
        %v1104 = vor.u32 %v1099, %v1103
        %v1106 = vshll.u32 %v980, 16
        %v1108 = vrot.slane %v1106, 1
        %v1109 = vsel %vm989, %v1104, %v1108
        %v1111 = vshrl.u32 %v927, 16
        %v1113 = vshll.u32 %v927, 16
        %v1115 = vrot.slane %v1113, 1
        %v1116 = vor.u32 %v1111, %v1115
        %v1118 = vshll.u32 %v981, 16
        %v1120 = vrot.slane %v1118, 1
        %v1121 = vsel %vm989, %v1116, %v1120
        %v1123 = vshrl.u32 %v928, 16
        %v1125 = vshll.u32 %v928, 16
        %v1127 = vrot.slane %v1125, 1
        %v1128 = vor.u32 %v1123, %v1127
        %v1130 = vshll.u32 %v982, 16
        %v1132 = vrot.slane %v1130, 1
        %v1133 = vsel %vm989, %v1128, %v1132
        %v1135 = vshrl.u32 %v929, 16
        %v1137 = vshll.u32 %v929, 16
        %v1139 = vrot.slane %v1137, 1
        %v1140 = vor.u32 %v1135, %v1139
        %v1142 = vshll.u32 %v983, 16
        %v1144 = vrot.slane %v1142, 1
        %v1145 = vsel %vm989, %v1140, %v1144
        %v1147 = vshrl.u32 %v930, 16
        %v1149 = vshll.u32 %v930, 16
        %v1151 = vrot.slane %v1149, 1
        %v1152 = vor.u32 %v1147, %v1151
        %v1154 = vshll.u32 %v984, 16
        %v1156 = vrot.slane %v1154, 1
        %v1157 = vsel %vm989, %v1152, %v1156
        %v1159 = vshrl.u32 %v931, 16
        %v1161 = vshll.u32 %v931, 16
        %v1163 = vrot.slane %v1161, 1
        %v1164 = vor.u32 %v1159, %v1163
        %v1166 = vshll.u32 %v985, 16
        %v1168 = vrot.slane %v1166, 1
        %v1169 = vsel %vm989, %v1164, %v1168
        %v1171 = vshrl.u32 %v932, 16
        %v1173 = vshll.u32 %v932, 16
        %v1175 = vrot.slane %v1173, 1
        %v1176 = vor.u32 %v1171, %v1175
        %v1178 = vshll.u32 %v986, 16
        %v1180 = vrot.slane %v1178, 1
        %v1181 = vsel %vm989, %v1176, %v1180
        %v1183 = vshrl.u32 %v933, 16
        %v1185 = vshll.u32 %v933, 16
        %v1187 = vrot.slane %v1185, 1
        %v1188 = vor.u32 %v1183, %v1187
        %v1190 = vshll.u32 %v987, 16
        %v1192 = vrot.slane %v1190, 1
        %v1193 = vsel %vm989, %v1188, %v1192
        %v1195 = vshrl.u32 %v934, 16
        %v1197 = vshll.u32 %v934, 16
        %v1199 = vrot.slane %v1197, 1
        %v1200 = vor.u32 %v1195, %v1199
        %v1202 = vshll.u32 %v988, 16
        %v1204 = vrot.slane %v1202, 1
        %v1205 = vsel %vm989, %v1200, %v1204
        %1206 = vrot.lane.b32.xlu0 %v1001, 64
        %v1207 = vpop.permute.xlu0 %1206
        %1208 = vrot.lane.b32.xlu0 %v1013, 64
        %v1209 = vpop.permute.xlu0 %1208
        %1210 = vrot.lane.b32.xlu0 %v1025, 64
        %v1211 = vpop.permute.xlu0 %1210
        %1212 = vrot.lane.b32.xlu0 %v1037, 64
        %v1213 = vpop.permute.xlu0 %1212
        %1214 = vrot.lane.b32.xlu0 %v1049, 64
        %v1215 = vpop.permute.xlu0 %1214
        %1216 = vrot.lane.b32.xlu0 %v1061, 64
        %v1217 = vpop.permute.xlu0 %1216
        %1218 = vrot.lane.b32.xlu0 %v1073, 64
        %v1219 = vpop.permute.xlu0 %1218
        %1220 = vrot.lane.b32.xlu0 %v1085, 64
        %v1221 = vpop.permute.xlu0 %1220
        %1222 = vrot.lane.b32.xlu0 %v1097, 64
        %v1223 = vpop.permute.xlu0 %1222
        %1224 = vrot.lane.b32.xlu0 %v1109, 64
        %v1225 = vpop.permute.xlu0 %1224
        %1226 = vrot.lane.b32.xlu0 %v1121, 64
        %v1227 = vpop.permute.xlu0 %1226
        %1228 = vrot.lane.b32.xlu0 %v1133, 64
        %v1229 = vpop.permute.xlu0 %1228
        %1230 = vrot.lane.b32.xlu0 %v1145, 64
        %v1231 = vpop.permute.xlu0 %1230
        %1232 = vrot.lane.b32.xlu0 %v1157, 64
        %v1233 = vpop.permute.xlu0 %1232
        %1234 = vrot.lane.b32.xlu0 %v1169, 64
        %v1235 = vpop.permute.xlu0 %1234
        %1236 = vrot.lane.b32.xlu0 %v1181, 64
        %v1237 = vpop.permute.xlu0 %1236
        %1238 = vrot.lane.b32.xlu0 %v1193, 64
        %v1239 = vpop.permute.xlu0 %1238
        %1240 = vrot.lane.b32.xlu0 %v1205, 64
        %v1241 = vpop.permute.xlu0 %1240
        %vm1242 = vcmask 1046528
        %v1243 = vrot.slane %v917, 1
        %v1244 = vrot.slane %v971, 1
        %v1245 = vsel %vm1242, %v1243, %v1244
        %v1246 = vrot.slane %v918, 1
        %v1247 = vrot.slane %v972, 1
        %v1248 = vsel %vm1242, %v1246, %v1247
        %v1249 = vrot.slane %v919, 1
        %v1250 = vrot.slane %v973, 1
        %v1251 = vsel %vm1242, %v1249, %v1250
        %v1252 = vrot.slane %v920, 1
        %v1253 = vrot.slane %v974, 1
        %v1254 = vsel %vm1242, %v1252, %v1253
        %v1255 = vrot.slane %v921, 1
        %v1256 = vrot.slane %v975, 1
        %v1257 = vsel %vm1242, %v1255, %v1256
        %v1258 = vrot.slane %v922, 1
        %v1259 = vrot.slane %v976, 1
        %v1260 = vsel %vm1242, %v1258, %v1259
        %v1261 = vrot.slane %v923, 1
        %v1262 = vrot.slane %v977, 1
        %v1263 = vsel %vm1242, %v1261, %v1262
        %v1264 = vrot.slane %v924, 1
        %v1265 = vrot.slane %v978, 1
        %v1266 = vsel %vm1242, %v1264, %v1265
        %v1267 = vrot.slane %v925, 1
        %v1268 = vrot.slane %v979, 1
        %v1269 = vsel %vm1242, %v1267, %v1268
        %v1270 = vrot.slane %v926, 1
        %v1271 = vrot.slane %v980, 1
        %v1272 = vsel %vm1242, %v1270, %v1271
        %v1273 = vrot.slane %v927, 1
        %v1274 = vrot.slane %v981, 1
        %v1275 = vsel %vm1242, %v1273, %v1274
        %v1276 = vrot.slane %v928, 1
        %v1277 = vrot.slane %v982, 1
        %v1278 = vsel %vm1242, %v1276, %v1277
        %v1279 = vrot.slane %v929, 1
        %v1280 = vrot.slane %v983, 1
        %v1281 = vsel %vm1242, %v1279, %v1280
        %v1282 = vrot.slane %v930, 1
        %v1283 = vrot.slane %v984, 1
        %v1284 = vsel %vm1242, %v1282, %v1283
        %v1285 = vrot.slane %v931, 1
        %v1286 = vrot.slane %v985, 1
        %v1287 = vsel %vm1242, %v1285, %v1286
        %v1288 = vrot.slane %v932, 1
        %v1289 = vrot.slane %v986, 1
        %v1290 = vsel %vm1242, %v1288, %v1289
        %v1291 = vrot.slane %v933, 1
        %v1292 = vrot.slane %v987, 1
        %v1293 = vsel %vm1242, %v1291, %v1292
        %v1294 = vrot.slane %v934, 1
        %v1295 = vrot.slane %v988, 1
        %v1296 = vsel %vm1242, %v1294, %v1295
        %v1298 = vsel %vm281, %v917, %v1207
        %v1301 = vsel %vm281, %v918, %v1209
        %v1304 = vsel %vm281, %v919, %v1211
        %v1307 = vsel %vm281, %v920, %v1213
        %v1310 = vsel %vm281, %v921, %v1215
        %v1313 = vsel %vm281, %v922, %v1217
        %v1316 = vsel %vm281, %v923, %v1219
        %v1319 = vsel %vm281, %v924, %v1221
        %v1322 = vsel %vm281, %v925, %v1223
        %v1325 = vsel %vm281, %v926, %v1225
        %v1328 = vsel %vm281, %v927, %v1227
        %v1331 = vsel %vm281, %v928, %v1229
        %v1334 = vsel %vm281, %v929, %v1231
        %v1337 = vsel %vm281, %v930, %v1233
        %v1340 = vsel %vm281, %v931, %v1235
        %v1343 = vsel %vm281, %v932, %v1237
        %v1346 = vsel %vm281, %v933, %v1239
        %v1349 = vsel %vm281, %v934, %v1241
        %v1351 = vld [vmem:[%s1] sm:$0xf]
        %v1352 = vld [vmem:[%s1 + $0x4] sm:$0xf]
        %v1353 = vld [vmem:[%s1 + $0x8] sm:$0xf]
        %v1354 = vld [vmem:[%s1 + $0xc] sm:$0xf]
        %v1355 = vld [vmem:[%s1 + $0x10] sm:$0xf]
        %v1356 = vld [vmem:[%s1 + $0x14] sm:$0xf]
        %v1357 = vld [vmem:[%s1 + $0x18] sm:$0xf]
        %v1358 = vld [vmem:[%s1 + $0x1c] sm:$0xf]
        %v1359 = vld [vmem:[%s1 + $0x20] sm:$0xf]
        %v1360 = vld [vmem:[%s1 + $0x24] sm:$0xf]
        %v1361 = vld [vmem:[%s1 + $0x28] sm:$0xf]
        %v1362 = vld [vmem:[%s1 + $0x2c] sm:$0xf]
        %v1363 = vld [vmem:[%s1 + $0x30] sm:$0xf]
        %v1364 = vld [vmem:[%s1 + $0x34] sm:$0xf]
        %v1365 = vld [vmem:[%s1 + $0x38] sm:$0xf]
        %v1366 = vld [vmem:[%s1 + $0x3c] sm:$0xf]
        %v1367 = vld [vmem:[%s1 + $0x40] sm:$0xf]
        %v1368 = vld [vmem:[%s1 + $0x44] sm:$0xf]
        %v1369 = vld [vmem:[%s1 + $0x48] sm:$0xf]
        %v1370 = vld [vmem:[%s1 + $0x4c] sm:$0xf]
        %v1371 = vld [vmem:[%s1 + $0x50] sm:$0xf]
        %v1372 = vld [vmem:[%s1 + $0x54] sm:$0xf]
        %v1373 = vld [vmem:[%s1 + $0x58] sm:$0xf]
        %v1374 = vld [vmem:[%s1 + $0x5c] sm:$0xf]
        %v1375 = vld [vmem:[%s1 + $0x60] sm:$0xf]
        %v1376 = vld [vmem:[%s1 + $0x64] sm:$0xf]
        %v1377 = vld [vmem:[%s1 + $0x68] sm:$0xf]
        %v1378 = vld [vmem:[%s1 + $0x6c] sm:$0xf]
        %v1379 = vld [vmem:[%s1 + $0x70] sm:$0xf]
        %v1380 = vld [vmem:[%s1 + $0x74] sm:$0xf]
        %v1381 = vld [vmem:[%s1 + $0x78] sm:$0xf]
        %v1382 = vld [vmem:[%s1 + $0x7c] sm:$0xf]
        %v1383 = vld [vmem:[%s1 + $0x80] sm:$0xf]
        %v1384 = vld [vmem:[%s1 + $0x84] sm:$0xf]
        %v1385 = vld [vmem:[%s1 + $0x88] sm:$0xf]
        %v1386 = vld [vmem:[%s1 + $0x8c] sm:$0xf]
        %v1387 = vld [vmem:[%s1 + $0x90] sm:$0xf]
        %v1388 = vld [vmem:[%s1 + $0x94] sm:$0xf]
        %v1389 = vld [vmem:[%s1 + $0x98] sm:$0xf]
        %v1390 = vld [vmem:[%s1 + $0x9c] sm:$0xf]
        %v1391 = vld [vmem:[%s1 + $0xa0] sm:$0xf]
        %v1392 = vld [vmem:[%s1 + $0xa4] sm:$0xf]
        %v1393 = vld [vmem:[%s1 + $0xa8] sm:$0xf]
        %v1394 = vld [vmem:[%s1 + $0xac] sm:$0xf]
        %v1395 = vld [vmem:[%s1 + $0xb0] sm:$0xf]
        %v1396 = vld [vmem:[%s1 + $0xb4] sm:$0xf]
        %v1397 = vld [vmem:[%s1 + $0xb8] sm:$0xf]
        %v1398 = vld [vmem:[%s1 + $0xbc] sm:$0xf]
        %v1399 = vld [vmem:[%s1 + $0xc0] sm:$0xf]
        %v1400 = vld [vmem:[%s1 + $0xc4] sm:$0xf]
        %v1401 = vld [vmem:[%s1 + $0xc8] sm:$0xf]
        %v1402 = vld [vmem:[%s1 + $0xcc] sm:$0xf]
        %v1403 = vld [vmem:[%s1 + $0xd0] sm:$0xf]
        %v1404 = vld [vmem:[%s1 + $0xd4] sm:$0xf]
        %v1405 = vld [vmem:[%s1 + $0xd8] sm:$0xf]
        %v1406 = vld [vmem:[%s1 + $0xdc] sm:$0xf]
        %v1407 = vld [vmem:[%s1 + $0xe0] sm:$0xf]
        %v1408 = vld [vmem:[%s1 + $0xe4] sm:$0xf]
        %v1409 = vld [vmem:[%s1 + $0xe8] sm:$0xf]
        %v1410 = vld [vmem:[%s1 + $0xec] sm:$0xf]
        %v1411 = vld [vmem:[%s1 + $0xf0] sm:$0xf]
        %v1412 = vld [vmem:[%s1 + $0xf4] sm:$0xf]
        %v1413 = vld [vmem:[%s1 + $0xf8] sm:$0xf]
        %v1414 = vld [vmem:[%s1 + $0xfc] sm:$0xf]
        %v1415 = vld [vmem:[%s1 + $0x100] sm:$0xf]
        %v1416 = vld [vmem:[%s1 + $0x104] sm:$0xf]
        %v1417 = vld [vmem:[%s1 + $0x108] sm:$0xf]
        %v1418 = vld [vmem:[%s1 + $0x10c] sm:$0xf]
        %v1419 = vld [vmem:[%s1 + $0x110] sm:$0xf]
        %v1420 = vld [vmem:[%s1 + $0x114] sm:$0xf]
        %v1421 = vld [vmem:[%s1 + $0x118] sm:$0xf]
        %v1422 = vld [vmem:[%s1 + $0x11c] sm:$0xf]
        %v1447 = vunpack.c.l.b16 %v1375
        %v1448 = vunpack.c.l.b16 %v1376
        %v1449 = vunpack.c.l.b16 %v1377
        %v1450 = vunpack.c.l.b16 %v1378
        %v1451 = vunpack.c.l.b16 %v1379
        %v1452 = vunpack.c.l.b16 %v1380
        %v1453 = vunpack.c.l.b16 %v1381
        %v1454 = vunpack.c.l.b16 %v1382
        %v1455 = vunpack.c.l.b16 %v1383
        %v1456 = vunpack.c.l.b16 %v1384
        %v1457 = vunpack.c.l.b16 %v1385
        %v1458 = vunpack.c.l.b16 %v1386
        %v1459 = vunpack.c.l.b16 %v1387
        %v1460 = vunpack.c.l.b16 %v1388
        %v1461 = vunpack.c.l.b16 %v1389
        %v1462 = vunpack.c.l.b16 %v1390
        %v1463 = vunpack.c.l.b16 %v1391
        %v1464 = vunpack.c.l.b16 %v1392
        %v1465 = vunpack.c.l.b16 %v1393
        %v1466 = vunpack.c.l.b16 %v1394
        %v1467 = vunpack.c.l.b16 %v1395
        %v1468 = vunpack.c.l.b16 %v1396
        %v1469 = vunpack.c.l.b16 %v1397
        %v1470 = vunpack.c.l.b16 %v1398
        %v1471 = vpack.c.b16 %v1448, %v1447
        %v1472 = vpack.c.b16 %v1450, %v1449
        %v1473 = vpack.c.b16 %v1452, %v1451
        %v1474 = vpack.c.b16 %v1454, %v1453
        %v1475 = vpack.c.b16 %v1456, %v1455
        %v1476 = vpack.c.b16 %v1458, %v1457
        %v1477 = vpack.c.b16 %v1460, %v1459
        %v1478 = vpack.c.b16 %v1462, %v1461
        %v1479 = vpack.c.b16 %v1464, %v1463
        %v1480 = vpack.c.b16 %v1466, %v1465
        %v1481 = vpack.c.b16 %v1468, %v1467
        %v1482 = vpack.c.b16 %v1470, %v1469
        %v1496 = vsel %vm281, %v1248, 0
        %v1499 = vsel %vm281, %v1251, 0
        %v1502 = vsel %vm281, %v1254, 0
        %v1505 = vsel %vm281, %v1257, 0
        %v1508 = vsel %vm281, %v1260, 0
        %v1511 = vsel %vm281, %v1263, 0
        %v1514 = vsel %vm281, %v1266, 0
        %v1517 = vsel %vm281, %v1269, 0
        %v1520 = vsel %vm281, %v1272, 0
        %v1523 = vsel %vm281, %v1275, 0
        %v1526 = vsel %vm281, %v1278, 0
        %v1529 = vsel %vm281, %v1281, 0
        %v1532 = vsel %vm281, %v1284, 0
        %v1535 = vsel %vm281, %v1287, 0
        %v1538 = vsel %vm281, %v1290, 0
        %v1541 = vsel %vm281, %v1293, 0
        %1543 = vmatprep.subr.bf16.mxu0 0
        %1544 = vmatpush1.bf16.msra.mxu0 %v1478
        %1545 = vmatprep.subr.bf16.mxu0 0
        %1546 = vmatpush1.bf16.msra.mxu0 %v1477
        %1547 = vmatprep.subr.bf16.mxu0 0
        %1548 = vmatpush1.bf16.msra.mxu0 %v1476
        %1549 = vmatprep.subr.bf16.mxu0 0
        %1550 = vmatpush1.bf16.msra.mxu0 %v1475
        %1551 = vmatprep.subr.bf16.mxu0 0
        %1552 = vmatpush1.bf16.msra.mxu0 %v1474
        %1553 = vmatprep.subr.bf16.mxu0 0
        %1554 = vmatpush1.bf16.msra.mxu0 %v1473
        %1555 = vmatprep.subr.bf16.mxu0 0
        %1556 = vmatpush1.bf16.msra.mxu0 %v1472
        %1557 = vmatprep.subr.bf16.mxu0 0
        %1558 = vmatpush1.bf16.msra.mxu0 %v1471
        %1559 = vmatprep.subr.bf16.mxu0 0
        %1560 = vmatpush2.bf16.msra.mxu0 0
        %1561 = vmatprep.subr.bf16.mxu0 0
        %1562 = vmatpush2.bf16.msra.mxu0 0
        %1563 = vmatprep.subr.bf16.mxu0 0
        %1564 = vmatpush2.bf16.msra.mxu0 0
        %1565 = vmatprep.subr.bf16.mxu0 0
        %1566 = vmatpush2.bf16.msra.mxu0 0
        %1567 = vmatprep.subr.bf16.mxu0 0
        %1568 = vmatpush2.bf16.msra.mxu0 %v1482
        %1569 = vmatprep.subr.bf16.mxu0 0
        %1570 = vmatpush2.bf16.msra.mxu0 %v1481
        %1571 = vmatprep.subr.bf16.mxu0 0
        %1572 = vmatpush2.bf16.msra.mxu0 %v1480
        %1573 = vmatprep.subr.bf16.mxu0 0
        %1574 = vmatpush2.bf16.msra.mxu0 %v1479
        %1575 = vmatprep.mubr.bf16.mxu0 %v1496
        %1576 = vmatmul.mubr.bf16.gmra.mxu0 %v1301
        %v1577 = vpop.f32.mrf.mxu0
        %v1578 = vadd.f32 0.0, %v1577
        %v1579 = vpop.f32.mrf.mxu0
        %v1580 = vpop.f32.mrf.mxu0
        %v1581 = vadd.f32 0.0, %v1580
        %v1582 = vpop.f32.mrf.mxu0
        %1583 = vmatprep.mubr.bf16.mxu0 %v1499
        %1584 = vmatmul.mubr.bf16.gmra.mxu0 %v1304
        %v1585 = vpop.f32.mrf.mxu0
        %v1586 = vadd.f32 0.0, %v1585
        %v1587 = vpop.f32.mrf.mxu0
        %v1588 = vpop.f32.mrf.mxu0
        %v1589 = vadd.f32 0.0, %v1588
        %v1590 = vpop.f32.mrf.mxu0
        %1591 = vmatprep.mubr.bf16.mxu0 %v1502
        %1592 = vmatmul.mubr.bf16.gmra.mxu0 %v1307
        %v1593 = vpop.f32.mrf.mxu0
        %v1594 = vadd.f32 0.0, %v1593
        %v1595 = vpop.f32.mrf.mxu0
        %v1596 = vpop.f32.mrf.mxu0
        %v1597 = vadd.f32 0.0, %v1596
        %v1598 = vpop.f32.mrf.mxu0
        %1599 = vmatprep.mubr.bf16.mxu0 %v1505
        %1600 = vmatmul.mubr.bf16.gmra.mxu0 %v1310
        %v1601 = vpop.f32.mrf.mxu0
        %v1602 = vadd.f32 0.0, %v1601
        %v1603 = vpop.f32.mrf.mxu0
        %v1604 = vpop.f32.mrf.mxu0
        %v1605 = vadd.f32 0.0, %v1604
        %v1606 = vpop.f32.mrf.mxu0
        %1607 = vmatprep.mubr.bf16.mxu0 %v1508
        %1608 = vmatmul.mubr.bf16.gmra.mxu0 %v1313
        %v1609 = vpop.f32.mrf.mxu0
        %v1610 = vadd.f32 0.0, %v1609
        %v1611 = vpop.f32.mrf.mxu0
        %v1612 = vpop.f32.mrf.mxu0
        %v1613 = vadd.f32 0.0, %v1612
        %v1614 = vpop.f32.mrf.mxu0
        %1615 = vmatprep.mubr.bf16.mxu0 %v1511
        %1616 = vmatmul.mubr.bf16.gmra.mxu0 %v1316
        %v1617 = vpop.f32.mrf.mxu0
        %v1618 = vadd.f32 0.0, %v1617
        %v1619 = vpop.f32.mrf.mxu0
        %v1620 = vpop.f32.mrf.mxu0
        %v1621 = vadd.f32 0.0, %v1620
        %v1622 = vpop.f32.mrf.mxu0
        %1623 = vmatprep.mubr.bf16.mxu0 %v1514
        %1624 = vmatmul.mubr.bf16.gmra.mxu0 %v1319
        %v1625 = vpop.f32.mrf.mxu0
        %v1626 = vadd.f32 0.0, %v1625
        %v1627 = vpop.f32.mrf.mxu0
        %v1628 = vpop.f32.mrf.mxu0
        %v1629 = vadd.f32 0.0, %v1628
        %v1630 = vpop.f32.mrf.mxu0
        %1631 = vmatprep.mubr.bf16.mxu0 %v1517
        %1632 = vmatmul.mubr.bf16.gmra.mxu0 %v1322
        %v1633 = vpop.f32.mrf.mxu0
        %v1634 = vadd.f32 0.0, %v1633
        %v1635 = vpop.f32.mrf.mxu0
        %v1636 = vpop.f32.mrf.mxu0
        %v1637 = vadd.f32 0.0, %v1636
        %v1638 = vpop.f32.mrf.mxu0
        %1639 = vmatprep.mubr.bf16.mxu0 %v1520
        %1640 = vmatmul.mubr.bf16.gmra.mxu0 %v1325
        %v1641 = vpop.f32.mrf.mxu0
        %v1642 = vadd.f32 0.0, %v1641
        %v1643 = vpop.f32.mrf.mxu0
        %v1644 = vpop.f32.mrf.mxu0
        %v1645 = vadd.f32 0.0, %v1644
        %v1646 = vpop.f32.mrf.mxu0
        %1647 = vmatprep.mubr.bf16.mxu0 %v1523
        %1648 = vmatmul.mubr.bf16.gmra.mxu0 %v1328
        %v1649 = vpop.f32.mrf.mxu0
        %v1650 = vadd.f32 0.0, %v1649
        %v1651 = vpop.f32.mrf.mxu0
        %v1652 = vpop.f32.mrf.mxu0
        %v1653 = vadd.f32 0.0, %v1652
        %v1654 = vpop.f32.mrf.mxu0
        %1655 = vmatprep.mubr.bf16.mxu0 %v1526
        %1656 = vmatmul.mubr.bf16.gmra.mxu0 %v1331
        %v1657 = vpop.f32.mrf.mxu0
        %v1658 = vadd.f32 0.0, %v1657
        %v1659 = vpop.f32.mrf.mxu0
        %v1660 = vpop.f32.mrf.mxu0
        %v1661 = vadd.f32 0.0, %v1660
        %v1662 = vpop.f32.mrf.mxu0
        %1663 = vmatprep.mubr.bf16.mxu0 %v1529
        %1664 = vmatmul.mubr.bf16.gmra.mxu0 %v1334
        %v1665 = vpop.f32.mrf.mxu0
        %v1666 = vadd.f32 0.0, %v1665
        %v1667 = vpop.f32.mrf.mxu0
        %v1668 = vpop.f32.mrf.mxu0
        %v1669 = vadd.f32 0.0, %v1668
        %v1670 = vpop.f32.mrf.mxu0
        %1671 = vmatprep.mubr.bf16.mxu0 %v1532
        %1672 = vmatmul.mubr.bf16.gmra.mxu0 %v1337
        %v1673 = vpop.f32.mrf.mxu0
        %v1674 = vadd.f32 0.0, %v1673
        %v1675 = vpop.f32.mrf.mxu0
        %v1676 = vpop.f32.mrf.mxu0
        %v1677 = vadd.f32 0.0, %v1676
        %v1678 = vpop.f32.mrf.mxu0
        %1679 = vmatprep.mubr.bf16.mxu0 %v1535
        %1680 = vmatmul.mubr.bf16.gmra.mxu0 %v1340
        %v1681 = vpop.f32.mrf.mxu0
        %v1682 = vadd.f32 0.0, %v1681
        %v1683 = vpop.f32.mrf.mxu0
        %v1684 = vpop.f32.mrf.mxu0
        %v1685 = vadd.f32 0.0, %v1684
        %v1686 = vpop.f32.mrf.mxu0
        %1687 = vmatprep.mubr.bf16.mxu0 %v1538
        %1688 = vmatmul.mubr.bf16.gmra.mxu0 %v1343
        %v1689 = vpop.f32.mrf.mxu0
        %v1690 = vadd.f32 0.0, %v1689
        %v1691 = vpop.f32.mrf.mxu0
        %v1692 = vpop.f32.mrf.mxu0
        %v1693 = vadd.f32 0.0, %v1692
        %v1694 = vpop.f32.mrf.mxu0
        %1695 = vmatprep.mubr.bf16.mxu0 %v1541
        %1696 = vmatmul.mubr.bf16.gmra.mxu0 %v1346
        %v1697 = vpop.f32.mrf.mxu0
        %v1698 = vadd.f32 0.0, %v1697
        %v1699 = vpop.f32.mrf.mxu0
        %v1700 = vpop.f32.mrf.mxu0
        %v1701 = vadd.f32 0.0, %v1700
        %v1702 = vpop.f32.mrf.mxu0
        %1703 = vdwg.mxu0
        %v1728 = vunpack.c.l.b16 %v1351
        %v1729 = vunpack.c.l.b16 %v1352
        %v1730 = vunpack.c.l.b16 %v1353
        %v1731 = vunpack.c.l.b16 %v1354
        %v1732 = vunpack.c.l.b16 %v1355
        %v1733 = vunpack.c.l.b16 %v1356
        %v1734 = vunpack.c.l.b16 %v1357
        %v1735 = vunpack.c.l.b16 %v1358
        %v1736 = vunpack.c.l.b16 %v1359
        %v1737 = vunpack.c.l.b16 %v1360
        %v1738 = vunpack.c.l.b16 %v1361
        %v1739 = vunpack.c.l.b16 %v1362
        %v1740 = vunpack.c.l.b16 %v1363
        %v1741 = vunpack.c.l.b16 %v1364
        %v1742 = vunpack.c.l.b16 %v1365
        %v1743 = vunpack.c.l.b16 %v1366
        %v1744 = vunpack.c.l.b16 %v1367
        %v1745 = vunpack.c.l.b16 %v1368
        %v1746 = vunpack.c.l.b16 %v1369
        %v1747 = vunpack.c.l.b16 %v1370
        %v1748 = vunpack.c.l.b16 %v1371
        %v1749 = vunpack.c.l.b16 %v1372
        %v1750 = vunpack.c.l.b16 %v1373
        %v1751 = vunpack.c.l.b16 %v1374
        %v1752 = vpack.c.b16 %v1729, %v1728
        %v1753 = vpack.c.b16 %v1731, %v1730
        %v1754 = vpack.c.b16 %v1733, %v1732
        %v1755 = vpack.c.b16 %v1735, %v1734
        %v1756 = vpack.c.b16 %v1737, %v1736
        %v1757 = vpack.c.b16 %v1739, %v1738
        %v1758 = vpack.c.b16 %v1741, %v1740
        %v1759 = vpack.c.b16 %v1743, %v1742
        %v1760 = vpack.c.b16 %v1745, %v1744
        %v1761 = vpack.c.b16 %v1747, %v1746
        %v1762 = vpack.c.b16 %v1749, %v1748
        %v1763 = vpack.c.b16 %v1751, %v1750
        %v1777 = vsel %vm281, %v1245, 0
        %1779 = vmatprep.subr.bf16.mxu0 0
        %1780 = vmatpush1.bf16.msra.mxu0 %v1759
        %1781 = vmatprep.subr.bf16.mxu0 0
        %1782 = vmatpush1.bf16.msra.mxu0 %v1758
        %1783 = vmatprep.subr.bf16.mxu0 0
        %1784 = vmatpush1.bf16.msra.mxu0 %v1757
        %1785 = vmatprep.subr.bf16.mxu0 0
        %1786 = vmatpush1.bf16.msra.mxu0 %v1756
        %1787 = vmatprep.subr.bf16.mxu0 0
        %1788 = vmatpush1.bf16.msra.mxu0 %v1755
        %1789 = vmatprep.subr.bf16.mxu0 0
        %1790 = vmatpush1.bf16.msra.mxu0 %v1754
        %1791 = vmatprep.subr.bf16.mxu0 0
        %1792 = vmatpush1.bf16.msra.mxu0 %v1753
        %1793 = vmatprep.subr.bf16.mxu0 0
        %1794 = vmatpush1.bf16.msra.mxu0 %v1752
        %1795 = vmatprep.subr.bf16.mxu0 0
        %1796 = vmatpush2.bf16.msra.mxu0 0
        %1797 = vmatprep.subr.bf16.mxu0 0
        %1798 = vmatpush2.bf16.msra.mxu0 0
        %1799 = vmatprep.subr.bf16.mxu0 0
        %1800 = vmatpush2.bf16.msra.mxu0 0
        %1801 = vmatprep.subr.bf16.mxu0 0
        %1802 = vmatpush2.bf16.msra.mxu0 0
        %1803 = vmatprep.subr.bf16.mxu0 0
        %1804 = vmatpush2.bf16.msra.mxu0 %v1763
        %1805 = vmatprep.subr.bf16.mxu0 0
        %1806 = vmatpush2.bf16.msra.mxu0 %v1762
        %1807 = vmatprep.subr.bf16.mxu0 0
        %1808 = vmatpush2.bf16.msra.mxu0 %v1761
        %1809 = vmatprep.subr.bf16.mxu0 0
        %1810 = vmatpush2.bf16.msra.mxu0 %v1760
        %1811 = vmatprep.mubr.bf16.mxu0 %v1777
        %1812 = vmatmul.mubr.bf16.gmra.mxu0 %v1298
        %v1813 = vpop.f32.mrf.mxu0
        %v1814 = vadd.f32 %v1578, %v1813
        %v1815 = vpop.f32.mrf.mxu0
        %v1816 = vpop.f32.mrf.mxu0
        %v1817 = vadd.f32 %v1581, %v1816
        %v1818 = vpop.f32.mrf.mxu0
        %1819 = vmatprep.mubr.bf16.mxu0 %v1496
        %1820 = vmatmul.mubr.bf16.gmra.mxu0 %v1301
        %v1821 = vpop.f32.mrf.mxu0
        %v1822 = vadd.f32 %v1586, %v1821
        %v1823 = vpop.f32.mrf.mxu0
        %v1824 = vpop.f32.mrf.mxu0
        %v1825 = vadd.f32 %v1589, %v1824
        %v1826 = vpop.f32.mrf.mxu0
        %1827 = vmatprep.mubr.bf16.mxu0 %v1499
        %1828 = vmatmul.mubr.bf16.gmra.mxu0 %v1304
        %v1829 = vpop.f32.mrf.mxu0
        %v1830 = vadd.f32 %v1594, %v1829
        %v1831 = vpop.f32.mrf.mxu0
        %v1832 = vpop.f32.mrf.mxu0
        %v1833 = vadd.f32 %v1597, %v1832
        %v1834 = vpop.f32.mrf.mxu0
        %1835 = vmatprep.mubr.bf16.mxu0 %v1502
        %1836 = vmatmul.mubr.bf16.gmra.mxu0 %v1307
        %v1837 = vpop.f32.mrf.mxu0
        %v1838 = vadd.f32 %v1602, %v1837
        %v1839 = vpop.f32.mrf.mxu0
        %v1840 = vpop.f32.mrf.mxu0
        %v1841 = vadd.f32 %v1605, %v1840
        %v1842 = vpop.f32.mrf.mxu0
        %1843 = vmatprep.mubr.bf16.mxu0 %v1505
        %1844 = vmatmul.mubr.bf16.gmra.mxu0 %v1310
        %v1845 = vpop.f32.mrf.mxu0
        %v1846 = vadd.f32 %v1610, %v1845
        %v1847 = vpop.f32.mrf.mxu0
        %v1848 = vpop.f32.mrf.mxu0
        %v1849 = vadd.f32 %v1613, %v1848
        %v1850 = vpop.f32.mrf.mxu0
        %1851 = vmatprep.mubr.bf16.mxu0 %v1508
        %1852 = vmatmul.mubr.bf16.gmra.mxu0 %v1313
        %v1853 = vpop.f32.mrf.mxu0
        %v1854 = vadd.f32 %v1618, %v1853
        %v1855 = vpop.f32.mrf.mxu0
        %v1856 = vpop.f32.mrf.mxu0
        %v1857 = vadd.f32 %v1621, %v1856
        %v1858 = vpop.f32.mrf.mxu0
        %1859 = vmatprep.mubr.bf16.mxu0 %v1511
        %1860 = vmatmul.mubr.bf16.gmra.mxu0 %v1316
        %v1861 = vpop.f32.mrf.mxu0
        %v1862 = vadd.f32 %v1626, %v1861
        %v1863 = vpop.f32.mrf.mxu0
        %v1864 = vpop.f32.mrf.mxu0
        %v1865 = vadd.f32 %v1629, %v1864
        %v1866 = vpop.f32.mrf.mxu0
        %1867 = vmatprep.mubr.bf16.mxu0 %v1514
        %1868 = vmatmul.mubr.bf16.gmra.mxu0 %v1319
        %v1869 = vpop.f32.mrf.mxu0
        %v1870 = vadd.f32 %v1634, %v1869
        %v1871 = vpop.f32.mrf.mxu0
        %v1872 = vpop.f32.mrf.mxu0
        %v1873 = vadd.f32 %v1637, %v1872
        %v1874 = vpop.f32.mrf.mxu0
        %1875 = vmatprep.mubr.bf16.mxu0 %v1517
        %1876 = vmatmul.mubr.bf16.gmra.mxu0 %v1322
        %v1877 = vpop.f32.mrf.mxu0
        %v1878 = vadd.f32 %v1642, %v1877
        %v1879 = vpop.f32.mrf.mxu0
        %v1880 = vpop.f32.mrf.mxu0
        %v1881 = vadd.f32 %v1645, %v1880
        %v1882 = vpop.f32.mrf.mxu0
        %1883 = vmatprep.mubr.bf16.mxu0 %v1520
        %1884 = vmatmul.mubr.bf16.gmra.mxu0 %v1325
        %v1885 = vpop.f32.mrf.mxu0
        %v1886 = vadd.f32 %v1650, %v1885
        %v1887 = vpop.f32.mrf.mxu0
        %v1888 = vpop.f32.mrf.mxu0
        %v1889 = vadd.f32 %v1653, %v1888
        %v1890 = vpop.f32.mrf.mxu0
        %1891 = vmatprep.mubr.bf16.mxu0 %v1523
        %1892 = vmatmul.mubr.bf16.gmra.mxu0 %v1328
        %v1893 = vpop.f32.mrf.mxu0
        %v1894 = vadd.f32 %v1658, %v1893
        %v1895 = vpop.f32.mrf.mxu0
        %v1896 = vpop.f32.mrf.mxu0
        %v1897 = vadd.f32 %v1661, %v1896
        %v1898 = vpop.f32.mrf.mxu0
        %1899 = vmatprep.mubr.bf16.mxu0 %v1526
        %1900 = vmatmul.mubr.bf16.gmra.mxu0 %v1331
        %v1901 = vpop.f32.mrf.mxu0
        %v1902 = vadd.f32 %v1666, %v1901
        %v1903 = vpop.f32.mrf.mxu0
        %v1904 = vpop.f32.mrf.mxu0
        %v1905 = vadd.f32 %v1669, %v1904
        %v1906 = vpop.f32.mrf.mxu0
        %1907 = vmatprep.mubr.bf16.mxu0 %v1529
        %1908 = vmatmul.mubr.bf16.gmra.mxu0 %v1334
        %v1909 = vpop.f32.mrf.mxu0
        %v1910 = vadd.f32 %v1674, %v1909
        %v1911 = vpop.f32.mrf.mxu0
        %v1912 = vpop.f32.mrf.mxu0
        %v1913 = vadd.f32 %v1677, %v1912
        %v1914 = vpop.f32.mrf.mxu0
        %1915 = vmatprep.mubr.bf16.mxu0 %v1532
        %1916 = vmatmul.mubr.bf16.gmra.mxu0 %v1337
        %v1917 = vpop.f32.mrf.mxu0
        %v1918 = vadd.f32 %v1682, %v1917
        %v1919 = vpop.f32.mrf.mxu0
        %v1920 = vpop.f32.mrf.mxu0
        %v1921 = vadd.f32 %v1685, %v1920
        %v1922 = vpop.f32.mrf.mxu0
        %1923 = vmatprep.mubr.bf16.mxu0 %v1535
        %1924 = vmatmul.mubr.bf16.gmra.mxu0 %v1340
        %v1925 = vpop.f32.mrf.mxu0
        %v1926 = vadd.f32 %v1690, %v1925
        %v1927 = vpop.f32.mrf.mxu0
        %v1928 = vpop.f32.mrf.mxu0
        %v1929 = vadd.f32 %v1693, %v1928
        %v1930 = vpop.f32.mrf.mxu0
        %1931 = vmatprep.mubr.bf16.mxu0 %v1538
        %1932 = vmatmul.mubr.bf16.gmra.mxu0 %v1343
        %v1933 = vpop.f32.mrf.mxu0
        %v1934 = vadd.f32 %v1698, %v1933
        %v1935 = vpop.f32.mrf.mxu0
        %v1936 = vpop.f32.mrf.mxu0
        %v1937 = vadd.f32 %v1701, %v1936
        %v1938 = vpop.f32.mrf.mxu0
        %1939 = vdwg.mxu0
        %v1964 = vunpack.c.l.b16 %v1399
        %v1965 = vunpack.c.l.b16 %v1400
        %v1966 = vunpack.c.l.b16 %v1401
        %v1967 = vunpack.c.l.b16 %v1402
        %v1968 = vunpack.c.l.b16 %v1403
        %v1969 = vunpack.c.l.b16 %v1404
        %v1970 = vunpack.c.l.b16 %v1405
        %v1971 = vunpack.c.l.b16 %v1406
        %v1972 = vunpack.c.l.b16 %v1407
        %v1973 = vunpack.c.l.b16 %v1408
        %v1974 = vunpack.c.l.b16 %v1409
        %v1975 = vunpack.c.l.b16 %v1410
        %v1976 = vunpack.c.l.b16 %v1411
        %v1977 = vunpack.c.l.b16 %v1412
        %v1978 = vunpack.c.l.b16 %v1413
        %v1979 = vunpack.c.l.b16 %v1414
        %v1980 = vunpack.c.l.b16 %v1415
        %v1981 = vunpack.c.l.b16 %v1416
        %v1982 = vunpack.c.l.b16 %v1417
        %v1983 = vunpack.c.l.b16 %v1418
        %v1984 = vunpack.c.l.b16 %v1419
        %v1985 = vunpack.c.l.b16 %v1420
        %v1986 = vunpack.c.l.b16 %v1421
        %v1987 = vunpack.c.l.b16 %v1422
        %v1988 = vpack.c.b16 %v1965, %v1964
        %v1989 = vpack.c.b16 %v1967, %v1966
        %v1990 = vpack.c.b16 %v1969, %v1968
        %v1991 = vpack.c.b16 %v1971, %v1970
        %v1992 = vpack.c.b16 %v1973, %v1972
        %v1993 = vpack.c.b16 %v1975, %v1974
        %v1994 = vpack.c.b16 %v1977, %v1976
        %v1995 = vpack.c.b16 %v1979, %v1978
        %v1996 = vpack.c.b16 %v1981, %v1980
        %v1997 = vpack.c.b16 %v1983, %v1982
        %v1998 = vpack.c.b16 %v1985, %v1984
        %v1999 = vpack.c.b16 %v1987, %v1986
        %v2013 = vsel %vm281, %v1296, 0
        %2015 = vmatprep.subr.bf16.mxu0 0
        %2016 = vmatpush1.bf16.msra.mxu0 %v1995
        %2017 = vmatprep.subr.bf16.mxu0 0
        %2018 = vmatpush1.bf16.msra.mxu0 %v1994
        %2019 = vmatprep.subr.bf16.mxu0 0
        %2020 = vmatpush1.bf16.msra.mxu0 %v1993
        %2021 = vmatprep.subr.bf16.mxu0 0
        %2022 = vmatpush1.bf16.msra.mxu0 %v1992
        %2023 = vmatprep.subr.bf16.mxu0 0
        %2024 = vmatpush1.bf16.msra.mxu0 %v1991
        %2025 = vmatprep.subr.bf16.mxu0 0
        %2026 = vmatpush1.bf16.msra.mxu0 %v1990
        %2027 = vmatprep.subr.bf16.mxu0 0
        %2028 = vmatpush1.bf16.msra.mxu0 %v1989
        %2029 = vmatprep.subr.bf16.mxu0 0
        %2030 = vmatpush1.bf16.msra.mxu0 %v1988
        %2031 = vmatprep.subr.bf16.mxu0 0
        %2032 = vmatpush2.bf16.msra.mxu0 0
        %2033 = vmatprep.subr.bf16.mxu0 0
        %2034 = vmatpush2.bf16.msra.mxu0 0
        %2035 = vmatprep.subr.bf16.mxu0 0
        %2036 = vmatpush2.bf16.msra.mxu0 0
        %2037 = vmatprep.subr.bf16.mxu0 0
        %2038 = vmatpush2.bf16.msra.mxu0 0
        %2039 = vmatprep.subr.bf16.mxu0 0
        %2040 = vmatpush2.bf16.msra.mxu0 %v1999
        %2041 = vmatprep.subr.bf16.mxu0 0
        %2042 = vmatpush2.bf16.msra.mxu0 %v1998
        %2043 = vmatprep.subr.bf16.mxu0 0
        %2044 = vmatpush2.bf16.msra.mxu0 %v1997
        %2045 = vmatprep.subr.bf16.mxu0 0
        %2046 = vmatpush2.bf16.msra.mxu0 %v1996
        %2047 = vmatprep.mubr.bf16.mxu0 %v1499
        %2048 = vmatmul.mubr.bf16.gmra.mxu0 %v1304
        %v2049 = vpop.f32.mrf.mxu0
        %v2050 = vadd.f32 0.0, %v2049
        %v2051 = vpop.f32.mrf.mxu0
        %v2052 = vpop.f32.mrf.mxu0
        %v2053 = vadd.f32 0.0, %v2052
        %v2054 = vpop.f32.mrf.mxu0
        %2055 = vmatprep.mubr.bf16.mxu0 %v1502
        %2056 = vmatmul.mubr.bf16.gmra.mxu0 %v1307
        %v2057 = vpop.f32.mrf.mxu0
        %v2058 = vadd.f32 0.0, %v2057
        %v2059 = vpop.f32.mrf.mxu0
        %v2060 = vpop.f32.mrf.mxu0
        %v2061 = vadd.f32 0.0, %v2060
        %v2062 = vpop.f32.mrf.mxu0
        %2063 = vmatprep.mubr.bf16.mxu0 %v1505
        %2064 = vmatmul.mubr.bf16.gmra.mxu0 %v1310
        %v2065 = vpop.f32.mrf.mxu0
        %v2066 = vadd.f32 0.0, %v2065
        %v2067 = vpop.f32.mrf.mxu0
        %v2068 = vpop.f32.mrf.mxu0
        %v2069 = vadd.f32 0.0, %v2068
        %v2070 = vpop.f32.mrf.mxu0
        %2071 = vmatprep.mubr.bf16.mxu0 %v1508
        %2072 = vmatmul.mubr.bf16.gmra.mxu0 %v1313
        %v2073 = vpop.f32.mrf.mxu0
        %v2074 = vadd.f32 0.0, %v2073
        %v2075 = vpop.f32.mrf.mxu0
        %v2076 = vpop.f32.mrf.mxu0
        %v2077 = vadd.f32 0.0, %v2076
        %v2078 = vpop.f32.mrf.mxu0
        %2079 = vmatprep.mubr.bf16.mxu0 %v1511
        %2080 = vmatmul.mubr.bf16.gmra.mxu0 %v1316
        %v2081 = vpop.f32.mrf.mxu0
        %v2082 = vadd.f32 0.0, %v2081
        %v2083 = vpop.f32.mrf.mxu0
        %v2084 = vpop.f32.mrf.mxu0
        %v2085 = vadd.f32 0.0, %v2084
        %v2086 = vpop.f32.mrf.mxu0
        %2087 = vmatprep.mubr.bf16.mxu0 %v1514
        %2088 = vmatmul.mubr.bf16.gmra.mxu0 %v1319
        %v2089 = vpop.f32.mrf.mxu0
        %v2090 = vadd.f32 0.0, %v2089
        %v2091 = vpop.f32.mrf.mxu0
        %v2092 = vpop.f32.mrf.mxu0
        %v2093 = vadd.f32 0.0, %v2092
        %v2094 = vpop.f32.mrf.mxu0
        %2095 = vmatprep.mubr.bf16.mxu0 %v1517
        %2096 = vmatmul.mubr.bf16.gmra.mxu0 %v1322
        %v2097 = vpop.f32.mrf.mxu0
        %v2098 = vadd.f32 0.0, %v2097
        %v2099 = vpop.f32.mrf.mxu0
        %v2100 = vpop.f32.mrf.mxu0
        %v2101 = vadd.f32 0.0, %v2100
        %v2102 = vpop.f32.mrf.mxu0
        %2103 = vmatprep.mubr.bf16.mxu0 %v1520
        %2104 = vmatmul.mubr.bf16.gmra.mxu0 %v1325
        %v2105 = vpop.f32.mrf.mxu0
        %v2106 = vadd.f32 0.0, %v2105
        %v2107 = vpop.f32.mrf.mxu0
        %v2108 = vpop.f32.mrf.mxu0
        %v2109 = vadd.f32 0.0, %v2108
        %v2110 = vpop.f32.mrf.mxu0
        %2111 = vmatprep.mubr.bf16.mxu0 %v1523
        %2112 = vmatmul.mubr.bf16.gmra.mxu0 %v1328
        %v2113 = vpop.f32.mrf.mxu0
        %v2114 = vadd.f32 0.0, %v2113
        %v2115 = vpop.f32.mrf.mxu0
        %v2116 = vpop.f32.mrf.mxu0
        %v2117 = vadd.f32 0.0, %v2116
        %v2118 = vpop.f32.mrf.mxu0
        %2119 = vmatprep.mubr.bf16.mxu0 %v1526
        %2120 = vmatmul.mubr.bf16.gmra.mxu0 %v1331
        %v2121 = vpop.f32.mrf.mxu0
        %v2122 = vadd.f32 0.0, %v2121
        %v2123 = vpop.f32.mrf.mxu0
        %v2124 = vpop.f32.mrf.mxu0
        %v2125 = vadd.f32 0.0, %v2124
        %v2126 = vpop.f32.mrf.mxu0
        %2127 = vmatprep.mubr.bf16.mxu0 %v1529
        %2128 = vmatmul.mubr.bf16.gmra.mxu0 %v1334
        %v2129 = vpop.f32.mrf.mxu0
        %v2130 = vadd.f32 0.0, %v2129
        %v2131 = vpop.f32.mrf.mxu0
        %v2132 = vpop.f32.mrf.mxu0
        %v2133 = vadd.f32 0.0, %v2132
        %v2134 = vpop.f32.mrf.mxu0
        %2135 = vmatprep.mubr.bf16.mxu0 %v1532
        %2136 = vmatmul.mubr.bf16.gmra.mxu0 %v1337
        %v2137 = vpop.f32.mrf.mxu0
        %v2138 = vadd.f32 0.0, %v2137
        %v2139 = vpop.f32.mrf.mxu0
        %v2140 = vpop.f32.mrf.mxu0
        %v2141 = vadd.f32 0.0, %v2140
        %v2142 = vpop.f32.mrf.mxu0
        %2143 = vmatprep.mubr.bf16.mxu0 %v1535
        %2144 = vmatmul.mubr.bf16.gmra.mxu0 %v1340
        %v2145 = vpop.f32.mrf.mxu0
        %v2146 = vadd.f32 0.0, %v2145
        %v2147 = vpop.f32.mrf.mxu0
        %v2148 = vpop.f32.mrf.mxu0
        %v2149 = vadd.f32 0.0, %v2148
        %v2150 = vpop.f32.mrf.mxu0
        %2151 = vmatprep.mubr.bf16.mxu0 %v1538
        %2152 = vmatmul.mubr.bf16.gmra.mxu0 %v1343
        %v2153 = vpop.f32.mrf.mxu0
        %v2154 = vadd.f32 0.0, %v2153
        %v2155 = vpop.f32.mrf.mxu0
        %v2156 = vpop.f32.mrf.mxu0
        %v2157 = vadd.f32 0.0, %v2156
        %v2158 = vpop.f32.mrf.mxu0
        %2159 = vmatprep.mubr.bf16.mxu0 %v1541
        %2160 = vmatmul.mubr.bf16.gmra.mxu0 %v1346
        %v2161 = vpop.f32.mrf.mxu0
        %v2162 = vadd.f32 0.0, %v2161
        %v2163 = vpop.f32.mrf.mxu0
        %v2164 = vpop.f32.mrf.mxu0
        %v2165 = vadd.f32 0.0, %v2164
        %v2166 = vpop.f32.mrf.mxu0
        %2167 = vmatprep.mubr.bf16.mxu0 %v2013
        %2168 = vmatmul.mubr.bf16.gmra.mxu0 %v1349
        %v2169 = vpop.f32.mrf.mxu0
        %v2170 = vadd.f32 0.0, %v2169
        %v2171 = vpop.f32.mrf.mxu0
        %v2172 = vpop.f32.mrf.mxu0
        %v2173 = vadd.f32 0.0, %v2172
        %v2174 = vpop.f32.mrf.mxu0
        %2175 = vdwg.mxu0
        %v2176 = vadd.f32 %v1814, %v2050
        %v2177 = vadd.f32 %v1817, %v2053
        %v2178 = vadd.f32 %v1822, %v2058
        %v2179 = vadd.f32 %v1825, %v2061
        %v2180 = vadd.f32 %v1830, %v2066
        %v2181 = vadd.f32 %v1833, %v2069
        %v2182 = vadd.f32 %v1838, %v2074
        %v2183 = vadd.f32 %v1841, %v2077
        %v2184 = vadd.f32 %v1846, %v2082
        %v2185 = vadd.f32 %v1849, %v2085
        %v2186 = vadd.f32 %v1854, %v2090
        %v2187 = vadd.f32 %v1857, %v2093
        %v2188 = vadd.f32 %v1862, %v2098
        %v2189 = vadd.f32 %v1865, %v2101
        %v2190 = vadd.f32 %v1870, %v2106
        %v2191 = vadd.f32 %v1873, %v2109
        %v2192 = vadd.f32 %v1878, %v2114
        %v2193 = vadd.f32 %v1881, %v2117
        %v2194 = vadd.f32 %v1886, %v2122
        %v2195 = vadd.f32 %v1889, %v2125
        %v2196 = vadd.f32 %v1894, %v2130
        %v2197 = vadd.f32 %v1897, %v2133
        %v2198 = vadd.f32 %v1902, %v2138
        %v2199 = vadd.f32 %v1905, %v2141
        %v2200 = vadd.f32 %v1910, %v2146
        %v2201 = vadd.f32 %v1913, %v2149
        %v2202 = vadd.f32 %v1918, %v2154
        %v2203 = vadd.f32 %v1921, %v2157
        %v2204 = vadd.f32 %v1926, %v2162
        %v2205 = vadd.f32 %v1929, %v2165
        %v2206 = vadd.f32 %v1934, %v2170
        %v2207 = vadd.f32 %v1937, %v2173
        %v2208 = vld [vmem:[%s2] sm:$0x1]
        %v2210 = vlaneseq
        %v2211 = vshrl.u32 %v2210, 7
        %v2212 = vsub.s32 0, %v2211
        %v2213 = vrot.slane %v2208, %v2212
        %v2215 = vadd.f32 %v2176, %v2213
        %v2216 = vadd.f32 %v2177, %v2213
        %v2217 = vadd.f32 %v2178, %v2213
        %v2218 = vadd.f32 %v2179, %v2213
        %v2219 = vadd.f32 %v2180, %v2213
        %v2220 = vadd.f32 %v2181, %v2213
        %v2221 = vadd.f32 %v2182, %v2213
        %v2222 = vadd.f32 %v2183, %v2213
        %v2223 = vadd.f32 %v2184, %v2213
        %v2224 = vadd.f32 %v2185, %v2213
        %v2225 = vadd.f32 %v2186, %v2213
        %v2226 = vadd.f32 %v2187, %v2213
        %v2227 = vadd.f32 %v2188, %v2213
        %v2228 = vadd.f32 %v2189, %v2213
        %v2229 = vadd.f32 %v2190, %v2213
        %v2230 = vadd.f32 %v2191, %v2213
        %v2231 = vadd.f32 %v2192, %v2213
        %v2232 = vadd.f32 %v2193, %v2213
        %v2233 = vadd.f32 %v2194, %v2213
        %v2234 = vadd.f32 %v2195, %v2213
        %v2235 = vadd.f32 %v2196, %v2213
        %v2236 = vadd.f32 %v2197, %v2213
        %v2237 = vadd.f32 %v2198, %v2213
        %v2238 = vadd.f32 %v2199, %v2213
        %v2239 = vadd.f32 %v2200, %v2213
        %v2240 = vadd.f32 %v2201, %v2213
        %v2241 = vadd.f32 %v2202, %v2213
        %v2242 = vadd.f32 %v2203, %v2213
        %v2243 = vadd.f32 %v2204, %v2213
        %v2244 = vadd.f32 %v2205, %v2213
        %v2245 = vadd.f32 %v2206, %v2213
        %v2246 = vadd.f32 %v2207, %v2213
        %v2247 = vmax.f32 %v2215, 0.0
        %v2248 = vmax.f32 %v2216, 0.0
        %v2249 = vmax.f32 %v2217, 0.0
        %v2250 = vmax.f32 %v2218, 0.0
        %v2251 = vmax.f32 %v2219, 0.0
        %v2252 = vmax.f32 %v2220, 0.0
        %v2253 = vmax.f32 %v2221, 0.0
        %v2254 = vmax.f32 %v2222, 0.0
        %v2255 = vmax.f32 %v2223, 0.0
        %v2256 = vmax.f32 %v2224, 0.0
        %v2257 = vmax.f32 %v2225, 0.0
        %v2258 = vmax.f32 %v2226, 0.0
        %v2259 = vmax.f32 %v2227, 0.0
        %v2260 = vmax.f32 %v2228, 0.0
        %v2261 = vmax.f32 %v2229, 0.0
        %v2262 = vmax.f32 %v2230, 0.0
        %v2263 = vmax.f32 %v2231, 0.0
        %v2264 = vmax.f32 %v2232, 0.0
        %v2265 = vmax.f32 %v2233, 0.0
        %v2266 = vmax.f32 %v2234, 0.0
        %v2267 = vmax.f32 %v2235, 0.0
        %v2268 = vmax.f32 %v2236, 0.0
        %v2269 = vmax.f32 %v2237, 0.0
        %v2270 = vmax.f32 %v2238, 0.0
        %v2271 = vmax.f32 %v2239, 0.0
        %v2272 = vmax.f32 %v2240, 0.0
        %v2273 = vmax.f32 %v2241, 0.0
        %v2274 = vmax.f32 %v2242, 0.0
        %v2275 = vmax.f32 %v2243, 0.0
        %v2276 = vmax.f32 %v2244, 0.0
        %v2277 = vmax.f32 %v2245, 0.0
        %v2278 = vmax.f32 %v2246, 0.0
        %2279 = vst.msk [vmem:[%s290 + $0x1] sm:$0xff] %vm281, %v2247
        %2280 = vst.msk [vmem:[%s290 + $0x9] sm:$0xff] %vm281, %v2248
        %2281 = vst.msk [vmem:[%s290 + $0x19] sm:$0xff] %vm281, %v2249
        %2282 = vst.msk [vmem:[%s290 + $0x21] sm:$0xff] %vm281, %v2250
        %2283 = vst.msk [vmem:[%s290 + $0x31] sm:$0xff] %vm281, %v2251
        %2284 = vst.msk [vmem:[%s290 + $0x39] sm:$0xff] %vm281, %v2252
        %2285 = vst.msk [vmem:[%s290 + $0x49] sm:$0xff] %vm281, %v2253
        %2286 = vst.msk [vmem:[%s290 + $0x51] sm:$0xff] %vm281, %v2254
        %2287 = vst.msk [vmem:[%s290 + $0x61] sm:$0xff] %vm281, %v2255
        %2288 = vst.msk [vmem:[%s290 + $0x69] sm:$0xff] %vm281, %v2256
        %2289 = vst.msk [vmem:[%s290 + $0x79] sm:$0xff] %vm281, %v2257
        %2290 = vst.msk [vmem:[%s290 + $0x81] sm:$0xff] %vm281, %v2258
        %2291 = vst.msk [vmem:[%s290 + $0x91] sm:$0xff] %vm281, %v2259
        %2292 = vst.msk [vmem:[%s290 + $0x99] sm:$0xff] %vm281, %v2260
        %2293 = vst.msk [vmem:[%s290 + $0xa9] sm:$0xff] %vm281, %v2261
        %2294 = vst.msk [vmem:[%s290 + $0xb1] sm:$0xff] %vm281, %v2262
        %2295 = vst.msk [vmem:[%s290 + $0xc1] sm:$0xff] %vm281, %v2263
        %2296 = vst.msk [vmem:[%s290 + $0xc9] sm:$0xff] %vm281, %v2264
        %2297 = vst.msk [vmem:[%s290 + $0xd9] sm:$0xff] %vm281, %v2265
        %2298 = vst.msk [vmem:[%s290 + $0xe1] sm:$0xff] %vm281, %v2266
        %2299 = vst.msk [vmem:[%s290 + $0xf1] sm:$0xff] %vm281, %v2267
        %2300 = vst.msk [vmem:[%s290 + $0xf9] sm:$0xff] %vm281, %v2268
        %2301 = vst.msk [vmem:[%s290 + $0x109] sm:$0xff] %vm281, %v2269
        %2302 = vst.msk [vmem:[%s290 + $0x111] sm:$0xff] %vm281, %v2270
        %2303 = vst.msk [vmem:[%s290 + $0x121] sm:$0xff] %vm281, %v2271
        %2304 = vst.msk [vmem:[%s290 + $0x129] sm:$0xff] %vm281, %v2272
        %2305 = vst.msk [vmem:[%s290 + $0x139] sm:$0xff] %vm281, %v2273
        %2306 = vst.msk [vmem:[%s290 + $0x141] sm:$0xff] %vm281, %v2274
        %2307 = vst.msk [vmem:[%s290 + $0x151] sm:$0xff] %vm281, %v2275
        %2308 = vst.msk [vmem:[%s290 + $0x159] sm:$0xff] %vm281, %v2276
        %2309 = vst.msk [vmem:[%s290 + $0x169] sm:$0xff] %vm281, %v2277
        %2310 = vst.msk [vmem:[%s290 + $0x171] sm:$0xff] %vm281, %v2278
        loop: start=0, step=1, limit=4
        $region33: #{flow_ref_net_forward.1} parent=31 // loop_pre_header
          _
        $region34: #{flow_ref_net_forward.1} parent=31 // loop_header
          %s2312 = sphi 0, %s2316
          %p2313 = scmp.ge.s32.totalorder %s2312, 4
        $region35: #{flow_ref_net_forward.1} parent=31 // loop_header_branch
          %2315 = sbr.rel (%p2313) target = $region39
        $region36: #{flow_ref_net_forward.1} parent=31 // loop_body
          %s2317 = smul.u32 %s2312, 2
          %s2318 = sadd.s32 %s2317, 1
          %s2319 = sadd.s32 %s2317, 2
          %v2320 = vld [vmem:[#allocation3] sm:$0xff]
          %v2321 = vld [vmem:[#allocation3 + $0x8] sm:$0xff]
          %v2322 = vld [vmem:[#allocation3 + $0x10] sm:$0x3]
          %v2323 = vld [vmem:[#allocation3 + $0x18] sm:$0xff]
          %v2324 = vld [vmem:[#allocation3 + $0x20] sm:$0xff]
          %v2325 = vld [vmem:[#allocation3 + $0x28] sm:$0x3]
          %v2326 = vld [vmem:[#allocation3 + $0x30] sm:$0xff]
          %v2327 = vld [vmem:[#allocation3 + $0x38] sm:$0xff]
          %v2328 = vld [vmem:[#allocation3 + $0x40] sm:$0x3]
          %v2329 = vld [vmem:[#allocation3 + $0x48] sm:$0xff]
          %v2330 = vld [vmem:[#allocation3 + $0x50] sm:$0xff]
          %v2331 = vld [vmem:[#allocation3 + $0x58] sm:$0x3]
          %v2332 = vld [vmem:[#allocation3 + $0x60] sm:$0xff]
          %v2333 = vld [vmem:[#allocation3 + $0x68] sm:$0xff]
          %v2334 = vld [vmem:[#allocation3 + $0x70] sm:$0x3]
          %v2335 = vld [vmem:[#allocation3 + $0x78] sm:$0xff]
          %v2336 = vld [vmem:[#allocation3 + $0x80] sm:$0xff]
          %v2337 = vld [vmem:[#allocation3 + $0x88] sm:$0x3]
          %v2338 = vld [vmem:[#allocation3 + $0x90] sm:$0xff]
          %v2339 = vld [vmem:[#allocation3 + $0x98] sm:$0xff]
          %v2340 = vld [vmem:[#allocation3 + $0xa0] sm:$0x3]
          %v2341 = vld [vmem:[#allocation3 + $0xa8] sm:$0xff]
          %v2342 = vld [vmem:[#allocation3 + $0xb0] sm:$0xff]
          %v2343 = vld [vmem:[#allocation3 + $0xb8] sm:$0x3]
          %v2344 = vld [vmem:[#allocation3 + $0xc0] sm:$0xff]
          %v2345 = vld [vmem:[#allocation3 + $0xc8] sm:$0xff]
          %v2346 = vld [vmem:[#allocation3 + $0xd0] sm:$0x3]
          %v2347 = vld [vmem:[#allocation3 + $0xd8] sm:$0xff]
          %v2348 = vld [vmem:[#allocation3 + $0xe0] sm:$0xff]
          %v2349 = vld [vmem:[#allocation3 + $0xe8] sm:$0x3]
          %v2350 = vld [vmem:[#allocation3 + $0xf0] sm:$0xff]
          %v2351 = vld [vmem:[#allocation3 + $0xf8] sm:$0xff]
          %v2352 = vld [vmem:[#allocation3 + $0x100] sm:$0x3]
          %v2353 = vld [vmem:[#allocation3 + $0x108] sm:$0xff]
          %v2354 = vld [vmem:[#allocation3 + $0x110] sm:$0xff]
          %v2355 = vld [vmem:[#allocation3 + $0x118] sm:$0x3]
          %v2356 = vld [vmem:[#allocation3 + $0x120] sm:$0xff]
          %v2357 = vld [vmem:[#allocation3 + $0x128] sm:$0xff]
          %v2358 = vld [vmem:[#allocation3 + $0x130] sm:$0x3]
          %v2359 = vld [vmem:[#allocation3 + $0x138] sm:$0xff]
          %v2360 = vld [vmem:[#allocation3 + $0x140] sm:$0xff]
          %v2361 = vld [vmem:[#allocation3 + $0x148] sm:$0x3]
          %v2362 = vld [vmem:[#allocation3 + $0x150] sm:$0xff]
          %v2363 = vld [vmem:[#allocation3 + $0x158] sm:$0xff]
          %v2364 = vld [vmem:[#allocation3 + $0x160] sm:$0x3]
          %v2365 = vld [vmem:[#allocation3 + $0x168] sm:$0xff]
          %v2366 = vld [vmem:[#allocation3 + $0x170] sm:$0xff]
          %v2367 = vld [vmem:[#allocation3 + $0x178] sm:$0x3]
          %v2368 = vld [vmem:[#allocation3 + $0x180] sm:$0xff]
          %v2369 = vld [vmem:[#allocation3 + $0x188] sm:$0xff]
          %v2370 = vld [vmem:[#allocation3 + $0x190] sm:$0x3]
          %v2371 = vld [vmem:[#allocation3 + $0x198] sm:$0xff]
          %v2372 = vld [vmem:[#allocation3 + $0x1a0] sm:$0xff]
          %v2373 = vld [vmem:[#allocation3 + $0x1a8] sm:$0x3]
          %v2374 = vpack.c.bf16 %v2321, %v2320
          %v2375 = vpack.c.bf16 %v2322, %v2322
          %v2376 = vpack.c.bf16 %v2324, %v2323
          %v2377 = vpack.c.bf16 %v2325, %v2325
          %v2378 = vpack.c.bf16 %v2327, %v2326
          %v2379 = vpack.c.bf16 %v2328, %v2328
          %v2380 = vpack.c.bf16 %v2330, %v2329
          %v2381 = vpack.c.bf16 %v2331, %v2331
          %v2382 = vpack.c.bf16 %v2333, %v2332
          %v2383 = vpack.c.bf16 %v2334, %v2334
          %v2384 = vpack.c.bf16 %v2336, %v2335
          %v2385 = vpack.c.bf16 %v2337, %v2337
          %v2386 = vpack.c.bf16 %v2339, %v2338
          %v2387 = vpack.c.bf16 %v2340, %v2340
          %v2388 = vpack.c.bf16 %v2342, %v2341
          %v2389 = vpack.c.bf16 %v2343, %v2343
          %v2390 = vpack.c.bf16 %v2345, %v2344
          %v2391 = vpack.c.bf16 %v2346, %v2346
          %v2392 = vpack.c.bf16 %v2348, %v2347
          %v2393 = vpack.c.bf16 %v2349, %v2349
          %v2394 = vpack.c.bf16 %v2351, %v2350
          %v2395 = vpack.c.bf16 %v2352, %v2352
          %v2396 = vpack.c.bf16 %v2354, %v2353
          %v2397 = vpack.c.bf16 %v2355, %v2355
          %v2398 = vpack.c.bf16 %v2357, %v2356
          %v2399 = vpack.c.bf16 %v2358, %v2358
          %v2400 = vpack.c.bf16 %v2360, %v2359
          %v2401 = vpack.c.bf16 %v2361, %v2361
          %v2402 = vpack.c.bf16 %v2363, %v2362
          %v2403 = vpack.c.bf16 %v2364, %v2364
          %v2404 = vpack.c.bf16 %v2366, %v2365
          %v2405 = vpack.c.bf16 %v2367, %v2367
          %v2406 = vpack.c.bf16 %v2369, %v2368
          %v2407 = vpack.c.bf16 %v2370, %v2370
          %v2408 = vpack.c.bf16 %v2372, %v2371
          %v2409 = vpack.c.bf16 %v2373, %v2373
          %v2411 = vshrl.u32 %v2374, 16
          %v2413 = vshll.u32 %v2374, 16
          %v2415 = vrot.slane %v2413, 1
          %v2416 = vor.u32 %v2411, %v2415
          %v2418 = vshll.u32 %v2375, 16
          %v2420 = vrot.slane %v2418, 1
          %v2421 = vsel %vm989, %v2416, %v2420
          %v2423 = vshrl.u32 %v2376, 16
          %v2425 = vshll.u32 %v2376, 16
          %v2427 = vrot.slane %v2425, 1
          %v2428 = vor.u32 %v2423, %v2427
          %v2430 = vshll.u32 %v2377, 16
          %v2432 = vrot.slane %v2430, 1
          %v2433 = vsel %vm989, %v2428, %v2432
          %v2435 = vshrl.u32 %v2378, 16
          %v2437 = vshll.u32 %v2378, 16
          %v2439 = vrot.slane %v2437, 1
          %v2440 = vor.u32 %v2435, %v2439
          %v2442 = vshll.u32 %v2379, 16
          %v2444 = vrot.slane %v2442, 1
          %v2445 = vsel %vm989, %v2440, %v2444
          %v2447 = vshrl.u32 %v2380, 16
          %v2449 = vshll.u32 %v2380, 16
          %v2451 = vrot.slane %v2449, 1
          %v2452 = vor.u32 %v2447, %v2451
          %v2454 = vshll.u32 %v2381, 16
          %v2456 = vrot.slane %v2454, 1
          %v2457 = vsel %vm989, %v2452, %v2456
          %v2459 = vshrl.u32 %v2382, 16
          %v2461 = vshll.u32 %v2382, 16
          %v2463 = vrot.slane %v2461, 1
          %v2464 = vor.u32 %v2459, %v2463
          %v2466 = vshll.u32 %v2383, 16
          %v2468 = vrot.slane %v2466, 1
          %v2469 = vsel %vm989, %v2464, %v2468
          %v2471 = vshrl.u32 %v2384, 16
          %v2473 = vshll.u32 %v2384, 16
          %v2475 = vrot.slane %v2473, 1
          %v2476 = vor.u32 %v2471, %v2475
          %v2478 = vshll.u32 %v2385, 16
          %v2480 = vrot.slane %v2478, 1
          %v2481 = vsel %vm989, %v2476, %v2480
          %v2483 = vshrl.u32 %v2386, 16
          %v2485 = vshll.u32 %v2386, 16
          %v2487 = vrot.slane %v2485, 1
          %v2488 = vor.u32 %v2483, %v2487
          %v2490 = vshll.u32 %v2387, 16
          %v2492 = vrot.slane %v2490, 1
          %v2493 = vsel %vm989, %v2488, %v2492
          %v2495 = vshrl.u32 %v2388, 16
          %v2497 = vshll.u32 %v2388, 16
          %v2499 = vrot.slane %v2497, 1
          %v2500 = vor.u32 %v2495, %v2499
          %v2502 = vshll.u32 %v2389, 16
          %v2504 = vrot.slane %v2502, 1
          %v2505 = vsel %vm989, %v2500, %v2504
          %v2507 = vshrl.u32 %v2390, 16
          %v2509 = vshll.u32 %v2390, 16
          %v2511 = vrot.slane %v2509, 1
          %v2512 = vor.u32 %v2507, %v2511
          %v2514 = vshll.u32 %v2391, 16
          %v2516 = vrot.slane %v2514, 1
          %v2517 = vsel %vm989, %v2512, %v2516
          %v2519 = vshrl.u32 %v2392, 16
          %v2521 = vshll.u32 %v2392, 16
          %v2523 = vrot.slane %v2521, 1
          %v2524 = vor.u32 %v2519, %v2523
          %v2526 = vshll.u32 %v2393, 16
          %v2528 = vrot.slane %v2526, 1
          %v2529 = vsel %vm989, %v2524, %v2528
          %v2531 = vshrl.u32 %v2394, 16
          %v2533 = vshll.u32 %v2394, 16
          %v2535 = vrot.slane %v2533, 1
          %v2536 = vor.u32 %v2531, %v2535
          %v2538 = vshll.u32 %v2395, 16
          %v2540 = vrot.slane %v2538, 1
          %v2541 = vsel %vm989, %v2536, %v2540
          %v2543 = vshrl.u32 %v2396, 16
          %v2545 = vshll.u32 %v2396, 16
          %v2547 = vrot.slane %v2545, 1
          %v2548 = vor.u32 %v2543, %v2547
          %v2550 = vshll.u32 %v2397, 16
          %v2552 = vrot.slane %v2550, 1
          %v2553 = vsel %vm989, %v2548, %v2552
          %v2555 = vshrl.u32 %v2398, 16
          %v2557 = vshll.u32 %v2398, 16
          %v2559 = vrot.slane %v2557, 1
          %v2560 = vor.u32 %v2555, %v2559
          %v2562 = vshll.u32 %v2399, 16
          %v2564 = vrot.slane %v2562, 1
          %v2565 = vsel %vm989, %v2560, %v2564
          %v2567 = vshrl.u32 %v2400, 16
          %v2569 = vshll.u32 %v2400, 16
          %v2571 = vrot.slane %v2569, 1
          %v2572 = vor.u32 %v2567, %v2571
          %v2574 = vshll.u32 %v2401, 16
          %v2576 = vrot.slane %v2574, 1
          %v2577 = vsel %vm989, %v2572, %v2576
          %v2579 = vshrl.u32 %v2402, 16
          %v2581 = vshll.u32 %v2402, 16
          %v2583 = vrot.slane %v2581, 1
          %v2584 = vor.u32 %v2579, %v2583
          %v2586 = vshll.u32 %v2403, 16
          %v2588 = vrot.slane %v2586, 1
          %v2589 = vsel %vm989, %v2584, %v2588
          %v2591 = vshrl.u32 %v2404, 16
          %v2593 = vshll.u32 %v2404, 16
          %v2595 = vrot.slane %v2593, 1
          %v2596 = vor.u32 %v2591, %v2595
          %v2598 = vshll.u32 %v2405, 16
          %v2600 = vrot.slane %v2598, 1
          %v2601 = vsel %vm989, %v2596, %v2600
          %v2603 = vshrl.u32 %v2406, 16
          %v2605 = vshll.u32 %v2406, 16
          %v2607 = vrot.slane %v2605, 1
          %v2608 = vor.u32 %v2603, %v2607
          %v2610 = vshll.u32 %v2407, 16
          %v2612 = vrot.slane %v2610, 1
          %v2613 = vsel %vm989, %v2608, %v2612
          %v2615 = vshrl.u32 %v2408, 16
          %v2617 = vshll.u32 %v2408, 16
          %v2619 = vrot.slane %v2617, 1
          %v2620 = vor.u32 %v2615, %v2619
          %v2622 = vshll.u32 %v2409, 16
          %v2624 = vrot.slane %v2622, 1
          %v2625 = vsel %vm989, %v2620, %v2624
          %2626 = vrot.lane.b32.xlu0 %v2421, 64
          %v2627 = vpop.permute.xlu0 %2626
          %2628 = vrot.lane.b32.xlu0 %v2433, 64
          %v2629 = vpop.permute.xlu0 %2628
          %2630 = vrot.lane.b32.xlu0 %v2445, 64
          %v2631 = vpop.permute.xlu0 %2630
          %2632 = vrot.lane.b32.xlu0 %v2457, 64
          %v2633 = vpop.permute.xlu0 %2632
          %2634 = vrot.lane.b32.xlu0 %v2469, 64
          %v2635 = vpop.permute.xlu0 %2634
          %2636 = vrot.lane.b32.xlu0 %v2481, 64
          %v2637 = vpop.permute.xlu0 %2636
          %2638 = vrot.lane.b32.xlu0 %v2493, 64
          %v2639 = vpop.permute.xlu0 %2638
          %2640 = vrot.lane.b32.xlu0 %v2505, 64
          %v2641 = vpop.permute.xlu0 %2640
          %2642 = vrot.lane.b32.xlu0 %v2517, 64
          %v2643 = vpop.permute.xlu0 %2642
          %2644 = vrot.lane.b32.xlu0 %v2529, 64
          %v2645 = vpop.permute.xlu0 %2644
          %2646 = vrot.lane.b32.xlu0 %v2541, 64
          %v2647 = vpop.permute.xlu0 %2646
          %2648 = vrot.lane.b32.xlu0 %v2553, 64
          %v2649 = vpop.permute.xlu0 %2648
          %2650 = vrot.lane.b32.xlu0 %v2565, 64
          %v2651 = vpop.permute.xlu0 %2650
          %2652 = vrot.lane.b32.xlu0 %v2577, 64
          %v2653 = vpop.permute.xlu0 %2652
          %2654 = vrot.lane.b32.xlu0 %v2589, 64
          %v2655 = vpop.permute.xlu0 %2654
          %2656 = vrot.lane.b32.xlu0 %v2601, 64
          %v2657 = vpop.permute.xlu0 %2656
          %2658 = vrot.lane.b32.xlu0 %v2613, 64
          %v2659 = vpop.permute.xlu0 %2658
          %2660 = vrot.lane.b32.xlu0 %v2625, 64
          %v2661 = vpop.permute.xlu0 %2660
          %v2698 = vrot.slane %v2374, 1
          %v2699 = vrot.slane %v2375, 1
          %v2700 = vsel %vm1242, %v2698, %v2699
          %v2701 = vrot.slane %v2376, 1
          %v2702 = vrot.slane %v2377, 1
          %v2703 = vsel %vm1242, %v2701, %v2702
          %v2704 = vrot.slane %v2378, 1
          %v2705 = vrot.slane %v2379, 1
          %v2706 = vsel %vm1242, %v2704, %v2705
          %v2707 = vrot.slane %v2380, 1
          %v2708 = vrot.slane %v2381, 1
          %v2709 = vsel %vm1242, %v2707, %v2708
          %v2710 = vrot.slane %v2382, 1
          %v2711 = vrot.slane %v2383, 1
          %v2712 = vsel %vm1242, %v2710, %v2711
          %v2713 = vrot.slane %v2384, 1
          %v2714 = vrot.slane %v2385, 1
          %v2715 = vsel %vm1242, %v2713, %v2714
          %v2716 = vrot.slane %v2386, 1
          %v2717 = vrot.slane %v2387, 1
          %v2718 = vsel %vm1242, %v2716, %v2717
          %v2719 = vrot.slane %v2388, 1
          %v2720 = vrot.slane %v2389, 1
          %v2721 = vsel %vm1242, %v2719, %v2720
          %v2722 = vrot.slane %v2390, 1
          %v2723 = vrot.slane %v2391, 1
          %v2724 = vsel %vm1242, %v2722, %v2723
          %v2725 = vrot.slane %v2392, 1
          %v2726 = vrot.slane %v2393, 1
          %v2727 = vsel %vm1242, %v2725, %v2726
          %v2728 = vrot.slane %v2394, 1
          %v2729 = vrot.slane %v2395, 1
          %v2730 = vsel %vm1242, %v2728, %v2729
          %v2731 = vrot.slane %v2396, 1
          %v2732 = vrot.slane %v2397, 1
          %v2733 = vsel %vm1242, %v2731, %v2732
          %v2734 = vrot.slane %v2398, 1
          %v2735 = vrot.slane %v2399, 1
          %v2736 = vsel %vm1242, %v2734, %v2735
          %v2737 = vrot.slane %v2400, 1
          %v2738 = vrot.slane %v2401, 1
          %v2739 = vsel %vm1242, %v2737, %v2738
          %v2740 = vrot.slane %v2402, 1
          %v2741 = vrot.slane %v2403, 1
          %v2742 = vsel %vm1242, %v2740, %v2741
          %v2743 = vrot.slane %v2404, 1
          %v2744 = vrot.slane %v2405, 1
          %v2745 = vsel %vm1242, %v2743, %v2744
          %v2746 = vrot.slane %v2406, 1
          %v2747 = vrot.slane %v2407, 1
          %v2748 = vsel %vm1242, %v2746, %v2747
          %v2749 = vrot.slane %v2408, 1
          %v2750 = vrot.slane %v2409, 1
          %v2751 = vsel %vm1242, %v2749, %v2750
          %v2753 = vsel %vm281, %v2374, %v2627
          %v2756 = vsel %vm281, %v2376, %v2629
          %v2759 = vsel %vm281, %v2378, %v2631
          %v2762 = vsel %vm281, %v2380, %v2633
          %v2765 = vsel %vm281, %v2382, %v2635
          %v2768 = vsel %vm281, %v2384, %v2637
          %v2771 = vsel %vm281, %v2386, %v2639
          %v2774 = vsel %vm281, %v2388, %v2641
          %v2777 = vsel %vm281, %v2390, %v2643
          %v2780 = vsel %vm281, %v2392, %v2645
          %v2783 = vsel %vm281, %v2394, %v2647
          %v2786 = vsel %vm281, %v2396, %v2649
          %v2789 = vsel %vm281, %v2398, %v2651
          %v2792 = vsel %vm281, %v2400, %v2653
          %v2795 = vsel %vm281, %v2402, %v2655
          %v2798 = vsel %vm281, %v2404, %v2657
          %v2801 = vsel %vm281, %v2406, %v2659
          %v2804 = vsel %vm281, %v2408, %v2661
          %s2806 = smul.u32 %s2318, 72
          %s2807 = smul.addr %s2806, 4
          %s2808 = scalar_lea.vmem %s1, %s2807
          %v2809 = vld [vmem:[%s2808] sm:$0xf]
          %v2810 = vld [vmem:[%s2808 + $0x4] sm:$0xf]
          %v2811 = vld [vmem:[%s2808 + $0x8] sm:$0xf]
          %v2812 = vld [vmem:[%s2808 + $0xc] sm:$0xf]
          %v2813 = vld [vmem:[%s2808 + $0x10] sm:$0xf]
          %v2814 = vld [vmem:[%s2808 + $0x14] sm:$0xf]
          %v2815 = vld [vmem:[%s2808 + $0x18] sm:$0xf]
          %v2816 = vld [vmem:[%s2808 + $0x1c] sm:$0xf]
          %v2817 = vld [vmem:[%s2808 + $0x20] sm:$0xf]
          %v2818 = vld [vmem:[%s2808 + $0x24] sm:$0xf]
          %v2819 = vld [vmem:[%s2808 + $0x28] sm:$0xf]
          %v2820 = vld [vmem:[%s2808 + $0x2c] sm:$0xf]
          %v2821 = vld [vmem:[%s2808 + $0x30] sm:$0xf]
          %v2822 = vld [vmem:[%s2808 + $0x34] sm:$0xf]
          %v2823 = vld [vmem:[%s2808 + $0x38] sm:$0xf]
          %v2824 = vld [vmem:[%s2808 + $0x3c] sm:$0xf]
          %v2825 = vld [vmem:[%s2808 + $0x40] sm:$0xf]
          %v2826 = vld [vmem:[%s2808 + $0x44] sm:$0xf]
          %v2827 = vld [vmem:[%s2808 + $0x48] sm:$0xf]
          %v2828 = vld [vmem:[%s2808 + $0x4c] sm:$0xf]
          %v2829 = vld [vmem:[%s2808 + $0x50] sm:$0xf]
          %v2830 = vld [vmem:[%s2808 + $0x54] sm:$0xf]
          %v2831 = vld [vmem:[%s2808 + $0x58] sm:$0xf]
          %v2832 = vld [vmem:[%s2808 + $0x5c] sm:$0xf]
          %v2833 = vld [vmem:[%s2808 + $0x60] sm:$0xf]
          %v2834 = vld [vmem:[%s2808 + $0x64] sm:$0xf]
          %v2835 = vld [vmem:[%s2808 + $0x68] sm:$0xf]
          %v2836 = vld [vmem:[%s2808 + $0x6c] sm:$0xf]
          %v2837 = vld [vmem:[%s2808 + $0x70] sm:$0xf]
          %v2838 = vld [vmem:[%s2808 + $0x74] sm:$0xf]
          %v2839 = vld [vmem:[%s2808 + $0x78] sm:$0xf]
          %v2840 = vld [vmem:[%s2808 + $0x7c] sm:$0xf]
          %v2841 = vld [vmem:[%s2808 + $0x80] sm:$0xf]
          %v2842 = vld [vmem:[%s2808 + $0x84] sm:$0xf]
          %v2843 = vld [vmem:[%s2808 + $0x88] sm:$0xf]
          %v2844 = vld [vmem:[%s2808 + $0x8c] sm:$0xf]
          %v2845 = vld [vmem:[%s2808 + $0x90] sm:$0xf]
          %v2846 = vld [vmem:[%s2808 + $0x94] sm:$0xf]
          %v2847 = vld [vmem:[%s2808 + $0x98] sm:$0xf]
          %v2848 = vld [vmem:[%s2808 + $0x9c] sm:$0xf]
          %v2849 = vld [vmem:[%s2808 + $0xa0] sm:$0xf]
          %v2850 = vld [vmem:[%s2808 + $0xa4] sm:$0xf]
          %v2851 = vld [vmem:[%s2808 + $0xa8] sm:$0xf]
          %v2852 = vld [vmem:[%s2808 + $0xac] sm:$0xf]
          %v2853 = vld [vmem:[%s2808 + $0xb0] sm:$0xf]
          %v2854 = vld [vmem:[%s2808 + $0xb4] sm:$0xf]
          %v2855 = vld [vmem:[%s2808 + $0xb8] sm:$0xf]
          %v2856 = vld [vmem:[%s2808 + $0xbc] sm:$0xf]
          %v2857 = vld [vmem:[%s2808 + $0xc0] sm:$0xf]
          %v2858 = vld [vmem:[%s2808 + $0xc4] sm:$0xf]
          %v2859 = vld [vmem:[%s2808 + $0xc8] sm:$0xf]
          %v2860 = vld [vmem:[%s2808 + $0xcc] sm:$0xf]
          %v2861 = vld [vmem:[%s2808 + $0xd0] sm:$0xf]
          %v2862 = vld [vmem:[%s2808 + $0xd4] sm:$0xf]
          %v2863 = vld [vmem:[%s2808 + $0xd8] sm:$0xf]
          %v2864 = vld [vmem:[%s2808 + $0xdc] sm:$0xf]
          %v2865 = vld [vmem:[%s2808 + $0xe0] sm:$0xf]
          %v2866 = vld [vmem:[%s2808 + $0xe4] sm:$0xf]
          %v2867 = vld [vmem:[%s2808 + $0xe8] sm:$0xf]
          %v2868 = vld [vmem:[%s2808 + $0xec] sm:$0xf]
          %v2869 = vld [vmem:[%s2808 + $0xf0] sm:$0xf]
          %v2870 = vld [vmem:[%s2808 + $0xf4] sm:$0xf]
          %v2871 = vld [vmem:[%s2808 + $0xf8] sm:$0xf]
          %v2872 = vld [vmem:[%s2808 + $0xfc] sm:$0xf]
          %v2873 = vld [vmem:[%s2808 + $0x100] sm:$0xf]
          %v2874 = vld [vmem:[%s2808 + $0x104] sm:$0xf]
          %v2875 = vld [vmem:[%s2808 + $0x108] sm:$0xf]
          %v2876 = vld [vmem:[%s2808 + $0x10c] sm:$0xf]
          %v2877 = vld [vmem:[%s2808 + $0x110] sm:$0xf]
          %v2878 = vld [vmem:[%s2808 + $0x114] sm:$0xf]
          %v2879 = vld [vmem:[%s2808 + $0x118] sm:$0xf]
          %v2880 = vld [vmem:[%s2808 + $0x11c] sm:$0xf]
          %v2905 = vunpack.c.l.b16 %v2833
          %v2906 = vunpack.c.l.b16 %v2834
          %v2907 = vunpack.c.l.b16 %v2835
          %v2908 = vunpack.c.l.b16 %v2836
          %v2909 = vunpack.c.l.b16 %v2837
          %v2910 = vunpack.c.l.b16 %v2838
          %v2911 = vunpack.c.l.b16 %v2839
          %v2912 = vunpack.c.l.b16 %v2840
          %v2913 = vunpack.c.l.b16 %v2841
          %v2914 = vunpack.c.l.b16 %v2842
          %v2915 = vunpack.c.l.b16 %v2843
          %v2916 = vunpack.c.l.b16 %v2844
          %v2917 = vunpack.c.l.b16 %v2845
          %v2918 = vunpack.c.l.b16 %v2846
          %v2919 = vunpack.c.l.b16 %v2847
          %v2920 = vunpack.c.l.b16 %v2848
          %v2921 = vunpack.c.l.b16 %v2849
          %v2922 = vunpack.c.l.b16 %v2850
          %v2923 = vunpack.c.l.b16 %v2851
          %v2924 = vunpack.c.l.b16 %v2852
          %v2925 = vunpack.c.l.b16 %v2853
          %v2926 = vunpack.c.l.b16 %v2854
          %v2927 = vunpack.c.l.b16 %v2855
          %v2928 = vunpack.c.l.b16 %v2856
          %v2929 = vpack.c.b16 %v2906, %v2905
          %v2930 = vpack.c.b16 %v2908, %v2907
          %v2931 = vpack.c.b16 %v2910, %v2909
          %v2932 = vpack.c.b16 %v2912, %v2911
          %v2933 = vpack.c.b16 %v2914, %v2913
          %v2934 = vpack.c.b16 %v2916, %v2915
          %v2935 = vpack.c.b16 %v2918, %v2917
          %v2936 = vpack.c.b16 %v2920, %v2919
          %v2937 = vpack.c.b16 %v2922, %v2921
          %v2938 = vpack.c.b16 %v2924, %v2923
          %v2939 = vpack.c.b16 %v2926, %v2925
          %v2940 = vpack.c.b16 %v2928, %v2927
          %v2954 = vsel %vm281, %v2703, 0
          %v2957 = vsel %vm281, %v2706, 0
          %v2960 = vsel %vm281, %v2709, 0
          %v2963 = vsel %vm281, %v2712, 0
          %v2966 = vsel %vm281, %v2715, 0
          %v2969 = vsel %vm281, %v2718, 0
          %v2972 = vsel %vm281, %v2721, 0
          %v2975 = vsel %vm281, %v2724, 0
          %v2978 = vsel %vm281, %v2727, 0
          %v2981 = vsel %vm281, %v2730, 0
          %v2984 = vsel %vm281, %v2733, 0
          %v2987 = vsel %vm281, %v2736, 0
          %v2990 = vsel %vm281, %v2739, 0
          %v2993 = vsel %vm281, %v2742, 0
          %v2996 = vsel %vm281, %v2745, 0
          %v2999 = vsel %vm281, %v2748, 0
          %3001 = vmatprep.subr.bf16.mxu0 0
          %3002 = vmatpush1.bf16.msra.mxu0 %v2936
          %3003 = vmatprep.subr.bf16.mxu0 0
          %3004 = vmatpush1.bf16.msra.mxu0 %v2935
          %3005 = vmatprep.subr.bf16.mxu0 0
          %3006 = vmatpush1.bf16.msra.mxu0 %v2934
          %3007 = vmatprep.subr.bf16.mxu0 0
          %3008 = vmatpush1.bf16.msra.mxu0 %v2933
          %3009 = vmatprep.subr.bf16.mxu0 0
          %3010 = vmatpush1.bf16.msra.mxu0 %v2932
          %3011 = vmatprep.subr.bf16.mxu0 0
          %3012 = vmatpush1.bf16.msra.mxu0 %v2931
          %3013 = vmatprep.subr.bf16.mxu0 0
          %3014 = vmatpush1.bf16.msra.mxu0 %v2930
          %3015 = vmatprep.subr.bf16.mxu0 0
          %3016 = vmatpush1.bf16.msra.mxu0 %v2929
          %3017 = vmatprep.subr.bf16.mxu0 0
          %3018 = vmatpush2.bf16.msra.mxu0 0
          %3019 = vmatprep.subr.bf16.mxu0 0
          %3020 = vmatpush2.bf16.msra.mxu0 0
          %3021 = vmatprep.subr.bf16.mxu0 0
          %3022 = vmatpush2.bf16.msra.mxu0 0
          %3023 = vmatprep.subr.bf16.mxu0 0
          %3024 = vmatpush2.bf16.msra.mxu0 0
          %3025 = vmatprep.subr.bf16.mxu0 0
          %3026 = vmatpush2.bf16.msra.mxu0 %v2940
          %3027 = vmatprep.subr.bf16.mxu0 0
          %3028 = vmatpush2.bf16.msra.mxu0 %v2939
          %3029 = vmatprep.subr.bf16.mxu0 0
          %3030 = vmatpush2.bf16.msra.mxu0 %v2938
          %3031 = vmatprep.subr.bf16.mxu0 0
          %3032 = vmatpush2.bf16.msra.mxu0 %v2937
          %3033 = vmatprep.mubr.bf16.mxu0 %v2954
          %3034 = vmatmul.mubr.bf16.gmra.mxu0 %v2756
          %v3035 = vpop.f32.mrf.mxu0
          %v3036 = vadd.f32 0.0, %v3035
          %v3037 = vpop.f32.mrf.mxu0
          %v3038 = vpop.f32.mrf.mxu0
          %v3039 = vadd.f32 0.0, %v3038
          %v3040 = vpop.f32.mrf.mxu0
          %3041 = vmatprep.mubr.bf16.mxu0 %v2957
          %3042 = vmatmul.mubr.bf16.gmra.mxu0 %v2759
          %v3043 = vpop.f32.mrf.mxu0
          %v3044 = vadd.f32 0.0, %v3043
          %v3045 = vpop.f32.mrf.mxu0
          %v3046 = vpop.f32.mrf.mxu0
          %v3047 = vadd.f32 0.0, %v3046
          %v3048 = vpop.f32.mrf.mxu0
          %3049 = vmatprep.mubr.bf16.mxu0 %v2960
          %3050 = vmatmul.mubr.bf16.gmra.mxu0 %v2762
          %v3051 = vpop.f32.mrf.mxu0
          %v3052 = vadd.f32 0.0, %v3051
          %v3053 = vpop.f32.mrf.mxu0
          %v3054 = vpop.f32.mrf.mxu0
          %v3055 = vadd.f32 0.0, %v3054
          %v3056 = vpop.f32.mrf.mxu0
          %3057 = vmatprep.mubr.bf16.mxu0 %v2963
          %3058 = vmatmul.mubr.bf16.gmra.mxu0 %v2765
          %v3059 = vpop.f32.mrf.mxu0
          %v3060 = vadd.f32 0.0, %v3059
          %v3061 = vpop.f32.mrf.mxu0
          %v3062 = vpop.f32.mrf.mxu0
          %v3063 = vadd.f32 0.0, %v3062
          %v3064 = vpop.f32.mrf.mxu0
          %3065 = vmatprep.mubr.bf16.mxu0 %v2966
          %3066 = vmatmul.mubr.bf16.gmra.mxu0 %v2768
          %v3067 = vpop.f32.mrf.mxu0
          %v3068 = vadd.f32 0.0, %v3067
          %v3069 = vpop.f32.mrf.mxu0
          %v3070 = vpop.f32.mrf.mxu0
          %v3071 = vadd.f32 0.0, %v3070
          %v3072 = vpop.f32.mrf.mxu0
          %3073 = vmatprep.mubr.bf16.mxu0 %v2969
          %3074 = vmatmul.mubr.bf16.gmra.mxu0 %v2771
          %v3075 = vpop.f32.mrf.mxu0
          %v3076 = vadd.f32 0.0, %v3075
          %v3077 = vpop.f32.mrf.mxu0
          %v3078 = vpop.f32.mrf.mxu0
          %v3079 = vadd.f32 0.0, %v3078
          %v3080 = vpop.f32.mrf.mxu0
          %3081 = vmatprep.mubr.bf16.mxu0 %v2972
          %3082 = vmatmul.mubr.bf16.gmra.mxu0 %v2774
          %v3083 = vpop.f32.mrf.mxu0
          %v3084 = vadd.f32 0.0, %v3083
          %v3085 = vpop.f32.mrf.mxu0
          %v3086 = vpop.f32.mrf.mxu0
          %v3087 = vadd.f32 0.0, %v3086
          %v3088 = vpop.f32.mrf.mxu0
          %3089 = vmatprep.mubr.bf16.mxu0 %v2975
          %3090 = vmatmul.mubr.bf16.gmra.mxu0 %v2777
          %v3091 = vpop.f32.mrf.mxu0
          %v3092 = vadd.f32 0.0, %v3091
          %v3093 = vpop.f32.mrf.mxu0
          %v3094 = vpop.f32.mrf.mxu0
          %v3095 = vadd.f32 0.0, %v3094
          %v3096 = vpop.f32.mrf.mxu0
          %3097 = vmatprep.mubr.bf16.mxu0 %v2978
          %3098 = vmatmul.mubr.bf16.gmra.mxu0 %v2780
          %v3099 = vpop.f32.mrf.mxu0
          %v3100 = vadd.f32 0.0, %v3099
          %v3101 = vpop.f32.mrf.mxu0
          %v3102 = vpop.f32.mrf.mxu0
          %v3103 = vadd.f32 0.0, %v3102
          %v3104 = vpop.f32.mrf.mxu0
          %3105 = vmatprep.mubr.bf16.mxu0 %v2981
          %3106 = vmatmul.mubr.bf16.gmra.mxu0 %v2783
          %v3107 = vpop.f32.mrf.mxu0
          %v3108 = vadd.f32 0.0, %v3107
          %v3109 = vpop.f32.mrf.mxu0
          %v3110 = vpop.f32.mrf.mxu0
          %v3111 = vadd.f32 0.0, %v3110
          %v3112 = vpop.f32.mrf.mxu0
          %3113 = vmatprep.mubr.bf16.mxu0 %v2984
          %3114 = vmatmul.mubr.bf16.gmra.mxu0 %v2786
          %v3115 = vpop.f32.mrf.mxu0
          %v3116 = vadd.f32 0.0, %v3115
          %v3117 = vpop.f32.mrf.mxu0
          %v3118 = vpop.f32.mrf.mxu0
          %v3119 = vadd.f32 0.0, %v3118
          %v3120 = vpop.f32.mrf.mxu0
          %3121 = vmatprep.mubr.bf16.mxu0 %v2987
          %3122 = vmatmul.mubr.bf16.gmra.mxu0 %v2789
          %v3123 = vpop.f32.mrf.mxu0
          %v3124 = vadd.f32 0.0, %v3123
          %v3125 = vpop.f32.mrf.mxu0
          %v3126 = vpop.f32.mrf.mxu0
          %v3127 = vadd.f32 0.0, %v3126
          %v3128 = vpop.f32.mrf.mxu0
          %3129 = vmatprep.mubr.bf16.mxu0 %v2990
          %3130 = vmatmul.mubr.bf16.gmra.mxu0 %v2792
          %v3131 = vpop.f32.mrf.mxu0
          %v3132 = vadd.f32 0.0, %v3131
          %v3133 = vpop.f32.mrf.mxu0
          %v3134 = vpop.f32.mrf.mxu0
          %v3135 = vadd.f32 0.0, %v3134
          %v3136 = vpop.f32.mrf.mxu0
          %3137 = vmatprep.mubr.bf16.mxu0 %v2993
          %3138 = vmatmul.mubr.bf16.gmra.mxu0 %v2795
          %v3139 = vpop.f32.mrf.mxu0
          %v3140 = vadd.f32 0.0, %v3139
          %v3141 = vpop.f32.mrf.mxu0
          %v3142 = vpop.f32.mrf.mxu0
          %v3143 = vadd.f32 0.0, %v3142
          %v3144 = vpop.f32.mrf.mxu0
          %3145 = vmatprep.mubr.bf16.mxu0 %v2996
          %3146 = vmatmul.mubr.bf16.gmra.mxu0 %v2798
          %v3147 = vpop.f32.mrf.mxu0
          %v3148 = vadd.f32 0.0, %v3147
          %v3149 = vpop.f32.mrf.mxu0
          %v3150 = vpop.f32.mrf.mxu0
          %v3151 = vadd.f32 0.0, %v3150
          %v3152 = vpop.f32.mrf.mxu0
          %3153 = vmatprep.mubr.bf16.mxu0 %v2999
          %3154 = vmatmul.mubr.bf16.gmra.mxu0 %v2801
          %v3155 = vpop.f32.mrf.mxu0
          %v3156 = vadd.f32 0.0, %v3155
          %v3157 = vpop.f32.mrf.mxu0
          %v3158 = vpop.f32.mrf.mxu0
          %v3159 = vadd.f32 0.0, %v3158
          %v3160 = vpop.f32.mrf.mxu0
          %3161 = vdwg.mxu0
          %v3186 = vunpack.c.l.b16 %v2809
          %v3187 = vunpack.c.l.b16 %v2810
          %v3188 = vunpack.c.l.b16 %v2811
          %v3189 = vunpack.c.l.b16 %v2812
          %v3190 = vunpack.c.l.b16 %v2813
          %v3191 = vunpack.c.l.b16 %v2814
          %v3192 = vunpack.c.l.b16 %v2815
          %v3193 = vunpack.c.l.b16 %v2816
          %v3194 = vunpack.c.l.b16 %v2817
          %v3195 = vunpack.c.l.b16 %v2818
          %v3196 = vunpack.c.l.b16 %v2819
          %v3197 = vunpack.c.l.b16 %v2820
          %v3198 = vunpack.c.l.b16 %v2821
          %v3199 = vunpack.c.l.b16 %v2822
          %v3200 = vunpack.c.l.b16 %v2823
          %v3201 = vunpack.c.l.b16 %v2824
          %v3202 = vunpack.c.l.b16 %v2825
          %v3203 = vunpack.c.l.b16 %v2826
          %v3204 = vunpack.c.l.b16 %v2827
          %v3205 = vunpack.c.l.b16 %v2828
          %v3206 = vunpack.c.l.b16 %v2829
          %v3207 = vunpack.c.l.b16 %v2830
          %v3208 = vunpack.c.l.b16 %v2831
          %v3209 = vunpack.c.l.b16 %v2832
          %v3210 = vpack.c.b16 %v3187, %v3186
          %v3211 = vpack.c.b16 %v3189, %v3188
          %v3212 = vpack.c.b16 %v3191, %v3190
          %v3213 = vpack.c.b16 %v3193, %v3192
          %v3214 = vpack.c.b16 %v3195, %v3194
          %v3215 = vpack.c.b16 %v3197, %v3196
          %v3216 = vpack.c.b16 %v3199, %v3198
          %v3217 = vpack.c.b16 %v3201, %v3200
          %v3218 = vpack.c.b16 %v3203, %v3202
          %v3219 = vpack.c.b16 %v3205, %v3204
          %v3220 = vpack.c.b16 %v3207, %v3206
          %v3221 = vpack.c.b16 %v3209, %v3208
          %v3235 = vsel %vm281, %v2700, 0
          %3237 = vmatprep.subr.bf16.mxu0 0
          %3238 = vmatpush1.bf16.msra.mxu0 %v3217
          %3239 = vmatprep.subr.bf16.mxu0 0
          %3240 = vmatpush1.bf16.msra.mxu0 %v3216
          %3241 = vmatprep.subr.bf16.mxu0 0
          %3242 = vmatpush1.bf16.msra.mxu0 %v3215
          %3243 = vmatprep.subr.bf16.mxu0 0
          %3244 = vmatpush1.bf16.msra.mxu0 %v3214
          %3245 = vmatprep.subr.bf16.mxu0 0
          %3246 = vmatpush1.bf16.msra.mxu0 %v3213
          %3247 = vmatprep.subr.bf16.mxu0 0
          %3248 = vmatpush1.bf16.msra.mxu0 %v3212
          %3249 = vmatprep.subr.bf16.mxu0 0
          %3250 = vmatpush1.bf16.msra.mxu0 %v3211
          %3251 = vmatprep.subr.bf16.mxu0 0
          %3252 = vmatpush1.bf16.msra.mxu0 %v3210
          %3253 = vmatprep.subr.bf16.mxu0 0
          %3254 = vmatpush2.bf16.msra.mxu0 0
          %3255 = vmatprep.subr.bf16.mxu0 0
          %3256 = vmatpush2.bf16.msra.mxu0 0
          %3257 = vmatprep.subr.bf16.mxu0 0
          %3258 = vmatpush2.bf16.msra.mxu0 0
          %3259 = vmatprep.subr.bf16.mxu0 0
          %3260 = vmatpush2.bf16.msra.mxu0 0
          %3261 = vmatprep.subr.bf16.mxu0 0
          %3262 = vmatpush2.bf16.msra.mxu0 %v3221
          %3263 = vmatprep.subr.bf16.mxu0 0
          %3264 = vmatpush2.bf16.msra.mxu0 %v3220
          %3265 = vmatprep.subr.bf16.mxu0 0
          %3266 = vmatpush2.bf16.msra.mxu0 %v3219
          %3267 = vmatprep.subr.bf16.mxu0 0
          %3268 = vmatpush2.bf16.msra.mxu0 %v3218
          %3269 = vmatprep.mubr.bf16.mxu0 %v3235
          %3270 = vmatmul.mubr.bf16.gmra.mxu0 %v2753
          %v3271 = vpop.f32.mrf.mxu0
          %v3272 = vadd.f32 %v3036, %v3271
          %v3273 = vpop.f32.mrf.mxu0
          %v3274 = vpop.f32.mrf.mxu0
          %v3275 = vadd.f32 %v3039, %v3274
          %v3276 = vpop.f32.mrf.mxu0
          %3277 = vmatprep.mubr.bf16.mxu0 %v2954
          %3278 = vmatmul.mubr.bf16.gmra.mxu0 %v2756
          %v3279 = vpop.f32.mrf.mxu0
          %v3280 = vadd.f32 %v3044, %v3279
          %v3281 = vpop.f32.mrf.mxu0
          %v3282 = vpop.f32.mrf.mxu0
          %v3283 = vadd.f32 %v3047, %v3282
          %v3284 = vpop.f32.mrf.mxu0
          %3285 = vmatprep.mubr.bf16.mxu0 %v2957
          %3286 = vmatmul.mubr.bf16.gmra.mxu0 %v2759
          %v3287 = vpop.f32.mrf.mxu0
          %v3288 = vadd.f32 %v3052, %v3287
          %v3289 = vpop.f32.mrf.mxu0
          %v3290 = vpop.f32.mrf.mxu0
          %v3291 = vadd.f32 %v3055, %v3290
          %v3292 = vpop.f32.mrf.mxu0
          %3293 = vmatprep.mubr.bf16.mxu0 %v2960
          %3294 = vmatmul.mubr.bf16.gmra.mxu0 %v2762
          %v3295 = vpop.f32.mrf.mxu0
          %v3296 = vadd.f32 %v3060, %v3295
          %v3297 = vpop.f32.mrf.mxu0
          %v3298 = vpop.f32.mrf.mxu0
          %v3299 = vadd.f32 %v3063, %v3298
          %v3300 = vpop.f32.mrf.mxu0
          %3301 = vmatprep.mubr.bf16.mxu0 %v2963
          %3302 = vmatmul.mubr.bf16.gmra.mxu0 %v2765
          %v3303 = vpop.f32.mrf.mxu0
          %v3304 = vadd.f32 %v3068, %v3303
          %v3305 = vpop.f32.mrf.mxu0
          %v3306 = vpop.f32.mrf.mxu0
          %v3307 = vadd.f32 %v3071, %v3306
          %v3308 = vpop.f32.mrf.mxu0
          %3309 = vmatprep.mubr.bf16.mxu0 %v2966
          %3310 = vmatmul.mubr.bf16.gmra.mxu0 %v2768
          %v3311 = vpop.f32.mrf.mxu0
          %v3312 = vadd.f32 %v3076, %v3311
          %v3313 = vpop.f32.mrf.mxu0
          %v3314 = vpop.f32.mrf.mxu0
          %v3315 = vadd.f32 %v3079, %v3314
          %v3316 = vpop.f32.mrf.mxu0
          %3317 = vmatprep.mubr.bf16.mxu0 %v2969
          %3318 = vmatmul.mubr.bf16.gmra.mxu0 %v2771
          %v3319 = vpop.f32.mrf.mxu0
          %v3320 = vadd.f32 %v3084, %v3319
          %v3321 = vpop.f32.mrf.mxu0
          %v3322 = vpop.f32.mrf.mxu0
          %v3323 = vadd.f32 %v3087, %v3322
          %v3324 = vpop.f32.mrf.mxu0
          %3325 = vmatprep.mubr.bf16.mxu0 %v2972
          %3326 = vmatmul.mubr.bf16.gmra.mxu0 %v2774
          %v3327 = vpop.f32.mrf.mxu0
          %v3328 = vadd.f32 %v3092, %v3327
          %v3329 = vpop.f32.mrf.mxu0
          %v3330 = vpop.f32.mrf.mxu0
          %v3331 = vadd.f32 %v3095, %v3330
          %v3332 = vpop.f32.mrf.mxu0
          %3333 = vmatprep.mubr.bf16.mxu0 %v2975
          %3334 = vmatmul.mubr.bf16.gmra.mxu0 %v2777
          %v3335 = vpop.f32.mrf.mxu0
          %v3336 = vadd.f32 %v3100, %v3335
          %v3337 = vpop.f32.mrf.mxu0
          %v3338 = vpop.f32.mrf.mxu0
          %v3339 = vadd.f32 %v3103, %v3338
          %v3340 = vpop.f32.mrf.mxu0
          %3341 = vmatprep.mubr.bf16.mxu0 %v2978
          %3342 = vmatmul.mubr.bf16.gmra.mxu0 %v2780
          %v3343 = vpop.f32.mrf.mxu0
          %v3344 = vadd.f32 %v3108, %v3343
          %v3345 = vpop.f32.mrf.mxu0
          %v3346 = vpop.f32.mrf.mxu0
          %v3347 = vadd.f32 %v3111, %v3346
          %v3348 = vpop.f32.mrf.mxu0
          %3349 = vmatprep.mubr.bf16.mxu0 %v2981
          %3350 = vmatmul.mubr.bf16.gmra.mxu0 %v2783
          %v3351 = vpop.f32.mrf.mxu0
          %v3352 = vadd.f32 %v3116, %v3351
          %v3353 = vpop.f32.mrf.mxu0
          %v3354 = vpop.f32.mrf.mxu0
          %v3355 = vadd.f32 %v3119, %v3354
          %v3356 = vpop.f32.mrf.mxu0
          %3357 = vmatprep.mubr.bf16.mxu0 %v2984
          %3358 = vmatmul.mubr.bf16.gmra.mxu0 %v2786
          %v3359 = vpop.f32.mrf.mxu0
          %v3360 = vadd.f32 %v3124, %v3359
          %v3361 = vpop.f32.mrf.mxu0
          %v3362 = vpop.f32.mrf.mxu0
          %v3363 = vadd.f32 %v3127, %v3362
          %v3364 = vpop.f32.mrf.mxu0
          %3365 = vmatprep.mubr.bf16.mxu0 %v2987
          %3366 = vmatmul.mubr.bf16.gmra.mxu0 %v2789
          %v3367 = vpop.f32.mrf.mxu0
          %v3368 = vadd.f32 %v3132, %v3367
          %v3369 = vpop.f32.mrf.mxu0
          %v3370 = vpop.f32.mrf.mxu0
          %v3371 = vadd.f32 %v3135, %v3370
          %v3372 = vpop.f32.mrf.mxu0
          %3373 = vmatprep.mubr.bf16.mxu0 %v2990
          %3374 = vmatmul.mubr.bf16.gmra.mxu0 %v2792
          %v3375 = vpop.f32.mrf.mxu0
          %v3376 = vadd.f32 %v3140, %v3375
          %v3377 = vpop.f32.mrf.mxu0
          %v3378 = vpop.f32.mrf.mxu0
          %v3379 = vadd.f32 %v3143, %v3378
          %v3380 = vpop.f32.mrf.mxu0
          %3381 = vmatprep.mubr.bf16.mxu0 %v2993
          %3382 = vmatmul.mubr.bf16.gmra.mxu0 %v2795
          %v3383 = vpop.f32.mrf.mxu0
          %v3384 = vadd.f32 %v3148, %v3383
          %v3385 = vpop.f32.mrf.mxu0
          %v3386 = vpop.f32.mrf.mxu0
          %v3387 = vadd.f32 %v3151, %v3386
          %v3388 = vpop.f32.mrf.mxu0
          %3389 = vmatprep.mubr.bf16.mxu0 %v2996
          %3390 = vmatmul.mubr.bf16.gmra.mxu0 %v2798
          %v3391 = vpop.f32.mrf.mxu0
          %v3392 = vadd.f32 %v3156, %v3391
          %v3393 = vpop.f32.mrf.mxu0
          %v3394 = vpop.f32.mrf.mxu0
          %v3395 = vadd.f32 %v3159, %v3394
          %v3396 = vpop.f32.mrf.mxu0
          %3397 = vdwg.mxu0
          %v3422 = vunpack.c.l.b16 %v2857
          %v3423 = vunpack.c.l.b16 %v2858
          %v3424 = vunpack.c.l.b16 %v2859
          %v3425 = vunpack.c.l.b16 %v2860
          %v3426 = vunpack.c.l.b16 %v2861
          %v3427 = vunpack.c.l.b16 %v2862
          %v3428 = vunpack.c.l.b16 %v2863
          %v3429 = vunpack.c.l.b16 %v2864
          %v3430 = vunpack.c.l.b16 %v2865
          %v3431 = vunpack.c.l.b16 %v2866
          %v3432 = vunpack.c.l.b16 %v2867
          %v3433 = vunpack.c.l.b16 %v2868
          %v3434 = vunpack.c.l.b16 %v2869
          %v3435 = vunpack.c.l.b16 %v2870
          %v3436 = vunpack.c.l.b16 %v2871
          %v3437 = vunpack.c.l.b16 %v2872
          %v3438 = vunpack.c.l.b16 %v2873
          %v3439 = vunpack.c.l.b16 %v2874
          %v3440 = vunpack.c.l.b16 %v2875
          %v3441 = vunpack.c.l.b16 %v2876
          %v3442 = vunpack.c.l.b16 %v2877
          %v3443 = vunpack.c.l.b16 %v2878
          %v3444 = vunpack.c.l.b16 %v2879
          %v3445 = vunpack.c.l.b16 %v2880
          %v3446 = vpack.c.b16 %v3423, %v3422
          %v3447 = vpack.c.b16 %v3425, %v3424
          %v3448 = vpack.c.b16 %v3427, %v3426
          %v3449 = vpack.c.b16 %v3429, %v3428
          %v3450 = vpack.c.b16 %v3431, %v3430
          %v3451 = vpack.c.b16 %v3433, %v3432
          %v3452 = vpack.c.b16 %v3435, %v3434
          %v3453 = vpack.c.b16 %v3437, %v3436
          %v3454 = vpack.c.b16 %v3439, %v3438
          %v3455 = vpack.c.b16 %v3441, %v3440
          %v3456 = vpack.c.b16 %v3443, %v3442
          %v3457 = vpack.c.b16 %v3445, %v3444
          %v3471 = vsel %vm281, %v2751, 0
          %3473 = vmatprep.subr.bf16.mxu0 0
          %3474 = vmatpush1.bf16.msra.mxu0 %v3453
          %3475 = vmatprep.subr.bf16.mxu0 0
          %3476 = vmatpush1.bf16.msra.mxu0 %v3452
          %3477 = vmatprep.subr.bf16.mxu0 0
          %3478 = vmatpush1.bf16.msra.mxu0 %v3451
          %3479 = vmatprep.subr.bf16.mxu0 0
          %3480 = vmatpush1.bf16.msra.mxu0 %v3450
          %3481 = vmatprep.subr.bf16.mxu0 0
          %3482 = vmatpush1.bf16.msra.mxu0 %v3449
          %3483 = vmatprep.subr.bf16.mxu0 0
          %3484 = vmatpush1.bf16.msra.mxu0 %v3448
          %3485 = vmatprep.subr.bf16.mxu0 0
          %3486 = vmatpush1.bf16.msra.mxu0 %v3447
          %3487 = vmatprep.subr.bf16.mxu0 0
          %3488 = vmatpush1.bf16.msra.mxu0 %v3446
          %3489 = vmatprep.subr.bf16.mxu0 0
          %3490 = vmatpush2.bf16.msra.mxu0 0
          %3491 = vmatprep.subr.bf16.mxu0 0
          %3492 = vmatpush2.bf16.msra.mxu0 0
          %3493 = vmatprep.subr.bf16.mxu0 0
          %3494 = vmatpush2.bf16.msra.mxu0 0
          %3495 = vmatprep.subr.bf16.mxu0 0
          %3496 = vmatpush2.bf16.msra.mxu0 0
          %3497 = vmatprep.subr.bf16.mxu0 0
          %3498 = vmatpush2.bf16.msra.mxu0 %v3457
          %3499 = vmatprep.subr.bf16.mxu0 0
          %3500 = vmatpush2.bf16.msra.mxu0 %v3456
          %3501 = vmatprep.subr.bf16.mxu0 0
          %3502 = vmatpush2.bf16.msra.mxu0 %v3455
          %3503 = vmatprep.subr.bf16.mxu0 0
          %3504 = vmatpush2.bf16.msra.mxu0 %v3454
          %3505 = vmatprep.mubr.bf16.mxu0 %v2957
          %3506 = vmatmul.mubr.bf16.gmra.mxu0 %v2759
          %v3507 = vpop.f32.mrf.mxu0
          %v3508 = vadd.f32 0.0, %v3507
          %v3509 = vpop.f32.mrf.mxu0
          %v3510 = vpop.f32.mrf.mxu0
          %v3511 = vadd.f32 0.0, %v3510
          %v3512 = vpop.f32.mrf.mxu0
          %3513 = vmatprep.mubr.bf16.mxu0 %v2960
          %3514 = vmatmul.mubr.bf16.gmra.mxu0 %v2762
          %v3515 = vpop.f32.mrf.mxu0
          %v3516 = vadd.f32 0.0, %v3515
          %v3517 = vpop.f32.mrf.mxu0
          %v3518 = vpop.f32.mrf.mxu0
          %v3519 = vadd.f32 0.0, %v3518
          %v3520 = vpop.f32.mrf.mxu0
          %3521 = vmatprep.mubr.bf16.mxu0 %v2963
          %3522 = vmatmul.mubr.bf16.gmra.mxu0 %v2765
          %v3523 = vpop.f32.mrf.mxu0
          %v3524 = vadd.f32 0.0, %v3523
          %v3525 = vpop.f32.mrf.mxu0
          %v3526 = vpop.f32.mrf.mxu0
          %v3527 = vadd.f32 0.0, %v3526
          %v3528 = vpop.f32.mrf.mxu0
          %3529 = vmatprep.mubr.bf16.mxu0 %v2966
          %3530 = vmatmul.mubr.bf16.gmra.mxu0 %v2768
          %v3531 = vpop.f32.mrf.mxu0
          %v3532 = vadd.f32 0.0, %v3531
          %v3533 = vpop.f32.mrf.mxu0
          %v3534 = vpop.f32.mrf.mxu0
          %v3535 = vadd.f32 0.0, %v3534
          %v3536 = vpop.f32.mrf.mxu0
          %3537 = vmatprep.mubr.bf16.mxu0 %v2969
          %3538 = vmatmul.mubr.bf16.gmra.mxu0 %v2771
          %v3539 = vpop.f32.mrf.mxu0
          %v3540 = vadd.f32 0.0, %v3539
          %v3541 = vpop.f32.mrf.mxu0
          %v3542 = vpop.f32.mrf.mxu0
          %v3543 = vadd.f32 0.0, %v3542
          %v3544 = vpop.f32.mrf.mxu0
          %3545 = vmatprep.mubr.bf16.mxu0 %v2972
          %3546 = vmatmul.mubr.bf16.gmra.mxu0 %v2774
          %v3547 = vpop.f32.mrf.mxu0
          %v3548 = vadd.f32 0.0, %v3547
          %v3549 = vpop.f32.mrf.mxu0
          %v3550 = vpop.f32.mrf.mxu0
          %v3551 = vadd.f32 0.0, %v3550
          %v3552 = vpop.f32.mrf.mxu0
          %3553 = vmatprep.mubr.bf16.mxu0 %v2975
          %3554 = vmatmul.mubr.bf16.gmra.mxu0 %v2777
          %v3555 = vpop.f32.mrf.mxu0
          %v3556 = vadd.f32 0.0, %v3555
          %v3557 = vpop.f32.mrf.mxu0
          %v3558 = vpop.f32.mrf.mxu0
          %v3559 = vadd.f32 0.0, %v3558
          %v3560 = vpop.f32.mrf.mxu0
          %3561 = vmatprep.mubr.bf16.mxu0 %v2978
          %3562 = vmatmul.mubr.bf16.gmra.mxu0 %v2780
          %v3563 = vpop.f32.mrf.mxu0
          %v3564 = vadd.f32 0.0, %v3563
          %v3565 = vpop.f32.mrf.mxu0
          %v3566 = vpop.f32.mrf.mxu0
          %v3567 = vadd.f32 0.0, %v3566
          %v3568 = vpop.f32.mrf.mxu0
          %3569 = vmatprep.mubr.bf16.mxu0 %v2981
          %3570 = vmatmul.mubr.bf16.gmra.mxu0 %v2783
          %v3571 = vpop.f32.mrf.mxu0
          %v3572 = vadd.f32 0.0, %v3571
          %v3573 = vpop.f32.mrf.mxu0
          %v3574 = vpop.f32.mrf.mxu0
          %v3575 = vadd.f32 0.0, %v3574
          %v3576 = vpop.f32.mrf.mxu0
          %3577 = vmatprep.mubr.bf16.mxu0 %v2984
          %3578 = vmatmul.mubr.bf16.gmra.mxu0 %v2786
          %v3579 = vpop.f32.mrf.mxu0
          %v3580 = vadd.f32 0.0, %v3579
          %v3581 = vpop.f32.mrf.mxu0
          %v3582 = vpop.f32.mrf.mxu0
          %v3583 = vadd.f32 0.0, %v3582
          %v3584 = vpop.f32.mrf.mxu0
          %3585 = vmatprep.mubr.bf16.mxu0 %v2987
          %3586 = vmatmul.mubr.bf16.gmra.mxu0 %v2789
          %v3587 = vpop.f32.mrf.mxu0
          %v3588 = vadd.f32 0.0, %v3587
          %v3589 = vpop.f32.mrf.mxu0
          %v3590 = vpop.f32.mrf.mxu0
          %v3591 = vadd.f32 0.0, %v3590
          %v3592 = vpop.f32.mrf.mxu0
          %3593 = vmatprep.mubr.bf16.mxu0 %v2990
          %3594 = vmatmul.mubr.bf16.gmra.mxu0 %v2792
          %v3595 = vpop.f32.mrf.mxu0
          %v3596 = vadd.f32 0.0, %v3595
          %v3597 = vpop.f32.mrf.mxu0
          %v3598 = vpop.f32.mrf.mxu0
          %v3599 = vadd.f32 0.0, %v3598
          %v3600 = vpop.f32.mrf.mxu0
          %3601 = vmatprep.mubr.bf16.mxu0 %v2993
          %3602 = vmatmul.mubr.bf16.gmra.mxu0 %v2795
          %v3603 = vpop.f32.mrf.mxu0
          %v3604 = vadd.f32 0.0, %v3603
          %v3605 = vpop.f32.mrf.mxu0
          %v3606 = vpop.f32.mrf.mxu0
          %v3607 = vadd.f32 0.0, %v3606
          %v3608 = vpop.f32.mrf.mxu0
          %3609 = vmatprep.mubr.bf16.mxu0 %v2996
          %3610 = vmatmul.mubr.bf16.gmra.mxu0 %v2798
          %v3611 = vpop.f32.mrf.mxu0
          %v3612 = vadd.f32 0.0, %v3611
          %v3613 = vpop.f32.mrf.mxu0
          %v3614 = vpop.f32.mrf.mxu0
          %v3615 = vadd.f32 0.0, %v3614
          %v3616 = vpop.f32.mrf.mxu0
          %3617 = vmatprep.mubr.bf16.mxu0 %v2999
          %3618 = vmatmul.mubr.bf16.gmra.mxu0 %v2801
          %v3619 = vpop.f32.mrf.mxu0
          %v3620 = vadd.f32 0.0, %v3619
          %v3621 = vpop.f32.mrf.mxu0
          %v3622 = vpop.f32.mrf.mxu0
          %v3623 = vadd.f32 0.0, %v3622
          %v3624 = vpop.f32.mrf.mxu0
          %3625 = vmatprep.mubr.bf16.mxu0 %v3471
          %3626 = vmatmul.mubr.bf16.gmra.mxu0 %v2804
          %v3627 = vpop.f32.mrf.mxu0
          %v3628 = vadd.f32 0.0, %v3627
          %v3629 = vpop.f32.mrf.mxu0
          %v3630 = vpop.f32.mrf.mxu0
          %v3631 = vadd.f32 0.0, %v3630
          %v3632 = vpop.f32.mrf.mxu0
          %3633 = vdwg.mxu0
          %v3634 = vadd.f32 %v3272, %v3508
          %v3635 = vadd.f32 %v3275, %v3511
          %v3636 = vadd.f32 %v3280, %v3516
          %v3637 = vadd.f32 %v3283, %v3519
          %v3638 = vadd.f32 %v3288, %v3524
          %v3639 = vadd.f32 %v3291, %v3527
          %v3640 = vadd.f32 %v3296, %v3532
          %v3641 = vadd.f32 %v3299, %v3535
          %v3642 = vadd.f32 %v3304, %v3540
          %v3643 = vadd.f32 %v3307, %v3543
          %v3644 = vadd.f32 %v3312, %v3548
          %v3645 = vadd.f32 %v3315, %v3551
          %v3646 = vadd.f32 %v3320, %v3556
          %v3647 = vadd.f32 %v3323, %v3559
          %v3648 = vadd.f32 %v3328, %v3564
          %v3649 = vadd.f32 %v3331, %v3567
          %v3650 = vadd.f32 %v3336, %v3572
          %v3651 = vadd.f32 %v3339, %v3575
          %v3652 = vadd.f32 %v3344, %v3580
          %v3653 = vadd.f32 %v3347, %v3583
          %v3654 = vadd.f32 %v3352, %v3588
          %v3655 = vadd.f32 %v3355, %v3591
          %v3656 = vadd.f32 %v3360, %v3596
          %v3657 = vadd.f32 %v3363, %v3599
          %v3658 = vadd.f32 %v3368, %v3604
          %v3659 = vadd.f32 %v3371, %v3607
          %v3660 = vadd.f32 %v3376, %v3612
          %v3661 = vadd.f32 %v3379, %v3615
          %v3662 = vadd.f32 %v3384, %v3620
          %v3663 = vadd.f32 %v3387, %v3623
          %v3664 = vadd.f32 %v3392, %v3628
          %v3665 = vadd.f32 %v3395, %v3631
          %s3666 = scalar_lea.vmem %s2, %s2318
          %v3667 = vld [vmem:[%s3666] sm:$0x1]
          %v3669 = vlaneseq
          %v3670 = vshrl.u32 %v3669, 7
          %v3671 = vsub.s32 0, %v3670
          %v3672 = vrot.slane %v3667, %v3671
          %v3674 = vadd.f32 %v3634, %v3672
          %v3675 = vadd.f32 %v3635, %v3672
          %v3676 = vadd.f32 %v3636, %v3672
          %v3677 = vadd.f32 %v3637, %v3672
          %v3678 = vadd.f32 %v3638, %v3672
          %v3679 = vadd.f32 %v3639, %v3672
          %v3680 = vadd.f32 %v3640, %v3672
          %v3681 = vadd.f32 %v3641, %v3672
          %v3682 = vadd.f32 %v3642, %v3672
          %v3683 = vadd.f32 %v3643, %v3672
          %v3684 = vadd.f32 %v3644, %v3672
          %v3685 = vadd.f32 %v3645, %v3672
          %v3686 = vadd.f32 %v3646, %v3672
          %v3687 = vadd.f32 %v3647, %v3672
          %v3688 = vadd.f32 %v3648, %v3672
          %v3689 = vadd.f32 %v3649, %v3672
          %v3690 = vadd.f32 %v3650, %v3672
          %v3691 = vadd.f32 %v3651, %v3672
          %v3692 = vadd.f32 %v3652, %v3672
          %v3693 = vadd.f32 %v3653, %v3672
          %v3694 = vadd.f32 %v3654, %v3672
          %v3695 = vadd.f32 %v3655, %v3672
          %v3696 = vadd.f32 %v3656, %v3672
          %v3697 = vadd.f32 %v3657, %v3672
          %v3698 = vadd.f32 %v3658, %v3672
          %v3699 = vadd.f32 %v3659, %v3672
          %v3700 = vadd.f32 %v3660, %v3672
          %v3701 = vadd.f32 %v3661, %v3672
          %v3702 = vadd.f32 %v3662, %v3672
          %v3703 = vadd.f32 %v3663, %v3672
          %v3704 = vadd.f32 %v3664, %v3672
          %v3705 = vadd.f32 %v3665, %v3672
          %v3706 = vmax.f32 %v3674, 0.0
          %v3707 = vmax.f32 %v3675, 0.0
          %v3708 = vmax.f32 %v3676, 0.0
          %v3709 = vmax.f32 %v3677, 0.0
          %v3710 = vmax.f32 %v3678, 0.0
          %v3711 = vmax.f32 %v3679, 0.0
          %v3712 = vmax.f32 %v3680, 0.0
          %v3713 = vmax.f32 %v3681, 0.0
          %v3714 = vmax.f32 %v3682, 0.0
          %v3715 = vmax.f32 %v3683, 0.0
          %v3716 = vmax.f32 %v3684, 0.0
          %v3717 = vmax.f32 %v3685, 0.0
          %v3718 = vmax.f32 %v3686, 0.0
          %v3719 = vmax.f32 %v3687, 0.0
          %v3720 = vmax.f32 %v3688, 0.0
          %v3721 = vmax.f32 %v3689, 0.0
          %v3722 = vmax.f32 %v3690, 0.0
          %v3723 = vmax.f32 %v3691, 0.0
          %v3724 = vmax.f32 %v3692, 0.0
          %v3725 = vmax.f32 %v3693, 0.0
          %v3726 = vmax.f32 %v3694, 0.0
          %v3727 = vmax.f32 %v3695, 0.0
          %v3728 = vmax.f32 %v3696, 0.0
          %v3729 = vmax.f32 %v3697, 0.0
          %v3730 = vmax.f32 %v3698, 0.0
          %v3731 = vmax.f32 %v3699, 0.0
          %v3732 = vmax.f32 %v3700, 0.0
          %v3733 = vmax.f32 %v3701, 0.0
          %v3734 = vmax.f32 %v3702, 0.0
          %v3735 = vmax.f32 %v3703, 0.0
          %v3736 = vmax.f32 %v3704, 0.0
          %v3737 = vmax.f32 %v3705, 0.0
          %v3738 = vpack.c.bf16 %v3707, %v3706
          %v3739 = vpack.c.bf16 %v3709, %v3708
          %v3740 = vpack.c.bf16 %v3711, %v3710
          %v3741 = vpack.c.bf16 %v3713, %v3712
          %v3742 = vpack.c.bf16 %v3715, %v3714
          %v3743 = vpack.c.bf16 %v3717, %v3716
          %v3744 = vpack.c.bf16 %v3719, %v3718
          %v3745 = vpack.c.bf16 %v3721, %v3720
          %v3746 = vpack.c.bf16 %v3723, %v3722
          %v3747 = vpack.c.bf16 %v3725, %v3724
          %v3748 = vpack.c.bf16 %v3727, %v3726
          %v3749 = vpack.c.bf16 %v3729, %v3728
          %v3750 = vpack.c.bf16 %v3731, %v3730
          %v3751 = vpack.c.bf16 %v3733, %v3732
          %v3752 = vpack.c.bf16 %v3735, %v3734
          %v3753 = vpack.c.bf16 %v3737, %v3736
          %v3770 = vunpack.c.l.b16 %v3738
          %v3771 = vunpack.c.h.b16 %v3738
          %v3772 = vunpack.c.l.b16 %v3739
          %v3773 = vunpack.c.h.b16 %v3739
          %v3774 = vunpack.c.l.b16 %v3740
          %v3775 = vunpack.c.h.b16 %v3740
          %v3776 = vunpack.c.l.b16 %v3741
          %v3777 = vunpack.c.h.b16 %v3741
          %v3778 = vunpack.c.l.b16 %v3742
          %v3779 = vunpack.c.h.b16 %v3742
          %v3780 = vunpack.c.l.b16 %v3743
          %v3781 = vunpack.c.h.b16 %v3743
          %v3782 = vunpack.c.l.b16 %v3744
          %v3783 = vunpack.c.h.b16 %v3744
          %v3784 = vunpack.c.l.b16 %v3745
          %v3785 = vunpack.c.h.b16 %v3745
          %v3786 = vunpack.c.l.b16 %v3746
          %v3787 = vunpack.c.h.b16 %v3746
          %v3788 = vunpack.c.l.b16 %v3747
          %v3789 = vunpack.c.h.b16 %v3747
          %v3790 = vunpack.c.l.b16 %v3748
          %v3791 = vunpack.c.h.b16 %v3748
          %v3792 = vunpack.c.l.b16 %v3749
          %v3793 = vunpack.c.h.b16 %v3749
          %v3794 = vunpack.c.l.b16 %v3750
          %v3795 = vunpack.c.h.b16 %v3750
          %v3796 = vunpack.c.l.b16 %v3751
          %v3797 = vunpack.c.h.b16 %v3751
          %v3798 = vunpack.c.l.b16 %v3752
          %v3799 = vunpack.c.h.b16 %v3752
          %v3800 = vunpack.c.l.b16 %v3753
          %v3801 = vunpack.c.h.b16 %v3753
          %v3802 = vpack.c.b16 %v3770, %v3770
          %v3803 = vpack.c.b16 %v3771, %v3771
          %v3804 = vpack.c.b16 %v3772, %v3772
          %v3805 = vpack.c.b16 %v3773, %v3773
          %v3806 = vpack.c.b16 %v3774, %v3774
          %v3807 = vpack.c.b16 %v3775, %v3775
          %v3808 = vpack.c.b16 %v3776, %v3776
          %v3809 = vpack.c.b16 %v3777, %v3777
          %v3810 = vpack.c.b16 %v3778, %v3778
          %v3811 = vpack.c.b16 %v3779, %v3779
          %v3812 = vpack.c.b16 %v3780, %v3780
          %v3813 = vpack.c.b16 %v3781, %v3781
          %v3814 = vpack.c.b16 %v3782, %v3782
          %v3815 = vpack.c.b16 %v3783, %v3783
          %v3816 = vpack.c.b16 %v3784, %v3784
          %v3817 = vpack.c.b16 %v3785, %v3785
          %v3818 = vpack.c.b16 %v3786, %v3786
          %v3819 = vpack.c.b16 %v3787, %v3787
          %v3820 = vpack.c.b16 %v3788, %v3788
          %v3821 = vpack.c.b16 %v3789, %v3789
          %v3822 = vpack.c.b16 %v3790, %v3790
          %v3823 = vpack.c.b16 %v3791, %v3791
          %v3824 = vpack.c.b16 %v3792, %v3792
          %v3825 = vpack.c.b16 %v3793, %v3793
          %v3826 = vpack.c.b16 %v3794, %v3794
          %v3827 = vpack.c.b16 %v3795, %v3795
          %v3828 = vpack.c.b16 %v3796, %v3796
          %v3829 = vpack.c.b16 %v3797, %v3797
          %v3830 = vpack.c.b16 %v3798, %v3798
          %v3831 = vpack.c.b16 %v3799, %v3799
          %v3832 = vpack.c.b16 %v3800, %v3800
          %v3833 = vpack.c.b16 %v3801, %v3801
          %v3835 = vshrl.u32 %v3802, 16
          %v3837 = vrot.slane %v3835, 7
          %v3838 = vshll.u32 %v3802, 16
          %v3840 = vor.u32 %v3837, %v3838
          %v3841 = vrot.slane %v3837, 4
          %v3843 = vshrl.u32 %v3803, 16
          %v3845 = vrot.slane %v3843, 7
          %v3846 = vshll.u32 %v3803, 16
          %v3848 = vor.u32 %v3845, %v3846
          %v3849 = vsel %vm356, %v3841, %v3848
          %v3850 = vrot.slane %v3845, 4
          %v3852 = vshrl.u32 %v3804, 16
          %v3854 = vrot.slane %v3852, 7
          %v3855 = vshll.u32 %v3804, 16
          %v3857 = vor.u32 %v3854, %v3855
          %v3858 = vrot.slane %v3854, 4
          %v3860 = vshrl.u32 %v3805, 16
          %v3862 = vrot.slane %v3860, 7
          %v3863 = vshll.u32 %v3805, 16
          %v3865 = vor.u32 %v3862, %v3863
          %v3866 = vsel %vm356, %v3858, %v3865
          %v3867 = vrot.slane %v3862, 4
          %v3869 = vshrl.u32 %v3806, 16
          %v3871 = vrot.slane %v3869, 7
          %v3872 = vshll.u32 %v3806, 16
          %v3874 = vor.u32 %v3871, %v3872
          %v3875 = vrot.slane %v3871, 4
          %v3877 = vshrl.u32 %v3807, 16
          %v3879 = vrot.slane %v3877, 7
          %v3880 = vshll.u32 %v3807, 16
          %v3882 = vor.u32 %v3879, %v3880
          %v3883 = vsel %vm356, %v3875, %v3882
          %v3884 = vrot.slane %v3879, 4
          %v3886 = vshrl.u32 %v3808, 16
          %v3888 = vrot.slane %v3886, 7
          %v3889 = vshll.u32 %v3808, 16
          %v3891 = vor.u32 %v3888, %v3889
          %v3892 = vrot.slane %v3888, 4
          %v3894 = vshrl.u32 %v3809, 16
          %v3896 = vrot.slane %v3894, 7
          %v3897 = vshll.u32 %v3809, 16
          %v3899 = vor.u32 %v3896, %v3897
          %v3900 = vsel %vm356, %v3892, %v3899
          %v3901 = vrot.slane %v3896, 4
          %v3903 = vshrl.u32 %v3810, 16
          %v3905 = vrot.slane %v3903, 7
          %v3906 = vshll.u32 %v3810, 16
          %v3908 = vor.u32 %v3905, %v3906
          %v3909 = vrot.slane %v3905, 4
          %v3911 = vshrl.u32 %v3811, 16
          %v3913 = vrot.slane %v3911, 7
          %v3914 = vshll.u32 %v3811, 16
          %v3916 = vor.u32 %v3913, %v3914
          %v3917 = vsel %vm356, %v3909, %v3916
          %v3918 = vrot.slane %v3913, 4
          %v3920 = vshrl.u32 %v3812, 16
          %v3922 = vrot.slane %v3920, 7
          %v3923 = vshll.u32 %v3812, 16
          %v3925 = vor.u32 %v3922, %v3923
          %v3926 = vrot.slane %v3922, 4
          %v3928 = vshrl.u32 %v3813, 16
          %v3930 = vrot.slane %v3928, 7
          %v3931 = vshll.u32 %v3813, 16
          %v3933 = vor.u32 %v3930, %v3931
          %v3934 = vsel %vm356, %v3926, %v3933
          %v3935 = vrot.slane %v3930, 4
          %v3937 = vshrl.u32 %v3814, 16
          %v3939 = vrot.slane %v3937, 7
          %v3940 = vshll.u32 %v3814, 16
          %v3942 = vor.u32 %v3939, %v3940
          %v3943 = vrot.slane %v3939, 4
          %v3945 = vshrl.u32 %v3815, 16
          %v3947 = vrot.slane %v3945, 7
          %v3948 = vshll.u32 %v3815, 16
          %v3950 = vor.u32 %v3947, %v3948
          %v3951 = vsel %vm356, %v3943, %v3950
          %v3952 = vrot.slane %v3947, 4
          %v3954 = vshrl.u32 %v3816, 16
          %v3956 = vrot.slane %v3954, 7
          %v3957 = vshll.u32 %v3816, 16
          %v3959 = vor.u32 %v3956, %v3957
          %v3960 = vrot.slane %v3956, 4
          %v3962 = vshrl.u32 %v3817, 16
          %v3964 = vrot.slane %v3962, 7
          %v3965 = vshll.u32 %v3817, 16
          %v3967 = vor.u32 %v3964, %v3965
          %v3968 = vsel %vm356, %v3960, %v3967
          %v3969 = vrot.slane %v3964, 4
          %v3971 = vshrl.u32 %v3818, 16
          %v3973 = vrot.slane %v3971, 7
          %v3974 = vshll.u32 %v3818, 16
          %v3976 = vor.u32 %v3973, %v3974
          %v3977 = vrot.slane %v3973, 4
          %v3979 = vshrl.u32 %v3819, 16
          %v3981 = vrot.slane %v3979, 7
          %v3982 = vshll.u32 %v3819, 16
          %v3984 = vor.u32 %v3981, %v3982
          %v3985 = vsel %vm356, %v3977, %v3984
          %v3986 = vrot.slane %v3981, 4
          %v3988 = vshrl.u32 %v3820, 16
          %v3990 = vrot.slane %v3988, 7
          %v3991 = vshll.u32 %v3820, 16
          %v3993 = vor.u32 %v3990, %v3991
          %v3994 = vrot.slane %v3990, 4
          %v3996 = vshrl.u32 %v3821, 16
          %v3998 = vrot.slane %v3996, 7
          %v3999 = vshll.u32 %v3821, 16
          %v4001 = vor.u32 %v3998, %v3999
          %v4002 = vsel %vm356, %v3994, %v4001
          %v4003 = vrot.slane %v3998, 4
          %v4005 = vshrl.u32 %v3822, 16
          %v4007 = vrot.slane %v4005, 7
          %v4008 = vshll.u32 %v3822, 16
          %v4010 = vor.u32 %v4007, %v4008
          %v4011 = vrot.slane %v4007, 4
          %v4013 = vshrl.u32 %v3823, 16
          %v4015 = vrot.slane %v4013, 7
          %v4016 = vshll.u32 %v3823, 16
          %v4018 = vor.u32 %v4015, %v4016
          %v4019 = vsel %vm356, %v4011, %v4018
          %v4020 = vrot.slane %v4015, 4
          %v4022 = vshrl.u32 %v3824, 16
          %v4024 = vrot.slane %v4022, 7
          %v4025 = vshll.u32 %v3824, 16
          %v4027 = vor.u32 %v4024, %v4025
          %v4028 = vrot.slane %v4024, 4
          %v4030 = vshrl.u32 %v3825, 16
          %v4032 = vrot.slane %v4030, 7
          %v4033 = vshll.u32 %v3825, 16
          %v4035 = vor.u32 %v4032, %v4033
          %v4036 = vsel %vm356, %v4028, %v4035
          %v4037 = vrot.slane %v4032, 4
          %v4039 = vshrl.u32 %v3826, 16
          %v4041 = vrot.slane %v4039, 7
          %v4042 = vshll.u32 %v3826, 16
          %v4044 = vor.u32 %v4041, %v4042
          %v4045 = vrot.slane %v4041, 4
          %v4047 = vshrl.u32 %v3827, 16
          %v4049 = vrot.slane %v4047, 7
          %v4050 = vshll.u32 %v3827, 16
          %v4052 = vor.u32 %v4049, %v4050
          %v4053 = vsel %vm356, %v4045, %v4052
          %v4054 = vrot.slane %v4049, 4
          %v4056 = vshrl.u32 %v3828, 16
          %v4058 = vrot.slane %v4056, 7
          %v4059 = vshll.u32 %v3828, 16
          %v4061 = vor.u32 %v4058, %v4059
          %v4062 = vrot.slane %v4058, 4
          %v4064 = vshrl.u32 %v3829, 16
          %v4066 = vrot.slane %v4064, 7
          %v4067 = vshll.u32 %v3829, 16
          %v4069 = vor.u32 %v4066, %v4067
          %v4070 = vsel %vm356, %v4062, %v4069
          %v4071 = vrot.slane %v4066, 4
          %v4073 = vshrl.u32 %v3830, 16
          %v4075 = vrot.slane %v4073, 7
          %v4076 = vshll.u32 %v3830, 16
          %v4078 = vor.u32 %v4075, %v4076
          %v4079 = vrot.slane %v4075, 4
          %v4081 = vshrl.u32 %v3831, 16
          %v4083 = vrot.slane %v4081, 7
          %v4084 = vshll.u32 %v3831, 16
          %v4086 = vor.u32 %v4083, %v4084
          %v4087 = vsel %vm356, %v4079, %v4086
          %v4088 = vrot.slane %v4083, 4
          %v4090 = vshrl.u32 %v3832, 16
          %v4092 = vrot.slane %v4090, 7
          %v4093 = vshll.u32 %v3832, 16
          %v4095 = vor.u32 %v4092, %v4093
          %v4096 = vrot.slane %v4092, 4
          %v4098 = vshrl.u32 %v3833, 16
          %v4100 = vrot.slane %v4098, 7
          %v4101 = vshll.u32 %v3833, 16
          %v4103 = vor.u32 %v4100, %v4101
          %v4104 = vsel %vm356, %v4096, %v4103
          %v4105 = vrot.slane %v4100, 4
          %v4154 = vld [vmem:[%s179] sm:$0xf]
          %v4155 = vsel %vm678, %v3840, %v4154
          %4156 = vst [vmem:[%s179] sm:$0xf] %v4155
          %4157 = vst.msk [vmem:[%s179 + $0x4] sm:$0xf] %vm170, %v3849
          %v4158 = vld [vmem:[%s179 + $0x8] sm:$0x1]
          %v4159 = vsel %vm182, %v3850, %v4158
          %4160 = vst [vmem:[%s179 + $0x8] sm:$0x1] %v4159
          %v4161 = vld [vmem:[%s179 + $0xc] sm:$0xf]
          %v4162 = vsel %vm678, %v3857, %v4161
          %4163 = vst [vmem:[%s179 + $0xc] sm:$0xf] %v4162
          %4164 = vst.msk [vmem:[%s179 + $0x10] sm:$0xf] %vm170, %v3866
          %v4165 = vld [vmem:[%s179 + $0x14] sm:$0x1]
          %v4166 = vsel %vm182, %v3867, %v4165
          %4167 = vst [vmem:[%s179 + $0x14] sm:$0x1] %v4166
          %v4168 = vld [vmem:[%s179 + $0x18] sm:$0xf]
          %v4169 = vsel %vm678, %v3874, %v4168
          %4170 = vst [vmem:[%s179 + $0x18] sm:$0xf] %v4169
          %4171 = vst.msk [vmem:[%s179 + $0x1c] sm:$0xf] %vm170, %v3883
          %v4172 = vld [vmem:[%s179 + $0x20] sm:$0x1]
          %v4173 = vsel %vm182, %v3884, %v4172
          %4174 = vst [vmem:[%s179 + $0x20] sm:$0x1] %v4173
          %v4175 = vld [vmem:[%s179 + $0x24] sm:$0xf]
          %v4176 = vsel %vm678, %v3891, %v4175
          %4177 = vst [vmem:[%s179 + $0x24] sm:$0xf] %v4176
          %4178 = vst.msk [vmem:[%s179 + $0x28] sm:$0xf] %vm170, %v3900
          %v4179 = vld [vmem:[%s179 + $0x2c] sm:$0x1]
          %v4180 = vsel %vm182, %v3901, %v4179
          %4181 = vst [vmem:[%s179 + $0x2c] sm:$0x1] %v4180
          %v4182 = vld [vmem:[%s179 + $0x30] sm:$0xf]
          %v4183 = vsel %vm678, %v3908, %v4182
          %4184 = vst [vmem:[%s179 + $0x30] sm:$0xf] %v4183
          %4185 = vst.msk [vmem:[%s179 + $0x34] sm:$0xf] %vm170, %v3917
          %v4186 = vld [vmem:[%s179 + $0x38] sm:$0x1]
          %v4187 = vsel %vm182, %v3918, %v4186
          %4188 = vst [vmem:[%s179 + $0x38] sm:$0x1] %v4187
          %v4189 = vld [vmem:[%s179 + $0x3c] sm:$0xf]
          %v4190 = vsel %vm678, %v3925, %v4189
          %4191 = vst [vmem:[%s179 + $0x3c] sm:$0xf] %v4190
          %4192 = vst.msk [vmem:[%s179 + $0x40] sm:$0xf] %vm170, %v3934
          %v4193 = vld [vmem:[%s179 + $0x44] sm:$0x1]
          %v4194 = vsel %vm182, %v3935, %v4193
          %4195 = vst [vmem:[%s179 + $0x44] sm:$0x1] %v4194
          %v4196 = vld [vmem:[%s179 + $0x48] sm:$0xf]
          %v4197 = vsel %vm678, %v3942, %v4196
          %4198 = vst [vmem:[%s179 + $0x48] sm:$0xf] %v4197
          %4199 = vst.msk [vmem:[%s179 + $0x4c] sm:$0xf] %vm170, %v3951
          %v4200 = vld [vmem:[%s179 + $0x50] sm:$0x1]
          %v4201 = vsel %vm182, %v3952, %v4200
          %4202 = vst [vmem:[%s179 + $0x50] sm:$0x1] %v4201
          %v4203 = vld [vmem:[%s179 + $0x54] sm:$0xf]
          %v4204 = vsel %vm678, %v3959, %v4203
          %4205 = vst [vmem:[%s179 + $0x54] sm:$0xf] %v4204
          %4206 = vst.msk [vmem:[%s179 + $0x58] sm:$0xf] %vm170, %v3968
          %v4207 = vld [vmem:[%s179 + $0x5c] sm:$0x1]
          %v4208 = vsel %vm182, %v3969, %v4207
          %4209 = vst [vmem:[%s179 + $0x5c] sm:$0x1] %v4208
          %v4210 = vld [vmem:[%s179 + $0x60] sm:$0xf]
          %v4211 = vsel %vm678, %v3976, %v4210
          %4212 = vst [vmem:[%s179 + $0x60] sm:$0xf] %v4211
          %4213 = vst.msk [vmem:[%s179 + $0x64] sm:$0xf] %vm170, %v3985
          %v4214 = vld [vmem:[%s179 + $0x68] sm:$0x1]
          %v4215 = vsel %vm182, %v3986, %v4214
          %4216 = vst [vmem:[%s179 + $0x68] sm:$0x1] %v4215
          %v4217 = vld [vmem:[%s179 + $0x6c] sm:$0xf]
          %v4218 = vsel %vm678, %v3993, %v4217
          %4219 = vst [vmem:[%s179 + $0x6c] sm:$0xf] %v4218
          %4220 = vst.msk [vmem:[%s179 + $0x70] sm:$0xf] %vm170, %v4002
          %v4221 = vld [vmem:[%s179 + $0x74] sm:$0x1]
          %v4222 = vsel %vm182, %v4003, %v4221
          %4223 = vst [vmem:[%s179 + $0x74] sm:$0x1] %v4222
          %v4224 = vld [vmem:[%s179 + $0x78] sm:$0xf]
          %v4225 = vsel %vm678, %v4010, %v4224
          %4226 = vst [vmem:[%s179 + $0x78] sm:$0xf] %v4225
          %4227 = vst.msk [vmem:[%s179 + $0x7c] sm:$0xf] %vm170, %v4019
          %v4228 = vld [vmem:[%s179 + $0x80] sm:$0x1]
          %v4229 = vsel %vm182, %v4020, %v4228
          %4230 = vst [vmem:[%s179 + $0x80] sm:$0x1] %v4229
          %v4231 = vld [vmem:[%s179 + $0x84] sm:$0xf]
          %v4232 = vsel %vm678, %v4027, %v4231
          %4233 = vst [vmem:[%s179 + $0x84] sm:$0xf] %v4232
          %4234 = vst.msk [vmem:[%s179 + $0x88] sm:$0xf] %vm170, %v4036
          %v4235 = vld [vmem:[%s179 + $0x8c] sm:$0x1]
          %v4236 = vsel %vm182, %v4037, %v4235
          %4237 = vst [vmem:[%s179 + $0x8c] sm:$0x1] %v4236
          %v4238 = vld [vmem:[%s179 + $0x90] sm:$0xf]
          %v4239 = vsel %vm678, %v4044, %v4238
          %4240 = vst [vmem:[%s179 + $0x90] sm:$0xf] %v4239
          %4241 = vst.msk [vmem:[%s179 + $0x94] sm:$0xf] %vm170, %v4053
          %v4242 = vld [vmem:[%s179 + $0x98] sm:$0x1]
          %v4243 = vsel %vm182, %v4054, %v4242
          %4244 = vst [vmem:[%s179 + $0x98] sm:$0x1] %v4243
          %v4245 = vld [vmem:[%s179 + $0x9c] sm:$0xf]
          %v4246 = vsel %vm678, %v4061, %v4245
          %4247 = vst [vmem:[%s179 + $0x9c] sm:$0xf] %v4246
          %4248 = vst.msk [vmem:[%s179 + $0xa0] sm:$0xf] %vm170, %v4070
          %v4249 = vld [vmem:[%s179 + $0xa4] sm:$0x1]
          %v4250 = vsel %vm182, %v4071, %v4249
          %4251 = vst [vmem:[%s179 + $0xa4] sm:$0x1] %v4250
          %v4252 = vld [vmem:[%s179 + $0xa8] sm:$0xf]
          %v4253 = vsel %vm678, %v4078, %v4252
          %4254 = vst [vmem:[%s179 + $0xa8] sm:$0xf] %v4253
          %4255 = vst.msk [vmem:[%s179 + $0xac] sm:$0xf] %vm170, %v4087
          %v4256 = vld [vmem:[%s179 + $0xb0] sm:$0x1]
          %v4257 = vsel %vm182, %v4088, %v4256
          %4258 = vst [vmem:[%s179 + $0xb0] sm:$0x1] %v4257
          %v4259 = vld [vmem:[%s179 + $0xb4] sm:$0xf]
          %v4260 = vsel %vm678, %v4095, %v4259
          %4261 = vst [vmem:[%s179 + $0xb4] sm:$0xf] %v4260
          %4262 = vst.msk [vmem:[%s179 + $0xb8] sm:$0xf] %vm170, %v4104
          %v4263 = vld [vmem:[%s179 + $0xbc] sm:$0x1]
          %v4264 = vsel %vm182, %v4105, %v4263
          %4265 = vst [vmem:[%s179 + $0xbc] sm:$0x1] %v4264
          %v4266 = vld [vmem:[#allocation2] sm:$0xf]
          %v4267 = vld [vmem:[#allocation2 + $0x4] sm:$0xf]
          %v4268 = vld [vmem:[#allocation2 + $0x8] sm:$0x1]
          %v4269 = vld [vmem:[#allocation2 + $0xc] sm:$0xf]
          %v4270 = vld [vmem:[#allocation2 + $0x10] sm:$0xf]
          %v4271 = vld [vmem:[#allocation2 + $0x14] sm:$0x1]
          %v4272 = vld [vmem:[#allocation2 + $0x18] sm:$0xf]
          %v4273 = vld [vmem:[#allocation2 + $0x1c] sm:$0xf]
          %v4274 = vld [vmem:[#allocation2 + $0x20] sm:$0x1]
          %v4275 = vld [vmem:[#allocation2 + $0x24] sm:$0xf]
          %v4276 = vld [vmem:[#allocation2 + $0x28] sm:$0xf]
          %v4277 = vld [vmem:[#allocation2 + $0x2c] sm:$0x1]
          %v4278 = vld [vmem:[#allocation2 + $0x30] sm:$0xf]
          %v4279 = vld [vmem:[#allocation2 + $0x34] sm:$0xf]
          %v4280 = vld [vmem:[#allocation2 + $0x38] sm:$0x1]
          %v4281 = vld [vmem:[#allocation2 + $0x3c] sm:$0xf]
          %v4282 = vld [vmem:[#allocation2 + $0x40] sm:$0xf]
          %v4283 = vld [vmem:[#allocation2 + $0x44] sm:$0x1]
          %v4284 = vld [vmem:[#allocation2 + $0x48] sm:$0xf]
          %v4285 = vld [vmem:[#allocation2 + $0x4c] sm:$0xf]
          %v4286 = vld [vmem:[#allocation2 + $0x50] sm:$0x1]
          %v4287 = vld [vmem:[#allocation2 + $0x54] sm:$0xf]
          %v4288 = vld [vmem:[#allocation2 + $0x58] sm:$0xf]
          %v4289 = vld [vmem:[#allocation2 + $0x5c] sm:$0x1]
          %v4290 = vld [vmem:[#allocation2 + $0x60] sm:$0xf]
          %v4291 = vld [vmem:[#allocation2 + $0x64] sm:$0xf]
          %v4292 = vld [vmem:[#allocation2 + $0x68] sm:$0x1]
          %v4293 = vld [vmem:[#allocation2 + $0x6c] sm:$0xf]
          %v4294 = vld [vmem:[#allocation2 + $0x70] sm:$0xf]
          %v4295 = vld [vmem:[#allocation2 + $0x74] sm:$0x1]
          %v4296 = vld [vmem:[#allocation2 + $0x78] sm:$0xf]
          %v4297 = vld [vmem:[#allocation2 + $0x7c] sm:$0xf]
          %v4298 = vld [vmem:[#allocation2 + $0x80] sm:$0x1]
          %v4299 = vld [vmem:[#allocation2 + $0x84] sm:$0xf]
          %v4300 = vld [vmem:[#allocation2 + $0x88] sm:$0xf]
          %v4301 = vld [vmem:[#allocation2 + $0x8c] sm:$0x1]
          %v4302 = vld [vmem:[#allocation2 + $0x90] sm:$0xf]
          %v4303 = vld [vmem:[#allocation2 + $0x94] sm:$0xf]
          %v4304 = vld [vmem:[#allocation2 + $0x98] sm:$0x1]
          %v4305 = vld [vmem:[#allocation2 + $0x9c] sm:$0xf]
          %v4306 = vld [vmem:[#allocation2 + $0xa0] sm:$0xf]
          %v4307 = vld [vmem:[#allocation2 + $0xa4] sm:$0x1]
          %v4308 = vld [vmem:[#allocation2 + $0xa8] sm:$0xf]
          %v4309 = vld [vmem:[#allocation2 + $0xac] sm:$0xf]
          %v4310 = vld [vmem:[#allocation2 + $0xb0] sm:$0x1]
          %v4311 = vld [vmem:[#allocation2 + $0xb4] sm:$0xf]
          %v4312 = vld [vmem:[#allocation2 + $0xb8] sm:$0xf]
          %v4313 = vld [vmem:[#allocation2 + $0xbc] sm:$0x1]
          %v4314 = vld [vmem:[#allocation2 + $0xc0] sm:$0xf]
          %v4315 = vld [vmem:[#allocation2 + $0xc4] sm:$0xf]
          %v4316 = vld [vmem:[#allocation2 + $0xc8] sm:$0x1]
          %v4317 = vld [vmem:[#allocation2 + $0xcc] sm:$0xf]
          %v4318 = vld [vmem:[#allocation2 + $0xd0] sm:$0xf]
          %v4319 = vld [vmem:[#allocation2 + $0xd4] sm:$0x1]
          %v4356 = vunpack.c.l.b16 %v4266
          %v4357 = vunpack.c.l.b16 %v4267
          %v4358 = vunpack.c.l.b16 %v4269
          %v4359 = vunpack.c.l.b16 %v4270
          %v4360 = vunpack.c.l.b16 %v4272
          %v4361 = vunpack.c.l.b16 %v4273
          %v4362 = vunpack.c.l.b16 %v4275
          %v4363 = vunpack.c.l.b16 %v4276
          %v4364 = vunpack.c.l.b16 %v4278
          %v4365 = vunpack.c.l.b16 %v4279
          %v4366 = vunpack.c.l.b16 %v4281
          %v4367 = vunpack.c.l.b16 %v4282
          %v4368 = vunpack.c.l.b16 %v4284
          %v4369 = vunpack.c.l.b16 %v4285
          %v4370 = vunpack.c.l.b16 %v4287
          %v4371 = vunpack.c.l.b16 %v4288
          %v4372 = vunpack.c.l.b16 %v4290
          %v4373 = vunpack.c.l.b16 %v4291
          %v4374 = vunpack.c.l.b16 %v4293
          %v4375 = vunpack.c.l.b16 %v4294
          %v4376 = vunpack.c.l.b16 %v4296
          %v4377 = vunpack.c.l.b16 %v4297
          %v4378 = vunpack.c.l.b16 %v4299
          %v4379 = vunpack.c.l.b16 %v4300
          %v4380 = vunpack.c.l.b16 %v4302
          %v4381 = vunpack.c.l.b16 %v4303
          %v4382 = vunpack.c.l.b16 %v4305
          %v4383 = vunpack.c.l.b16 %v4306
          %v4384 = vunpack.c.l.b16 %v4308
          %v4385 = vunpack.c.l.b16 %v4309
          %v4386 = vunpack.c.l.b16 %v4311
          %v4387 = vunpack.c.l.b16 %v4312
          %v4388 = vunpack.c.l.b16 %v4314
          %v4389 = vunpack.c.l.b16 %v4315
          %v4390 = vunpack.c.l.b16 %v4317
          %v4391 = vunpack.c.l.b16 %v4318
          %v4392 = vpack.c.b16 %v4357, %v4356
          %v4393 = vpack.c.b16 %v4359, %v4358
          %v4394 = vpack.c.b16 %v4361, %v4360
          %v4395 = vpack.c.b16 %v4363, %v4362
          %v4396 = vpack.c.b16 %v4365, %v4364
          %v4397 = vpack.c.b16 %v4367, %v4366
          %v4398 = vpack.c.b16 %v4369, %v4368
          %v4399 = vpack.c.b16 %v4371, %v4370
          %v4400 = vpack.c.b16 %v4373, %v4372
          %v4401 = vpack.c.b16 %v4375, %v4374
          %v4402 = vpack.c.b16 %v4377, %v4376
          %v4403 = vpack.c.b16 %v4379, %v4378
          %v4404 = vpack.c.b16 %v4381, %v4380
          %v4405 = vpack.c.b16 %v4383, %v4382
          %v4406 = vpack.c.b16 %v4385, %v4384
          %v4407 = vpack.c.b16 %v4387, %v4386
          %v4408 = vpack.c.b16 %v4389, %v4388
          %v4409 = vpack.c.b16 %v4391, %v4390
          %v4428 = vunpack.c.l.b16 %v4268
          %v4429 = vunpack.c.l.b16 %v4271
          %v4430 = vunpack.c.l.b16 %v4274
          %v4431 = vunpack.c.l.b16 %v4277
          %v4432 = vunpack.c.l.b16 %v4280
          %v4433 = vunpack.c.l.b16 %v4283
          %v4434 = vunpack.c.l.b16 %v4286
          %v4435 = vunpack.c.l.b16 %v4289
          %v4436 = vunpack.c.l.b16 %v4292
          %v4437 = vunpack.c.l.b16 %v4295
          %v4438 = vunpack.c.l.b16 %v4298
          %v4439 = vunpack.c.l.b16 %v4301
          %v4440 = vunpack.c.l.b16 %v4304
          %v4441 = vunpack.c.l.b16 %v4307
          %v4442 = vunpack.c.l.b16 %v4310
          %v4443 = vunpack.c.l.b16 %v4313
          %v4444 = vunpack.c.l.b16 %v4316
          %v4445 = vunpack.c.l.b16 %v4319
          %v4446 = vpack.c.b16 %v4428, %v4428
          %v4447 = vpack.c.b16 %v4429, %v4429
          %v4448 = vpack.c.b16 %v4430, %v4430
          %v4449 = vpack.c.b16 %v4431, %v4431
          %v4450 = vpack.c.b16 %v4432, %v4432
          %v4451 = vpack.c.b16 %v4433, %v4433
          %v4452 = vpack.c.b16 %v4434, %v4434
          %v4453 = vpack.c.b16 %v4435, %v4435
          %v4454 = vpack.c.b16 %v4436, %v4436
          %v4455 = vpack.c.b16 %v4437, %v4437
          %v4456 = vpack.c.b16 %v4438, %v4438
          %v4457 = vpack.c.b16 %v4439, %v4439
          %v4458 = vpack.c.b16 %v4440, %v4440
          %v4459 = vpack.c.b16 %v4441, %v4441
          %v4460 = vpack.c.b16 %v4442, %v4442
          %v4461 = vpack.c.b16 %v4443, %v4443
          %v4462 = vpack.c.b16 %v4444, %v4444
          %v4463 = vpack.c.b16 %v4445, %v4445
          %v4465 = vshrl.u32 %v4392, 16
          %v4467 = vshll.u32 %v4392, 16
          %v4469 = vrot.slane %v4467, 1
          %v4470 = vor.u32 %v4465, %v4469
          %v4472 = vshll.u32 %v4446, 16
          %v4474 = vrot.slane %v4472, 1
          %v4475 = vsel %vm989, %v4470, %v4474
          %v4477 = vshrl.u32 %v4393, 16
          %v4479 = vshll.u32 %v4393, 16
          %v4481 = vrot.slane %v4479, 1
          %v4482 = vor.u32 %v4477, %v4481
          %v4484 = vshll.u32 %v4447, 16
          %v4486 = vrot.slane %v4484, 1
          %v4487 = vsel %vm989, %v4482, %v4486
          %v4489 = vshrl.u32 %v4394, 16
          %v4491 = vshll.u32 %v4394, 16
          %v4493 = vrot.slane %v4491, 1
          %v4494 = vor.u32 %v4489, %v4493
          %v4496 = vshll.u32 %v4448, 16
          %v4498 = vrot.slane %v4496, 1
          %v4499 = vsel %vm989, %v4494, %v4498
          %v4501 = vshrl.u32 %v4395, 16
          %v4503 = vshll.u32 %v4395, 16
          %v4505 = vrot.slane %v4503, 1
          %v4506 = vor.u32 %v4501, %v4505
          %v4508 = vshll.u32 %v4449, 16
          %v4510 = vrot.slane %v4508, 1
          %v4511 = vsel %vm989, %v4506, %v4510
          %v4513 = vshrl.u32 %v4396, 16
          %v4515 = vshll.u32 %v4396, 16
          %v4517 = vrot.slane %v4515, 1
          %v4518 = vor.u32 %v4513, %v4517
          %v4520 = vshll.u32 %v4450, 16
          %v4522 = vrot.slane %v4520, 1
          %v4523 = vsel %vm989, %v4518, %v4522
          %v4525 = vshrl.u32 %v4397, 16
          %v4527 = vshll.u32 %v4397, 16
          %v4529 = vrot.slane %v4527, 1
          %v4530 = vor.u32 %v4525, %v4529
          %v4532 = vshll.u32 %v4451, 16
          %v4534 = vrot.slane %v4532, 1
          %v4535 = vsel %vm989, %v4530, %v4534
          %v4537 = vshrl.u32 %v4398, 16
          %v4539 = vshll.u32 %v4398, 16
          %v4541 = vrot.slane %v4539, 1
          %v4542 = vor.u32 %v4537, %v4541
          %v4544 = vshll.u32 %v4452, 16
          %v4546 = vrot.slane %v4544, 1
          %v4547 = vsel %vm989, %v4542, %v4546
          %v4549 = vshrl.u32 %v4399, 16
          %v4551 = vshll.u32 %v4399, 16
          %v4553 = vrot.slane %v4551, 1
          %v4554 = vor.u32 %v4549, %v4553
          %v4556 = vshll.u32 %v4453, 16
          %v4558 = vrot.slane %v4556, 1
          %v4559 = vsel %vm989, %v4554, %v4558
          %v4561 = vshrl.u32 %v4400, 16
          %v4563 = vshll.u32 %v4400, 16
          %v4565 = vrot.slane %v4563, 1
          %v4566 = vor.u32 %v4561, %v4565
          %v4568 = vshll.u32 %v4454, 16
          %v4570 = vrot.slane %v4568, 1
          %v4571 = vsel %vm989, %v4566, %v4570
          %v4573 = vshrl.u32 %v4401, 16
          %v4575 = vshll.u32 %v4401, 16
          %v4577 = vrot.slane %v4575, 1
          %v4578 = vor.u32 %v4573, %v4577
          %v4580 = vshll.u32 %v4455, 16
          %v4582 = vrot.slane %v4580, 1
          %v4583 = vsel %vm989, %v4578, %v4582
          %v4585 = vshrl.u32 %v4402, 16
          %v4587 = vshll.u32 %v4402, 16
          %v4589 = vrot.slane %v4587, 1
          %v4590 = vor.u32 %v4585, %v4589
          %v4592 = vshll.u32 %v4456, 16
          %v4594 = vrot.slane %v4592, 1
          %v4595 = vsel %vm989, %v4590, %v4594
          %v4597 = vshrl.u32 %v4403, 16
          %v4599 = vshll.u32 %v4403, 16
          %v4601 = vrot.slane %v4599, 1
          %v4602 = vor.u32 %v4597, %v4601
          %v4604 = vshll.u32 %v4457, 16
          %v4606 = vrot.slane %v4604, 1
          %v4607 = vsel %vm989, %v4602, %v4606
          %v4609 = vshrl.u32 %v4404, 16
          %v4611 = vshll.u32 %v4404, 16
          %v4613 = vrot.slane %v4611, 1
          %v4614 = vor.u32 %v4609, %v4613
          %v4616 = vshll.u32 %v4458, 16
          %v4618 = vrot.slane %v4616, 1
          %v4619 = vsel %vm989, %v4614, %v4618
          %v4621 = vshrl.u32 %v4405, 16
          %v4623 = vshll.u32 %v4405, 16
          %v4625 = vrot.slane %v4623, 1
          %v4626 = vor.u32 %v4621, %v4625
          %v4628 = vshll.u32 %v4459, 16
          %v4630 = vrot.slane %v4628, 1
          %v4631 = vsel %vm989, %v4626, %v4630
          %v4633 = vshrl.u32 %v4406, 16
          %v4635 = vshll.u32 %v4406, 16
          %v4637 = vrot.slane %v4635, 1
          %v4638 = vor.u32 %v4633, %v4637
          %v4640 = vshll.u32 %v4460, 16
          %v4642 = vrot.slane %v4640, 1
          %v4643 = vsel %vm989, %v4638, %v4642
          %v4645 = vshrl.u32 %v4407, 16
          %v4647 = vshll.u32 %v4407, 16
          %v4649 = vrot.slane %v4647, 1
          %v4650 = vor.u32 %v4645, %v4649
          %v4652 = vshll.u32 %v4461, 16
          %v4654 = vrot.slane %v4652, 1
          %v4655 = vsel %vm989, %v4650, %v4654
          %v4657 = vshrl.u32 %v4408, 16
          %v4659 = vshll.u32 %v4408, 16
          %v4661 = vrot.slane %v4659, 1
          %v4662 = vor.u32 %v4657, %v4661
          %v4664 = vshll.u32 %v4462, 16
          %v4666 = vrot.slane %v4664, 1
          %v4667 = vsel %vm989, %v4662, %v4666
          %v4669 = vshrl.u32 %v4409, 16
          %v4671 = vshll.u32 %v4409, 16
          %v4673 = vrot.slane %v4671, 1
          %v4674 = vor.u32 %v4669, %v4673
          %v4676 = vshll.u32 %v4463, 16
          %v4678 = vrot.slane %v4676, 1
          %v4679 = vsel %vm989, %v4674, %v4678
          %4680 = vrot.lane.b32.xlu0 %v4475, 64
          %v4681 = vpop.permute.xlu0 %4680
          %4682 = vrot.lane.b32.xlu0 %v4487, 64
          %v4683 = vpop.permute.xlu0 %4682
          %4684 = vrot.lane.b32.xlu0 %v4499, 64
          %v4685 = vpop.permute.xlu0 %4684
          %4686 = vrot.lane.b32.xlu0 %v4511, 64
          %v4687 = vpop.permute.xlu0 %4686
          %4688 = vrot.lane.b32.xlu0 %v4523, 64
          %v4689 = vpop.permute.xlu0 %4688
          %4690 = vrot.lane.b32.xlu0 %v4535, 64
          %v4691 = vpop.permute.xlu0 %4690
          %4692 = vrot.lane.b32.xlu0 %v4547, 64
          %v4693 = vpop.permute.xlu0 %4692
          %4694 = vrot.lane.b32.xlu0 %v4559, 64
          %v4695 = vpop.permute.xlu0 %4694
          %4696 = vrot.lane.b32.xlu0 %v4571, 64
          %v4697 = vpop.permute.xlu0 %4696
          %4698 = vrot.lane.b32.xlu0 %v4583, 64
          %v4699 = vpop.permute.xlu0 %4698
          %4700 = vrot.lane.b32.xlu0 %v4595, 64
          %v4701 = vpop.permute.xlu0 %4700
          %4702 = vrot.lane.b32.xlu0 %v4607, 64
          %v4703 = vpop.permute.xlu0 %4702
          %4704 = vrot.lane.b32.xlu0 %v4619, 64
          %v4705 = vpop.permute.xlu0 %4704
          %4706 = vrot.lane.b32.xlu0 %v4631, 64
          %v4707 = vpop.permute.xlu0 %4706
          %4708 = vrot.lane.b32.xlu0 %v4643, 64
          %v4709 = vpop.permute.xlu0 %4708
          %4710 = vrot.lane.b32.xlu0 %v4655, 64
          %v4711 = vpop.permute.xlu0 %4710
          %4712 = vrot.lane.b32.xlu0 %v4667, 64
          %v4713 = vpop.permute.xlu0 %4712
          %4714 = vrot.lane.b32.xlu0 %v4679, 64
          %v4715 = vpop.permute.xlu0 %4714
          %v4716 = vrot.slane %v4392, 1
          %v4717 = vrot.slane %v4446, 1
          %v4718 = vsel %vm1242, %v4716, %v4717
          %v4719 = vrot.slane %v4393, 1
          %v4720 = vrot.slane %v4447, 1
          %v4721 = vsel %vm1242, %v4719, %v4720
          %v4722 = vrot.slane %v4394, 1
          %v4723 = vrot.slane %v4448, 1
          %v4724 = vsel %vm1242, %v4722, %v4723
          %v4725 = vrot.slane %v4395, 1
          %v4726 = vrot.slane %v4449, 1
          %v4727 = vsel %vm1242, %v4725, %v4726
          %v4728 = vrot.slane %v4396, 1
          %v4729 = vrot.slane %v4450, 1
          %v4730 = vsel %vm1242, %v4728, %v4729
          %v4731 = vrot.slane %v4397, 1
          %v4732 = vrot.slane %v4451, 1
          %v4733 = vsel %vm1242, %v4731, %v4732
          %v4734 = vrot.slane %v4398, 1
          %v4735 = vrot.slane %v4452, 1
          %v4736 = vsel %vm1242, %v4734, %v4735
          %v4737 = vrot.slane %v4399, 1
          %v4738 = vrot.slane %v4453, 1
          %v4739 = vsel %vm1242, %v4737, %v4738
          %v4740 = vrot.slane %v4400, 1
          %v4741 = vrot.slane %v4454, 1
          %v4742 = vsel %vm1242, %v4740, %v4741
          %v4743 = vrot.slane %v4401, 1
          %v4744 = vrot.slane %v4455, 1
          %v4745 = vsel %vm1242, %v4743, %v4744
          %v4746 = vrot.slane %v4402, 1
          %v4747 = vrot.slane %v4456, 1
          %v4748 = vsel %vm1242, %v4746, %v4747
          %v4749 = vrot.slane %v4403, 1
          %v4750 = vrot.slane %v4457, 1
          %v4751 = vsel %vm1242, %v4749, %v4750
          %v4752 = vrot.slane %v4404, 1
          %v4753 = vrot.slane %v4458, 1
          %v4754 = vsel %vm1242, %v4752, %v4753
          %v4755 = vrot.slane %v4405, 1
          %v4756 = vrot.slane %v4459, 1
          %v4757 = vsel %vm1242, %v4755, %v4756
          %v4758 = vrot.slane %v4406, 1
          %v4759 = vrot.slane %v4460, 1
          %v4760 = vsel %vm1242, %v4758, %v4759
          %v4761 = vrot.slane %v4407, 1
          %v4762 = vrot.slane %v4461, 1
          %v4763 = vsel %vm1242, %v4761, %v4762
          %v4764 = vrot.slane %v4408, 1
          %v4765 = vrot.slane %v4462, 1
          %v4766 = vsel %vm1242, %v4764, %v4765
          %v4767 = vrot.slane %v4409, 1
          %v4768 = vrot.slane %v4463, 1
          %v4769 = vsel %vm1242, %v4767, %v4768
          %v4771 = vsel %vm281, %v4392, %v4681
          %v4774 = vsel %vm281, %v4393, %v4683
          %v4777 = vsel %vm281, %v4394, %v4685
          %v4780 = vsel %vm281, %v4395, %v4687
          %v4783 = vsel %vm281, %v4396, %v4689
          %v4786 = vsel %vm281, %v4397, %v4691
          %v4789 = vsel %vm281, %v4398, %v4693
          %v4792 = vsel %vm281, %v4399, %v4695
          %v4795 = vsel %vm281, %v4400, %v4697
          %v4798 = vsel %vm281, %v4401, %v4699
          %v4801 = vsel %vm281, %v4402, %v4701
          %v4804 = vsel %vm281, %v4403, %v4703
          %v4807 = vsel %vm281, %v4404, %v4705
          %v4810 = vsel %vm281, %v4405, %v4707
          %v4813 = vsel %vm281, %v4406, %v4709
          %v4816 = vsel %vm281, %v4407, %v4711
          %v4819 = vsel %vm281, %v4408, %v4713
          %v4822 = vsel %vm281, %v4409, %v4715
          %s4824 = smul.u32 %s2319, 72
          %s4825 = smul.addr %s4824, 4
          %s4826 = scalar_lea.vmem %s1, %s4825
          %v4827 = vld [vmem:[%s4826] sm:$0xf]
          %v4828 = vld [vmem:[%s4826 + $0x4] sm:$0xf]
          %v4829 = vld [vmem:[%s4826 + $0x8] sm:$0xf]
          %v4830 = vld [vmem:[%s4826 + $0xc] sm:$0xf]
          %v4831 = vld [vmem:[%s4826 + $0x10] sm:$0xf]
          %v4832 = vld [vmem:[%s4826 + $0x14] sm:$0xf]
          %v4833 = vld [vmem:[%s4826 + $0x18] sm:$0xf]
          %v4834 = vld [vmem:[%s4826 + $0x1c] sm:$0xf]
          %v4835 = vld [vmem:[%s4826 + $0x20] sm:$0xf]
          %v4836 = vld [vmem:[%s4826 + $0x24] sm:$0xf]
          %v4837 = vld [vmem:[%s4826 + $0x28] sm:$0xf]
          %v4838 = vld [vmem:[%s4826 + $0x2c] sm:$0xf]
          %v4839 = vld [vmem:[%s4826 + $0x30] sm:$0xf]
          %v4840 = vld [vmem:[%s4826 + $0x34] sm:$0xf]
          %v4841 = vld [vmem:[%s4826 + $0x38] sm:$0xf]
          %v4842 = vld [vmem:[%s4826 + $0x3c] sm:$0xf]
          %v4843 = vld [vmem:[%s4826 + $0x40] sm:$0xf]
          %v4844 = vld [vmem:[%s4826 + $0x44] sm:$0xf]
          %v4845 = vld [vmem:[%s4826 + $0x48] sm:$0xf]
          %v4846 = vld [vmem:[%s4826 + $0x4c] sm:$0xf]
          %v4847 = vld [vmem:[%s4826 + $0x50] sm:$0xf]
          %v4848 = vld [vmem:[%s4826 + $0x54] sm:$0xf]
          %v4849 = vld [vmem:[%s4826 + $0x58] sm:$0xf]
          %v4850 = vld [vmem:[%s4826 + $0x5c] sm:$0xf]
          %v4851 = vld [vmem:[%s4826 + $0x60] sm:$0xf]
          %v4852 = vld [vmem:[%s4826 + $0x64] sm:$0xf]
          %v4853 = vld [vmem:[%s4826 + $0x68] sm:$0xf]
          %v4854 = vld [vmem:[%s4826 + $0x6c] sm:$0xf]
          %v4855 = vld [vmem:[%s4826 + $0x70] sm:$0xf]
          %v4856 = vld [vmem:[%s4826 + $0x74] sm:$0xf]
          %v4857 = vld [vmem:[%s4826 + $0x78] sm:$0xf]
          %v4858 = vld [vmem:[%s4826 + $0x7c] sm:$0xf]
          %v4859 = vld [vmem:[%s4826 + $0x80] sm:$0xf]
          %v4860 = vld [vmem:[%s4826 + $0x84] sm:$0xf]
          %v4861 = vld [vmem:[%s4826 + $0x88] sm:$0xf]
          %v4862 = vld [vmem:[%s4826 + $0x8c] sm:$0xf]
          %v4863 = vld [vmem:[%s4826 + $0x90] sm:$0xf]
          %v4864 = vld [vmem:[%s4826 + $0x94] sm:$0xf]
          %v4865 = vld [vmem:[%s4826 + $0x98] sm:$0xf]
          %v4866 = vld [vmem:[%s4826 + $0x9c] sm:$0xf]
          %v4867 = vld [vmem:[%s4826 + $0xa0] sm:$0xf]
          %v4868 = vld [vmem:[%s4826 + $0xa4] sm:$0xf]
          %v4869 = vld [vmem:[%s4826 + $0xa8] sm:$0xf]
          %v4870 = vld [vmem:[%s4826 + $0xac] sm:$0xf]
          %v4871 = vld [vmem:[%s4826 + $0xb0] sm:$0xf]
          %v4872 = vld [vmem:[%s4826 + $0xb4] sm:$0xf]
          %v4873 = vld [vmem:[%s4826 + $0xb8] sm:$0xf]
          %v4874 = vld [vmem:[%s4826 + $0xbc] sm:$0xf]
          %v4875 = vld [vmem:[%s4826 + $0xc0] sm:$0xf]
          %v4876 = vld [vmem:[%s4826 + $0xc4] sm:$0xf]
          %v4877 = vld [vmem:[%s4826 + $0xc8] sm:$0xf]
          %v4878 = vld [vmem:[%s4826 + $0xcc] sm:$0xf]
          %v4879 = vld [vmem:[%s4826 + $0xd0] sm:$0xf]
          %v4880 = vld [vmem:[%s4826 + $0xd4] sm:$0xf]
          %v4881 = vld [vmem:[%s4826 + $0xd8] sm:$0xf]
          %v4882 = vld [vmem:[%s4826 + $0xdc] sm:$0xf]
          %v4883 = vld [vmem:[%s4826 + $0xe0] sm:$0xf]
          %v4884 = vld [vmem:[%s4826 + $0xe4] sm:$0xf]
          %v4885 = vld [vmem:[%s4826 + $0xe8] sm:$0xf]
          %v4886 = vld [vmem:[%s4826 + $0xec] sm:$0xf]
          %v4887 = vld [vmem:[%s4826 + $0xf0] sm:$0xf]
          %v4888 = vld [vmem:[%s4826 + $0xf4] sm:$0xf]
          %v4889 = vld [vmem:[%s4826 + $0xf8] sm:$0xf]
          %v4890 = vld [vmem:[%s4826 + $0xfc] sm:$0xf]
          %v4891 = vld [vmem:[%s4826 + $0x100] sm:$0xf]
          %v4892 = vld [vmem:[%s4826 + $0x104] sm:$0xf]
          %v4893 = vld [vmem:[%s4826 + $0x108] sm:$0xf]
          %v4894 = vld [vmem:[%s4826 + $0x10c] sm:$0xf]
          %v4895 = vld [vmem:[%s4826 + $0x110] sm:$0xf]
          %v4896 = vld [vmem:[%s4826 + $0x114] sm:$0xf]
          %v4897 = vld [vmem:[%s4826 + $0x118] sm:$0xf]
          %v4898 = vld [vmem:[%s4826 + $0x11c] sm:$0xf]
          %v4923 = vunpack.c.l.b16 %v4851
          %v4924 = vunpack.c.l.b16 %v4852
          %v4925 = vunpack.c.l.b16 %v4853
          %v4926 = vunpack.c.l.b16 %v4854
          %v4927 = vunpack.c.l.b16 %v4855
          %v4928 = vunpack.c.l.b16 %v4856
          %v4929 = vunpack.c.l.b16 %v4857
          %v4930 = vunpack.c.l.b16 %v4858
          %v4931 = vunpack.c.l.b16 %v4859
          %v4932 = vunpack.c.l.b16 %v4860
          %v4933 = vunpack.c.l.b16 %v4861
          %v4934 = vunpack.c.l.b16 %v4862
          %v4935 = vunpack.c.l.b16 %v4863
          %v4936 = vunpack.c.l.b16 %v4864
          %v4937 = vunpack.c.l.b16 %v4865
          %v4938 = vunpack.c.l.b16 %v4866
          %v4939 = vunpack.c.l.b16 %v4867
          %v4940 = vunpack.c.l.b16 %v4868
          %v4941 = vunpack.c.l.b16 %v4869
          %v4942 = vunpack.c.l.b16 %v4870
          %v4943 = vunpack.c.l.b16 %v4871
          %v4944 = vunpack.c.l.b16 %v4872
          %v4945 = vunpack.c.l.b16 %v4873
          %v4946 = vunpack.c.l.b16 %v4874
          %v4947 = vpack.c.b16 %v4924, %v4923
          %v4948 = vpack.c.b16 %v4926, %v4925
          %v4949 = vpack.c.b16 %v4928, %v4927
          %v4950 = vpack.c.b16 %v4930, %v4929
          %v4951 = vpack.c.b16 %v4932, %v4931
          %v4952 = vpack.c.b16 %v4934, %v4933
          %v4953 = vpack.c.b16 %v4936, %v4935
          %v4954 = vpack.c.b16 %v4938, %v4937
          %v4955 = vpack.c.b16 %v4940, %v4939
          %v4956 = vpack.c.b16 %v4942, %v4941
          %v4957 = vpack.c.b16 %v4944, %v4943
          %v4958 = vpack.c.b16 %v4946, %v4945
          %v4972 = vsel %vm281, %v4721, 0
          %v4975 = vsel %vm281, %v4724, 0
          %v4978 = vsel %vm281, %v4727, 0
          %v4981 = vsel %vm281, %v4730, 0
          %v4984 = vsel %vm281, %v4733, 0
          %v4987 = vsel %vm281, %v4736, 0
          %v4990 = vsel %vm281, %v4739, 0
          %v4993 = vsel %vm281, %v4742, 0
          %v4996 = vsel %vm281, %v4745, 0
          %v4999 = vsel %vm281, %v4748, 0
          %v5002 = vsel %vm281, %v4751, 0
          %v5005 = vsel %vm281, %v4754, 0
          %v5008 = vsel %vm281, %v4757, 0
          %v5011 = vsel %vm281, %v4760, 0
          %v5014 = vsel %vm281, %v4763, 0
          %v5017 = vsel %vm281, %v4766, 0
          %5019 = vmatprep.subr.bf16.mxu0 0
          %5020 = vmatpush1.bf16.msra.mxu0 %v4954
          %5021 = vmatprep.subr.bf16.mxu0 0
          %5022 = vmatpush1.bf16.msra.mxu0 %v4953
          %5023 = vmatprep.subr.bf16.mxu0 0
          %5024 = vmatpush1.bf16.msra.mxu0 %v4952
          %5025 = vmatprep.subr.bf16.mxu0 0
          %5026 = vmatpush1.bf16.msra.mxu0 %v4951
          %5027 = vmatprep.subr.bf16.mxu0 0
          %5028 = vmatpush1.bf16.msra.mxu0 %v4950
          %5029 = vmatprep.subr.bf16.mxu0 0
          %5030 = vmatpush1.bf16.msra.mxu0 %v4949
          %5031 = vmatprep.subr.bf16.mxu0 0
          %5032 = vmatpush1.bf16.msra.mxu0 %v4948
          %5033 = vmatprep.subr.bf16.mxu0 0
          %5034 = vmatpush1.bf16.msra.mxu0 %v4947
          %5035 = vmatprep.subr.bf16.mxu0 0
          %5036 = vmatpush2.bf16.msra.mxu0 0
          %5037 = vmatprep.subr.bf16.mxu0 0
          %5038 = vmatpush2.bf16.msra.mxu0 0
          %5039 = vmatprep.subr.bf16.mxu0 0
          %5040 = vmatpush2.bf16.msra.mxu0 0
          %5041 = vmatprep.subr.bf16.mxu0 0
          %5042 = vmatpush2.bf16.msra.mxu0 0
          %5043 = vmatprep.subr.bf16.mxu0 0
          %5044 = vmatpush2.bf16.msra.mxu0 %v4958
          %5045 = vmatprep.subr.bf16.mxu0 0
          %5046 = vmatpush2.bf16.msra.mxu0 %v4957
          %5047 = vmatprep.subr.bf16.mxu0 0
          %5048 = vmatpush2.bf16.msra.mxu0 %v4956
          %5049 = vmatprep.subr.bf16.mxu0 0
          %5050 = vmatpush2.bf16.msra.mxu0 %v4955
          %5051 = vmatprep.mubr.bf16.mxu0 %v4972
          %5052 = vmatmul.mubr.bf16.gmra.mxu0 %v4774
          %v5053 = vpop.f32.mrf.mxu0
          %v5054 = vadd.f32 0.0, %v5053
          %v5055 = vpop.f32.mrf.mxu0
          %v5056 = vpop.f32.mrf.mxu0
          %v5057 = vadd.f32 0.0, %v5056
          %v5058 = vpop.f32.mrf.mxu0
          %5059 = vmatprep.mubr.bf16.mxu0 %v4975
          %5060 = vmatmul.mubr.bf16.gmra.mxu0 %v4777
          %v5061 = vpop.f32.mrf.mxu0
          %v5062 = vadd.f32 0.0, %v5061
          %v5063 = vpop.f32.mrf.mxu0
          %v5064 = vpop.f32.mrf.mxu0
          %v5065 = vadd.f32 0.0, %v5064
          %v5066 = vpop.f32.mrf.mxu0
          %5067 = vmatprep.mubr.bf16.mxu0 %v4978
          %5068 = vmatmul.mubr.bf16.gmra.mxu0 %v4780
          %v5069 = vpop.f32.mrf.mxu0
          %v5070 = vadd.f32 0.0, %v5069
          %v5071 = vpop.f32.mrf.mxu0
          %v5072 = vpop.f32.mrf.mxu0
          %v5073 = vadd.f32 0.0, %v5072
          %v5074 = vpop.f32.mrf.mxu0
          %5075 = vmatprep.mubr.bf16.mxu0 %v4981
          %5076 = vmatmul.mubr.bf16.gmra.mxu0 %v4783
          %v5077 = vpop.f32.mrf.mxu0
          %v5078 = vadd.f32 0.0, %v5077
          %v5079 = vpop.f32.mrf.mxu0
          %v5080 = vpop.f32.mrf.mxu0
          %v5081 = vadd.f32 0.0, %v5080
          %v5082 = vpop.f32.mrf.mxu0
          %5083 = vmatprep.mubr.bf16.mxu0 %v4984
          %5084 = vmatmul.mubr.bf16.gmra.mxu0 %v4786
          %v5085 = vpop.f32.mrf.mxu0
          %v5086 = vadd.f32 0.0, %v5085
          %v5087 = vpop.f32.mrf.mxu0
          %v5088 = vpop.f32.mrf.mxu0
          %v5089 = vadd.f32 0.0, %v5088
          %v5090 = vpop.f32.mrf.mxu0
          %5091 = vmatprep.mubr.bf16.mxu0 %v4987
          %5092 = vmatmul.mubr.bf16.gmra.mxu0 %v4789
          %v5093 = vpop.f32.mrf.mxu0
          %v5094 = vadd.f32 0.0, %v5093
          %v5095 = vpop.f32.mrf.mxu0
          %v5096 = vpop.f32.mrf.mxu0
          %v5097 = vadd.f32 0.0, %v5096
          %v5098 = vpop.f32.mrf.mxu0
          %5099 = vmatprep.mubr.bf16.mxu0 %v4990
          %5100 = vmatmul.mubr.bf16.gmra.mxu0 %v4792
          %v5101 = vpop.f32.mrf.mxu0
          %v5102 = vadd.f32 0.0, %v5101
          %v5103 = vpop.f32.mrf.mxu0
          %v5104 = vpop.f32.mrf.mxu0
          %v5105 = vadd.f32 0.0, %v5104
          %v5106 = vpop.f32.mrf.mxu0
          %5107 = vmatprep.mubr.bf16.mxu0 %v4993
          %5108 = vmatmul.mubr.bf16.gmra.mxu0 %v4795
          %v5109 = vpop.f32.mrf.mxu0
          %v5110 = vadd.f32 0.0, %v5109
          %v5111 = vpop.f32.mrf.mxu0
          %v5112 = vpop.f32.mrf.mxu0
          %v5113 = vadd.f32 0.0, %v5112
          %v5114 = vpop.f32.mrf.mxu0
          %5115 = vmatprep.mubr.bf16.mxu0 %v4996
          %5116 = vmatmul.mubr.bf16.gmra.mxu0 %v4798
          %v5117 = vpop.f32.mrf.mxu0
          %v5118 = vadd.f32 0.0, %v5117
          %v5119 = vpop.f32.mrf.mxu0
          %v5120 = vpop.f32.mrf.mxu0
          %v5121 = vadd.f32 0.0, %v5120
          %v5122 = vpop.f32.mrf.mxu0
          %5123 = vmatprep.mubr.bf16.mxu0 %v4999
          %5124 = vmatmul.mubr.bf16.gmra.mxu0 %v4801
          %v5125 = vpop.f32.mrf.mxu0
          %v5126 = vadd.f32 0.0, %v5125
          %v5127 = vpop.f32.mrf.mxu0
          %v5128 = vpop.f32.mrf.mxu0
          %v5129 = vadd.f32 0.0, %v5128
          %v5130 = vpop.f32.mrf.mxu0
          %5131 = vmatprep.mubr.bf16.mxu0 %v5002
          %5132 = vmatmul.mubr.bf16.gmra.mxu0 %v4804
          %v5133 = vpop.f32.mrf.mxu0
          %v5134 = vadd.f32 0.0, %v5133
          %v5135 = vpop.f32.mrf.mxu0
          %v5136 = vpop.f32.mrf.mxu0
          %v5137 = vadd.f32 0.0, %v5136
          %v5138 = vpop.f32.mrf.mxu0
          %5139 = vmatprep.mubr.bf16.mxu0 %v5005
          %5140 = vmatmul.mubr.bf16.gmra.mxu0 %v4807
          %v5141 = vpop.f32.mrf.mxu0
          %v5142 = vadd.f32 0.0, %v5141
          %v5143 = vpop.f32.mrf.mxu0
          %v5144 = vpop.f32.mrf.mxu0
          %v5145 = vadd.f32 0.0, %v5144
          %v5146 = vpop.f32.mrf.mxu0
          %5147 = vmatprep.mubr.bf16.mxu0 %v5008
          %5148 = vmatmul.mubr.bf16.gmra.mxu0 %v4810
          %v5149 = vpop.f32.mrf.mxu0
          %v5150 = vadd.f32 0.0, %v5149
          %v5151 = vpop.f32.mrf.mxu0
          %v5152 = vpop.f32.mrf.mxu0
          %v5153 = vadd.f32 0.0, %v5152
          %v5154 = vpop.f32.mrf.mxu0
          %5155 = vmatprep.mubr.bf16.mxu0 %v5011
          %5156 = vmatmul.mubr.bf16.gmra.mxu0 %v4813
          %v5157 = vpop.f32.mrf.mxu0
          %v5158 = vadd.f32 0.0, %v5157
          %v5159 = vpop.f32.mrf.mxu0
          %v5160 = vpop.f32.mrf.mxu0
          %v5161 = vadd.f32 0.0, %v5160
          %v5162 = vpop.f32.mrf.mxu0
          %5163 = vmatprep.mubr.bf16.mxu0 %v5014
          %5164 = vmatmul.mubr.bf16.gmra.mxu0 %v4816
          %v5165 = vpop.f32.mrf.mxu0
          %v5166 = vadd.f32 0.0, %v5165
          %v5167 = vpop.f32.mrf.mxu0
          %v5168 = vpop.f32.mrf.mxu0
          %v5169 = vadd.f32 0.0, %v5168
          %v5170 = vpop.f32.mrf.mxu0
          %5171 = vmatprep.mubr.bf16.mxu0 %v5017
          %5172 = vmatmul.mubr.bf16.gmra.mxu0 %v4819
          %v5173 = vpop.f32.mrf.mxu0
          %v5174 = vadd.f32 0.0, %v5173
          %v5175 = vpop.f32.mrf.mxu0
          %v5176 = vpop.f32.mrf.mxu0
          %v5177 = vadd.f32 0.0, %v5176
          %v5178 = vpop.f32.mrf.mxu0
          %5179 = vdwg.mxu0
          %v5204 = vunpack.c.l.b16 %v4827
          %v5205 = vunpack.c.l.b16 %v4828
          %v5206 = vunpack.c.l.b16 %v4829
          %v5207 = vunpack.c.l.b16 %v4830
          %v5208 = vunpack.c.l.b16 %v4831
          %v5209 = vunpack.c.l.b16 %v4832
          %v5210 = vunpack.c.l.b16 %v4833
          %v5211 = vunpack.c.l.b16 %v4834
          %v5212 = vunpack.c.l.b16 %v4835
          %v5213 = vunpack.c.l.b16 %v4836
          %v5214 = vunpack.c.l.b16 %v4837
          %v5215 = vunpack.c.l.b16 %v4838
          %v5216 = vunpack.c.l.b16 %v4839
          %v5217 = vunpack.c.l.b16 %v4840
          %v5218 = vunpack.c.l.b16 %v4841
          %v5219 = vunpack.c.l.b16 %v4842
          %v5220 = vunpack.c.l.b16 %v4843
          %v5221 = vunpack.c.l.b16 %v4844
          %v5222 = vunpack.c.l.b16 %v4845
          %v5223 = vunpack.c.l.b16 %v4846
          %v5224 = vunpack.c.l.b16 %v4847
          %v5225 = vunpack.c.l.b16 %v4848
          %v5226 = vunpack.c.l.b16 %v4849
          %v5227 = vunpack.c.l.b16 %v4850
          %v5228 = vpack.c.b16 %v5205, %v5204
          %v5229 = vpack.c.b16 %v5207, %v5206
          %v5230 = vpack.c.b16 %v5209, %v5208
          %v5231 = vpack.c.b16 %v5211, %v5210
          %v5232 = vpack.c.b16 %v5213, %v5212
          %v5233 = vpack.c.b16 %v5215, %v5214
          %v5234 = vpack.c.b16 %v5217, %v5216
          %v5235 = vpack.c.b16 %v5219, %v5218
          %v5236 = vpack.c.b16 %v5221, %v5220
          %v5237 = vpack.c.b16 %v5223, %v5222
          %v5238 = vpack.c.b16 %v5225, %v5224
          %v5239 = vpack.c.b16 %v5227, %v5226
          %v5253 = vsel %vm281, %v4718, 0
          %5255 = vmatprep.subr.bf16.mxu0 0
          %5256 = vmatpush1.bf16.msra.mxu0 %v5235
          %5257 = vmatprep.subr.bf16.mxu0 0
          %5258 = vmatpush1.bf16.msra.mxu0 %v5234
          %5259 = vmatprep.subr.bf16.mxu0 0
          %5260 = vmatpush1.bf16.msra.mxu0 %v5233
          %5261 = vmatprep.subr.bf16.mxu0 0
          %5262 = vmatpush1.bf16.msra.mxu0 %v5232
          %5263 = vmatprep.subr.bf16.mxu0 0
          %5264 = vmatpush1.bf16.msra.mxu0 %v5231
          %5265 = vmatprep.subr.bf16.mxu0 0
          %5266 = vmatpush1.bf16.msra.mxu0 %v5230
          %5267 = vmatprep.subr.bf16.mxu0 0
          %5268 = vmatpush1.bf16.msra.mxu0 %v5229
          %5269 = vmatprep.subr.bf16.mxu0 0
          %5270 = vmatpush1.bf16.msra.mxu0 %v5228
          %5271 = vmatprep.subr.bf16.mxu0 0
          %5272 = vmatpush2.bf16.msra.mxu0 0
          %5273 = vmatprep.subr.bf16.mxu0 0
          %5274 = vmatpush2.bf16.msra.mxu0 0
          %5275 = vmatprep.subr.bf16.mxu0 0
          %5276 = vmatpush2.bf16.msra.mxu0 0
          %5277 = vmatprep.subr.bf16.mxu0 0
          %5278 = vmatpush2.bf16.msra.mxu0 0
          %5279 = vmatprep.subr.bf16.mxu0 0
          %5280 = vmatpush2.bf16.msra.mxu0 %v5239
          %5281 = vmatprep.subr.bf16.mxu0 0
          %5282 = vmatpush2.bf16.msra.mxu0 %v5238
          %5283 = vmatprep.subr.bf16.mxu0 0
          %5284 = vmatpush2.bf16.msra.mxu0 %v5237
          %5285 = vmatprep.subr.bf16.mxu0 0
          %5286 = vmatpush2.bf16.msra.mxu0 %v5236
          %5287 = vmatprep.mubr.bf16.mxu0 %v5253
          %5288 = vmatmul.mubr.bf16.gmra.mxu0 %v4771
          %v5289 = vpop.f32.mrf.mxu0
          %v5290 = vadd.f32 %v5054, %v5289
          %v5291 = vpop.f32.mrf.mxu0
          %v5292 = vpop.f32.mrf.mxu0
          %v5293 = vadd.f32 %v5057, %v5292
          %v5294 = vpop.f32.mrf.mxu0
          %5295 = vmatprep.mubr.bf16.mxu0 %v4972
          %5296 = vmatmul.mubr.bf16.gmra.mxu0 %v4774
          %v5297 = vpop.f32.mrf.mxu0
          %v5298 = vadd.f32 %v5062, %v5297
          %v5299 = vpop.f32.mrf.mxu0
          %v5300 = vpop.f32.mrf.mxu0
          %v5301 = vadd.f32 %v5065, %v5300
          %v5302 = vpop.f32.mrf.mxu0
          %5303 = vmatprep.mubr.bf16.mxu0 %v4975
          %5304 = vmatmul.mubr.bf16.gmra.mxu0 %v4777
          %v5305 = vpop.f32.mrf.mxu0
          %v5306 = vadd.f32 %v5070, %v5305
          %v5307 = vpop.f32.mrf.mxu0
          %v5308 = vpop.f32.mrf.mxu0
          %v5309 = vadd.f32 %v5073, %v5308
          %v5310 = vpop.f32.mrf.mxu0
          %5311 = vmatprep.mubr.bf16.mxu0 %v4978
          %5312 = vmatmul.mubr.bf16.gmra.mxu0 %v4780
          %v5313 = vpop.f32.mrf.mxu0
          %v5314 = vadd.f32 %v5078, %v5313
          %v5315 = vpop.f32.mrf.mxu0
          %v5316 = vpop.f32.mrf.mxu0
          %v5317 = vadd.f32 %v5081, %v5316
          %v5318 = vpop.f32.mrf.mxu0
          %5319 = vmatprep.mubr.bf16.mxu0 %v4981
          %5320 = vmatmul.mubr.bf16.gmra.mxu0 %v4783
          %v5321 = vpop.f32.mrf.mxu0
          %v5322 = vadd.f32 %v5086, %v5321
          %v5323 = vpop.f32.mrf.mxu0
          %v5324 = vpop.f32.mrf.mxu0
          %v5325 = vadd.f32 %v5089, %v5324
          %v5326 = vpop.f32.mrf.mxu0
          %5327 = vmatprep.mubr.bf16.mxu0 %v4984
          %5328 = vmatmul.mubr.bf16.gmra.mxu0 %v4786
          %v5329 = vpop.f32.mrf.mxu0
          %v5330 = vadd.f32 %v5094, %v5329
          %v5331 = vpop.f32.mrf.mxu0
          %v5332 = vpop.f32.mrf.mxu0
          %v5333 = vadd.f32 %v5097, %v5332
          %v5334 = vpop.f32.mrf.mxu0
          %5335 = vmatprep.mubr.bf16.mxu0 %v4987
          %5336 = vmatmul.mubr.bf16.gmra.mxu0 %v4789
          %v5337 = vpop.f32.mrf.mxu0
          %v5338 = vadd.f32 %v5102, %v5337
          %v5339 = vpop.f32.mrf.mxu0
          %v5340 = vpop.f32.mrf.mxu0
          %v5341 = vadd.f32 %v5105, %v5340
          %v5342 = vpop.f32.mrf.mxu0
          %5343 = vmatprep.mubr.bf16.mxu0 %v4990
          %5344 = vmatmul.mubr.bf16.gmra.mxu0 %v4792
          %v5345 = vpop.f32.mrf.mxu0
          %v5346 = vadd.f32 %v5110, %v5345
          %v5347 = vpop.f32.mrf.mxu0
          %v5348 = vpop.f32.mrf.mxu0
          %v5349 = vadd.f32 %v5113, %v5348
          %v5350 = vpop.f32.mrf.mxu0
          %5351 = vmatprep.mubr.bf16.mxu0 %v4993
          %5352 = vmatmul.mubr.bf16.gmra.mxu0 %v4795
          %v5353 = vpop.f32.mrf.mxu0
          %v5354 = vadd.f32 %v5118, %v5353
          %v5355 = vpop.f32.mrf.mxu0
          %v5356 = vpop.f32.mrf.mxu0
          %v5357 = vadd.f32 %v5121, %v5356
          %v5358 = vpop.f32.mrf.mxu0
          %5359 = vmatprep.mubr.bf16.mxu0 %v4996
          %5360 = vmatmul.mubr.bf16.gmra.mxu0 %v4798
          %v5361 = vpop.f32.mrf.mxu0
          %v5362 = vadd.f32 %v5126, %v5361
          %v5363 = vpop.f32.mrf.mxu0
          %v5364 = vpop.f32.mrf.mxu0
          %v5365 = vadd.f32 %v5129, %v5364
          %v5366 = vpop.f32.mrf.mxu0
          %5367 = vmatprep.mubr.bf16.mxu0 %v4999
          %5368 = vmatmul.mubr.bf16.gmra.mxu0 %v4801
          %v5369 = vpop.f32.mrf.mxu0
          %v5370 = vadd.f32 %v5134, %v5369
          %v5371 = vpop.f32.mrf.mxu0
          %v5372 = vpop.f32.mrf.mxu0
          %v5373 = vadd.f32 %v5137, %v5372
          %v5374 = vpop.f32.mrf.mxu0
          %5375 = vmatprep.mubr.bf16.mxu0 %v5002
          %5376 = vmatmul.mubr.bf16.gmra.mxu0 %v4804
          %v5377 = vpop.f32.mrf.mxu0
          %v5378 = vadd.f32 %v5142, %v5377
          %v5379 = vpop.f32.mrf.mxu0
          %v5380 = vpop.f32.mrf.mxu0
          %v5381 = vadd.f32 %v5145, %v5380
          %v5382 = vpop.f32.mrf.mxu0
          %5383 = vmatprep.mubr.bf16.mxu0 %v5005
          %5384 = vmatmul.mubr.bf16.gmra.mxu0 %v4807
          %v5385 = vpop.f32.mrf.mxu0
          %v5386 = vadd.f32 %v5150, %v5385
          %v5387 = vpop.f32.mrf.mxu0
          %v5388 = vpop.f32.mrf.mxu0
          %v5389 = vadd.f32 %v5153, %v5388
          %v5390 = vpop.f32.mrf.mxu0
          %5391 = vmatprep.mubr.bf16.mxu0 %v5008
          %5392 = vmatmul.mubr.bf16.gmra.mxu0 %v4810
          %v5393 = vpop.f32.mrf.mxu0
          %v5394 = vadd.f32 %v5158, %v5393
          %v5395 = vpop.f32.mrf.mxu0
          %v5396 = vpop.f32.mrf.mxu0
          %v5397 = vadd.f32 %v5161, %v5396
          %v5398 = vpop.f32.mrf.mxu0
          %5399 = vmatprep.mubr.bf16.mxu0 %v5011
          %5400 = vmatmul.mubr.bf16.gmra.mxu0 %v4813
          %v5401 = vpop.f32.mrf.mxu0
          %v5402 = vadd.f32 %v5166, %v5401
          %v5403 = vpop.f32.mrf.mxu0
          %v5404 = vpop.f32.mrf.mxu0
          %v5405 = vadd.f32 %v5169, %v5404
          %v5406 = vpop.f32.mrf.mxu0
          %5407 = vmatprep.mubr.bf16.mxu0 %v5014
          %5408 = vmatmul.mubr.bf16.gmra.mxu0 %v4816
          %v5409 = vpop.f32.mrf.mxu0
          %v5410 = vadd.f32 %v5174, %v5409
          %v5411 = vpop.f32.mrf.mxu0
          %v5412 = vpop.f32.mrf.mxu0
          %v5413 = vadd.f32 %v5177, %v5412
          %v5414 = vpop.f32.mrf.mxu0
          %5415 = vdwg.mxu0
          %v5440 = vunpack.c.l.b16 %v4875
          %v5441 = vunpack.c.l.b16 %v4876
          %v5442 = vunpack.c.l.b16 %v4877
          %v5443 = vunpack.c.l.b16 %v4878
          %v5444 = vunpack.c.l.b16 %v4879
          %v5445 = vunpack.c.l.b16 %v4880
          %v5446 = vunpack.c.l.b16 %v4881
          %v5447 = vunpack.c.l.b16 %v4882
          %v5448 = vunpack.c.l.b16 %v4883
          %v5449 = vunpack.c.l.b16 %v4884
          %v5450 = vunpack.c.l.b16 %v4885
          %v5451 = vunpack.c.l.b16 %v4886
          %v5452 = vunpack.c.l.b16 %v4887
          %v5453 = vunpack.c.l.b16 %v4888
          %v5454 = vunpack.c.l.b16 %v4889
          %v5455 = vunpack.c.l.b16 %v4890
          %v5456 = vunpack.c.l.b16 %v4891
          %v5457 = vunpack.c.l.b16 %v4892
          %v5458 = vunpack.c.l.b16 %v4893
          %v5459 = vunpack.c.l.b16 %v4894
          %v5460 = vunpack.c.l.b16 %v4895
          %v5461 = vunpack.c.l.b16 %v4896
          %v5462 = vunpack.c.l.b16 %v4897
          %v5463 = vunpack.c.l.b16 %v4898
          %v5464 = vpack.c.b16 %v5441, %v5440
          %v5465 = vpack.c.b16 %v5443, %v5442
          %v5466 = vpack.c.b16 %v5445, %v5444
          %v5467 = vpack.c.b16 %v5447, %v5446
          %v5468 = vpack.c.b16 %v5449, %v5448
          %v5469 = vpack.c.b16 %v5451, %v5450
          %v5470 = vpack.c.b16 %v5453, %v5452
          %v5471 = vpack.c.b16 %v5455, %v5454
          %v5472 = vpack.c.b16 %v5457, %v5456
          %v5473 = vpack.c.b16 %v5459, %v5458
          %v5474 = vpack.c.b16 %v5461, %v5460
          %v5475 = vpack.c.b16 %v5463, %v5462
          %v5489 = vsel %vm281, %v4769, 0
          %5491 = vmatprep.subr.bf16.mxu0 0
          %5492 = vmatpush1.bf16.msra.mxu0 %v5471
          %5493 = vmatprep.subr.bf16.mxu0 0
          %5494 = vmatpush1.bf16.msra.mxu0 %v5470
          %5495 = vmatprep.subr.bf16.mxu0 0
          %5496 = vmatpush1.bf16.msra.mxu0 %v5469
          %5497 = vmatprep.subr.bf16.mxu0 0
          %5498 = vmatpush1.bf16.msra.mxu0 %v5468
          %5499 = vmatprep.subr.bf16.mxu0 0
          %5500 = vmatpush1.bf16.msra.mxu0 %v5467
          %5501 = vmatprep.subr.bf16.mxu0 0
          %5502 = vmatpush1.bf16.msra.mxu0 %v5466
          %5503 = vmatprep.subr.bf16.mxu0 0
          %5504 = vmatpush1.bf16.msra.mxu0 %v5465
          %5505 = vmatprep.subr.bf16.mxu0 0
          %5506 = vmatpush1.bf16.msra.mxu0 %v5464
          %5507 = vmatprep.subr.bf16.mxu0 0
          %5508 = vmatpush2.bf16.msra.mxu0 0
          %5509 = vmatprep.subr.bf16.mxu0 0
          %5510 = vmatpush2.bf16.msra.mxu0 0
          %5511 = vmatprep.subr.bf16.mxu0 0
          %5512 = vmatpush2.bf16.msra.mxu0 0
          %5513 = vmatprep.subr.bf16.mxu0 0
          %5514 = vmatpush2.bf16.msra.mxu0 0
          %5515 = vmatprep.subr.bf16.mxu0 0
          %5516 = vmatpush2.bf16.msra.mxu0 %v5475
          %5517 = vmatprep.subr.bf16.mxu0 0
          %5518 = vmatpush2.bf16.msra.mxu0 %v5474
          %5519 = vmatprep.subr.bf16.mxu0 0
          %5520 = vmatpush2.bf16.msra.mxu0 %v5473
          %5521 = vmatprep.subr.bf16.mxu0 0
          %5522 = vmatpush2.bf16.msra.mxu0 %v5472
          %5523 = vmatprep.mubr.bf16.mxu0 %v4975
          %5524 = vmatmul.mubr.bf16.gmra.mxu0 %v4777
          %v5525 = vpop.f32.mrf.mxu0
          %v5526 = vadd.f32 0.0, %v5525
          %v5527 = vpop.f32.mrf.mxu0
          %v5528 = vpop.f32.mrf.mxu0
          %v5529 = vadd.f32 0.0, %v5528
          %v5530 = vpop.f32.mrf.mxu0
          %5531 = vmatprep.mubr.bf16.mxu0 %v4978
          %5532 = vmatmul.mubr.bf16.gmra.mxu0 %v4780
          %v5533 = vpop.f32.mrf.mxu0
          %v5534 = vadd.f32 0.0, %v5533
          %v5535 = vpop.f32.mrf.mxu0
          %v5536 = vpop.f32.mrf.mxu0
          %v5537 = vadd.f32 0.0, %v5536
          %v5538 = vpop.f32.mrf.mxu0
          %5539 = vmatprep.mubr.bf16.mxu0 %v4981
          %5540 = vmatmul.mubr.bf16.gmra.mxu0 %v4783
          %v5541 = vpop.f32.mrf.mxu0
          %v5542 = vadd.f32 0.0, %v5541
          %v5543 = vpop.f32.mrf.mxu0
          %v5544 = vpop.f32.mrf.mxu0
          %v5545 = vadd.f32 0.0, %v5544
          %v5546 = vpop.f32.mrf.mxu0
          %5547 = vmatprep.mubr.bf16.mxu0 %v4984
          %5548 = vmatmul.mubr.bf16.gmra.mxu0 %v4786
          %v5549 = vpop.f32.mrf.mxu0
          %v5550 = vadd.f32 0.0, %v5549
          %v5551 = vpop.f32.mrf.mxu0
          %v5552 = vpop.f32.mrf.mxu0
          %v5553 = vadd.f32 0.0, %v5552
          %v5554 = vpop.f32.mrf.mxu0
          %5555 = vmatprep.mubr.bf16.mxu0 %v4987
          %5556 = vmatmul.mubr.bf16.gmra.mxu0 %v4789
          %v5557 = vpop.f32.mrf.mxu0
          %v5558 = vadd.f32 0.0, %v5557
          %v5559 = vpop.f32.mrf.mxu0
          %v5560 = vpop.f32.mrf.mxu0
          %v5561 = vadd.f32 0.0, %v5560
          %v5562 = vpop.f32.mrf.mxu0
          %5563 = vmatprep.mubr.bf16.mxu0 %v4990
          %5564 = vmatmul.mubr.bf16.gmra.mxu0 %v4792
          %v5565 = vpop.f32.mrf.mxu0
          %v5566 = vadd.f32 0.0, %v5565
          %v5567 = vpop.f32.mrf.mxu0
          %v5568 = vpop.f32.mrf.mxu0
          %v5569 = vadd.f32 0.0, %v5568
          %v5570 = vpop.f32.mrf.mxu0
          %5571 = vmatprep.mubr.bf16.mxu0 %v4993
          %5572 = vmatmul.mubr.bf16.gmra.mxu0 %v4795
          %v5573 = vpop.f32.mrf.mxu0
          %v5574 = vadd.f32 0.0, %v5573
          %v5575 = vpop.f32.mrf.mxu0
          %v5576 = vpop.f32.mrf.mxu0
          %v5577 = vadd.f32 0.0, %v5576
          %v5578 = vpop.f32.mrf.mxu0
          %5579 = vmatprep.mubr.bf16.mxu0 %v4996
          %5580 = vmatmul.mubr.bf16.gmra.mxu0 %v4798
          %v5581 = vpop.f32.mrf.mxu0
          %v5582 = vadd.f32 0.0, %v5581
          %v5583 = vpop.f32.mrf.mxu0
          %v5584 = vpop.f32.mrf.mxu0
          %v5585 = vadd.f32 0.0, %v5584
          %v5586 = vpop.f32.mrf.mxu0
          %5587 = vmatprep.mubr.bf16.mxu0 %v4999
          %5588 = vmatmul.mubr.bf16.gmra.mxu0 %v4801
          %v5589 = vpop.f32.mrf.mxu0
          %v5590 = vadd.f32 0.0, %v5589
          %v5591 = vpop.f32.mrf.mxu0
          %v5592 = vpop.f32.mrf.mxu0
          %v5593 = vadd.f32 0.0, %v5592
          %v5594 = vpop.f32.mrf.mxu0
          %5595 = vmatprep.mubr.bf16.mxu0 %v5002
          %5596 = vmatmul.mubr.bf16.gmra.mxu0 %v4804
          %v5597 = vpop.f32.mrf.mxu0
          %v5598 = vadd.f32 0.0, %v5597
          %v5599 = vpop.f32.mrf.mxu0
          %v5600 = vpop.f32.mrf.mxu0
          %v5601 = vadd.f32 0.0, %v5600
          %v5602 = vpop.f32.mrf.mxu0
          %5603 = vmatprep.mubr.bf16.mxu0 %v5005
          %5604 = vmatmul.mubr.bf16.gmra.mxu0 %v4807
          %v5605 = vpop.f32.mrf.mxu0
          %v5606 = vadd.f32 0.0, %v5605
          %v5607 = vpop.f32.mrf.mxu0
          %v5608 = vpop.f32.mrf.mxu0
          %v5609 = vadd.f32 0.0, %v5608
          %v5610 = vpop.f32.mrf.mxu0
          %5611 = vmatprep.mubr.bf16.mxu0 %v5008
          %5612 = vmatmul.mubr.bf16.gmra.mxu0 %v4810
          %v5613 = vpop.f32.mrf.mxu0
          %v5614 = vadd.f32 0.0, %v5613
          %v5615 = vpop.f32.mrf.mxu0
          %v5616 = vpop.f32.mrf.mxu0
          %v5617 = vadd.f32 0.0, %v5616
          %v5618 = vpop.f32.mrf.mxu0
          %5619 = vmatprep.mubr.bf16.mxu0 %v5011
          %5620 = vmatmul.mubr.bf16.gmra.mxu0 %v4813
          %v5621 = vpop.f32.mrf.mxu0
          %v5622 = vadd.f32 0.0, %v5621
          %v5623 = vpop.f32.mrf.mxu0
          %v5624 = vpop.f32.mrf.mxu0
          %v5625 = vadd.f32 0.0, %v5624
          %v5626 = vpop.f32.mrf.mxu0
          %5627 = vmatprep.mubr.bf16.mxu0 %v5014
          %5628 = vmatmul.mubr.bf16.gmra.mxu0 %v4816
          %v5629 = vpop.f32.mrf.mxu0
          %v5630 = vadd.f32 0.0, %v5629
          %v5631 = vpop.f32.mrf.mxu0
          %v5632 = vpop.f32.mrf.mxu0
          %v5633 = vadd.f32 0.0, %v5632
          %v5634 = vpop.f32.mrf.mxu0
          %5635 = vmatprep.mubr.bf16.mxu0 %v5017
          %5636 = vmatmul.mubr.bf16.gmra.mxu0 %v4819
          %v5637 = vpop.f32.mrf.mxu0
          %v5638 = vadd.f32 0.0, %v5637
          %v5639 = vpop.f32.mrf.mxu0
          %v5640 = vpop.f32.mrf.mxu0
          %v5641 = vadd.f32 0.0, %v5640
          %v5642 = vpop.f32.mrf.mxu0
          %5643 = vmatprep.mubr.bf16.mxu0 %v5489
          %5644 = vmatmul.mubr.bf16.gmra.mxu0 %v4822
          %v5645 = vpop.f32.mrf.mxu0
          %v5646 = vadd.f32 0.0, %v5645
          %v5647 = vpop.f32.mrf.mxu0
          %v5648 = vpop.f32.mrf.mxu0
          %v5649 = vadd.f32 0.0, %v5648
          %v5650 = vpop.f32.mrf.mxu0
          %5651 = vdwg.mxu0
          %v5652 = vadd.f32 %v5290, %v5526
          %v5653 = vadd.f32 %v5293, %v5529
          %v5654 = vadd.f32 %v5298, %v5534
          %v5655 = vadd.f32 %v5301, %v5537
          %v5656 = vadd.f32 %v5306, %v5542
          %v5657 = vadd.f32 %v5309, %v5545
          %v5658 = vadd.f32 %v5314, %v5550
          %v5659 = vadd.f32 %v5317, %v5553
          %v5660 = vadd.f32 %v5322, %v5558
          %v5661 = vadd.f32 %v5325, %v5561
          %v5662 = vadd.f32 %v5330, %v5566
          %v5663 = vadd.f32 %v5333, %v5569
          %v5664 = vadd.f32 %v5338, %v5574
          %v5665 = vadd.f32 %v5341, %v5577
          %v5666 = vadd.f32 %v5346, %v5582
          %v5667 = vadd.f32 %v5349, %v5585
          %v5668 = vadd.f32 %v5354, %v5590
          %v5669 = vadd.f32 %v5357, %v5593
          %v5670 = vadd.f32 %v5362, %v5598
          %v5671 = vadd.f32 %v5365, %v5601
          %v5672 = vadd.f32 %v5370, %v5606
          %v5673 = vadd.f32 %v5373, %v5609
          %v5674 = vadd.f32 %v5378, %v5614
          %v5675 = vadd.f32 %v5381, %v5617
          %v5676 = vadd.f32 %v5386, %v5622
          %v5677 = vadd.f32 %v5389, %v5625
          %v5678 = vadd.f32 %v5394, %v5630
          %v5679 = vadd.f32 %v5397, %v5633
          %v5680 = vadd.f32 %v5402, %v5638
          %v5681 = vadd.f32 %v5405, %v5641
          %v5682 = vadd.f32 %v5410, %v5646
          %v5683 = vadd.f32 %v5413, %v5649
          %s5684 = scalar_lea.vmem %s2, %s2319
          %v5685 = vld [vmem:[%s5684] sm:$0x1]
          %v5687 = vlaneseq
          %v5688 = vshrl.u32 %v5687, 7
          %v5689 = vsub.s32 0, %v5688
          %v5690 = vrot.slane %v5685, %v5689
          %v5692 = vadd.f32 %v5652, %v5690
          %v5693 = vadd.f32 %v5653, %v5690
          %v5694 = vadd.f32 %v5654, %v5690
          %v5695 = vadd.f32 %v5655, %v5690
          %v5696 = vadd.f32 %v5656, %v5690
          %v5697 = vadd.f32 %v5657, %v5690
          %v5698 = vadd.f32 %v5658, %v5690
          %v5699 = vadd.f32 %v5659, %v5690
          %v5700 = vadd.f32 %v5660, %v5690
          %v5701 = vadd.f32 %v5661, %v5690
          %v5702 = vadd.f32 %v5662, %v5690
          %v5703 = vadd.f32 %v5663, %v5690
          %v5704 = vadd.f32 %v5664, %v5690
          %v5705 = vadd.f32 %v5665, %v5690
          %v5706 = vadd.f32 %v5666, %v5690
          %v5707 = vadd.f32 %v5667, %v5690
          %v5708 = vadd.f32 %v5668, %v5690
          %v5709 = vadd.f32 %v5669, %v5690
          %v5710 = vadd.f32 %v5670, %v5690
          %v5711 = vadd.f32 %v5671, %v5690
          %v5712 = vadd.f32 %v5672, %v5690
          %v5713 = vadd.f32 %v5673, %v5690
          %v5714 = vadd.f32 %v5674, %v5690
          %v5715 = vadd.f32 %v5675, %v5690
          %v5716 = vadd.f32 %v5676, %v5690
          %v5717 = vadd.f32 %v5677, %v5690
          %v5718 = vadd.f32 %v5678, %v5690
          %v5719 = vadd.f32 %v5679, %v5690
          %v5720 = vadd.f32 %v5680, %v5690
          %v5721 = vadd.f32 %v5681, %v5690
          %v5722 = vadd.f32 %v5682, %v5690
          %v5723 = vadd.f32 %v5683, %v5690
          %v5724 = vld [vmem:[%s290 + $0x1] sm:$0xff]
          %v5725 = vld [vmem:[%s290 + $0x9] sm:$0xff]
          %v5726 = vld [vmem:[%s290 + $0x19] sm:$0xff]
          %v5727 = vld [vmem:[%s290 + $0x21] sm:$0xff]
          %v5728 = vld [vmem:[%s290 + $0x31] sm:$0xff]
          %v5729 = vld [vmem:[%s290 + $0x39] sm:$0xff]
          %v5730 = vld [vmem:[%s290 + $0x49] sm:$0xff]
          %v5731 = vld [vmem:[%s290 + $0x51] sm:$0xff]
          %v5732 = vld [vmem:[%s290 + $0x61] sm:$0xff]
          %v5733 = vld [vmem:[%s290 + $0x69] sm:$0xff]
          %v5734 = vld [vmem:[%s290 + $0x79] sm:$0xff]
          %v5735 = vld [vmem:[%s290 + $0x81] sm:$0xff]
          %v5736 = vld [vmem:[%s290 + $0x91] sm:$0xff]
          %v5737 = vld [vmem:[%s290 + $0x99] sm:$0xff]
          %v5738 = vld [vmem:[%s290 + $0xa9] sm:$0xff]
          %v5739 = vld [vmem:[%s290 + $0xb1] sm:$0xff]
          %v5740 = vld [vmem:[%s290 + $0xc1] sm:$0xff]
          %v5741 = vld [vmem:[%s290 + $0xc9] sm:$0xff]
          %v5742 = vld [vmem:[%s290 + $0xd9] sm:$0xff]
          %v5743 = vld [vmem:[%s290 + $0xe1] sm:$0xff]
          %v5744 = vld [vmem:[%s290 + $0xf1] sm:$0xff]
          %v5745 = vld [vmem:[%s290 + $0xf9] sm:$0xff]
          %v5746 = vld [vmem:[%s290 + $0x109] sm:$0xff]
          %v5747 = vld [vmem:[%s290 + $0x111] sm:$0xff]
          %v5748 = vld [vmem:[%s290 + $0x121] sm:$0xff]
          %v5749 = vld [vmem:[%s290 + $0x129] sm:$0xff]
          %v5750 = vld [vmem:[%s290 + $0x139] sm:$0xff]
          %v5751 = vld [vmem:[%s290 + $0x141] sm:$0xff]
          %v5752 = vld [vmem:[%s290 + $0x151] sm:$0xff]
          %v5753 = vld [vmem:[%s290 + $0x159] sm:$0xff]
          %v5754 = vld [vmem:[%s290 + $0x169] sm:$0xff]
          %v5755 = vld [vmem:[%s290 + $0x171] sm:$0xff]
          %v5756 = vadd.f32 %v5692, %v5724
          %v5757 = vadd.f32 %v5693, %v5725
          %v5758 = vadd.f32 %v5694, %v5726
          %v5759 = vadd.f32 %v5695, %v5727
          %v5760 = vadd.f32 %v5696, %v5728
          %v5761 = vadd.f32 %v5697, %v5729
          %v5762 = vadd.f32 %v5698, %v5730
          %v5763 = vadd.f32 %v5699, %v5731
          %v5764 = vadd.f32 %v5700, %v5732
          %v5765 = vadd.f32 %v5701, %v5733
          %v5766 = vadd.f32 %v5702, %v5734
          %v5767 = vadd.f32 %v5703, %v5735
          %v5768 = vadd.f32 %v5704, %v5736
          %v5769 = vadd.f32 %v5705, %v5737
          %v5770 = vadd.f32 %v5706, %v5738
          %v5771 = vadd.f32 %v5707, %v5739
          %v5772 = vadd.f32 %v5708, %v5740
          %v5773 = vadd.f32 %v5709, %v5741
          %v5774 = vadd.f32 %v5710, %v5742
          %v5775 = vadd.f32 %v5711, %v5743
          %v5776 = vadd.f32 %v5712, %v5744
          %v5777 = vadd.f32 %v5713, %v5745
          %v5778 = vadd.f32 %v5714, %v5746
          %v5779 = vadd.f32 %v5715, %v5747
          %v5780 = vadd.f32 %v5716, %v5748
          %v5781 = vadd.f32 %v5717, %v5749
          %v5782 = vadd.f32 %v5718, %v5750
          %v5783 = vadd.f32 %v5719, %v5751
          %v5784 = vadd.f32 %v5720, %v5752
          %v5785 = vadd.f32 %v5721, %v5753
          %v5786 = vadd.f32 %v5722, %v5754
          %v5787 = vadd.f32 %v5723, %v5755
          %5788 = vst.msk [vmem:[%s290 + $0x1] sm:$0xff] %vm281, %v5756
          %5789 = vst.msk [vmem:[%s290 + $0x9] sm:$0xff] %vm281, %v5757
          %5790 = vst.msk [vmem:[%s290 + $0x19] sm:$0xff] %vm281, %v5758
          %5791 = vst.msk [vmem:[%s290 + $0x21] sm:$0xff] %vm281, %v5759
          %5792 = vst.msk [vmem:[%s290 + $0x31] sm:$0xff] %vm281, %v5760
          %5793 = vst.msk [vmem:[%s290 + $0x39] sm:$0xff] %vm281, %v5761
          %5794 = vst.msk [vmem:[%s290 + $0x49] sm:$0xff] %vm281, %v5762
          %5795 = vst.msk [vmem:[%s290 + $0x51] sm:$0xff] %vm281, %v5763
          %5796 = vst.msk [vmem:[%s290 + $0x61] sm:$0xff] %vm281, %v5764
          %5797 = vst.msk [vmem:[%s290 + $0x69] sm:$0xff] %vm281, %v5765
          %5798 = vst.msk [vmem:[%s290 + $0x79] sm:$0xff] %vm281, %v5766
          %5799 = vst.msk [vmem:[%s290 + $0x81] sm:$0xff] %vm281, %v5767
          %5800 = vst.msk [vmem:[%s290 + $0x91] sm:$0xff] %vm281, %v5768
          %5801 = vst.msk [vmem:[%s290 + $0x99] sm:$0xff] %vm281, %v5769
          %5802 = vst.msk [vmem:[%s290 + $0xa9] sm:$0xff] %vm281, %v5770
          %5803 = vst.msk [vmem:[%s290 + $0xb1] sm:$0xff] %vm281, %v5771
          %5804 = vst.msk [vmem:[%s290 + $0xc1] sm:$0xff] %vm281, %v5772
          %5805 = vst.msk [vmem:[%s290 + $0xc9] sm:$0xff] %vm281, %v5773
          %5806 = vst.msk [vmem:[%s290 + $0xd9] sm:$0xff] %vm281, %v5774
          %5807 = vst.msk [vmem:[%s290 + $0xe1] sm:$0xff] %vm281, %v5775
          %5808 = vst.msk [vmem:[%s290 + $0xf1] sm:$0xff] %vm281, %v5776
          %5809 = vst.msk [vmem:[%s290 + $0xf9] sm:$0xff] %vm281, %v5777
          %5810 = vst.msk [vmem:[%s290 + $0x109] sm:$0xff] %vm281, %v5778
          %5811 = vst.msk [vmem:[%s290 + $0x111] sm:$0xff] %vm281, %v5779
          %5812 = vst.msk [vmem:[%s290 + $0x121] sm:$0xff] %vm281, %v5780
          %5813 = vst.msk [vmem:[%s290 + $0x129] sm:$0xff] %vm281, %v5781
          %5814 = vst.msk [vmem:[%s290 + $0x139] sm:$0xff] %vm281, %v5782
          %5815 = vst.msk [vmem:[%s290 + $0x141] sm:$0xff] %vm281, %v5783
          %5816 = vst.msk [vmem:[%s290 + $0x151] sm:$0xff] %vm281, %v5784
          %5817 = vst.msk [vmem:[%s290 + $0x159] sm:$0xff] %vm281, %v5785
          %5818 = vst.msk [vmem:[%s290 + $0x169] sm:$0xff] %vm281, %v5786
          %5819 = vst.msk [vmem:[%s290 + $0x171] sm:$0xff] %vm281, %v5787
        $region37: #{flow_ref_net_forward.1} parent=31 // loop_footer
          %s2316 = sadd.s32 1, %s2312
        $region38: #{flow_ref_net_forward.1} parent=31 // loop_footer_branch
          %2311 = sbr.rel target = $region34
        $region39: #{flow_ref_net_forward.1} parent=31 // loop_exit
          _
        %v5820 = vld [vmem:[#allocation3] sm:$0xff]
        %v5821 = vld [vmem:[#allocation3 + $0x8] sm:$0xff]
        %v5822 = vld [vmem:[#allocation3 + $0x10] sm:$0x3]
        %v5823 = vld [vmem:[#allocation3 + $0x18] sm:$0xff]
        %v5824 = vld [vmem:[#allocation3 + $0x20] sm:$0xff]
        %v5825 = vld [vmem:[#allocation3 + $0x28] sm:$0x3]
        %v5826 = vld [vmem:[#allocation3 + $0x30] sm:$0xff]
        %v5827 = vld [vmem:[#allocation3 + $0x38] sm:$0xff]
        %v5828 = vld [vmem:[#allocation3 + $0x40] sm:$0x3]
        %v5829 = vld [vmem:[#allocation3 + $0x48] sm:$0xff]
        %v5830 = vld [vmem:[#allocation3 + $0x50] sm:$0xff]
        %v5831 = vld [vmem:[#allocation3 + $0x58] sm:$0x3]
        %v5832 = vld [vmem:[#allocation3 + $0x60] sm:$0xff]
        %v5833 = vld [vmem:[#allocation3 + $0x68] sm:$0xff]
        %v5834 = vld [vmem:[#allocation3 + $0x70] sm:$0x3]
        %v5835 = vld [vmem:[#allocation3 + $0x78] sm:$0xff]
        %v5836 = vld [vmem:[#allocation3 + $0x80] sm:$0xff]
        %v5837 = vld [vmem:[#allocation3 + $0x88] sm:$0x3]
        %v5838 = vld [vmem:[#allocation3 + $0x90] sm:$0xff]
        %v5839 = vld [vmem:[#allocation3 + $0x98] sm:$0xff]
        %v5840 = vld [vmem:[#allocation3 + $0xa0] sm:$0x3]
        %v5841 = vld [vmem:[#allocation3 + $0xa8] sm:$0xff]
        %v5842 = vld [vmem:[#allocation3 + $0xb0] sm:$0xff]
        %v5843 = vld [vmem:[#allocation3 + $0xb8] sm:$0x3]
        %v5844 = vld [vmem:[#allocation3 + $0xc0] sm:$0xff]
        %v5845 = vld [vmem:[#allocation3 + $0xc8] sm:$0xff]
        %v5846 = vld [vmem:[#allocation3 + $0xd0] sm:$0x3]
        %v5847 = vld [vmem:[#allocation3 + $0xd8] sm:$0xff]
        %v5848 = vld [vmem:[#allocation3 + $0xe0] sm:$0xff]
        %v5849 = vld [vmem:[#allocation3 + $0xe8] sm:$0x3]
        %v5850 = vld [vmem:[#allocation3 + $0xf0] sm:$0xff]
        %v5851 = vld [vmem:[#allocation3 + $0xf8] sm:$0xff]
        %v5852 = vld [vmem:[#allocation3 + $0x100] sm:$0x3]
        %v5853 = vld [vmem:[#allocation3 + $0x108] sm:$0xff]
        %v5854 = vld [vmem:[#allocation3 + $0x110] sm:$0xff]
        %v5855 = vld [vmem:[#allocation3 + $0x118] sm:$0x3]
        %v5856 = vld [vmem:[#allocation3 + $0x120] sm:$0xff]
        %v5857 = vld [vmem:[#allocation3 + $0x128] sm:$0xff]
        %v5858 = vld [vmem:[#allocation3 + $0x130] sm:$0x3]
        %v5859 = vld [vmem:[#allocation3 + $0x138] sm:$0xff]
        %v5860 = vld [vmem:[#allocation3 + $0x140] sm:$0xff]
        %v5861 = vld [vmem:[#allocation3 + $0x148] sm:$0x3]
        %v5862 = vld [vmem:[#allocation3 + $0x150] sm:$0xff]
        %v5863 = vld [vmem:[#allocation3 + $0x158] sm:$0xff]
        %v5864 = vld [vmem:[#allocation3 + $0x160] sm:$0x3]
        %v5865 = vld [vmem:[#allocation3 + $0x168] sm:$0xff]
        %v5866 = vld [vmem:[#allocation3 + $0x170] sm:$0xff]
        %v5867 = vld [vmem:[#allocation3 + $0x178] sm:$0x3]
        %v5868 = vld [vmem:[#allocation3 + $0x180] sm:$0xff]
        %v5869 = vld [vmem:[#allocation3 + $0x188] sm:$0xff]
        %v5870 = vld [vmem:[#allocation3 + $0x190] sm:$0x3]
        %v5871 = vld [vmem:[#allocation3 + $0x198] sm:$0xff]
        %v5872 = vld [vmem:[#allocation3 + $0x1a0] sm:$0xff]
        %v5873 = vld [vmem:[#allocation3 + $0x1a8] sm:$0x3]
        %v5874 = vpack.c.bf16 %v5821, %v5820
        %v5875 = vpack.c.bf16 %v5822, %v5822
        %v5876 = vpack.c.bf16 %v5824, %v5823
        %v5877 = vpack.c.bf16 %v5825, %v5825
        %v5878 = vpack.c.bf16 %v5827, %v5826
        %v5879 = vpack.c.bf16 %v5828, %v5828
        %v5880 = vpack.c.bf16 %v5830, %v5829
        %v5881 = vpack.c.bf16 %v5831, %v5831
        %v5882 = vpack.c.bf16 %v5833, %v5832
        %v5883 = vpack.c.bf16 %v5834, %v5834
        %v5884 = vpack.c.bf16 %v5836, %v5835
        %v5885 = vpack.c.bf16 %v5837, %v5837
        %v5886 = vpack.c.bf16 %v5839, %v5838
        %v5887 = vpack.c.bf16 %v5840, %v5840
        %v5888 = vpack.c.bf16 %v5842, %v5841
        %v5889 = vpack.c.bf16 %v5843, %v5843
        %v5890 = vpack.c.bf16 %v5845, %v5844
        %v5891 = vpack.c.bf16 %v5846, %v5846
        %v5892 = vpack.c.bf16 %v5848, %v5847
        %v5893 = vpack.c.bf16 %v5849, %v5849
        %v5894 = vpack.c.bf16 %v5851, %v5850
        %v5895 = vpack.c.bf16 %v5852, %v5852
        %v5896 = vpack.c.bf16 %v5854, %v5853
        %v5897 = vpack.c.bf16 %v5855, %v5855
        %v5898 = vpack.c.bf16 %v5857, %v5856
        %v5899 = vpack.c.bf16 %v5858, %v5858
        %v5900 = vpack.c.bf16 %v5860, %v5859
        %v5901 = vpack.c.bf16 %v5861, %v5861
        %v5902 = vpack.c.bf16 %v5863, %v5862
        %v5903 = vpack.c.bf16 %v5864, %v5864
        %v5904 = vpack.c.bf16 %v5866, %v5865
        %v5905 = vpack.c.bf16 %v5867, %v5867
        %v5906 = vpack.c.bf16 %v5869, %v5868
        %v5907 = vpack.c.bf16 %v5870, %v5870
        %v5908 = vpack.c.bf16 %v5872, %v5871
        %v5909 = vpack.c.bf16 %v5873, %v5873
        %v5911 = vshrl.u32 %v5874, 16
        %v5913 = vshll.u32 %v5874, 16
        %v5915 = vrot.slane %v5913, 1
        %v5916 = vor.u32 %v5911, %v5915
        %v5918 = vshll.u32 %v5875, 16
        %v5920 = vrot.slane %v5918, 1
        %v5921 = vsel %vm989, %v5916, %v5920
        %v5923 = vshrl.u32 %v5876, 16
        %v5925 = vshll.u32 %v5876, 16
        %v5927 = vrot.slane %v5925, 1
        %v5928 = vor.u32 %v5923, %v5927
        %v5930 = vshll.u32 %v5877, 16
        %v5932 = vrot.slane %v5930, 1
        %v5933 = vsel %vm989, %v5928, %v5932
        %v5935 = vshrl.u32 %v5878, 16
        %v5937 = vshll.u32 %v5878, 16
        %v5939 = vrot.slane %v5937, 1
        %v5940 = vor.u32 %v5935, %v5939
        %v5942 = vshll.u32 %v5879, 16
        %v5944 = vrot.slane %v5942, 1
        %v5945 = vsel %vm989, %v5940, %v5944
        %v5947 = vshrl.u32 %v5880, 16
        %v5949 = vshll.u32 %v5880, 16
        %v5951 = vrot.slane %v5949, 1
        %v5952 = vor.u32 %v5947, %v5951
        %v5954 = vshll.u32 %v5881, 16
        %v5956 = vrot.slane %v5954, 1
        %v5957 = vsel %vm989, %v5952, %v5956
        %v5959 = vshrl.u32 %v5882, 16
        %v5961 = vshll.u32 %v5882, 16
        %v5963 = vrot.slane %v5961, 1
        %v5964 = vor.u32 %v5959, %v5963
        %v5966 = vshll.u32 %v5883, 16
        %v5968 = vrot.slane %v5966, 1
        %v5969 = vsel %vm989, %v5964, %v5968
        %v5971 = vshrl.u32 %v5884, 16
        %v5973 = vshll.u32 %v5884, 16
        %v5975 = vrot.slane %v5973, 1
        %v5976 = vor.u32 %v5971, %v5975
        %v5978 = vshll.u32 %v5885, 16
        %v5980 = vrot.slane %v5978, 1
        %v5981 = vsel %vm989, %v5976, %v5980
        %v5983 = vshrl.u32 %v5886, 16
        %v5985 = vshll.u32 %v5886, 16
        %v5987 = vrot.slane %v5985, 1
        %v5988 = vor.u32 %v5983, %v5987
        %v5990 = vshll.u32 %v5887, 16
        %v5992 = vrot.slane %v5990, 1
        %v5993 = vsel %vm989, %v5988, %v5992
        %v5995 = vshrl.u32 %v5888, 16
        %v5997 = vshll.u32 %v5888, 16
        %v5999 = vrot.slane %v5997, 1
        %v6000 = vor.u32 %v5995, %v5999
        %v6002 = vshll.u32 %v5889, 16
        %v6004 = vrot.slane %v6002, 1
        %v6005 = vsel %vm989, %v6000, %v6004
        %v6007 = vshrl.u32 %v5890, 16
        %v6009 = vshll.u32 %v5890, 16
        %v6011 = vrot.slane %v6009, 1
        %v6012 = vor.u32 %v6007, %v6011
        %v6014 = vshll.u32 %v5891, 16
        %v6016 = vrot.slane %v6014, 1
        %v6017 = vsel %vm989, %v6012, %v6016
        %v6019 = vshrl.u32 %v5892, 16
        %v6021 = vshll.u32 %v5892, 16
        %v6023 = vrot.slane %v6021, 1
        %v6024 = vor.u32 %v6019, %v6023
        %v6026 = vshll.u32 %v5893, 16
        %v6028 = vrot.slane %v6026, 1
        %v6029 = vsel %vm989, %v6024, %v6028
        %v6031 = vshrl.u32 %v5894, 16
        %v6033 = vshll.u32 %v5894, 16
        %v6035 = vrot.slane %v6033, 1
        %v6036 = vor.u32 %v6031, %v6035
        %v6038 = vshll.u32 %v5895, 16
        %v6040 = vrot.slane %v6038, 1
        %v6041 = vsel %vm989, %v6036, %v6040
        %v6043 = vshrl.u32 %v5896, 16
        %v6045 = vshll.u32 %v5896, 16
        %v6047 = vrot.slane %v6045, 1
        %v6048 = vor.u32 %v6043, %v6047
        %v6050 = vshll.u32 %v5897, 16
        %v6052 = vrot.slane %v6050, 1
        %v6053 = vsel %vm989, %v6048, %v6052
        %v6055 = vshrl.u32 %v5898, 16
        %v6057 = vshll.u32 %v5898, 16
        %v6059 = vrot.slane %v6057, 1
        %v6060 = vor.u32 %v6055, %v6059
        %v6062 = vshll.u32 %v5899, 16
        %v6064 = vrot.slane %v6062, 1
        %v6065 = vsel %vm989, %v6060, %v6064
        %v6067 = vshrl.u32 %v5900, 16
        %v6069 = vshll.u32 %v5900, 16
        %v6071 = vrot.slane %v6069, 1
        %v6072 = vor.u32 %v6067, %v6071
        %v6074 = vshll.u32 %v5901, 16
        %v6076 = vrot.slane %v6074, 1
        %v6077 = vsel %vm989, %v6072, %v6076
        %v6079 = vshrl.u32 %v5902, 16
        %v6081 = vshll.u32 %v5902, 16
        %v6083 = vrot.slane %v6081, 1
        %v6084 = vor.u32 %v6079, %v6083
        %v6086 = vshll.u32 %v5903, 16
        %v6088 = vrot.slane %v6086, 1
        %v6089 = vsel %vm989, %v6084, %v6088
        %v6091 = vshrl.u32 %v5904, 16
        %v6093 = vshll.u32 %v5904, 16
        %v6095 = vrot.slane %v6093, 1
        %v6096 = vor.u32 %v6091, %v6095
        %v6098 = vshll.u32 %v5905, 16
        %v6100 = vrot.slane %v6098, 1
        %v6101 = vsel %vm989, %v6096, %v6100
        %v6103 = vshrl.u32 %v5906, 16
        %v6105 = vshll.u32 %v5906, 16
        %v6107 = vrot.slane %v6105, 1
        %v6108 = vor.u32 %v6103, %v6107
        %v6110 = vshll.u32 %v5907, 16
        %v6112 = vrot.slane %v6110, 1
        %v6113 = vsel %vm989, %v6108, %v6112
        %v6115 = vshrl.u32 %v5908, 16
        %v6117 = vshll.u32 %v5908, 16
        %v6119 = vrot.slane %v6117, 1
        %v6120 = vor.u32 %v6115, %v6119
        %v6122 = vshll.u32 %v5909, 16
        %v6124 = vrot.slane %v6122, 1
        %v6125 = vsel %vm989, %v6120, %v6124
        %6126 = vrot.lane.b32.xlu0 %v5921, 64
        %v6127 = vpop.permute.xlu0 %6126
        %6128 = vrot.lane.b32.xlu0 %v5933, 64
        %v6129 = vpop.permute.xlu0 %6128
        %6130 = vrot.lane.b32.xlu0 %v5945, 64
        %v6131 = vpop.permute.xlu0 %6130
        %6132 = vrot.lane.b32.xlu0 %v5957, 64
        %v6133 = vpop.permute.xlu0 %6132
        %6134 = vrot.lane.b32.xlu0 %v5969, 64
        %v6135 = vpop.permute.xlu0 %6134
        %6136 = vrot.lane.b32.xlu0 %v5981, 64
        %v6137 = vpop.permute.xlu0 %6136
        %6138 = vrot.lane.b32.xlu0 %v5993, 64
        %v6139 = vpop.permute.xlu0 %6138
        %6140 = vrot.lane.b32.xlu0 %v6005, 64
        %v6141 = vpop.permute.xlu0 %6140
        %6142 = vrot.lane.b32.xlu0 %v6017, 64
        %v6143 = vpop.permute.xlu0 %6142
        %6144 = vrot.lane.b32.xlu0 %v6029, 64
        %v6145 = vpop.permute.xlu0 %6144
        %6146 = vrot.lane.b32.xlu0 %v6041, 64
        %v6147 = vpop.permute.xlu0 %6146
        %6148 = vrot.lane.b32.xlu0 %v6053, 64
        %v6149 = vpop.permute.xlu0 %6148
        %6150 = vrot.lane.b32.xlu0 %v6065, 64
        %v6151 = vpop.permute.xlu0 %6150
        %6152 = vrot.lane.b32.xlu0 %v6077, 64
        %v6153 = vpop.permute.xlu0 %6152
        %6154 = vrot.lane.b32.xlu0 %v6089, 64
        %v6155 = vpop.permute.xlu0 %6154
        %6156 = vrot.lane.b32.xlu0 %v6101, 64
        %v6157 = vpop.permute.xlu0 %6156
        %6158 = vrot.lane.b32.xlu0 %v6113, 64
        %v6159 = vpop.permute.xlu0 %6158
        %6160 = vrot.lane.b32.xlu0 %v6125, 64
        %v6161 = vpop.permute.xlu0 %6160
        %v6198 = vrot.slane %v5874, 1
        %v6199 = vrot.slane %v5875, 1
        %v6200 = vsel %vm1242, %v6198, %v6199
        %v6201 = vrot.slane %v5876, 1
        %v6202 = vrot.slane %v5877, 1
        %v6203 = vsel %vm1242, %v6201, %v6202
        %v6204 = vrot.slane %v5878, 1
        %v6205 = vrot.slane %v5879, 1
        %v6206 = vsel %vm1242, %v6204, %v6205
        %v6207 = vrot.slane %v5880, 1
        %v6208 = vrot.slane %v5881, 1
        %v6209 = vsel %vm1242, %v6207, %v6208
        %v6210 = vrot.slane %v5882, 1
        %v6211 = vrot.slane %v5883, 1
        %v6212 = vsel %vm1242, %v6210, %v6211
        %v6213 = vrot.slane %v5884, 1
        %v6214 = vrot.slane %v5885, 1
        %v6215 = vsel %vm1242, %v6213, %v6214
        %v6216 = vrot.slane %v5886, 1
        %v6217 = vrot.slane %v5887, 1
        %v6218 = vsel %vm1242, %v6216, %v6217
        %v6219 = vrot.slane %v5888, 1
        %v6220 = vrot.slane %v5889, 1
        %v6221 = vsel %vm1242, %v6219, %v6220
        %v6222 = vrot.slane %v5890, 1
        %v6223 = vrot.slane %v5891, 1
        %v6224 = vsel %vm1242, %v6222, %v6223
        %v6225 = vrot.slane %v5892, 1
        %v6226 = vrot.slane %v5893, 1
        %v6227 = vsel %vm1242, %v6225, %v6226
        %v6228 = vrot.slane %v5894, 1
        %v6229 = vrot.slane %v5895, 1
        %v6230 = vsel %vm1242, %v6228, %v6229
        %v6231 = vrot.slane %v5896, 1
        %v6232 = vrot.slane %v5897, 1
        %v6233 = vsel %vm1242, %v6231, %v6232
        %v6234 = vrot.slane %v5898, 1
        %v6235 = vrot.slane %v5899, 1
        %v6236 = vsel %vm1242, %v6234, %v6235
        %v6237 = vrot.slane %v5900, 1
        %v6238 = vrot.slane %v5901, 1
        %v6239 = vsel %vm1242, %v6237, %v6238
        %v6240 = vrot.slane %v5902, 1
        %v6241 = vrot.slane %v5903, 1
        %v6242 = vsel %vm1242, %v6240, %v6241
        %v6243 = vrot.slane %v5904, 1
        %v6244 = vrot.slane %v5905, 1
        %v6245 = vsel %vm1242, %v6243, %v6244
        %v6246 = vrot.slane %v5906, 1
        %v6247 = vrot.slane %v5907, 1
        %v6248 = vsel %vm1242, %v6246, %v6247
        %v6249 = vrot.slane %v5908, 1
        %v6250 = vrot.slane %v5909, 1
        %v6251 = vsel %vm1242, %v6249, %v6250
        %v6253 = vsel %vm281, %v5874, %v6127
        %v6256 = vsel %vm281, %v5876, %v6129
        %v6259 = vsel %vm281, %v5878, %v6131
        %v6262 = vsel %vm281, %v5880, %v6133
        %v6265 = vsel %vm281, %v5882, %v6135
        %v6268 = vsel %vm281, %v5884, %v6137
        %v6271 = vsel %vm281, %v5886, %v6139
        %v6274 = vsel %vm281, %v5888, %v6141
        %v6277 = vsel %vm281, %v5890, %v6143
        %v6280 = vsel %vm281, %v5892, %v6145
        %v6283 = vsel %vm281, %v5894, %v6147
        %v6286 = vsel %vm281, %v5896, %v6149
        %v6289 = vsel %vm281, %v5898, %v6151
        %v6292 = vsel %vm281, %v5900, %v6153
        %v6295 = vsel %vm281, %v5902, %v6155
        %v6298 = vsel %vm281, %v5904, %v6157
        %v6301 = vsel %vm281, %v5906, %v6159
        %v6304 = vsel %vm281, %v5908, %v6161
        %s6306 = scalar_lea.vmem %s1, 2592
        %v6307 = vld [vmem:[%s6306] sm:$0xf]
        %v6308 = vld [vmem:[%s6306 + $0x4] sm:$0xf]
        %v6309 = vld [vmem:[%s6306 + $0x8] sm:$0xf]
        %v6310 = vld [vmem:[%s6306 + $0xc] sm:$0xf]
        %v6311 = vld [vmem:[%s6306 + $0x10] sm:$0xf]
        %v6312 = vld [vmem:[%s6306 + $0x14] sm:$0xf]
        %v6313 = vld [vmem:[%s6306 + $0x18] sm:$0xf]
        %v6314 = vld [vmem:[%s6306 + $0x1c] sm:$0xf]
        %v6315 = vld [vmem:[%s6306 + $0x20] sm:$0xf]
        %v6316 = vld [vmem:[%s6306 + $0x24] sm:$0xf]
        %v6317 = vld [vmem:[%s6306 + $0x28] sm:$0xf]
        %v6318 = vld [vmem:[%s6306 + $0x2c] sm:$0xf]
        %v6319 = vld [vmem:[%s6306 + $0x30] sm:$0xf]
        %v6320 = vld [vmem:[%s6306 + $0x34] sm:$0xf]
        %v6321 = vld [vmem:[%s6306 + $0x38] sm:$0xf]
        %v6322 = vld [vmem:[%s6306 + $0x3c] sm:$0xf]
        %v6323 = vld [vmem:[%s6306 + $0x40] sm:$0xf]
        %v6324 = vld [vmem:[%s6306 + $0x44] sm:$0xf]
        %v6325 = vld [vmem:[%s6306 + $0x48] sm:$0xf]
        %v6326 = vld [vmem:[%s6306 + $0x4c] sm:$0xf]
        %v6327 = vld [vmem:[%s6306 + $0x50] sm:$0xf]
        %v6328 = vld [vmem:[%s6306 + $0x54] sm:$0xf]
        %v6329 = vld [vmem:[%s6306 + $0x58] sm:$0xf]
        %v6330 = vld [vmem:[%s6306 + $0x5c] sm:$0xf]
        %v6331 = vld [vmem:[%s6306 + $0x60] sm:$0xf]
        %v6332 = vld [vmem:[%s6306 + $0x64] sm:$0xf]
        %v6333 = vld [vmem:[%s6306 + $0x68] sm:$0xf]
        %v6334 = vld [vmem:[%s6306 + $0x6c] sm:$0xf]
        %v6335 = vld [vmem:[%s6306 + $0x70] sm:$0xf]
        %v6336 = vld [vmem:[%s6306 + $0x74] sm:$0xf]
        %v6337 = vld [vmem:[%s6306 + $0x78] sm:$0xf]
        %v6338 = vld [vmem:[%s6306 + $0x7c] sm:$0xf]
        %v6339 = vld [vmem:[%s6306 + $0x80] sm:$0xf]
        %v6340 = vld [vmem:[%s6306 + $0x84] sm:$0xf]
        %v6341 = vld [vmem:[%s6306 + $0x88] sm:$0xf]
        %v6342 = vld [vmem:[%s6306 + $0x8c] sm:$0xf]
        %v6343 = vld [vmem:[%s6306 + $0x90] sm:$0xf]
        %v6344 = vld [vmem:[%s6306 + $0x94] sm:$0xf]
        %v6345 = vld [vmem:[%s6306 + $0x98] sm:$0xf]
        %v6346 = vld [vmem:[%s6306 + $0x9c] sm:$0xf]
        %v6347 = vld [vmem:[%s6306 + $0xa0] sm:$0xf]
        %v6348 = vld [vmem:[%s6306 + $0xa4] sm:$0xf]
        %v6349 = vld [vmem:[%s6306 + $0xa8] sm:$0xf]
        %v6350 = vld [vmem:[%s6306 + $0xac] sm:$0xf]
        %v6351 = vld [vmem:[%s6306 + $0xb0] sm:$0xf]
        %v6352 = vld [vmem:[%s6306 + $0xb4] sm:$0xf]
        %v6353 = vld [vmem:[%s6306 + $0xb8] sm:$0xf]
        %v6354 = vld [vmem:[%s6306 + $0xbc] sm:$0xf]
        %v6355 = vld [vmem:[%s6306 + $0xc0] sm:$0xf]
        %v6356 = vld [vmem:[%s6306 + $0xc4] sm:$0xf]
        %v6357 = vld [vmem:[%s6306 + $0xc8] sm:$0xf]
        %v6358 = vld [vmem:[%s6306 + $0xcc] sm:$0xf]
        %v6359 = vld [vmem:[%s6306 + $0xd0] sm:$0xf]
        %v6360 = vld [vmem:[%s6306 + $0xd4] sm:$0xf]
        %v6361 = vld [vmem:[%s6306 + $0xd8] sm:$0xf]
        %v6362 = vld [vmem:[%s6306 + $0xdc] sm:$0xf]
        %v6363 = vld [vmem:[%s6306 + $0xe0] sm:$0xf]
        %v6364 = vld [vmem:[%s6306 + $0xe4] sm:$0xf]
        %v6365 = vld [vmem:[%s6306 + $0xe8] sm:$0xf]
        %v6366 = vld [vmem:[%s6306 + $0xec] sm:$0xf]
        %v6367 = vld [vmem:[%s6306 + $0xf0] sm:$0xf]
        %v6368 = vld [vmem:[%s6306 + $0xf4] sm:$0xf]
        %v6369 = vld [vmem:[%s6306 + $0xf8] sm:$0xf]
        %v6370 = vld [vmem:[%s6306 + $0xfc] sm:$0xf]
        %v6371 = vld [vmem:[%s6306 + $0x100] sm:$0xf]
        %v6372 = vld [vmem:[%s6306 + $0x104] sm:$0xf]
        %v6373 = vld [vmem:[%s6306 + $0x108] sm:$0xf]
        %v6374 = vld [vmem:[%s6306 + $0x10c] sm:$0xf]
        %v6375 = vld [vmem:[%s6306 + $0x110] sm:$0xf]
        %v6376 = vld [vmem:[%s6306 + $0x114] sm:$0xf]
        %v6377 = vld [vmem:[%s6306 + $0x118] sm:$0xf]
        %v6378 = vld [vmem:[%s6306 + $0x11c] sm:$0xf]
        %v6403 = vunpack.c.l.b16 %v6331
        %v6404 = vunpack.c.l.b16 %v6332
        %v6405 = vunpack.c.l.b16 %v6333
        %v6406 = vunpack.c.l.b16 %v6334
        %v6407 = vunpack.c.l.b16 %v6335
        %v6408 = vunpack.c.l.b16 %v6336
        %v6409 = vunpack.c.l.b16 %v6337
        %v6410 = vunpack.c.l.b16 %v6338
        %v6411 = vunpack.c.l.b16 %v6339
        %v6412 = vunpack.c.l.b16 %v6340
        %v6413 = vunpack.c.l.b16 %v6341
        %v6414 = vunpack.c.l.b16 %v6342
        %v6415 = vunpack.c.l.b16 %v6343
        %v6416 = vunpack.c.l.b16 %v6344
        %v6417 = vunpack.c.l.b16 %v6345
        %v6418 = vunpack.c.l.b16 %v6346
        %v6419 = vunpack.c.l.b16 %v6347
        %v6420 = vunpack.c.l.b16 %v6348
        %v6421 = vunpack.c.l.b16 %v6349
        %v6422 = vunpack.c.l.b16 %v6350
        %v6423 = vunpack.c.l.b16 %v6351
        %v6424 = vunpack.c.l.b16 %v6352
        %v6425 = vunpack.c.l.b16 %v6353
        %v6426 = vunpack.c.l.b16 %v6354
        %v6427 = vpack.c.b16 %v6404, %v6403
        %v6428 = vpack.c.b16 %v6406, %v6405
        %v6429 = vpack.c.b16 %v6408, %v6407
        %v6430 = vpack.c.b16 %v6410, %v6409
        %v6431 = vpack.c.b16 %v6412, %v6411
        %v6432 = vpack.c.b16 %v6414, %v6413
        %v6433 = vpack.c.b16 %v6416, %v6415
        %v6434 = vpack.c.b16 %v6418, %v6417
        %v6435 = vpack.c.b16 %v6420, %v6419
        %v6436 = vpack.c.b16 %v6422, %v6421
        %v6437 = vpack.c.b16 %v6424, %v6423
        %v6438 = vpack.c.b16 %v6426, %v6425
        %v6452 = vsel %vm281, %v6203, 0
        %v6455 = vsel %vm281, %v6206, 0
        %v6458 = vsel %vm281, %v6209, 0
        %v6461 = vsel %vm281, %v6212, 0
        %v6464 = vsel %vm281, %v6215, 0
        %v6467 = vsel %vm281, %v6218, 0
        %v6470 = vsel %vm281, %v6221, 0
        %v6473 = vsel %vm281, %v6224, 0
        %v6476 = vsel %vm281, %v6227, 0
        %v6479 = vsel %vm281, %v6230, 0
        %v6482 = vsel %vm281, %v6233, 0
        %v6485 = vsel %vm281, %v6236, 0
        %v6488 = vsel %vm281, %v6239, 0
        %v6491 = vsel %vm281, %v6242, 0
        %v6494 = vsel %vm281, %v6245, 0
        %v6497 = vsel %vm281, %v6248, 0
        %6499 = vmatprep.subr.bf16.mxu0 0
        %6500 = vmatpush1.bf16.msra.mxu0 %v6434
        %6501 = vmatprep.subr.bf16.mxu0 0
        %6502 = vmatpush1.bf16.msra.mxu0 %v6433
        %6503 = vmatprep.subr.bf16.mxu0 0
        %6504 = vmatpush1.bf16.msra.mxu0 %v6432
        %6505 = vmatprep.subr.bf16.mxu0 0
        %6506 = vmatpush1.bf16.msra.mxu0 %v6431
        %6507 = vmatprep.subr.bf16.mxu0 0
        %6508 = vmatpush1.bf16.msra.mxu0 %v6430
        %6509 = vmatprep.subr.bf16.mxu0 0
        %6510 = vmatpush1.bf16.msra.mxu0 %v6429
        %6511 = vmatprep.subr.bf16.mxu0 0
        %6512 = vmatpush1.bf16.msra.mxu0 %v6428
        %6513 = vmatprep.subr.bf16.mxu0 0
        %6514 = vmatpush1.bf16.msra.mxu0 %v6427
        %6515 = vmatprep.subr.bf16.mxu0 0
        %6516 = vmatpush2.bf16.msra.mxu0 0
        %6517 = vmatprep.subr.bf16.mxu0 0
        %6518 = vmatpush2.bf16.msra.mxu0 0
        %6519 = vmatprep.subr.bf16.mxu0 0
        %6520 = vmatpush2.bf16.msra.mxu0 0
        %6521 = vmatprep.subr.bf16.mxu0 0
        %6522 = vmatpush2.bf16.msra.mxu0 0
        %6523 = vmatprep.subr.bf16.mxu0 0
        %6524 = vmatpush2.bf16.msra.mxu0 %v6438
        %6525 = vmatprep.subr.bf16.mxu0 0
        %6526 = vmatpush2.bf16.msra.mxu0 %v6437
        %6527 = vmatprep.subr.bf16.mxu0 0
        %6528 = vmatpush2.bf16.msra.mxu0 %v6436
        %6529 = vmatprep.subr.bf16.mxu0 0
        %6530 = vmatpush2.bf16.msra.mxu0 %v6435
        %6531 = vmatprep.mubr.bf16.mxu0 %v6452
        %6532 = vmatmul.mubr.bf16.gmra.mxu0 %v6256
        %v6533 = vpop.f32.mrf.mxu0
        %v6534 = vadd.f32 0.0, %v6533
        %v6535 = vpop.f32.mrf.mxu0
        %v6536 = vpop.f32.mrf.mxu0
        %v6537 = vadd.f32 0.0, %v6536
        %v6538 = vpop.f32.mrf.mxu0
        %6539 = vmatprep.mubr.bf16.mxu0 %v6455
        %6540 = vmatmul.mubr.bf16.gmra.mxu0 %v6259
        %v6541 = vpop.f32.mrf.mxu0
        %v6542 = vadd.f32 0.0, %v6541
        %v6543 = vpop.f32.mrf.mxu0
        %v6544 = vpop.f32.mrf.mxu0
        %v6545 = vadd.f32 0.0, %v6544
        %v6546 = vpop.f32.mrf.mxu0
        %6547 = vmatprep.mubr.bf16.mxu0 %v6458
        %6548 = vmatmul.mubr.bf16.gmra.mxu0 %v6262
        %v6549 = vpop.f32.mrf.mxu0
        %v6550 = vadd.f32 0.0, %v6549
        %v6551 = vpop.f32.mrf.mxu0
        %v6552 = vpop.f32.mrf.mxu0
        %v6553 = vadd.f32 0.0, %v6552
        %v6554 = vpop.f32.mrf.mxu0
        %6555 = vmatprep.mubr.bf16.mxu0 %v6461
        %6556 = vmatmul.mubr.bf16.gmra.mxu0 %v6265
        %v6557 = vpop.f32.mrf.mxu0
        %v6558 = vadd.f32 0.0, %v6557
        %v6559 = vpop.f32.mrf.mxu0
        %v6560 = vpop.f32.mrf.mxu0
        %v6561 = vadd.f32 0.0, %v6560
        %v6562 = vpop.f32.mrf.mxu0
        %6563 = vmatprep.mubr.bf16.mxu0 %v6464
        %6564 = vmatmul.mubr.bf16.gmra.mxu0 %v6268
        %v6565 = vpop.f32.mrf.mxu0
        %v6566 = vadd.f32 0.0, %v6565
        %v6567 = vpop.f32.mrf.mxu0
        %v6568 = vpop.f32.mrf.mxu0
        %v6569 = vadd.f32 0.0, %v6568
        %v6570 = vpop.f32.mrf.mxu0
        %6571 = vmatprep.mubr.bf16.mxu0 %v6467
        %6572 = vmatmul.mubr.bf16.gmra.mxu0 %v6271
        %v6573 = vpop.f32.mrf.mxu0
        %v6574 = vadd.f32 0.0, %v6573
        %v6575 = vpop.f32.mrf.mxu0
        %v6576 = vpop.f32.mrf.mxu0
        %v6577 = vadd.f32 0.0, %v6576
        %v6578 = vpop.f32.mrf.mxu0
        %6579 = vmatprep.mubr.bf16.mxu0 %v6470
        %6580 = vmatmul.mubr.bf16.gmra.mxu0 %v6274
        %v6581 = vpop.f32.mrf.mxu0
        %v6582 = vadd.f32 0.0, %v6581
        %v6583 = vpop.f32.mrf.mxu0
        %v6584 = vpop.f32.mrf.mxu0
        %v6585 = vadd.f32 0.0, %v6584
        %v6586 = vpop.f32.mrf.mxu0
        %6587 = vmatprep.mubr.bf16.mxu0 %v6473
        %6588 = vmatmul.mubr.bf16.gmra.mxu0 %v6277
        %v6589 = vpop.f32.mrf.mxu0
        %v6590 = vadd.f32 0.0, %v6589
        %v6591 = vpop.f32.mrf.mxu0
        %v6592 = vpop.f32.mrf.mxu0
        %v6593 = vadd.f32 0.0, %v6592
        %v6594 = vpop.f32.mrf.mxu0
        %6595 = vmatprep.mubr.bf16.mxu0 %v6476
        %6596 = vmatmul.mubr.bf16.gmra.mxu0 %v6280
        %v6597 = vpop.f32.mrf.mxu0
        %v6598 = vadd.f32 0.0, %v6597
        %v6599 = vpop.f32.mrf.mxu0
        %v6600 = vpop.f32.mrf.mxu0
        %v6601 = vadd.f32 0.0, %v6600
        %v6602 = vpop.f32.mrf.mxu0
        %6603 = vmatprep.mubr.bf16.mxu0 %v6479
        %6604 = vmatmul.mubr.bf16.gmra.mxu0 %v6283
        %v6605 = vpop.f32.mrf.mxu0
        %v6606 = vadd.f32 0.0, %v6605
        %v6607 = vpop.f32.mrf.mxu0
        %v6608 = vpop.f32.mrf.mxu0
        %v6609 = vadd.f32 0.0, %v6608
        %v6610 = vpop.f32.mrf.mxu0
        %6611 = vmatprep.mubr.bf16.mxu0 %v6482
        %6612 = vmatmul.mubr.bf16.gmra.mxu0 %v6286
        %v6613 = vpop.f32.mrf.mxu0
        %v6614 = vadd.f32 0.0, %v6613
        %v6615 = vpop.f32.mrf.mxu0
        %v6616 = vpop.f32.mrf.mxu0
        %v6617 = vadd.f32 0.0, %v6616
        %v6618 = vpop.f32.mrf.mxu0
        %6619 = vmatprep.mubr.bf16.mxu0 %v6485
        %6620 = vmatmul.mubr.bf16.gmra.mxu0 %v6289
        %v6621 = vpop.f32.mrf.mxu0
        %v6622 = vadd.f32 0.0, %v6621
        %v6623 = vpop.f32.mrf.mxu0
        %v6624 = vpop.f32.mrf.mxu0
        %v6625 = vadd.f32 0.0, %v6624
        %v6626 = vpop.f32.mrf.mxu0
        %6627 = vmatprep.mubr.bf16.mxu0 %v6488
        %6628 = vmatmul.mubr.bf16.gmra.mxu0 %v6292
        %v6629 = vpop.f32.mrf.mxu0
        %v6630 = vadd.f32 0.0, %v6629
        %v6631 = vpop.f32.mrf.mxu0
        %v6632 = vpop.f32.mrf.mxu0
        %v6633 = vadd.f32 0.0, %v6632
        %v6634 = vpop.f32.mrf.mxu0
        %6635 = vmatprep.mubr.bf16.mxu0 %v6491
        %6636 = vmatmul.mubr.bf16.gmra.mxu0 %v6295
        %v6637 = vpop.f32.mrf.mxu0
        %v6638 = vadd.f32 0.0, %v6637
        %v6639 = vpop.f32.mrf.mxu0
        %v6640 = vpop.f32.mrf.mxu0
        %v6641 = vadd.f32 0.0, %v6640
        %v6642 = vpop.f32.mrf.mxu0
        %6643 = vmatprep.mubr.bf16.mxu0 %v6494
        %6644 = vmatmul.mubr.bf16.gmra.mxu0 %v6298
        %v6645 = vpop.f32.mrf.mxu0
        %v6646 = vadd.f32 0.0, %v6645
        %v6647 = vpop.f32.mrf.mxu0
        %v6648 = vpop.f32.mrf.mxu0
        %v6649 = vadd.f32 0.0, %v6648
        %v6650 = vpop.f32.mrf.mxu0
        %6651 = vmatprep.mubr.bf16.mxu0 %v6497
        %6652 = vmatmul.mubr.bf16.gmra.mxu0 %v6301
        %v6653 = vpop.f32.mrf.mxu0
        %v6654 = vadd.f32 0.0, %v6653
        %v6655 = vpop.f32.mrf.mxu0
        %v6656 = vpop.f32.mrf.mxu0
        %v6657 = vadd.f32 0.0, %v6656
        %v6658 = vpop.f32.mrf.mxu0
        %6659 = vdwg.mxu0
        %v6684 = vunpack.c.l.b16 %v6307
        %v6685 = vunpack.c.l.b16 %v6308
        %v6686 = vunpack.c.l.b16 %v6309
        %v6687 = vunpack.c.l.b16 %v6310
        %v6688 = vunpack.c.l.b16 %v6311
        %v6689 = vunpack.c.l.b16 %v6312
        %v6690 = vunpack.c.l.b16 %v6313
        %v6691 = vunpack.c.l.b16 %v6314
        %v6692 = vunpack.c.l.b16 %v6315
        %v6693 = vunpack.c.l.b16 %v6316
        %v6694 = vunpack.c.l.b16 %v6317
        %v6695 = vunpack.c.l.b16 %v6318
        %v6696 = vunpack.c.l.b16 %v6319
        %v6697 = vunpack.c.l.b16 %v6320
        %v6698 = vunpack.c.l.b16 %v6321
        %v6699 = vunpack.c.l.b16 %v6322
        %v6700 = vunpack.c.l.b16 %v6323
        %v6701 = vunpack.c.l.b16 %v6324
        %v6702 = vunpack.c.l.b16 %v6325
        %v6703 = vunpack.c.l.b16 %v6326
        %v6704 = vunpack.c.l.b16 %v6327
        %v6705 = vunpack.c.l.b16 %v6328
        %v6706 = vunpack.c.l.b16 %v6329
        %v6707 = vunpack.c.l.b16 %v6330
        %v6708 = vpack.c.b16 %v6685, %v6684
        %v6709 = vpack.c.b16 %v6687, %v6686
        %v6710 = vpack.c.b16 %v6689, %v6688
        %v6711 = vpack.c.b16 %v6691, %v6690
        %v6712 = vpack.c.b16 %v6693, %v6692
        %v6713 = vpack.c.b16 %v6695, %v6694
        %v6714 = vpack.c.b16 %v6697, %v6696
        %v6715 = vpack.c.b16 %v6699, %v6698
        %v6716 = vpack.c.b16 %v6701, %v6700
        %v6717 = vpack.c.b16 %v6703, %v6702
        %v6718 = vpack.c.b16 %v6705, %v6704
        %v6719 = vpack.c.b16 %v6707, %v6706
        %v6733 = vsel %vm281, %v6200, 0
        %6735 = vmatprep.subr.bf16.mxu0 0
        %6736 = vmatpush1.bf16.msra.mxu0 %v6715
        %6737 = vmatprep.subr.bf16.mxu0 0
        %6738 = vmatpush1.bf16.msra.mxu0 %v6714
        %6739 = vmatprep.subr.bf16.mxu0 0
        %6740 = vmatpush1.bf16.msra.mxu0 %v6713
        %6741 = vmatprep.subr.bf16.mxu0 0
        %6742 = vmatpush1.bf16.msra.mxu0 %v6712
        %6743 = vmatprep.subr.bf16.mxu0 0
        %6744 = vmatpush1.bf16.msra.mxu0 %v6711
        %6745 = vmatprep.subr.bf16.mxu0 0
        %6746 = vmatpush1.bf16.msra.mxu0 %v6710
        %6747 = vmatprep.subr.bf16.mxu0 0
        %6748 = vmatpush1.bf16.msra.mxu0 %v6709
        %6749 = vmatprep.subr.bf16.mxu0 0
        %6750 = vmatpush1.bf16.msra.mxu0 %v6708
        %6751 = vmatprep.subr.bf16.mxu0 0
        %6752 = vmatpush2.bf16.msra.mxu0 0
        %6753 = vmatprep.subr.bf16.mxu0 0
        %6754 = vmatpush2.bf16.msra.mxu0 0
        %6755 = vmatprep.subr.bf16.mxu0 0
        %6756 = vmatpush2.bf16.msra.mxu0 0
        %6757 = vmatprep.subr.bf16.mxu0 0
        %6758 = vmatpush2.bf16.msra.mxu0 0
        %6759 = vmatprep.subr.bf16.mxu0 0
        %6760 = vmatpush2.bf16.msra.mxu0 %v6719
        %6761 = vmatprep.subr.bf16.mxu0 0
        %6762 = vmatpush2.bf16.msra.mxu0 %v6718
        %6763 = vmatprep.subr.bf16.mxu0 0
        %6764 = vmatpush2.bf16.msra.mxu0 %v6717
        %6765 = vmatprep.subr.bf16.mxu0 0
        %6766 = vmatpush2.bf16.msra.mxu0 %v6716
        %6767 = vmatprep.mubr.bf16.mxu0 %v6733
        %6768 = vmatmul.mubr.bf16.gmra.mxu0 %v6253
        %v6769 = vpop.f32.mrf.mxu0
        %v6770 = vadd.f32 %v6534, %v6769
        %v6771 = vpop.f32.mrf.mxu0
        %v6772 = vpop.f32.mrf.mxu0
        %v6773 = vadd.f32 %v6537, %v6772
        %v6774 = vpop.f32.mrf.mxu0
        %6775 = vmatprep.mubr.bf16.mxu0 %v6452
        %6776 = vmatmul.mubr.bf16.gmra.mxu0 %v6256
        %v6777 = vpop.f32.mrf.mxu0
        %v6778 = vadd.f32 %v6542, %v6777
        %v6779 = vpop.f32.mrf.mxu0
        %v6780 = vpop.f32.mrf.mxu0
        %v6781 = vadd.f32 %v6545, %v6780
        %v6782 = vpop.f32.mrf.mxu0
        %6783 = vmatprep.mubr.bf16.mxu0 %v6455
        %6784 = vmatmul.mubr.bf16.gmra.mxu0 %v6259
        %v6785 = vpop.f32.mrf.mxu0
        %v6786 = vadd.f32 %v6550, %v6785
        %v6787 = vpop.f32.mrf.mxu0
        %v6788 = vpop.f32.mrf.mxu0
        %v6789 = vadd.f32 %v6553, %v6788
        %v6790 = vpop.f32.mrf.mxu0
        %6791 = vmatprep.mubr.bf16.mxu0 %v6458
        %6792 = vmatmul.mubr.bf16.gmra.mxu0 %v6262
        %v6793 = vpop.f32.mrf.mxu0
        %v6794 = vadd.f32 %v6558, %v6793
        %v6795 = vpop.f32.mrf.mxu0
        %v6796 = vpop.f32.mrf.mxu0
        %v6797 = vadd.f32 %v6561, %v6796
        %v6798 = vpop.f32.mrf.mxu0
        %6799 = vmatprep.mubr.bf16.mxu0 %v6461
        %6800 = vmatmul.mubr.bf16.gmra.mxu0 %v6265
        %v6801 = vpop.f32.mrf.mxu0
        %v6802 = vadd.f32 %v6566, %v6801
        %v6803 = vpop.f32.mrf.mxu0
        %v6804 = vpop.f32.mrf.mxu0
        %v6805 = vadd.f32 %v6569, %v6804
        %v6806 = vpop.f32.mrf.mxu0
        %6807 = vmatprep.mubr.bf16.mxu0 %v6464
        %6808 = vmatmul.mubr.bf16.gmra.mxu0 %v6268
        %v6809 = vpop.f32.mrf.mxu0
        %v6810 = vadd.f32 %v6574, %v6809
        %v6811 = vpop.f32.mrf.mxu0
        %v6812 = vpop.f32.mrf.mxu0
        %v6813 = vadd.f32 %v6577, %v6812
        %v6814 = vpop.f32.mrf.mxu0
        %6815 = vmatprep.mubr.bf16.mxu0 %v6467
        %6816 = vmatmul.mubr.bf16.gmra.mxu0 %v6271
        %v6817 = vpop.f32.mrf.mxu0
        %v6818 = vadd.f32 %v6582, %v6817
        %v6819 = vpop.f32.mrf.mxu0
        %v6820 = vpop.f32.mrf.mxu0
        %v6821 = vadd.f32 %v6585, %v6820
        %v6822 = vpop.f32.mrf.mxu0
        %6823 = vmatprep.mubr.bf16.mxu0 %v6470
        %6824 = vmatmul.mubr.bf16.gmra.mxu0 %v6274
        %v6825 = vpop.f32.mrf.mxu0
        %v6826 = vadd.f32 %v6590, %v6825
        %v6827 = vpop.f32.mrf.mxu0
        %v6828 = vpop.f32.mrf.mxu0
        %v6829 = vadd.f32 %v6593, %v6828
        %v6830 = vpop.f32.mrf.mxu0
        %6831 = vmatprep.mubr.bf16.mxu0 %v6473
        %6832 = vmatmul.mubr.bf16.gmra.mxu0 %v6277
        %v6833 = vpop.f32.mrf.mxu0
        %v6834 = vadd.f32 %v6598, %v6833
        %v6835 = vpop.f32.mrf.mxu0
        %v6836 = vpop.f32.mrf.mxu0
        %v6837 = vadd.f32 %v6601, %v6836
        %v6838 = vpop.f32.mrf.mxu0
        %6839 = vmatprep.mubr.bf16.mxu0 %v6476
        %6840 = vmatmul.mubr.bf16.gmra.mxu0 %v6280
        %v6841 = vpop.f32.mrf.mxu0
        %v6842 = vadd.f32 %v6606, %v6841
        %v6843 = vpop.f32.mrf.mxu0
        %v6844 = vpop.f32.mrf.mxu0
        %v6845 = vadd.f32 %v6609, %v6844
        %v6846 = vpop.f32.mrf.mxu0
        %6847 = vmatprep.mubr.bf16.mxu0 %v6479
        %6848 = vmatmul.mubr.bf16.gmra.mxu0 %v6283
        %v6849 = vpop.f32.mrf.mxu0
        %v6850 = vadd.f32 %v6614, %v6849
        %v6851 = vpop.f32.mrf.mxu0
        %v6852 = vpop.f32.mrf.mxu0
        %v6853 = vadd.f32 %v6617, %v6852
        %v6854 = vpop.f32.mrf.mxu0
        %6855 = vmatprep.mubr.bf16.mxu0 %v6482
        %6856 = vmatmul.mubr.bf16.gmra.mxu0 %v6286
        %v6857 = vpop.f32.mrf.mxu0
        %v6858 = vadd.f32 %v6622, %v6857
        %v6859 = vpop.f32.mrf.mxu0
        %v6860 = vpop.f32.mrf.mxu0
        %v6861 = vadd.f32 %v6625, %v6860
        %v6862 = vpop.f32.mrf.mxu0
        %6863 = vmatprep.mubr.bf16.mxu0 %v6485
        %6864 = vmatmul.mubr.bf16.gmra.mxu0 %v6289
        %v6865 = vpop.f32.mrf.mxu0
        %v6866 = vadd.f32 %v6630, %v6865
        %v6867 = vpop.f32.mrf.mxu0
        %v6868 = vpop.f32.mrf.mxu0
        %v6869 = vadd.f32 %v6633, %v6868
        %v6870 = vpop.f32.mrf.mxu0
        %6871 = vmatprep.mubr.bf16.mxu0 %v6488
        %6872 = vmatmul.mubr.bf16.gmra.mxu0 %v6292
        %v6873 = vpop.f32.mrf.mxu0
        %v6874 = vadd.f32 %v6638, %v6873
        %v6875 = vpop.f32.mrf.mxu0
        %v6876 = vpop.f32.mrf.mxu0
        %v6877 = vadd.f32 %v6641, %v6876
        %v6878 = vpop.f32.mrf.mxu0
        %6879 = vmatprep.mubr.bf16.mxu0 %v6491
        %6880 = vmatmul.mubr.bf16.gmra.mxu0 %v6295
        %v6881 = vpop.f32.mrf.mxu0
        %v6882 = vadd.f32 %v6646, %v6881
        %v6883 = vpop.f32.mrf.mxu0
        %v6884 = vpop.f32.mrf.mxu0
        %v6885 = vadd.f32 %v6649, %v6884
        %v6886 = vpop.f32.mrf.mxu0
        %6887 = vmatprep.mubr.bf16.mxu0 %v6494
        %6888 = vmatmul.mubr.bf16.gmra.mxu0 %v6298
        %v6889 = vpop.f32.mrf.mxu0
        %v6890 = vadd.f32 %v6654, %v6889
        %v6891 = vpop.f32.mrf.mxu0
        %v6892 = vpop.f32.mrf.mxu0
        %v6893 = vadd.f32 %v6657, %v6892
        %v6894 = vpop.f32.mrf.mxu0
        %6895 = vdwg.mxu0
        %v6920 = vunpack.c.l.b16 %v6355
        %v6921 = vunpack.c.l.b16 %v6356
        %v6922 = vunpack.c.l.b16 %v6357
        %v6923 = vunpack.c.l.b16 %v6358
        %v6924 = vunpack.c.l.b16 %v6359
        %v6925 = vunpack.c.l.b16 %v6360
        %v6926 = vunpack.c.l.b16 %v6361
        %v6927 = vunpack.c.l.b16 %v6362
        %v6928 = vunpack.c.l.b16 %v6363
        %v6929 = vunpack.c.l.b16 %v6364
        %v6930 = vunpack.c.l.b16 %v6365
        %v6931 = vunpack.c.l.b16 %v6366
        %v6932 = vunpack.c.l.b16 %v6367
        %v6933 = vunpack.c.l.b16 %v6368
        %v6934 = vunpack.c.l.b16 %v6369
        %v6935 = vunpack.c.l.b16 %v6370
        %v6936 = vunpack.c.l.b16 %v6371
        %v6937 = vunpack.c.l.b16 %v6372
        %v6938 = vunpack.c.l.b16 %v6373
        %v6939 = vunpack.c.l.b16 %v6374
        %v6940 = vunpack.c.l.b16 %v6375
        %v6941 = vunpack.c.l.b16 %v6376
        %v6942 = vunpack.c.l.b16 %v6377
        %v6943 = vunpack.c.l.b16 %v6378
        %v6944 = vpack.c.b16 %v6921, %v6920
        %v6945 = vpack.c.b16 %v6923, %v6922
        %v6946 = vpack.c.b16 %v6925, %v6924
        %v6947 = vpack.c.b16 %v6927, %v6926
        %v6948 = vpack.c.b16 %v6929, %v6928
        %v6949 = vpack.c.b16 %v6931, %v6930
        %v6950 = vpack.c.b16 %v6933, %v6932
        %v6951 = vpack.c.b16 %v6935, %v6934
        %v6952 = vpack.c.b16 %v6937, %v6936
        %v6953 = vpack.c.b16 %v6939, %v6938
        %v6954 = vpack.c.b16 %v6941, %v6940
        %v6955 = vpack.c.b16 %v6943, %v6942
        %v6969 = vsel %vm281, %v6251, 0
        %6971 = vmatprep.subr.bf16.mxu0 0
        %6972 = vmatpush1.bf16.msra.mxu0 %v6951
        %6973 = vmatprep.subr.bf16.mxu0 0
        %6974 = vmatpush1.bf16.msra.mxu0 %v6950
        %6975 = vmatprep.subr.bf16.mxu0 0
        %6976 = vmatpush1.bf16.msra.mxu0 %v6949
        %6977 = vmatprep.subr.bf16.mxu0 0
        %6978 = vmatpush1.bf16.msra.mxu0 %v6948
        %6979 = vmatprep.subr.bf16.mxu0 0
        %6980 = vmatpush1.bf16.msra.mxu0 %v6947
        %6981 = vmatprep.subr.bf16.mxu0 0
        %6982 = vmatpush1.bf16.msra.mxu0 %v6946
        %6983 = vmatprep.subr.bf16.mxu0 0
        %6984 = vmatpush1.bf16.msra.mxu0 %v6945
        %6985 = vmatprep.subr.bf16.mxu0 0
        %6986 = vmatpush1.bf16.msra.mxu0 %v6944
        %6987 = vmatprep.subr.bf16.mxu0 0
        %6988 = vmatpush2.bf16.msra.mxu0 0
        %6989 = vmatprep.subr.bf16.mxu0 0
        %6990 = vmatpush2.bf16.msra.mxu0 0
        %6991 = vmatprep.subr.bf16.mxu0 0
        %6992 = vmatpush2.bf16.msra.mxu0 0
        %6993 = vmatprep.subr.bf16.mxu0 0
        %6994 = vmatpush2.bf16.msra.mxu0 0
        %6995 = vmatprep.subr.bf16.mxu0 0
        %6996 = vmatpush2.bf16.msra.mxu0 %v6955
        %6997 = vmatprep.subr.bf16.mxu0 0
        %6998 = vmatpush2.bf16.msra.mxu0 %v6954
        %6999 = vmatprep.subr.bf16.mxu0 0
        %7000 = vmatpush2.bf16.msra.mxu0 %v6953
        %7001 = vmatprep.subr.bf16.mxu0 0
        %7002 = vmatpush2.bf16.msra.mxu0 %v6952
        %7003 = vmatprep.mubr.bf16.mxu0 %v6455
        %7004 = vmatmul.mubr.bf16.gmra.mxu0 %v6259
        %v7005 = vpop.f32.mrf.mxu0
        %v7006 = vadd.f32 0.0, %v7005
        %v7007 = vpop.f32.mrf.mxu0
        %v7008 = vpop.f32.mrf.mxu0
        %v7009 = vadd.f32 0.0, %v7008
        %v7010 = vpop.f32.mrf.mxu0
        %7011 = vmatprep.mubr.bf16.mxu0 %v6458
        %7012 = vmatmul.mubr.bf16.gmra.mxu0 %v6262
        %v7013 = vpop.f32.mrf.mxu0
        %v7014 = vadd.f32 0.0, %v7013
        %v7015 = vpop.f32.mrf.mxu0
        %v7016 = vpop.f32.mrf.mxu0
        %v7017 = vadd.f32 0.0, %v7016
        %v7018 = vpop.f32.mrf.mxu0
        %7019 = vmatprep.mubr.bf16.mxu0 %v6461
        %7020 = vmatmul.mubr.bf16.gmra.mxu0 %v6265
        %v7021 = vpop.f32.mrf.mxu0
        %v7022 = vadd.f32 0.0, %v7021
        %v7023 = vpop.f32.mrf.mxu0
        %v7024 = vpop.f32.mrf.mxu0
        %v7025 = vadd.f32 0.0, %v7024
        %v7026 = vpop.f32.mrf.mxu0
        %7027 = vmatprep.mubr.bf16.mxu0 %v6464
        %7028 = vmatmul.mubr.bf16.gmra.mxu0 %v6268
        %v7029 = vpop.f32.mrf.mxu0
        %v7030 = vadd.f32 0.0, %v7029
        %v7031 = vpop.f32.mrf.mxu0
        %v7032 = vpop.f32.mrf.mxu0
        %v7033 = vadd.f32 0.0, %v7032
        %v7034 = vpop.f32.mrf.mxu0
        %7035 = vmatprep.mubr.bf16.mxu0 %v6467
        %7036 = vmatmul.mubr.bf16.gmra.mxu0 %v6271
        %v7037 = vpop.f32.mrf.mxu0
        %v7038 = vadd.f32 0.0, %v7037
        %v7039 = vpop.f32.mrf.mxu0
        %v7040 = vpop.f32.mrf.mxu0
        %v7041 = vadd.f32 0.0, %v7040
        %v7042 = vpop.f32.mrf.mxu0
        %7043 = vmatprep.mubr.bf16.mxu0 %v6470
        %7044 = vmatmul.mubr.bf16.gmra.mxu0 %v6274
        %v7045 = vpop.f32.mrf.mxu0
        %v7046 = vadd.f32 0.0, %v7045
        %v7047 = vpop.f32.mrf.mxu0
        %v7048 = vpop.f32.mrf.mxu0
        %v7049 = vadd.f32 0.0, %v7048
        %v7050 = vpop.f32.mrf.mxu0
        %7051 = vmatprep.mubr.bf16.mxu0 %v6473
        %7052 = vmatmul.mubr.bf16.gmra.mxu0 %v6277
        %v7053 = vpop.f32.mrf.mxu0
        %v7054 = vadd.f32 0.0, %v7053
        %v7055 = vpop.f32.mrf.mxu0
        %v7056 = vpop.f32.mrf.mxu0
        %v7057 = vadd.f32 0.0, %v7056
        %v7058 = vpop.f32.mrf.mxu0
        %7059 = vmatprep.mubr.bf16.mxu0 %v6476
        %7060 = vmatmul.mubr.bf16.gmra.mxu0 %v6280
        %v7061 = vpop.f32.mrf.mxu0
        %v7062 = vadd.f32 0.0, %v7061
        %v7063 = vpop.f32.mrf.mxu0
        %v7064 = vpop.f32.mrf.mxu0
        %v7065 = vadd.f32 0.0, %v7064
        %v7066 = vpop.f32.mrf.mxu0
        %7067 = vmatprep.mubr.bf16.mxu0 %v6479
        %7068 = vmatmul.mubr.bf16.gmra.mxu0 %v6283
        %v7069 = vpop.f32.mrf.mxu0
        %v7070 = vadd.f32 0.0, %v7069
        %v7071 = vpop.f32.mrf.mxu0
        %v7072 = vpop.f32.mrf.mxu0
        %v7073 = vadd.f32 0.0, %v7072
        %v7074 = vpop.f32.mrf.mxu0
        %7075 = vmatprep.mubr.bf16.mxu0 %v6482
        %7076 = vmatmul.mubr.bf16.gmra.mxu0 %v6286
        %v7077 = vpop.f32.mrf.mxu0
        %v7078 = vadd.f32 0.0, %v7077
        %v7079 = vpop.f32.mrf.mxu0
        %v7080 = vpop.f32.mrf.mxu0
        %v7081 = vadd.f32 0.0, %v7080
        %v7082 = vpop.f32.mrf.mxu0
        %7083 = vmatprep.mubr.bf16.mxu0 %v6485
        %7084 = vmatmul.mubr.bf16.gmra.mxu0 %v6289
        %v7085 = vpop.f32.mrf.mxu0
        %v7086 = vadd.f32 0.0, %v7085
        %v7087 = vpop.f32.mrf.mxu0
        %v7088 = vpop.f32.mrf.mxu0
        %v7089 = vadd.f32 0.0, %v7088
        %v7090 = vpop.f32.mrf.mxu0
        %7091 = vmatprep.mubr.bf16.mxu0 %v6488
        %7092 = vmatmul.mubr.bf16.gmra.mxu0 %v6292
        %v7093 = vpop.f32.mrf.mxu0
        %v7094 = vadd.f32 0.0, %v7093
        %v7095 = vpop.f32.mrf.mxu0
        %v7096 = vpop.f32.mrf.mxu0
        %v7097 = vadd.f32 0.0, %v7096
        %v7098 = vpop.f32.mrf.mxu0
        %7099 = vmatprep.mubr.bf16.mxu0 %v6491
        %7100 = vmatmul.mubr.bf16.gmra.mxu0 %v6295
        %v7101 = vpop.f32.mrf.mxu0
        %v7102 = vadd.f32 0.0, %v7101
        %v7103 = vpop.f32.mrf.mxu0
        %v7104 = vpop.f32.mrf.mxu0
        %v7105 = vadd.f32 0.0, %v7104
        %v7106 = vpop.f32.mrf.mxu0
        %7107 = vmatprep.mubr.bf16.mxu0 %v6494
        %7108 = vmatmul.mubr.bf16.gmra.mxu0 %v6298
        %v7109 = vpop.f32.mrf.mxu0
        %v7110 = vadd.f32 0.0, %v7109
        %v7111 = vpop.f32.mrf.mxu0
        %v7112 = vpop.f32.mrf.mxu0
        %v7113 = vadd.f32 0.0, %v7112
        %v7114 = vpop.f32.mrf.mxu0
        %7115 = vmatprep.mubr.bf16.mxu0 %v6497
        %7116 = vmatmul.mubr.bf16.gmra.mxu0 %v6301
        %v7117 = vpop.f32.mrf.mxu0
        %v7118 = vadd.f32 0.0, %v7117
        %v7119 = vpop.f32.mrf.mxu0
        %v7120 = vpop.f32.mrf.mxu0
        %v7121 = vadd.f32 0.0, %v7120
        %v7122 = vpop.f32.mrf.mxu0
        %7123 = vmatprep.mubr.bf16.mxu0 %v6969
        %7124 = vmatmul.mubr.bf16.gmra.mxu0 %v6304
        %v7125 = vpop.f32.mrf.mxu0
        %v7126 = vadd.f32 0.0, %v7125
        %v7127 = vpop.f32.mrf.mxu0
        %v7128 = vpop.f32.mrf.mxu0
        %v7129 = vadd.f32 0.0, %v7128
        %v7130 = vpop.f32.mrf.mxu0
        %7131 = vdwg.mxu0
        %v7132 = vadd.f32 %v6770, %v7006
        %v7133 = vadd.f32 %v6773, %v7009
        %v7134 = vadd.f32 %v6778, %v7014
        %v7135 = vadd.f32 %v6781, %v7017
        %v7136 = vadd.f32 %v6786, %v7022
        %v7137 = vadd.f32 %v6789, %v7025
        %v7138 = vadd.f32 %v6794, %v7030
        %v7139 = vadd.f32 %v6797, %v7033
        %v7140 = vadd.f32 %v6802, %v7038
        %v7141 = vadd.f32 %v6805, %v7041
        %v7142 = vadd.f32 %v6810, %v7046
        %v7143 = vadd.f32 %v6813, %v7049
        %v7144 = vadd.f32 %v6818, %v7054
        %v7145 = vadd.f32 %v6821, %v7057
        %v7146 = vadd.f32 %v6826, %v7062
        %v7147 = vadd.f32 %v6829, %v7065
        %v7148 = vadd.f32 %v6834, %v7070
        %v7149 = vadd.f32 %v6837, %v7073
        %v7150 = vadd.f32 %v6842, %v7078
        %v7151 = vadd.f32 %v6845, %v7081
        %v7152 = vadd.f32 %v6850, %v7086
        %v7153 = vadd.f32 %v6853, %v7089
        %v7154 = vadd.f32 %v6858, %v7094
        %v7155 = vadd.f32 %v6861, %v7097
        %v7156 = vadd.f32 %v6866, %v7102
        %v7157 = vadd.f32 %v6869, %v7105
        %v7158 = vadd.f32 %v6874, %v7110
        %v7159 = vadd.f32 %v6877, %v7113
        %v7160 = vadd.f32 %v6882, %v7118
        %v7161 = vadd.f32 %v6885, %v7121
        %v7162 = vadd.f32 %v6890, %v7126
        %v7163 = vadd.f32 %v6893, %v7129
        %s7164 = scalar_lea.vmem %s2, 9
        %v7165 = vld [vmem:[%s7164] sm:$0x1]
        %v7167 = vlaneseq
        %v7168 = vshrl.u32 %v7167, 7
        %v7169 = vsub.s32 0, %v7168
        %v7170 = vrot.slane %v7165, %v7169
        %v7172 = vadd.f32 %v7132, %v7170
        %v7173 = vadd.f32 %v7133, %v7170
        %v7174 = vadd.f32 %v7134, %v7170
        %v7175 = vadd.f32 %v7135, %v7170
        %v7176 = vadd.f32 %v7136, %v7170
        %v7177 = vadd.f32 %v7137, %v7170
        %v7178 = vadd.f32 %v7138, %v7170
        %v7179 = vadd.f32 %v7139, %v7170
        %v7180 = vadd.f32 %v7140, %v7170
        %v7181 = vadd.f32 %v7141, %v7170
        %v7182 = vadd.f32 %v7142, %v7170
        %v7183 = vadd.f32 %v7143, %v7170
        %v7184 = vadd.f32 %v7144, %v7170
        %v7185 = vadd.f32 %v7145, %v7170
        %v7186 = vadd.f32 %v7146, %v7170
        %v7187 = vadd.f32 %v7147, %v7170
        %v7188 = vadd.f32 %v7148, %v7170
        %v7189 = vadd.f32 %v7149, %v7170
        %v7190 = vadd.f32 %v7150, %v7170
        %v7191 = vadd.f32 %v7151, %v7170
        %v7192 = vadd.f32 %v7152, %v7170
        %v7193 = vadd.f32 %v7153, %v7170
        %v7194 = vadd.f32 %v7154, %v7170
        %v7195 = vadd.f32 %v7155, %v7170
        %v7196 = vadd.f32 %v7156, %v7170
        %v7197 = vadd.f32 %v7157, %v7170
        %v7198 = vadd.f32 %v7158, %v7170
        %v7199 = vadd.f32 %v7159, %v7170
        %v7200 = vadd.f32 %v7160, %v7170
        %v7201 = vadd.f32 %v7161, %v7170
        %v7202 = vadd.f32 %v7162, %v7170
        %v7203 = vadd.f32 %v7163, %v7170
        %7204 = vst.msk [vmem:[%s163] sm:$0xff] %vm281, %v7172
        %7205 = vst.msk [vmem:[%s163 + $0x8] sm:$0xff] %vm281, %v7173
        %7206 = vst.msk [vmem:[%s163 + $0x10] sm:$0xff] %vm281, %v7174
        %7207 = vst.msk [vmem:[%s163 + $0x18] sm:$0xff] %vm281, %v7175
        %7208 = vst.msk [vmem:[%s163 + $0x20] sm:$0xff] %vm281, %v7176
        %7209 = vst.msk [vmem:[%s163 + $0x28] sm:$0xff] %vm281, %v7177
        %7210 = vst.msk [vmem:[%s163 + $0x30] sm:$0xff] %vm281, %v7178
        %7211 = vst.msk [vmem:[%s163 + $0x38] sm:$0xff] %vm281, %v7179
        %7212 = vst.msk [vmem:[%s163 + $0x40] sm:$0xff] %vm281, %v7180
        %7213 = vst.msk [vmem:[%s163 + $0x48] sm:$0xff] %vm281, %v7181
        %7214 = vst.msk [vmem:[%s163 + $0x50] sm:$0xff] %vm281, %v7182
        %7215 = vst.msk [vmem:[%s163 + $0x58] sm:$0xff] %vm281, %v7183
        %7216 = vst.msk [vmem:[%s163 + $0x60] sm:$0xff] %vm281, %v7184
        %7217 = vst.msk [vmem:[%s163 + $0x68] sm:$0xff] %vm281, %v7185
        %7218 = vst.msk [vmem:[%s163 + $0x70] sm:$0xff] %vm281, %v7186
        %7219 = vst.msk [vmem:[%s163 + $0x78] sm:$0xff] %vm281, %v7187
        %7220 = vst.msk [vmem:[%s163 + $0x80] sm:$0xff] %vm281, %v7188
        %7221 = vst.msk [vmem:[%s163 + $0x88] sm:$0xff] %vm281, %v7189
        %7222 = vst.msk [vmem:[%s163 + $0x90] sm:$0xff] %vm281, %v7190
        %7223 = vst.msk [vmem:[%s163 + $0x98] sm:$0xff] %vm281, %v7191
        %7224 = vst.msk [vmem:[%s163 + $0xa0] sm:$0xff] %vm281, %v7192
        %7225 = vst.msk [vmem:[%s163 + $0xa8] sm:$0xff] %vm281, %v7193
        %7226 = vst.msk [vmem:[%s163 + $0xb0] sm:$0xff] %vm281, %v7194
        %7227 = vst.msk [vmem:[%s163 + $0xb8] sm:$0xff] %vm281, %v7195
        %7228 = vst.msk [vmem:[%s163 + $0xc0] sm:$0xff] %vm281, %v7196
        %7229 = vst.msk [vmem:[%s163 + $0xc8] sm:$0xff] %vm281, %v7197
        %7230 = vst.msk [vmem:[%s163 + $0xd0] sm:$0xff] %vm281, %v7198
        %7231 = vst.msk [vmem:[%s163 + $0xd8] sm:$0xff] %vm281, %v7199
        %7232 = vst.msk [vmem:[%s163 + $0xe0] sm:$0xff] %vm281, %v7200
        %7233 = vst.msk [vmem:[%s163 + $0xe8] sm:$0xff] %vm281, %v7201
        %7234 = vst.msk [vmem:[%s163 + $0xf0] sm:$0xff] %vm281, %v7202
        %7235 = vst.msk [vmem:[%s163 + $0xf8] sm:$0xff] %vm281, %v7203
        %s7236 = sand.u32 %s93, 1
        %s7237 = scalar_lea.sflag [#allocation5], %s7236
        %s7238 = sand.u32 %s93, 1
        %s7239 = smul.addr %s7238, 256
        %s7240 = scalar_lea.vmem [#allocation4], %s7239
        // Predicated region
        $region40: #{flow_ref_net_forward.1} parent=31 // pred_check
          %p7241 = pneg %p103
        $region41: #{flow_ref_net_forward.1} parent=31 // pred_check_branch
          %7243 = sbr.rel (%p7241) target = $region43
        $region42: #{flow_ref_net_forward.1} parent=31 // pred_region
          %s7245 = ssub.s32 4096, 4096
          %7246 = vsyncadd %s7237, %s7245
          %s7247 = smul.addr %s17, 32
          %s7248 = smul.addr %s7247, 128
          %s7249 = scalar_lea.hbm %s3, %s7248
          %s7250 = sshll.u32 %s7240, 4
          %s7251 = int_to_ptr.vmem [resolvable:$true] %s7250
          %7256 = dma.vmem_to_hbm [thread:$0]  %s7251, 4096, %s7249, %s7237, 128, 128, 8
        $region43: #{flow_ref_net_forward.1} parent=31 // pred_fallthru
          _
      $region32: #{flow_ref_net_forward.1} parent=5 // pred_fallthru
        _
      %p7257 = scmp.le.s32.totalorder 2, %s12
      // Predicated region
      $region44: #{flow_ref_net_forward.1} parent=5 // pred_check
        %p7258 = pneg %p7257
      $region45: #{flow_ref_net_forward.1} parent=5 // pred_check_branch
        %7260 = sbr.rel (%p7258) target = $region47
      $region46: #{flow_ref_net_forward.1} parent=5 // pred_region
        %s7261 = ssub.s32 %s12, 2
        // Predicated region
        $region48: #{flow_ref_net_forward.1} parent=46 // pred_check
          %p7262 = pneg %p109
        $region49: #{flow_ref_net_forward.1} parent=46 // pred_check_branch
          %7264 = sbr.rel (%p7262) target = $region51
        $region50: #{flow_ref_net_forward.1} parent=46 // pred_region
          %s7265 = sand.u32 %s94, 1
          %s7266 = scalar_lea.sflag [#allocation5], %s7265
          %s7267 = sand.u32 %s94, 1
          %s7268 = smul.addr %s7267, 256
          %s7269 = scalar_lea.vmem [#allocation4], %s7268
          %7270 = dma.done %s7266, 4096
        $region51: #{flow_ref_net_forward.1} parent=46 // pred_fallthru
          _
      $region47: #{flow_ref_net_forward.1} parent=5 // pred_fallthru
        _
    $region6: #{flow_ref_net_forward.1} parent=1 // loop_footer
      %s16 = sadd.s32 1, %s12
    $region7: #{flow_ref_net_forward.1} parent=1 // loop_footer_branch
      %11 = sbr.rel target = $region3
    $region8: #{flow_ref_net_forward.1} parent=1 // loop_exit
      _
    %7271 = vsyncpa [#allocation5], 1
    %s7272 = scalar_lea.sflag [#allocation5], 1
    %7273 = vsyncpa %s7272, 1

</llo_original>
